<compile_context>
chip_gen: v6e
topology: v6e:2x2x1
jax: 0.10.0
libtpu: 0.0.40
codegen_flags: <defaults>
</compile_context>

<pallas_src>
import jax
import jax.numpy as jnp
from jax.experimental import pallas as pl
from jax.experimental.pallas import tpu as pltpu

ROWS, COLS = 1024, 4096          # hardcoded reshape target in the PyTorch module
BLOCK_ROWS = 256                 # 256 x 4096 f32 = 4 MiB per input tile, grid of 4


def _scale_cast_kernel(x_ref, o_ref):
    # y = x * 0.5 ; cast float -> int8 (truncation toward zero for in-range
    # values, matching torch's CharTensor cast). x**2 from the module is dead
    # code and intentionally not emitted.
    o_ref[...] = (x_ref[...] * 0.5).astype(jnp.int8)


def reshape_casting_forward(x):
    """x: any float32 array with 1024*4096 elements (row-major).

    Returns int8 array of shape (1024, 4096).
    """
    # Pure-metadata reshape for a row-major input. If x could arrive with a
    # transposed/non-row-major layout, tile the original shape directly in the
    # BlockSpec instead to avoid a hidden HBM->HBM copy.
    x2 = jnp.reshape(x, (ROWS, COLS))

    grid = (ROWS // BLOCK_ROWS,)
    n_elems = ROWS * COLS
    cost = pl.CostEstimate(
        flops=n_elems,                          # one multiply per element
        transcendentals=0,
        bytes_accessed=n_elems * 4 + n_elems,   # f32 read + int8 write
    )

    return pl.pallas_call(
        _scale_cast_kernel,
        out_shape=jax.ShapeDtypeStruct((ROWS, COLS), jnp.int8),
        grid_spec=pltpu.PrefetchScalarGridSpec(
            num_scalar_prefetch=0,
            grid=grid,
            in_specs=[pl.BlockSpec((BLOCK_ROWS, COLS), lambda i: (i, 0))],
            out_specs=pl.BlockSpec((BLOCK_ROWS, COLS), lambda i: (i, 0)),
        ),
        compiler_params=pltpu.CompilerParams(
            dimension_semantics=("parallel",),
            # 10 MiB of double buffers fits every generation's default scoped
            # VMEM limit (v5e/v6e 16/32 MiB, v7x 32 MiB) — no override needed.
            allow_input_fusion=[True],
        ),
        cost_estimate=cost,
    )(x2)


if __name__ == "__main__":
    key = jax.random.PRNGKey(0)
    # The reshape target (1024, 4096) is fixed in the module, so the input must
    # contain exactly 1024*4096 elements. Scale so the int8 cast produces
    # non-trivial values while staying comfortably inside int8 range after *0.5.
    x = jax.random.normal(key, (ROWS, COLS), dtype=jnp.float32) * 20.0

    out = reshape_casting_forward(x)
    out = jax.block_until_ready(out)

    # Reference check (pure JAX, same truncation-toward-zero semantics).
    ref = (jnp.reshape(x, (ROWS, COLS)) * 0.5).astype(jnp.int8)
    assert out.shape == (ROWS, COLS) and out.dtype == jnp.int8
    assert bool(jnp.all(out == ref))

    print("KERNEL_OK")
</pallas_src>

<mosaic_0001>
module attributes {stable_mosaic.version = 11 : i64} {
  func.func @_scale_cast_kernel(%arg0: i32, %arg1: memref<256x4096xf32, #tpu.memory_space<vmem>>, %arg2: memref<256x4096xi8, #tpu.memory_space<vmem>>) attributes {dimension_semantics = [#tpu.dimension_semantics<parallel>], iteration_bounds = array<i64: 4>, scalar_prefetch = 0 : i64, scratch_operands = 0 : i64, tpu.core_type = #tpu.core_type<tc>, window_params = [{transform_indices = @transform_0, window_bounds = array<i64: 256, 4096>}, {transform_indices = @transform_1, window_bounds = array<i64: 256, 4096>}]} {
    %c0 = arith.constant 0 : index
    %c0_0 = arith.constant 0 : index
    %0 = vector.load %arg1[%c0, %c0_0] : memref<256x4096xf32, #tpu.memory_space<vmem>>, vector<256x4096xf32>
    %cst = arith.constant 5.000000e-01 : f32
    %1 = vector.broadcast %cst : f32 to vector<256x4096xf32>
    %2 = arith.mulf %0, %1 : vector<256x4096xf32>
    %3 = arith.fptosi %2 : vector<256x4096xf32> to vector<256x4096xi8>
    %c0_1 = arith.constant 0 : index
    %c0_2 = arith.constant 0 : index
    %4 = vector.load %arg2[%c0_1, %c0_2] : memref<256x4096xi8, #tpu.memory_space<vmem>>, vector<256x4096xi8>
    tpu.vector_store %arg2[%c0_1, %c0_2], %3 {strides = array<i32>} : memref<256x4096xi8, #tpu.memory_space<vmem>>, vector<256x4096xi8>,
    return
  }
  func.func @transform_0(%arg0: i32) -> (i32, i32) {
    %c0_i32 = arith.constant 0 : i32
    %c0_i32_0 = arith.constant 0 : i32
    return %arg0, %c0_i32 : i32, i32
  }
  func.func @transform_1(%arg0: i32) -> (i32, i32) {
    %c0_i32 = arith.constant 0 : i32
    %c0_i32_0 = arith.constant 0 : i32
    return %arg0, %c0_i32 : i32, i32
  }
}

</mosaic_0001>

<llo_original>
// kernel: tpu_custom_call.1
$region0: #{tpu_custom_call.1}
  #allocation0 [shape = 'u32[]', space=smem, size = 0x4, offset = 0x4, fixed_abs, tag = 'smem constant byte address 0x4 - core index']
  #allocation1 [shape = 'u32[144,128]{1,0:T(1,128)}', space=vmem, size = 0x12000, scoped, tag = 'internal scratch']
  %s0 = inlined_call_operand.hbm [shape: f32[1024,4096], index: 0, kind: input, shape index: {}]
  %s1 = inlined_call_operand.hbm [shape: s8[1024,4096], index: 1, kind: output, shape index: {}]
  %s2 = sld [smem:[#allocation0]]
  $region41: #{tpu_custom_call.1} parent=0
    _
  %s4 = ssub.s32 1, %s2
  %s5 = scalar_select 0, %s4, %s2
  $region1: #{tpu_custom_call.1} parent=0
    #allocation2 [shape = 'u8[8388608]{0}', space=vmem, size = 0x800000, scoped, tag = 'input window, operand 0']
    #allocation3 [shape = 's32[2]{0}', space=sflag, size = 0x8, scoped, tag = 'scoped memory for tpu_custom_call.1']
    #allocation4 [shape = 's32[2]{0}', space=sflag, size = 0x8, scoped, tag = 'scoped memory for tpu_custom_call.1']
    #allocation5 [shape = 'u8[2097152]{0}', space=vmem, size = 0x200000, scoped, tag = 'output window, operand 0']
    %6 = vsyncpa [#allocation3], 0
    %s7 = scalar_lea.sflag [#allocation3], 1
    %8 = vsyncpa %s7, 0
    %9 = vsyncpa [#allocation4], 0
    %s10 = scalar_lea.sflag [#allocation4], 1
    %11 = vsyncpa %s10, 0
    loop: start=0, step=1, limit=6
    $region2: #{tpu_custom_call.1} parent=1 // loop_pre_header
      _
    $region3: #{tpu_custom_call.1} parent=1 // loop_header
      %s13 = sphi 0, %s17
      %p14 = scmp.ge.s32.totalorder %s13, 6
      %s23 = sphi 0, %s25
      %s26 = sphi 0, %s23
      %s27 = sphi 0, %s26
      %s43 = sphi 0, %s27
      %s49 = sphi 0, %s51
      %s52 = sphi 0, %s49
      %s53 = sphi 0, %s52
      %s69 = sphi 0, %s53
    $region4: #{tpu_custom_call.1} parent=1 // loop_header_branch
      %16 = sbr.rel (%p14) target = $region8
    $region5: #{tpu_custom_call.1} parent=1 // loop_body
      %s18 = ssub.s32 %s13, 1
      %s19 = ssub.s32 %s13, 2
      %s20 = sadd.s32 %s13, 1
      %s21 = ssub.s32 %s13, %s20
      %p22 = scmp.eq.s32.totalorder %s21, 0
      %s24 = sadd.s32 %s23, 1
      %s25 = scalar_select %p22, %s23, %s24
      %p28 = pneg %p22
      %p29 = scmp.eq.s32.totalorder %s13, 3
      %p30 = por %p28, %p29
      %p31 = scmp.ne.s32.totalorder %s23, %s26
      %p32 = scmp.eq.s32.totalorder %s13, 0
      %p33 = por %p31, %p32
      %p34 = scmp.ne.s32.totalorder %s23, %s26
      %p35 = scmp.eq.s32.totalorder %s18, 3
      %p36 = por %p34, %p35
      %p37 = scmp.ne.s32.totalorder %s26, %s27
      %p38 = scmp.eq.s32.totalorder %s18, 0
      %p39 = por %p37, %p38
      %p40 = scmp.ne.s32.totalorder %s26, %s27
      %p41 = scmp.eq.s32.totalorder %s19, 3
      %p42 = por %p40, %p41
      %p44 = scmp.ne.s32.totalorder %s27, %s43
      %p45 = scmp.eq.s32.totalorder %s19, 0
      %p46 = por %p44, %p45
      %s47 = ssub.s32 %s13, %s20
      %p48 = scmp.eq.s32.totalorder %s47, 0
      %s50 = sadd.s32 %s49, 1
      %s51 = scalar_select %p48, %s49, %s50
      %p54 = pneg %p48
      %p55 = scmp.eq.s32.totalorder %s13, 3
      %p56 = por %p54, %p55
      %p57 = scmp.ne.s32.totalorder %s49, %s52
      %p58 = scmp.eq.s32.totalorder %s13, 0
      %p59 = por %p57, %p58
      %p60 = scmp.ne.s32.totalorder %s49, %s52
      %p61 = scmp.eq.s32.totalorder %s18, 3
      %p62 = por %p60, %p61
      %p63 = scmp.ne.s32.totalorder %s52, %s53
      %p64 = scmp.eq.s32.totalorder %s18, 0
      %p65 = por %p63, %p64
      %p66 = scmp.ne.s32.totalorder %s52, %s53
      %p67 = scmp.eq.s32.totalorder %s19, 3
      %p68 = por %p66, %p67
      %p70 = scmp.ne.s32.totalorder %s53, %s69
      %p71 = scmp.eq.s32.totalorder %s19, 0
      %p72 = por %p70, %p71
      %p73 = scmp.le.s32.totalorder 1, %s13
      %p74 = scmp.lt.s32.totalorder %s13, 5
      %p75 = pnand %p73, %p74
      %p76 = pneg %p75
      // Predicated region
      $region9: #{tpu_custom_call.1} parent=5 // pred_check
        _
      $region10: #{tpu_custom_call.1} parent=5 // pred_check_branch
        %78 = sbr.rel (%p75) target = $region12
      $region11: #{tpu_custom_call.1} parent=5 // pred_region
        %s79 = ssub.s32 %s13, 1
      $region12: #{tpu_custom_call.1} parent=5 // pred_fallthru
        _
      %p80 = scmp.lt.s32.totalorder %s13, 4
      // Predicated region
      $region13: #{tpu_custom_call.1} parent=5 // pred_check
        %p81 = pneg %p80
      $region14: #{tpu_custom_call.1} parent=5 // pred_check_branch
        %83 = sbr.rel (%p81) target = $region16
      $region15: #{tpu_custom_call.1} parent=5 // pred_region
        // Predicated region
        $region17: #{tpu_custom_call.1} parent=15 // pred_check
          %p84 = pneg %p33
        $region18: #{tpu_custom_call.1} parent=15 // pred_check_branch
          %86 = sbr.rel (%p84) target = $region20
        $region19: #{tpu_custom_call.1} parent=15 // pred_region
          %s87 = sand.u32 %s23, 1
          %s88 = scalar_lea.sflag [#allocation3], %s87
          %s89 = sand.u32 %s23, 1
          %s90 = smul.addr %s89, 8192
          %s91 = scalar_lea.vmem [#allocation2], %s90
          %s92 = smul.u32 32, %s13
          %s94 = ssub.s32 131072, 131072
          %95 = vsyncadd %s88, %s94
          %s96 = smul.addr %s92, 32
          %s97 = smul.addr %s96, 128
          %s98 = scalar_lea.hbm %s0, %s97
          %s99 = sshll.u32 %s91, 4
          %s100 = int_to_ptr.vmem [resolvable:$true] %s99
          %105 = dma.hbm_to_vmem [thread:$0]  %s98, 131072, %s100, %s88, 4096, 4096, 256
        $region20: #{tpu_custom_call.1} parent=15 // pred_fallthru
          _
      $region16: #{tpu_custom_call.1} parent=5 // pred_fallthru
        _
      %p106 = scmp.le.s32.totalorder 1, %s13
      %p107 = scmp.lt.s32.totalorder %s13, 5
      %p108 = pnand %p106, %p107
      %p109 = pneg %p108
      // Predicated region
      $region21: #{tpu_custom_call.1} parent=5 // pred_check
        _
      $region22: #{tpu_custom_call.1} parent=5 // pred_check_branch
        %111 = sbr.rel (%p108) target = $region24
      $region23: #{tpu_custom_call.1} parent=5 // pred_region
        %s112 = ssub.s32 %s13, 1
        %s113 = sand.u32 %s26, 1
        %s114 = scalar_lea.sflag [#allocation3], %s113
        %s115 = sand.u32 %s26, 1
        %s116 = smul.addr %s115, 8192
        %s117 = scalar_lea.vmem [#allocation2], %s116
        // Predicated region
        $region25: #{tpu_custom_call.1} parent=23 // pred_check
          %p118 = pneg %p39
        $region26: #{tpu_custom_call.1} parent=23 // pred_check_branch
          %120 = sbr.rel (%p118) target = $region28
        $region27: #{tpu_custom_call.1} parent=23 // pred_region
          %121 = dma.done %s114, 131072
        $region28: #{tpu_custom_call.1} parent=23 // pred_fallthru
          _
        %s122 = sand.u32 %s26, 1
        %s123 = scalar_lea.sflag [#allocation3], %s122
        %s124 = sand.u32 %s26, 1
        %s125 = smul.addr %s124, 8192
        %s126 = scalar_lea.vmem [#allocation2], %s125
        %p127 = pneg %p39
        %p128 = pneg %p36
        %p129 = pneg %p65
        %p130 = pneg %p62
        %s131 = sand.u32 %s52, 1
        %s132 = scalar_lea.sflag [#allocation4], %s131
        %s133 = sand.u32 %s52, 1
        %s134 = smul.addr %s133, 2048
        %s135 = scalar_lea.vmem [#allocation5], %s134
        %s136 = smul.u32 32, %s18
        %s137 = smul.u32 8, %s18
        %v138 = vld [vmem:[%s117] sm:$0xff]
        %v139 = vld [vmem:[%s117 + $0x8] sm:$0xff]
        %v140 = vld [vmem:[%s117 + $0x10] sm:$0xff]
        %v141 = vld [vmem:[%s117 + $0x18] sm:$0xff]
        %v142 = vld [vmem:[%s117 + $0x20] sm:$0xff]
        %v143 = vld [vmem:[%s117 + $0x28] sm:$0xff]
        %v144 = vld [vmem:[%s117 + $0x30] sm:$0xff]
        %v145 = vld [vmem:[%s117 + $0x38] sm:$0xff]
        %v146 = vld [vmem:[%s117 + $0x40] sm:$0xff]
        %v147 = vld [vmem:[%s117 + $0x48] sm:$0xff]
        %v148 = vld [vmem:[%s117 + $0x50] sm:$0xff]
        %v149 = vld [vmem:[%s117 + $0x58] sm:$0xff]
        %v150 = vld [vmem:[%s117 + $0x60] sm:$0xff]
        %v151 = vld [vmem:[%s117 + $0x68] sm:$0xff]
        %v152 = vld [vmem:[%s117 + $0x70] sm:$0xff]
        %v153 = vld [vmem:[%s117 + $0x78] sm:$0xff]
        %v154 = vld [vmem:[%s117 + $0x80] sm:$0xff]
        %v155 = vld [vmem:[%s117 + $0x88] sm:$0xff]
        %v156 = vld [vmem:[%s117 + $0x90] sm:$0xff]
        %v157 = vld [vmem:[%s117 + $0x98] sm:$0xff]
        %v158 = vld [vmem:[%s117 + $0xa0] sm:$0xff]
        %v159 = vld [vmem:[%s117 + $0xa8] sm:$0xff]
        %v160 = vld [vmem:[%s117 + $0xb0] sm:$0xff]
        %v161 = vld [vmem:[%s117 + $0xb8] sm:$0xff]
        %v162 = vld [vmem:[%s117 + $0xc0] sm:$0xff]
        %v163 = vld [vmem:[%s117 + $0xc8] sm:$0xff]
        %v164 = vld [vmem:[%s117 + $0xd0] sm:$0xff]
        %v165 = vld [vmem:[%s117 + $0xd8] sm:$0xff]
        %v166 = vld [vmem:[%s117 + $0xe0] sm:$0xff]
        %v167 = vld [vmem:[%s117 + $0xe8] sm:$0xff]
        %v168 = vld [vmem:[%s117 + $0xf0] sm:$0xff]
        %v169 = vld [vmem:[%s117 + $0xf8] sm:$0xff]
        %v170 = vld [vmem:[%s117 + $0x100] sm:$0xff]
        %v171 = vld [vmem:[%s117 + $0x108] sm:$0xff]
        %v172 = vld [vmem:[%s117 + $0x110] sm:$0xff]
        %v173 = vld [vmem:[%s117 + $0x118] sm:$0xff]
        %v174 = vld [vmem:[%s117 + $0x120] sm:$0xff]
        %v175 = vld [vmem:[%s117 + $0x128] sm:$0xff]
        %v176 = vld [vmem:[%s117 + $0x130] sm:$0xff]
        %v177 = vld [vmem:[%s117 + $0x138] sm:$0xff]
        %v178 = vld [vmem:[%s117 + $0x140] sm:$0xff]
        %v179 = vld [vmem:[%s117 + $0x148] sm:$0xff]
        %v180 = vld [vmem:[%s117 + $0x150] sm:$0xff]
        %v181 = vld [vmem:[%s117 + $0x158] sm:$0xff]
        %v182 = vld [vmem:[%s117 + $0x160] sm:$0xff]
        %v183 = vld [vmem:[%s117 + $0x168] sm:$0xff]
        %v184 = vld [vmem:[%s117 + $0x170] sm:$0xff]
        %v185 = vld [vmem:[%s117 + $0x178] sm:$0xff]
        %v186 = vld [vmem:[%s117 + $0x180] sm:$0xff]
        %v187 = vld [vmem:[%s117 + $0x188] sm:$0xff]
        %v188 = vld [vmem:[%s117 + $0x190] sm:$0xff]
        %v189 = vld [vmem:[%s117 + $0x198] sm:$0xff]
        %v190 = vld [vmem:[%s117 + $0x1a0] sm:$0xff]
        %v191 = vld [vmem:[%s117 + $0x1a8] sm:$0xff]
        %v192 = vld [vmem:[%s117 + $0x1b0] sm:$0xff]
        %v193 = vld [vmem:[%s117 + $0x1b8] sm:$0xff]
        %v194 = vld [vmem:[%s117 + $0x1c0] sm:$0xff]
        %v195 = vld [vmem:[%s117 + $0x1c8] sm:$0xff]
        %v196 = vld [vmem:[%s117 + $0x1d0] sm:$0xff]
        %v197 = vld [vmem:[%s117 + $0x1d8] sm:$0xff]
        %v198 = vld [vmem:[%s117 + $0x1e0] sm:$0xff]
        %v199 = vld [vmem:[%s117 + $0x1e8] sm:$0xff]
        %v200 = vld [vmem:[%s117 + $0x1f0] sm:$0xff]
        %v201 = vld [vmem:[%s117 + $0x1f8] sm:$0xff]
        %v202 = vld [vmem:[%s117 + $0x200] sm:$0xff]
        %v203 = vld [vmem:[%s117 + $0x208] sm:$0xff]
        %v204 = vld [vmem:[%s117 + $0x210] sm:$0xff]
        %v205 = vld [vmem:[%s117 + $0x218] sm:$0xff]
        %v206 = vld [vmem:[%s117 + $0x220] sm:$0xff]
        %v207 = vld [vmem:[%s117 + $0x228] sm:$0xff]
        %v208 = vld [vmem:[%s117 + $0x230] sm:$0xff]
        %v209 = vld [vmem:[%s117 + $0x238] sm:$0xff]
        %v210 = vld [vmem:[%s117 + $0x240] sm:$0xff]
        %v211 = vld [vmem:[%s117 + $0x248] sm:$0xff]
        %v212 = vld [vmem:[%s117 + $0x250] sm:$0xff]
        %v213 = vld [vmem:[%s117 + $0x258] sm:$0xff]
        %v214 = vld [vmem:[%s117 + $0x260] sm:$0xff]
        %v215 = vld [vmem:[%s117 + $0x268] sm:$0xff]
        %v216 = vld [vmem:[%s117 + $0x270] sm:$0xff]
        %v217 = vld [vmem:[%s117 + $0x278] sm:$0xff]
        %v218 = vld [vmem:[%s117 + $0x280] sm:$0xff]
        %v219 = vld [vmem:[%s117 + $0x288] sm:$0xff]
        %v220 = vld [vmem:[%s117 + $0x290] sm:$0xff]
        %v221 = vld [vmem:[%s117 + $0x298] sm:$0xff]
        %v222 = vld [vmem:[%s117 + $0x2a0] sm:$0xff]
        %v223 = vld [vmem:[%s117 + $0x2a8] sm:$0xff]
        %v224 = vld [vmem:[%s117 + $0x2b0] sm:$0xff]
        %v225 = vld [vmem:[%s117 + $0x2b8] sm:$0xff]
        %v226 = vld [vmem:[%s117 + $0x2c0] sm:$0xff]
        %v227 = vld [vmem:[%s117 + $0x2c8] sm:$0xff]
        %v228 = vld [vmem:[%s117 + $0x2d0] sm:$0xff]
        %v229 = vld [vmem:[%s117 + $0x2d8] sm:$0xff]
        %v230 = vld [vmem:[%s117 + $0x2e0] sm:$0xff]
        %v231 = vld [vmem:[%s117 + $0x2e8] sm:$0xff]
        %v232 = vld [vmem:[%s117 + $0x2f0] sm:$0xff]
        %v233 = vld [vmem:[%s117 + $0x2f8] sm:$0xff]
        %v234 = vld [vmem:[%s117 + $0x300] sm:$0xff]
        %v235 = vld [vmem:[%s117 + $0x308] sm:$0xff]
        %v236 = vld [vmem:[%s117 + $0x310] sm:$0xff]
        %v237 = vld [vmem:[%s117 + $0x318] sm:$0xff]
        %v238 = vld [vmem:[%s117 + $0x320] sm:$0xff]
        %v239 = vld [vmem:[%s117 + $0x328] sm:$0xff]
        %v240 = vld [vmem:[%s117 + $0x330] sm:$0xff]
        %v241 = vld [vmem:[%s117 + $0x338] sm:$0xff]
        %v242 = vld [vmem:[%s117 + $0x340] sm:$0xff]
        %v243 = vld [vmem:[%s117 + $0x348] sm:$0xff]
        %v244 = vld [vmem:[%s117 + $0x350] sm:$0xff]
        %v245 = vld [vmem:[%s117 + $0x358] sm:$0xff]
        %v246 = vld [vmem:[%s117 + $0x360] sm:$0xff]
        %v247 = vld [vmem:[%s117 + $0x368] sm:$0xff]
        %v248 = vld [vmem:[%s117 + $0x370] sm:$0xff]
        %v249 = vld [vmem:[%s117 + $0x378] sm:$0xff]
        %v250 = vld [vmem:[%s117 + $0x380] sm:$0xff]
        %v251 = vld [vmem:[%s117 + $0x388] sm:$0xff]
        %v252 = vld [vmem:[%s117 + $0x390] sm:$0xff]
        %v253 = vld [vmem:[%s117 + $0x398] sm:$0xff]
        %v254 = vld [vmem:[%s117 + $0x3a0] sm:$0xff]
        %v255 = vld [vmem:[%s117 + $0x3a8] sm:$0xff]
        %v256 = vld [vmem:[%s117 + $0x3b0] sm:$0xff]
        %v257 = vld [vmem:[%s117 + $0x3b8] sm:$0xff]
        %v258 = vld [vmem:[%s117 + $0x3c0] sm:$0xff]
        %v259 = vld [vmem:[%s117 + $0x3c8] sm:$0xff]
        %v260 = vld [vmem:[%s117 + $0x3d0] sm:$0xff]
        %v261 = vld [vmem:[%s117 + $0x3d8] sm:$0xff]
        %v262 = vld [vmem:[%s117 + $0x3e0] sm:$0xff]
        %v263 = vld [vmem:[%s117 + $0x3e8] sm:$0xff]
        %v264 = vld [vmem:[%s117 + $0x3f0] sm:$0xff]
        %v265 = vld [vmem:[%s117 + $0x3f8] sm:$0xff]
        %v266 = vld [vmem:[%s117 + $0x400] sm:$0xff]
        %v267 = vld [vmem:[%s117 + $0x408] sm:$0xff]
        %v268 = vld [vmem:[%s117 + $0x410] sm:$0xff]
        %v269 = vld [vmem:[%s117 + $0x418] sm:$0xff]
        %v270 = vld [vmem:[%s117 + $0x420] sm:$0xff]
        %v271 = vld [vmem:[%s117 + $0x428] sm:$0xff]
        %v272 = vld [vmem:[%s117 + $0x430] sm:$0xff]
        %v273 = vld [vmem:[%s117 + $0x438] sm:$0xff]
        %v274 = vld [vmem:[%s117 + $0x440] sm:$0xff]
        %v275 = vld [vmem:[%s117 + $0x448] sm:$0xff]
        %v276 = vld [vmem:[%s117 + $0x450] sm:$0xff]
        %v277 = vld [vmem:[%s117 + $0x458] sm:$0xff]
        %v278 = vld [vmem:[%s117 + $0x460] sm:$0xff]
        %v279 = vld [vmem:[%s117 + $0x468] sm:$0xff]
        %v280 = vld [vmem:[%s117 + $0x470] sm:$0xff]
        %v281 = vld [vmem:[%s117 + $0x478] sm:$0xff]
        %v282 = vld [vmem:[%s117 + $0x480] sm:$0xff]
        %v283 = vld [vmem:[%s117 + $0x488] sm:$0xff]
        %v284 = vld [vmem:[%s117 + $0x490] sm:$0xff]
        %v285 = vld [vmem:[%s117 + $0x498] sm:$0xff]
        %v286 = vld [vmem:[%s117 + $0x4a0] sm:$0xff]
        %v287 = vld [vmem:[%s117 + $0x4a8] sm:$0xff]
        %v288 = vld [vmem:[%s117 + $0x4b0] sm:$0xff]
        %v289 = vld [vmem:[%s117 + $0x4b8] sm:$0xff]
        %v290 = vld [vmem:[%s117 + $0x4c0] sm:$0xff]
        %v291 = vld [vmem:[%s117 + $0x4c8] sm:$0xff]
        %v292 = vld [vmem:[%s117 + $0x4d0] sm:$0xff]
        %v293 = vld [vmem:[%s117 + $0x4d8] sm:$0xff]
        %v294 = vld [vmem:[%s117 + $0x4e0] sm:$0xff]
        %v295 = vld [vmem:[%s117 + $0x4e8] sm:$0xff]
        %v296 = vld [vmem:[%s117 + $0x4f0] sm:$0xff]
        %v297 = vld [vmem:[%s117 + $0x4f8] sm:$0xff]
        %v298 = vld [vmem:[%s117 + $0x500] sm:$0xff]
        %v299 = vld [vmem:[%s117 + $0x508] sm:$0xff]
        %v300 = vld [vmem:[%s117 + $0x510] sm:$0xff]
        %v301 = vld [vmem:[%s117 + $0x518] sm:$0xff]
        %v302 = vld [vmem:[%s117 + $0x520] sm:$0xff]
        %v303 = vld [vmem:[%s117 + $0x528] sm:$0xff]
        %v304 = vld [vmem:[%s117 + $0x530] sm:$0xff]
        %v305 = vld [vmem:[%s117 + $0x538] sm:$0xff]
        %v306 = vld [vmem:[%s117 + $0x540] sm:$0xff]
        %v307 = vld [vmem:[%s117 + $0x548] sm:$0xff]
        %v308 = vld [vmem:[%s117 + $0x550] sm:$0xff]
        %v309 = vld [vmem:[%s117 + $0x558] sm:$0xff]
        %v310 = vld [vmem:[%s117 + $0x560] sm:$0xff]
        %v311 = vld [vmem:[%s117 + $0x568] sm:$0xff]
        %v312 = vld [vmem:[%s117 + $0x570] sm:$0xff]
        %v313 = vld [vmem:[%s117 + $0x578] sm:$0xff]
        %v314 = vld [vmem:[%s117 + $0x580] sm:$0xff]
        %v315 = vld [vmem:[%s117 + $0x588] sm:$0xff]
        %v316 = vld [vmem:[%s117 + $0x590] sm:$0xff]
        %v317 = vld [vmem:[%s117 + $0x598] sm:$0xff]
        %v318 = vld [vmem:[%s117 + $0x5a0] sm:$0xff]
        %v319 = vld [vmem:[%s117 + $0x5a8] sm:$0xff]
        %v320 = vld [vmem:[%s117 + $0x5b0] sm:$0xff]
        %v321 = vld [vmem:[%s117 + $0x5b8] sm:$0xff]
        %v322 = vld [vmem:[%s117 + $0x5c0] sm:$0xff]
        %v323 = vld [vmem:[%s117 + $0x5c8] sm:$0xff]
        %v324 = vld [vmem:[%s117 + $0x5d0] sm:$0xff]
        %v325 = vld [vmem:[%s117 + $0x5d8] sm:$0xff]
        %v326 = vld [vmem:[%s117 + $0x5e0] sm:$0xff]
        %v327 = vld [vmem:[%s117 + $0x5e8] sm:$0xff]
        %v328 = vld [vmem:[%s117 + $0x5f0] sm:$0xff]
        %v329 = vld [vmem:[%s117 + $0x5f8] sm:$0xff]
        %v330 = vld [vmem:[%s117 + $0x600] sm:$0xff]
        %v331 = vld [vmem:[%s117 + $0x608] sm:$0xff]
        %v332 = vld [vmem:[%s117 + $0x610] sm:$0xff]
        %v333 = vld [vmem:[%s117 + $0x618] sm:$0xff]
        %v334 = vld [vmem:[%s117 + $0x620] sm:$0xff]
        %v335 = vld [vmem:[%s117 + $0x628] sm:$0xff]
        %v336 = vld [vmem:[%s117 + $0x630] sm:$0xff]
        %v337 = vld [vmem:[%s117 + $0x638] sm:$0xff]
        %v338 = vld [vmem:[%s117 + $0x640] sm:$0xff]
        %v339 = vld [vmem:[%s117 + $0x648] sm:$0xff]
        %v340 = vld [vmem:[%s117 + $0x650] sm:$0xff]
        %v341 = vld [vmem:[%s117 + $0x658] sm:$0xff]
        %v342 = vld [vmem:[%s117 + $0x660] sm:$0xff]
        %v343 = vld [vmem:[%s117 + $0x668] sm:$0xff]
        %v344 = vld [vmem:[%s117 + $0x670] sm:$0xff]
        %v345 = vld [vmem:[%s117 + $0x678] sm:$0xff]
        %v346 = vld [vmem:[%s117 + $0x680] sm:$0xff]
        %v347 = vld [vmem:[%s117 + $0x688] sm:$0xff]
        %v348 = vld [vmem:[%s117 + $0x690] sm:$0xff]
        %v349 = vld [vmem:[%s117 + $0x698] sm:$0xff]
        %v350 = vld [vmem:[%s117 + $0x6a0] sm:$0xff]
        %v351 = vld [vmem:[%s117 + $0x6a8] sm:$0xff]
        %v352 = vld [vmem:[%s117 + $0x6b0] sm:$0xff]
        %v353 = vld [vmem:[%s117 + $0x6b8] sm:$0xff]
        %v354 = vld [vmem:[%s117 + $0x6c0] sm:$0xff]
        %v355 = vld [vmem:[%s117 + $0x6c8] sm:$0xff]
        %v356 = vld [vmem:[%s117 + $0x6d0] sm:$0xff]
        %v357 = vld [vmem:[%s117 + $0x6d8] sm:$0xff]
        %v358 = vld [vmem:[%s117 + $0x6e0] sm:$0xff]
        %v359 = vld [vmem:[%s117 + $0x6e8] sm:$0xff]
        %v360 = vld [vmem:[%s117 + $0x6f0] sm:$0xff]
        %v361 = vld [vmem:[%s117 + $0x6f8] sm:$0xff]
        %v362 = vld [vmem:[%s117 + $0x700] sm:$0xff]
        %v363 = vld [vmem:[%s117 + $0x708] sm:$0xff]
        %v364 = vld [vmem:[%s117 + $0x710] sm:$0xff]
        %v365 = vld [vmem:[%s117 + $0x718] sm:$0xff]
        %v366 = vld [vmem:[%s117 + $0x720] sm:$0xff]
        %v367 = vld [vmem:[%s117 + $0x728] sm:$0xff]
        %v368 = vld [vmem:[%s117 + $0x730] sm:$0xff]
        %v369 = vld [vmem:[%s117 + $0x738] sm:$0xff]
        %v370 = vld [vmem:[%s117 + $0x740] sm:$0xff]
        %v371 = vld [vmem:[%s117 + $0x748] sm:$0xff]
        %v372 = vld [vmem:[%s117 + $0x750] sm:$0xff]
        %v373 = vld [vmem:[%s117 + $0x758] sm:$0xff]
        %v374 = vld [vmem:[%s117 + $0x760] sm:$0xff]
        %v375 = vld [vmem:[%s117 + $0x768] sm:$0xff]
        %v376 = vld [vmem:[%s117 + $0x770] sm:$0xff]
        %v377 = vld [vmem:[%s117 + $0x778] sm:$0xff]
        %v378 = vld [vmem:[%s117 + $0x780] sm:$0xff]
        %v379 = vld [vmem:[%s117 + $0x788] sm:$0xff]
        %v380 = vld [vmem:[%s117 + $0x790] sm:$0xff]
        %v381 = vld [vmem:[%s117 + $0x798] sm:$0xff]
        %v382 = vld [vmem:[%s117 + $0x7a0] sm:$0xff]
        %v383 = vld [vmem:[%s117 + $0x7a8] sm:$0xff]
        %v384 = vld [vmem:[%s117 + $0x7b0] sm:$0xff]
        %v385 = vld [vmem:[%s117 + $0x7b8] sm:$0xff]
        %v386 = vld [vmem:[%s117 + $0x7c0] sm:$0xff]
        %v387 = vld [vmem:[%s117 + $0x7c8] sm:$0xff]
        %v388 = vld [vmem:[%s117 + $0x7d0] sm:$0xff]
        %v389 = vld [vmem:[%s117 + $0x7d8] sm:$0xff]
        %v390 = vld [vmem:[%s117 + $0x7e0] sm:$0xff]
        %v391 = vld [vmem:[%s117 + $0x7e8] sm:$0xff]
        %v392 = vld [vmem:[%s117 + $0x7f0] sm:$0xff]
        %v393 = vld [vmem:[%s117 + $0x7f8] sm:$0xff]
        %v394 = vld [vmem:[%s117 + $0x800] sm:$0xff]
        %v395 = vld [vmem:[%s117 + $0x808] sm:$0xff]
        %v396 = vld [vmem:[%s117 + $0x810] sm:$0xff]
        %v397 = vld [vmem:[%s117 + $0x818] sm:$0xff]
        %v398 = vld [vmem:[%s117 + $0x820] sm:$0xff]
        %v399 = vld [vmem:[%s117 + $0x828] sm:$0xff]
        %v400 = vld [vmem:[%s117 + $0x830] sm:$0xff]
        %v401 = vld [vmem:[%s117 + $0x838] sm:$0xff]
        %v402 = vld [vmem:[%s117 + $0x840] sm:$0xff]
        %v403 = vld [vmem:[%s117 + $0x848] sm:$0xff]
        %v404 = vld [vmem:[%s117 + $0x850] sm:$0xff]
        %v405 = vld [vmem:[%s117 + $0x858] sm:$0xff]
        %v406 = vld [vmem:[%s117 + $0x860] sm:$0xff]
        %v407 = vld [vmem:[%s117 + $0x868] sm:$0xff]
        %v408 = vld [vmem:[%s117 + $0x870] sm:$0xff]
        %v409 = vld [vmem:[%s117 + $0x878] sm:$0xff]
        %v410 = vld [vmem:[%s117 + $0x880] sm:$0xff]
        %v411 = vld [vmem:[%s117 + $0x888] sm:$0xff]
        %v412 = vld [vmem:[%s117 + $0x890] sm:$0xff]
        %v413 = vld [vmem:[%s117 + $0x898] sm:$0xff]
        %v414 = vld [vmem:[%s117 + $0x8a0] sm:$0xff]
        %v415 = vld [vmem:[%s117 + $0x8a8] sm:$0xff]
        %v416 = vld [vmem:[%s117 + $0x8b0] sm:$0xff]
        %v417 = vld [vmem:[%s117 + $0x8b8] sm:$0xff]
        %v418 = vld [vmem:[%s117 + $0x8c0] sm:$0xff]
        %v419 = vld [vmem:[%s117 + $0x8c8] sm:$0xff]
        %v420 = vld [vmem:[%s117 + $0x8d0] sm:$0xff]
        %v421 = vld [vmem:[%s117 + $0x8d8] sm:$0xff]
        %v422 = vld [vmem:[%s117 + $0x8e0] sm:$0xff]
        %v423 = vld [vmem:[%s117 + $0x8e8] sm:$0xff]
        %v424 = vld [vmem:[%s117 + $0x8f0] sm:$0xff]
        %v425 = vld [vmem:[%s117 + $0x8f8] sm:$0xff]
        %v426 = vld [vmem:[%s117 + $0x900] sm:$0xff]
        %v427 = vld [vmem:[%s117 + $0x908] sm:$0xff]
        %v428 = vld [vmem:[%s117 + $0x910] sm:$0xff]
        %v429 = vld [vmem:[%s117 + $0x918] sm:$0xff]
        %v430 = vld [vmem:[%s117 + $0x920] sm:$0xff]
        %v431 = vld [vmem:[%s117 + $0x928] sm:$0xff]
        %v432 = vld [vmem:[%s117 + $0x930] sm:$0xff]
        %v433 = vld [vmem:[%s117 + $0x938] sm:$0xff]
        %v434 = vld [vmem:[%s117 + $0x940] sm:$0xff]
        %v435 = vld [vmem:[%s117 + $0x948] sm:$0xff]
        %v436 = vld [vmem:[%s117 + $0x950] sm:$0xff]
        %v437 = vld [vmem:[%s117 + $0x958] sm:$0xff]
        %v438 = vld [vmem:[%s117 + $0x960] sm:$0xff]
        %v439 = vld [vmem:[%s117 + $0x968] sm:$0xff]
        %v440 = vld [vmem:[%s117 + $0x970] sm:$0xff]
        %v441 = vld [vmem:[%s117 + $0x978] sm:$0xff]
        %v442 = vld [vmem:[%s117 + $0x980] sm:$0xff]
        %v443 = vld [vmem:[%s117 + $0x988] sm:$0xff]
        %v444 = vld [vmem:[%s117 + $0x990] sm:$0xff]
        %v445 = vld [vmem:[%s117 + $0x998] sm:$0xff]
        %v446 = vld [vmem:[%s117 + $0x9a0] sm:$0xff]
        %v447 = vld [vmem:[%s117 + $0x9a8] sm:$0xff]
        %v448 = vld [vmem:[%s117 + $0x9b0] sm:$0xff]
        %v449 = vld [vmem:[%s117 + $0x9b8] sm:$0xff]
        %v450 = vld [vmem:[%s117 + $0x9c0] sm:$0xff]
        %v451 = vld [vmem:[%s117 + $0x9c8] sm:$0xff]
        %v452 = vld [vmem:[%s117 + $0x9d0] sm:$0xff]
        %v453 = vld [vmem:[%s117 + $0x9d8] sm:$0xff]
        %v454 = vld [vmem:[%s117 + $0x9e0] sm:$0xff]
        %v455 = vld [vmem:[%s117 + $0x9e8] sm:$0xff]
        %v456 = vld [vmem:[%s117 + $0x9f0] sm:$0xff]
        %v457 = vld [vmem:[%s117 + $0x9f8] sm:$0xff]
        %v458 = vld [vmem:[%s117 + $0xa00] sm:$0xff]
        %v459 = vld [vmem:[%s117 + $0xa08] sm:$0xff]
        %v460 = vld [vmem:[%s117 + $0xa10] sm:$0xff]
        %v461 = vld [vmem:[%s117 + $0xa18] sm:$0xff]
        %v462 = vld [vmem:[%s117 + $0xa20] sm:$0xff]
        %v463 = vld [vmem:[%s117 + $0xa28] sm:$0xff]
        %v464 = vld [vmem:[%s117 + $0xa30] sm:$0xff]
        %v465 = vld [vmem:[%s117 + $0xa38] sm:$0xff]
        %v466 = vld [vmem:[%s117 + $0xa40] sm:$0xff]
        %v467 = vld [vmem:[%s117 + $0xa48] sm:$0xff]
        %v468 = vld [vmem:[%s117 + $0xa50] sm:$0xff]
        %v469 = vld [vmem:[%s117 + $0xa58] sm:$0xff]
        %v470 = vld [vmem:[%s117 + $0xa60] sm:$0xff]
        %v471 = vld [vmem:[%s117 + $0xa68] sm:$0xff]
        %v472 = vld [vmem:[%s117 + $0xa70] sm:$0xff]
        %v473 = vld [vmem:[%s117 + $0xa78] sm:$0xff]
        %v474 = vld [vmem:[%s117 + $0xa80] sm:$0xff]
        %v475 = vld [vmem:[%s117 + $0xa88] sm:$0xff]
        %v476 = vld [vmem:[%s117 + $0xa90] sm:$0xff]
        %v477 = vld [vmem:[%s117 + $0xa98] sm:$0xff]
        %v478 = vld [vmem:[%s117 + $0xaa0] sm:$0xff]
        %v479 = vld [vmem:[%s117 + $0xaa8] sm:$0xff]
        %v480 = vld [vmem:[%s117 + $0xab0] sm:$0xff]
        %v481 = vld [vmem:[%s117 + $0xab8] sm:$0xff]
        %v482 = vld [vmem:[%s117 + $0xac0] sm:$0xff]
        %v483 = vld [vmem:[%s117 + $0xac8] sm:$0xff]
        %v484 = vld [vmem:[%s117 + $0xad0] sm:$0xff]
        %v485 = vld [vmem:[%s117 + $0xad8] sm:$0xff]
        %v486 = vld [vmem:[%s117 + $0xae0] sm:$0xff]
        %v487 = vld [vmem:[%s117 + $0xae8] sm:$0xff]
        %v488 = vld [vmem:[%s117 + $0xaf0] sm:$0xff]
        %v489 = vld [vmem:[%s117 + $0xaf8] sm:$0xff]
        %v490 = vld [vmem:[%s117 + $0xb00] sm:$0xff]
        %v491 = vld [vmem:[%s117 + $0xb08] sm:$0xff]
        %v492 = vld [vmem:[%s117 + $0xb10] sm:$0xff]
        %v493 = vld [vmem:[%s117 + $0xb18] sm:$0xff]
        %v494 = vld [vmem:[%s117 + $0xb20] sm:$0xff]
        %v495 = vld [vmem:[%s117 + $0xb28] sm:$0xff]
        %v496 = vld [vmem:[%s117 + $0xb30] sm:$0xff]
        %v497 = vld [vmem:[%s117 + $0xb38] sm:$0xff]
        %v498 = vld [vmem:[%s117 + $0xb40] sm:$0xff]
        %v499 = vld [vmem:[%s117 + $0xb48] sm:$0xff]
        %v500 = vld [vmem:[%s117 + $0xb50] sm:$0xff]
        %v501 = vld [vmem:[%s117 + $0xb58] sm:$0xff]
        %v502 = vld [vmem:[%s117 + $0xb60] sm:$0xff]
        %v503 = vld [vmem:[%s117 + $0xb68] sm:$0xff]
        %v504 = vld [vmem:[%s117 + $0xb70] sm:$0xff]
        %v505 = vld [vmem:[%s117 + $0xb78] sm:$0xff]
        %v506 = vld [vmem:[%s117 + $0xb80] sm:$0xff]
        %v507 = vld [vmem:[%s117 + $0xb88] sm:$0xff]
        %v508 = vld [vmem:[%s117 + $0xb90] sm:$0xff]
        %v509 = vld [vmem:[%s117 + $0xb98] sm:$0xff]
        %v510 = vld [vmem:[%s117 + $0xba0] sm:$0xff]
        %v511 = vld [vmem:[%s117 + $0xba8] sm:$0xff]
        %v512 = vld [vmem:[%s117 + $0xbb0] sm:$0xff]
        %v513 = vld [vmem:[%s117 + $0xbb8] sm:$0xff]
        %v514 = vld [vmem:[%s117 + $0xbc0] sm:$0xff]
        %v515 = vld [vmem:[%s117 + $0xbc8] sm:$0xff]
        %v516 = vld [vmem:[%s117 + $0xbd0] sm:$0xff]
        %v517 = vld [vmem:[%s117 + $0xbd8] sm:$0xff]
        %v518 = vld [vmem:[%s117 + $0xbe0] sm:$0xff]
        %v519 = vld [vmem:[%s117 + $0xbe8] sm:$0xff]
        %v520 = vld [vmem:[%s117 + $0xbf0] sm:$0xff]
        %v521 = vld [vmem:[%s117 + $0xbf8] sm:$0xff]
        %v522 = vld [vmem:[%s117 + $0xc00] sm:$0xff]
        %v523 = vld [vmem:[%s117 + $0xc08] sm:$0xff]
        %v524 = vld [vmem:[%s117 + $0xc10] sm:$0xff]
        %v525 = vld [vmem:[%s117 + $0xc18] sm:$0xff]
        %v526 = vld [vmem:[%s117 + $0xc20] sm:$0xff]
        %v527 = vld [vmem:[%s117 + $0xc28] sm:$0xff]
        %v528 = vld [vmem:[%s117 + $0xc30] sm:$0xff]
        %v529 = vld [vmem:[%s117 + $0xc38] sm:$0xff]
        %v530 = vld [vmem:[%s117 + $0xc40] sm:$0xff]
        %v531 = vld [vmem:[%s117 + $0xc48] sm:$0xff]
        %v532 = vld [vmem:[%s117 + $0xc50] sm:$0xff]
        %v533 = vld [vmem:[%s117 + $0xc58] sm:$0xff]
        %v534 = vld [vmem:[%s117 + $0xc60] sm:$0xff]
        %v535 = vld [vmem:[%s117 + $0xc68] sm:$0xff]
        %v536 = vld [vmem:[%s117 + $0xc70] sm:$0xff]
        %v537 = vld [vmem:[%s117 + $0xc78] sm:$0xff]
        %v538 = vld [vmem:[%s117 + $0xc80] sm:$0xff]
        %v539 = vld [vmem:[%s117 + $0xc88] sm:$0xff]
        %v540 = vld [vmem:[%s117 + $0xc90] sm:$0xff]
        %v541 = vld [vmem:[%s117 + $0xc98] sm:$0xff]
        %v542 = vld [vmem:[%s117 + $0xca0] sm:$0xff]
        %v543 = vld [vmem:[%s117 + $0xca8] sm:$0xff]
        %v544 = vld [vmem:[%s117 + $0xcb0] sm:$0xff]
        %v545 = vld [vmem:[%s117 + $0xcb8] sm:$0xff]
        %v546 = vld [vmem:[%s117 + $0xcc0] sm:$0xff]
        %v547 = vld [vmem:[%s117 + $0xcc8] sm:$0xff]
        %v548 = vld [vmem:[%s117 + $0xcd0] sm:$0xff]
        %v549 = vld [vmem:[%s117 + $0xcd8] sm:$0xff]
        %v550 = vld [vmem:[%s117 + $0xce0] sm:$0xff]
        %v551 = vld [vmem:[%s117 + $0xce8] sm:$0xff]
        %v552 = vld [vmem:[%s117 + $0xcf0] sm:$0xff]
        %v553 = vld [vmem:[%s117 + $0xcf8] sm:$0xff]
        %v554 = vld [vmem:[%s117 + $0xd00] sm:$0xff]
        %v555 = vld [vmem:[%s117 + $0xd08] sm:$0xff]
        %v556 = vld [vmem:[%s117 + $0xd10] sm:$0xff]
        %v557 = vld [vmem:[%s117 + $0xd18] sm:$0xff]
        %v558 = vld [vmem:[%s117 + $0xd20] sm:$0xff]
        %v559 = vld [vmem:[%s117 + $0xd28] sm:$0xff]
        %v560 = vld [vmem:[%s117 + $0xd30] sm:$0xff]
        %v561 = vld [vmem:[%s117 + $0xd38] sm:$0xff]
        %v562 = vld [vmem:[%s117 + $0xd40] sm:$0xff]
        %v563 = vld [vmem:[%s117 + $0xd48] sm:$0xff]
        %v564 = vld [vmem:[%s117 + $0xd50] sm:$0xff]
        %v565 = vld [vmem:[%s117 + $0xd58] sm:$0xff]
        %v566 = vld [vmem:[%s117 + $0xd60] sm:$0xff]
        %v567 = vld [vmem:[%s117 + $0xd68] sm:$0xff]
        %v568 = vld [vmem:[%s117 + $0xd70] sm:$0xff]
        %v569 = vld [vmem:[%s117 + $0xd78] sm:$0xff]
        %v570 = vld [vmem:[%s117 + $0xd80] sm:$0xff]
        %v571 = vld [vmem:[%s117 + $0xd88] sm:$0xff]
        %v572 = vld [vmem:[%s117 + $0xd90] sm:$0xff]
        %v573 = vld [vmem:[%s117 + $0xd98] sm:$0xff]
        %v574 = vld [vmem:[%s117 + $0xda0] sm:$0xff]
        %v575 = vld [vmem:[%s117 + $0xda8] sm:$0xff]
        %v576 = vld [vmem:[%s117 + $0xdb0] sm:$0xff]
        %v577 = vld [vmem:[%s117 + $0xdb8] sm:$0xff]
        %v578 = vld [vmem:[%s117 + $0xdc0] sm:$0xff]
        %v579 = vld [vmem:[%s117 + $0xdc8] sm:$0xff]
        %v580 = vld [vmem:[%s117 + $0xdd0] sm:$0xff]
        %v581 = vld [vmem:[%s117 + $0xdd8] sm:$0xff]
        %v582 = vld [vmem:[%s117 + $0xde0] sm:$0xff]
        %v583 = vld [vmem:[%s117 + $0xde8] sm:$0xff]
        %v584 = vld [vmem:[%s117 + $0xdf0] sm:$0xff]
        %v585 = vld [vmem:[%s117 + $0xdf8] sm:$0xff]
        %v586 = vld [vmem:[%s117 + $0xe00] sm:$0xff]
        %v587 = vld [vmem:[%s117 + $0xe08] sm:$0xff]
        %v588 = vld [vmem:[%s117 + $0xe10] sm:$0xff]
        %v589 = vld [vmem:[%s117 + $0xe18] sm:$0xff]
        %v590 = vld [vmem:[%s117 + $0xe20] sm:$0xff]
        %v591 = vld [vmem:[%s117 + $0xe28] sm:$0xff]
        %v592 = vld [vmem:[%s117 + $0xe30] sm:$0xff]
        %v593 = vld [vmem:[%s117 + $0xe38] sm:$0xff]
        %v594 = vld [vmem:[%s117 + $0xe40] sm:$0xff]
        %v595 = vld [vmem:[%s117 + $0xe48] sm:$0xff]
        %v596 = vld [vmem:[%s117 + $0xe50] sm:$0xff]
        %v597 = vld [vmem:[%s117 + $0xe58] sm:$0xff]
        %v598 = vld [vmem:[%s117 + $0xe60] sm:$0xff]
        %v599 = vld [vmem:[%s117 + $0xe68] sm:$0xff]
        %v600 = vld [vmem:[%s117 + $0xe70] sm:$0xff]
        %v601 = vld [vmem:[%s117 + $0xe78] sm:$0xff]
        %v602 = vld [vmem:[%s117 + $0xe80] sm:$0xff]
        %v603 = vld [vmem:[%s117 + $0xe88] sm:$0xff]
        %v604 = vld [vmem:[%s117 + $0xe90] sm:$0xff]
        %v605 = vld [vmem:[%s117 + $0xe98] sm:$0xff]
        %v606 = vld [vmem:[%s117 + $0xea0] sm:$0xff]
        %v607 = vld [vmem:[%s117 + $0xea8] sm:$0xff]
        %v608 = vld [vmem:[%s117 + $0xeb0] sm:$0xff]
        %v609 = vld [vmem:[%s117 + $0xeb8] sm:$0xff]
        %v610 = vld [vmem:[%s117 + $0xec0] sm:$0xff]
        %v611 = vld [vmem:[%s117 + $0xec8] sm:$0xff]
        %v612 = vld [vmem:[%s117 + $0xed0] sm:$0xff]
        %v613 = vld [vmem:[%s117 + $0xed8] sm:$0xff]
        %v614 = vld [vmem:[%s117 + $0xee0] sm:$0xff]
        %v615 = vld [vmem:[%s117 + $0xee8] sm:$0xff]
        %v616 = vld [vmem:[%s117 + $0xef0] sm:$0xff]
        %v617 = vld [vmem:[%s117 + $0xef8] sm:$0xff]
        %v618 = vld [vmem:[%s117 + $0xf00] sm:$0xff]
        %v619 = vld [vmem:[%s117 + $0xf08] sm:$0xff]
        %v620 = vld [vmem:[%s117 + $0xf10] sm:$0xff]
        %v621 = vld [vmem:[%s117 + $0xf18] sm:$0xff]
        %v622 = vld [vmem:[%s117 + $0xf20] sm:$0xff]
        %v623 = vld [vmem:[%s117 + $0xf28] sm:$0xff]
        %v624 = vld [vmem:[%s117 + $0xf30] sm:$0xff]
        %v625 = vld [vmem:[%s117 + $0xf38] sm:$0xff]
        %v626 = vld [vmem:[%s117 + $0xf40] sm:$0xff]
        %v627 = vld [vmem:[%s117 + $0xf48] sm:$0xff]
        %v628 = vld [vmem:[%s117 + $0xf50] sm:$0xff]
        %v629 = vld [vmem:[%s117 + $0xf58] sm:$0xff]
        %v630 = vld [vmem:[%s117 + $0xf60] sm:$0xff]
        %v631 = vld [vmem:[%s117 + $0xf68] sm:$0xff]
        %v632 = vld [vmem:[%s117 + $0xf70] sm:$0xff]
        %v633 = vld [vmem:[%s117 + $0xf78] sm:$0xff]
        %v634 = vld [vmem:[%s117 + $0xf80] sm:$0xff]
        %v635 = vld [vmem:[%s117 + $0xf88] sm:$0xff]
        %v636 = vld [vmem:[%s117 + $0xf90] sm:$0xff]
        %v637 = vld [vmem:[%s117 + $0xf98] sm:$0xff]
        %v638 = vld [vmem:[%s117 + $0xfa0] sm:$0xff]
        %v639 = vld [vmem:[%s117 + $0xfa8] sm:$0xff]
        %v640 = vld [vmem:[%s117 + $0xfb0] sm:$0xff]
        %v641 = vld [vmem:[%s117 + $0xfb8] sm:$0xff]
        %v642 = vld [vmem:[%s117 + $0xfc0] sm:$0xff]
        %v643 = vld [vmem:[%s117 + $0xfc8] sm:$0xff]
        %v644 = vld [vmem:[%s117 + $0xfd0] sm:$0xff]
        %v645 = vld [vmem:[%s117 + $0xfd8] sm:$0xff]
        %v646 = vld [vmem:[%s117 + $0xfe0] sm:$0xff]
        %v647 = vld [vmem:[%s117 + $0xfe8] sm:$0xff]
        %v648 = vld [vmem:[%s117 + $0xff0] sm:$0xff]
        %v649 = vld [vmem:[%s117 + $0xff8] sm:$0xff]
        %v650 = vld [vmem:[%s117 + $0x1000] sm:$0xff]
        %v651 = vld [vmem:[%s117 + $0x1008] sm:$0xff]
        %v652 = vld [vmem:[%s117 + $0x1010] sm:$0xff]
        %v653 = vld [vmem:[%s117 + $0x1018] sm:$0xff]
        %v654 = vld [vmem:[%s117 + $0x1020] sm:$0xff]
        %v655 = vld [vmem:[%s117 + $0x1028] sm:$0xff]
        %v656 = vld [vmem:[%s117 + $0x1030] sm:$0xff]
        %v657 = vld [vmem:[%s117 + $0x1038] sm:$0xff]
        %v658 = vld [vmem:[%s117 + $0x1040] sm:$0xff]
        %v659 = vld [vmem:[%s117 + $0x1048] sm:$0xff]
        %v660 = vld [vmem:[%s117 + $0x1050] sm:$0xff]
        %v661 = vld [vmem:[%s117 + $0x1058] sm:$0xff]
        %v662 = vld [vmem:[%s117 + $0x1060] sm:$0xff]
        %v663 = vld [vmem:[%s117 + $0x1068] sm:$0xff]
        %v664 = vld [vmem:[%s117 + $0x1070] sm:$0xff]
        %v665 = vld [vmem:[%s117 + $0x1078] sm:$0xff]
        %v666 = vld [vmem:[%s117 + $0x1080] sm:$0xff]
        %v667 = vld [vmem:[%s117 + $0x1088] sm:$0xff]
        %v668 = vld [vmem:[%s117 + $0x1090] sm:$0xff]
        %v669 = vld [vmem:[%s117 + $0x1098] sm:$0xff]
        %v670 = vld [vmem:[%s117 + $0x10a0] sm:$0xff]
        %v671 = vld [vmem:[%s117 + $0x10a8] sm:$0xff]
        %v672 = vld [vmem:[%s117 + $0x10b0] sm:$0xff]
        %v673 = vld [vmem:[%s117 + $0x10b8] sm:$0xff]
        %v674 = vld [vmem:[%s117 + $0x10c0] sm:$0xff]
        %v675 = vld [vmem:[%s117 + $0x10c8] sm:$0xff]
        %v676 = vld [vmem:[%s117 + $0x10d0] sm:$0xff]
        %v677 = vld [vmem:[%s117 + $0x10d8] sm:$0xff]
        %v678 = vld [vmem:[%s117 + $0x10e0] sm:$0xff]
        %v679 = vld [vmem:[%s117 + $0x10e8] sm:$0xff]
        %v680 = vld [vmem:[%s117 + $0x10f0] sm:$0xff]
        %v681 = vld [vmem:[%s117 + $0x10f8] sm:$0xff]
        %v682 = vld [vmem:[%s117 + $0x1100] sm:$0xff]
        %v683 = vld [vmem:[%s117 + $0x1108] sm:$0xff]
        %v684 = vld [vmem:[%s117 + $0x1110] sm:$0xff]
        %v685 = vld [vmem:[%s117 + $0x1118] sm:$0xff]
        %v686 = vld [vmem:[%s117 + $0x1120] sm:$0xff]
        %v687 = vld [vmem:[%s117 + $0x1128] sm:$0xff]
        %v688 = vld [vmem:[%s117 + $0x1130] sm:$0xff]
        %v689 = vld [vmem:[%s117 + $0x1138] sm:$0xff]
        %v690 = vld [vmem:[%s117 + $0x1140] sm:$0xff]
        %v691 = vld [vmem:[%s117 + $0x1148] sm:$0xff]
        %v692 = vld [vmem:[%s117 + $0x1150] sm:$0xff]
        %v693 = vld [vmem:[%s117 + $0x1158] sm:$0xff]
        %v694 = vld [vmem:[%s117 + $0x1160] sm:$0xff]
        %v695 = vld [vmem:[%s117 + $0x1168] sm:$0xff]
        %v696 = vld [vmem:[%s117 + $0x1170] sm:$0xff]
        %v697 = vld [vmem:[%s117 + $0x1178] sm:$0xff]
        %v698 = vld [vmem:[%s117 + $0x1180] sm:$0xff]
        %v699 = vld [vmem:[%s117 + $0x1188] sm:$0xff]
        %v700 = vld [vmem:[%s117 + $0x1190] sm:$0xff]
        %v701 = vld [vmem:[%s117 + $0x1198] sm:$0xff]
        %v702 = vld [vmem:[%s117 + $0x11a0] sm:$0xff]
        %v703 = vld [vmem:[%s117 + $0x11a8] sm:$0xff]
        %v704 = vld [vmem:[%s117 + $0x11b0] sm:$0xff]
        %v705 = vld [vmem:[%s117 + $0x11b8] sm:$0xff]
        %v706 = vld [vmem:[%s117 + $0x11c0] sm:$0xff]
        %v707 = vld [vmem:[%s117 + $0x11c8] sm:$0xff]
        %v708 = vld [vmem:[%s117 + $0x11d0] sm:$0xff]
        %v709 = vld [vmem:[%s117 + $0x11d8] sm:$0xff]
        %v710 = vld [vmem:[%s117 + $0x11e0] sm:$0xff]
        %v711 = vld [vmem:[%s117 + $0x11e8] sm:$0xff]
        %v712 = vld [vmem:[%s117 + $0x11f0] sm:$0xff]
        %v713 = vld [vmem:[%s117 + $0x11f8] sm:$0xff]
        %v714 = vld [vmem:[%s117 + $0x1200] sm:$0xff]
        %v715 = vld [vmem:[%s117 + $0x1208] sm:$0xff]
        %v716 = vld [vmem:[%s117 + $0x1210] sm:$0xff]
        %v717 = vld [vmem:[%s117 + $0x1218] sm:$0xff]
        %v718 = vld [vmem:[%s117 + $0x1220] sm:$0xff]
        %v719 = vld [vmem:[%s117 + $0x1228] sm:$0xff]
        %v720 = vld [vmem:[%s117 + $0x1230] sm:$0xff]
        %v721 = vld [vmem:[%s117 + $0x1238] sm:$0xff]
        %v722 = vld [vmem:[%s117 + $0x1240] sm:$0xff]
        %v723 = vld [vmem:[%s117 + $0x1248] sm:$0xff]
        %v724 = vld [vmem:[%s117 + $0x1250] sm:$0xff]
        %v725 = vld [vmem:[%s117 + $0x1258] sm:$0xff]
        %v726 = vld [vmem:[%s117 + $0x1260] sm:$0xff]
        %v727 = vld [vmem:[%s117 + $0x1268] sm:$0xff]
        %v728 = vld [vmem:[%s117 + $0x1270] sm:$0xff]
        %v729 = vld [vmem:[%s117 + $0x1278] sm:$0xff]
        %v730 = vld [vmem:[%s117 + $0x1280] sm:$0xff]
        %v731 = vld [vmem:[%s117 + $0x1288] sm:$0xff]
        %v732 = vld [vmem:[%s117 + $0x1290] sm:$0xff]
        %v733 = vld [vmem:[%s117 + $0x1298] sm:$0xff]
        %v734 = vld [vmem:[%s117 + $0x12a0] sm:$0xff]
        %v735 = vld [vmem:[%s117 + $0x12a8] sm:$0xff]
        %v736 = vld [vmem:[%s117 + $0x12b0] sm:$0xff]
        %v737 = vld [vmem:[%s117 + $0x12b8] sm:$0xff]
        %v738 = vld [vmem:[%s117 + $0x12c0] sm:$0xff]
        %v739 = vld [vmem:[%s117 + $0x12c8] sm:$0xff]
        %v740 = vld [vmem:[%s117 + $0x12d0] sm:$0xff]
        %v741 = vld [vmem:[%s117 + $0x12d8] sm:$0xff]
        %v742 = vld [vmem:[%s117 + $0x12e0] sm:$0xff]
        %v743 = vld [vmem:[%s117 + $0x12e8] sm:$0xff]
        %v744 = vld [vmem:[%s117 + $0x12f0] sm:$0xff]
        %v745 = vld [vmem:[%s117 + $0x12f8] sm:$0xff]
        %v746 = vld [vmem:[%s117 + $0x1300] sm:$0xff]
        %v747 = vld [vmem:[%s117 + $0x1308] sm:$0xff]
        %v748 = vld [vmem:[%s117 + $0x1310] sm:$0xff]
        %v749 = vld [vmem:[%s117 + $0x1318] sm:$0xff]
        %v750 = vld [vmem:[%s117 + $0x1320] sm:$0xff]
        %v751 = vld [vmem:[%s117 + $0x1328] sm:$0xff]
        %v752 = vld [vmem:[%s117 + $0x1330] sm:$0xff]
        %v753 = vld [vmem:[%s117 + $0x1338] sm:$0xff]
        %v754 = vld [vmem:[%s117 + $0x1340] sm:$0xff]
        %v755 = vld [vmem:[%s117 + $0x1348] sm:$0xff]
        %v756 = vld [vmem:[%s117 + $0x1350] sm:$0xff]
        %v757 = vld [vmem:[%s117 + $0x1358] sm:$0xff]
        %v758 = vld [vmem:[%s117 + $0x1360] sm:$0xff]
        %v759 = vld [vmem:[%s117 + $0x1368] sm:$0xff]
        %v760 = vld [vmem:[%s117 + $0x1370] sm:$0xff]
        %v761 = vld [vmem:[%s117 + $0x1378] sm:$0xff]
        %v762 = vld [vmem:[%s117 + $0x1380] sm:$0xff]
        %v763 = vld [vmem:[%s117 + $0x1388] sm:$0xff]
        %v764 = vld [vmem:[%s117 + $0x1390] sm:$0xff]
        %v765 = vld [vmem:[%s117 + $0x1398] sm:$0xff]
        %v766 = vld [vmem:[%s117 + $0x13a0] sm:$0xff]
        %v767 = vld [vmem:[%s117 + $0x13a8] sm:$0xff]
        %v768 = vld [vmem:[%s117 + $0x13b0] sm:$0xff]
        %v769 = vld [vmem:[%s117 + $0x13b8] sm:$0xff]
        %v770 = vld [vmem:[%s117 + $0x13c0] sm:$0xff]
        %v771 = vld [vmem:[%s117 + $0x13c8] sm:$0xff]
        %v772 = vld [vmem:[%s117 + $0x13d0] sm:$0xff]
        %v773 = vld [vmem:[%s117 + $0x13d8] sm:$0xff]
        %v774 = vld [vmem:[%s117 + $0x13e0] sm:$0xff]
        %v775 = vld [vmem:[%s117 + $0x13e8] sm:$0xff]
        %v776 = vld [vmem:[%s117 + $0x13f0] sm:$0xff]
        %v777 = vld [vmem:[%s117 + $0x13f8] sm:$0xff]
        %v778 = vld [vmem:[%s117 + $0x1400] sm:$0xff]
        %v779 = vld [vmem:[%s117 + $0x1408] sm:$0xff]
        %v780 = vld [vmem:[%s117 + $0x1410] sm:$0xff]
        %v781 = vld [vmem:[%s117 + $0x1418] sm:$0xff]
        %v782 = vld [vmem:[%s117 + $0x1420] sm:$0xff]
        %v783 = vld [vmem:[%s117 + $0x1428] sm:$0xff]
        %v784 = vld [vmem:[%s117 + $0x1430] sm:$0xff]
        %v785 = vld [vmem:[%s117 + $0x1438] sm:$0xff]
        %v786 = vld [vmem:[%s117 + $0x1440] sm:$0xff]
        %v787 = vld [vmem:[%s117 + $0x1448] sm:$0xff]
        %v788 = vld [vmem:[%s117 + $0x1450] sm:$0xff]
        %v789 = vld [vmem:[%s117 + $0x1458] sm:$0xff]
        %v790 = vld [vmem:[%s117 + $0x1460] sm:$0xff]
        %v791 = vld [vmem:[%s117 + $0x1468] sm:$0xff]
        %v792 = vld [vmem:[%s117 + $0x1470] sm:$0xff]
        %v793 = vld [vmem:[%s117 + $0x1478] sm:$0xff]
        %v794 = vld [vmem:[%s117 + $0x1480] sm:$0xff]
        %v795 = vld [vmem:[%s117 + $0x1488] sm:$0xff]
        %v796 = vld [vmem:[%s117 + $0x1490] sm:$0xff]
        %v797 = vld [vmem:[%s117 + $0x1498] sm:$0xff]
        %v798 = vld [vmem:[%s117 + $0x14a0] sm:$0xff]
        %v799 = vld [vmem:[%s117 + $0x14a8] sm:$0xff]
        %v800 = vld [vmem:[%s117 + $0x14b0] sm:$0xff]
        %v801 = vld [vmem:[%s117 + $0x14b8] sm:$0xff]
        %v802 = vld [vmem:[%s117 + $0x14c0] sm:$0xff]
        %v803 = vld [vmem:[%s117 + $0x14c8] sm:$0xff]
        %v804 = vld [vmem:[%s117 + $0x14d0] sm:$0xff]
        %v805 = vld [vmem:[%s117 + $0x14d8] sm:$0xff]
        %v806 = vld [vmem:[%s117 + $0x14e0] sm:$0xff]
        %v807 = vld [vmem:[%s117 + $0x14e8] sm:$0xff]
        %v808 = vld [vmem:[%s117 + $0x14f0] sm:$0xff]
        %v809 = vld [vmem:[%s117 + $0x14f8] sm:$0xff]
        %v810 = vld [vmem:[%s117 + $0x1500] sm:$0xff]
        %v811 = vld [vmem:[%s117 + $0x1508] sm:$0xff]
        %v812 = vld [vmem:[%s117 + $0x1510] sm:$0xff]
        %v813 = vld [vmem:[%s117 + $0x1518] sm:$0xff]
        %v814 = vld [vmem:[%s117 + $0x1520] sm:$0xff]
        %v815 = vld [vmem:[%s117 + $0x1528] sm:$0xff]
        %v816 = vld [vmem:[%s117 + $0x1530] sm:$0xff]
        %v817 = vld [vmem:[%s117 + $0x1538] sm:$0xff]
        %v818 = vld [vmem:[%s117 + $0x1540] sm:$0xff]
        %v819 = vld [vmem:[%s117 + $0x1548] sm:$0xff]
        %v820 = vld [vmem:[%s117 + $0x1550] sm:$0xff]
        %v821 = vld [vmem:[%s117 + $0x1558] sm:$0xff]
        %v822 = vld [vmem:[%s117 + $0x1560] sm:$0xff]
        %v823 = vld [vmem:[%s117 + $0x1568] sm:$0xff]
        %v824 = vld [vmem:[%s117 + $0x1570] sm:$0xff]
        %v825 = vld [vmem:[%s117 + $0x1578] sm:$0xff]
        %v826 = vld [vmem:[%s117 + $0x1580] sm:$0xff]
        %v827 = vld [vmem:[%s117 + $0x1588] sm:$0xff]
        %v828 = vld [vmem:[%s117 + $0x1590] sm:$0xff]
        %v829 = vld [vmem:[%s117 + $0x1598] sm:$0xff]
        %v830 = vld [vmem:[%s117 + $0x15a0] sm:$0xff]
        %v831 = vld [vmem:[%s117 + $0x15a8] sm:$0xff]
        %v832 = vld [vmem:[%s117 + $0x15b0] sm:$0xff]
        %v833 = vld [vmem:[%s117 + $0x15b8] sm:$0xff]
        %v834 = vld [vmem:[%s117 + $0x15c0] sm:$0xff]
        %v835 = vld [vmem:[%s117 + $0x15c8] sm:$0xff]
        %v836 = vld [vmem:[%s117 + $0x15d0] sm:$0xff]
        %v837 = vld [vmem:[%s117 + $0x15d8] sm:$0xff]
        %v838 = vld [vmem:[%s117 + $0x15e0] sm:$0xff]
        %v839 = vld [vmem:[%s117 + $0x15e8] sm:$0xff]
        %v840 = vld [vmem:[%s117 + $0x15f0] sm:$0xff]
        %v841 = vld [vmem:[%s117 + $0x15f8] sm:$0xff]
        %v842 = vld [vmem:[%s117 + $0x1600] sm:$0xff]
        %v843 = vld [vmem:[%s117 + $0x1608] sm:$0xff]
        %v844 = vld [vmem:[%s117 + $0x1610] sm:$0xff]
        %v845 = vld [vmem:[%s117 + $0x1618] sm:$0xff]
        %v846 = vld [vmem:[%s117 + $0x1620] sm:$0xff]
        %v847 = vld [vmem:[%s117 + $0x1628] sm:$0xff]
        %v848 = vld [vmem:[%s117 + $0x1630] sm:$0xff]
        %v849 = vld [vmem:[%s117 + $0x1638] sm:$0xff]
        %v850 = vld [vmem:[%s117 + $0x1640] sm:$0xff]
        %v851 = vld [vmem:[%s117 + $0x1648] sm:$0xff]
        %v852 = vld [vmem:[%s117 + $0x1650] sm:$0xff]
        %v853 = vld [vmem:[%s117 + $0x1658] sm:$0xff]
        %v854 = vld [vmem:[%s117 + $0x1660] sm:$0xff]
        %v855 = vld [vmem:[%s117 + $0x1668] sm:$0xff]
        %v856 = vld [vmem:[%s117 + $0x1670] sm:$0xff]
        %v857 = vld [vmem:[%s117 + $0x1678] sm:$0xff]
        %v858 = vld [vmem:[%s117 + $0x1680] sm:$0xff]
        %v859 = vld [vmem:[%s117 + $0x1688] sm:$0xff]
        %v860 = vld [vmem:[%s117 + $0x1690] sm:$0xff]
        %v861 = vld [vmem:[%s117 + $0x1698] sm:$0xff]
        %v862 = vld [vmem:[%s117 + $0x16a0] sm:$0xff]
        %v863 = vld [vmem:[%s117 + $0x16a8] sm:$0xff]
        %v864 = vld [vmem:[%s117 + $0x16b0] sm:$0xff]
        %v865 = vld [vmem:[%s117 + $0x16b8] sm:$0xff]
        %v866 = vld [vmem:[%s117 + $0x16c0] sm:$0xff]
        %v867 = vld [vmem:[%s117 + $0x16c8] sm:$0xff]
        %v868 = vld [vmem:[%s117 + $0x16d0] sm:$0xff]
        %v869 = vld [vmem:[%s117 + $0x16d8] sm:$0xff]
        %v870 = vld [vmem:[%s117 + $0x16e0] sm:$0xff]
        %v871 = vld [vmem:[%s117 + $0x16e8] sm:$0xff]
        %v872 = vld [vmem:[%s117 + $0x16f0] sm:$0xff]
        %v873 = vld [vmem:[%s117 + $0x16f8] sm:$0xff]
        %v874 = vld [vmem:[%s117 + $0x1700] sm:$0xff]
        %v875 = vld [vmem:[%s117 + $0x1708] sm:$0xff]
        %v876 = vld [vmem:[%s117 + $0x1710] sm:$0xff]
        %v877 = vld [vmem:[%s117 + $0x1718] sm:$0xff]
        %v878 = vld [vmem:[%s117 + $0x1720] sm:$0xff]
        %v879 = vld [vmem:[%s117 + $0x1728] sm:$0xff]
        %v880 = vld [vmem:[%s117 + $0x1730] sm:$0xff]
        %v881 = vld [vmem:[%s117 + $0x1738] sm:$0xff]
        %v882 = vld [vmem:[%s117 + $0x1740] sm:$0xff]
        %v883 = vld [vmem:[%s117 + $0x1748] sm:$0xff]
        %v884 = vld [vmem:[%s117 + $0x1750] sm:$0xff]
        %v885 = vld [vmem:[%s117 + $0x1758] sm:$0xff]
        %v886 = vld [vmem:[%s117 + $0x1760] sm:$0xff]
        %v887 = vld [vmem:[%s117 + $0x1768] sm:$0xff]
        %v888 = vld [vmem:[%s117 + $0x1770] sm:$0xff]
        %v889 = vld [vmem:[%s117 + $0x1778] sm:$0xff]
        %v890 = vld [vmem:[%s117 + $0x1780] sm:$0xff]
        %v891 = vld [vmem:[%s117 + $0x1788] sm:$0xff]
        %v892 = vld [vmem:[%s117 + $0x1790] sm:$0xff]
        %v893 = vld [vmem:[%s117 + $0x1798] sm:$0xff]
        %v894 = vld [vmem:[%s117 + $0x17a0] sm:$0xff]
        %v895 = vld [vmem:[%s117 + $0x17a8] sm:$0xff]
        %v896 = vld [vmem:[%s117 + $0x17b0] sm:$0xff]
        %v897 = vld [vmem:[%s117 + $0x17b8] sm:$0xff]
        %v898 = vld [vmem:[%s117 + $0x17c0] sm:$0xff]
        %v899 = vld [vmem:[%s117 + $0x17c8] sm:$0xff]
        %v900 = vld [vmem:[%s117 + $0x17d0] sm:$0xff]
        %v901 = vld [vmem:[%s117 + $0x17d8] sm:$0xff]
        %v902 = vld [vmem:[%s117 + $0x17e0] sm:$0xff]
        %v903 = vld [vmem:[%s117 + $0x17e8] sm:$0xff]
        %v904 = vld [vmem:[%s117 + $0x17f0] sm:$0xff]
        %v905 = vld [vmem:[%s117 + $0x17f8] sm:$0xff]
        %v906 = vld [vmem:[%s117 + $0x1800] sm:$0xff]
        %v907 = vld [vmem:[%s117 + $0x1808] sm:$0xff]
        %v908 = vld [vmem:[%s117 + $0x1810] sm:$0xff]
        %v909 = vld [vmem:[%s117 + $0x1818] sm:$0xff]
        %v910 = vld [vmem:[%s117 + $0x1820] sm:$0xff]
        %v911 = vld [vmem:[%s117 + $0x1828] sm:$0xff]
        %v912 = vld [vmem:[%s117 + $0x1830] sm:$0xff]
        %v913 = vld [vmem:[%s117 + $0x1838] sm:$0xff]
        %v914 = vld [vmem:[%s117 + $0x1840] sm:$0xff]
        %v915 = vld [vmem:[%s117 + $0x1848] sm:$0xff]
        %v916 = vld [vmem:[%s117 + $0x1850] sm:$0xff]
        %v917 = vld [vmem:[%s117 + $0x1858] sm:$0xff]
        %v918 = vld [vmem:[%s117 + $0x1860] sm:$0xff]
        %v919 = vld [vmem:[%s117 + $0x1868] sm:$0xff]
        %v920 = vld [vmem:[%s117 + $0x1870] sm:$0xff]
        %v921 = vld [vmem:[%s117 + $0x1878] sm:$0xff]
        %v922 = vld [vmem:[%s117 + $0x1880] sm:$0xff]
        %v923 = vld [vmem:[%s117 + $0x1888] sm:$0xff]
        %v924 = vld [vmem:[%s117 + $0x1890] sm:$0xff]
        %v925 = vld [vmem:[%s117 + $0x1898] sm:$0xff]
        %v926 = vld [vmem:[%s117 + $0x18a0] sm:$0xff]
        %v927 = vld [vmem:[%s117 + $0x18a8] sm:$0xff]
        %v928 = vld [vmem:[%s117 + $0x18b0] sm:$0xff]
        %v929 = vld [vmem:[%s117 + $0x18b8] sm:$0xff]
        %v930 = vld [vmem:[%s117 + $0x18c0] sm:$0xff]
        %v931 = vld [vmem:[%s117 + $0x18c8] sm:$0xff]
        %v932 = vld [vmem:[%s117 + $0x18d0] sm:$0xff]
        %v933 = vld [vmem:[%s117 + $0x18d8] sm:$0xff]
        %v934 = vld [vmem:[%s117 + $0x18e0] sm:$0xff]
        %v935 = vld [vmem:[%s117 + $0x18e8] sm:$0xff]
        %v936 = vld [vmem:[%s117 + $0x18f0] sm:$0xff]
        %v937 = vld [vmem:[%s117 + $0x18f8] sm:$0xff]
        %v938 = vld [vmem:[%s117 + $0x1900] sm:$0xff]
        %v939 = vld [vmem:[%s117 + $0x1908] sm:$0xff]
        %v940 = vld [vmem:[%s117 + $0x1910] sm:$0xff]
        %v941 = vld [vmem:[%s117 + $0x1918] sm:$0xff]
        %v942 = vld [vmem:[%s117 + $0x1920] sm:$0xff]
        %v943 = vld [vmem:[%s117 + $0x1928] sm:$0xff]
        %v944 = vld [vmem:[%s117 + $0x1930] sm:$0xff]
        %v945 = vld [vmem:[%s117 + $0x1938] sm:$0xff]
        %v946 = vld [vmem:[%s117 + $0x1940] sm:$0xff]
        %v947 = vld [vmem:[%s117 + $0x1948] sm:$0xff]
        %v948 = vld [vmem:[%s117 + $0x1950] sm:$0xff]
        %v949 = vld [vmem:[%s117 + $0x1958] sm:$0xff]
        %v950 = vld [vmem:[%s117 + $0x1960] sm:$0xff]
        %v951 = vld [vmem:[%s117 + $0x1968] sm:$0xff]
        %v952 = vld [vmem:[%s117 + $0x1970] sm:$0xff]
        %v953 = vld [vmem:[%s117 + $0x1978] sm:$0xff]
        %v954 = vld [vmem:[%s117 + $0x1980] sm:$0xff]
        %v955 = vld [vmem:[%s117 + $0x1988] sm:$0xff]
        %v956 = vld [vmem:[%s117 + $0x1990] sm:$0xff]
        %v957 = vld [vmem:[%s117 + $0x1998] sm:$0xff]
        %v958 = vld [vmem:[%s117 + $0x19a0] sm:$0xff]
        %v959 = vld [vmem:[%s117 + $0x19a8] sm:$0xff]
        %v960 = vld [vmem:[%s117 + $0x19b0] sm:$0xff]
        %v961 = vld [vmem:[%s117 + $0x19b8] sm:$0xff]
        %v962 = vld [vmem:[%s117 + $0x19c0] sm:$0xff]
        %v963 = vld [vmem:[%s117 + $0x19c8] sm:$0xff]
        %v964 = vld [vmem:[%s117 + $0x19d0] sm:$0xff]
        %v965 = vld [vmem:[%s117 + $0x19d8] sm:$0xff]
        %v966 = vld [vmem:[%s117 + $0x19e0] sm:$0xff]
        %v967 = vld [vmem:[%s117 + $0x19e8] sm:$0xff]
        %v968 = vld [vmem:[%s117 + $0x19f0] sm:$0xff]
        %v969 = vld [vmem:[%s117 + $0x19f8] sm:$0xff]
        %v970 = vld [vmem:[%s117 + $0x1a00] sm:$0xff]
        %v971 = vld [vmem:[%s117 + $0x1a08] sm:$0xff]
        %v972 = vld [vmem:[%s117 + $0x1a10] sm:$0xff]
        %v973 = vld [vmem:[%s117 + $0x1a18] sm:$0xff]
        %v974 = vld [vmem:[%s117 + $0x1a20] sm:$0xff]
        %v975 = vld [vmem:[%s117 + $0x1a28] sm:$0xff]
        %v976 = vld [vmem:[%s117 + $0x1a30] sm:$0xff]
        %v977 = vld [vmem:[%s117 + $0x1a38] sm:$0xff]
        %v978 = vld [vmem:[%s117 + $0x1a40] sm:$0xff]
        %v979 = vld [vmem:[%s117 + $0x1a48] sm:$0xff]
        %v980 = vld [vmem:[%s117 + $0x1a50] sm:$0xff]
        %v981 = vld [vmem:[%s117 + $0x1a58] sm:$0xff]
        %v982 = vld [vmem:[%s117 + $0x1a60] sm:$0xff]
        %v983 = vld [vmem:[%s117 + $0x1a68] sm:$0xff]
        %v984 = vld [vmem:[%s117 + $0x1a70] sm:$0xff]
        %v985 = vld [vmem:[%s117 + $0x1a78] sm:$0xff]
        %v986 = vld [vmem:[%s117 + $0x1a80] sm:$0xff]
        %v987 = vld [vmem:[%s117 + $0x1a88] sm:$0xff]
        %v988 = vld [vmem:[%s117 + $0x1a90] sm:$0xff]
        %v989 = vld [vmem:[%s117 + $0x1a98] sm:$0xff]
        %v990 = vld [vmem:[%s117 + $0x1aa0] sm:$0xff]
        %v991 = vld [vmem:[%s117 + $0x1aa8] sm:$0xff]
        %v992 = vld [vmem:[%s117 + $0x1ab0] sm:$0xff]
        %v993 = vld [vmem:[%s117 + $0x1ab8] sm:$0xff]
        %v994 = vld [vmem:[%s117 + $0x1ac0] sm:$0xff]
        %v995 = vld [vmem:[%s117 + $0x1ac8] sm:$0xff]
        %v996 = vld [vmem:[%s117 + $0x1ad0] sm:$0xff]
        %v997 = vld [vmem:[%s117 + $0x1ad8] sm:$0xff]
        %v998 = vld [vmem:[%s117 + $0x1ae0] sm:$0xff]
        %v999 = vld [vmem:[%s117 + $0x1ae8] sm:$0xff]
        %v1000 = vld [vmem:[%s117 + $0x1af0] sm:$0xff]
        %v1001 = vld [vmem:[%s117 + $0x1af8] sm:$0xff]
        %v1002 = vld [vmem:[%s117 + $0x1b00] sm:$0xff]
        %v1003 = vld [vmem:[%s117 + $0x1b08] sm:$0xff]
        %v1004 = vld [vmem:[%s117 + $0x1b10] sm:$0xff]
        %v1005 = vld [vmem:[%s117 + $0x1b18] sm:$0xff]
        %v1006 = vld [vmem:[%s117 + $0x1b20] sm:$0xff]
        %v1007 = vld [vmem:[%s117 + $0x1b28] sm:$0xff]
        %v1008 = vld [vmem:[%s117 + $0x1b30] sm:$0xff]
        %v1009 = vld [vmem:[%s117 + $0x1b38] sm:$0xff]
        %v1010 = vld [vmem:[%s117 + $0x1b40] sm:$0xff]
        %v1011 = vld [vmem:[%s117 + $0x1b48] sm:$0xff]
        %v1012 = vld [vmem:[%s117 + $0x1b50] sm:$0xff]
        %v1013 = vld [vmem:[%s117 + $0x1b58] sm:$0xff]
        %v1014 = vld [vmem:[%s117 + $0x1b60] sm:$0xff]
        %v1015 = vld [vmem:[%s117 + $0x1b68] sm:$0xff]
        %v1016 = vld [vmem:[%s117 + $0x1b70] sm:$0xff]
        %v1017 = vld [vmem:[%s117 + $0x1b78] sm:$0xff]
        %v1018 = vld [vmem:[%s117 + $0x1b80] sm:$0xff]
        %v1019 = vld [vmem:[%s117 + $0x1b88] sm:$0xff]
        %v1020 = vld [vmem:[%s117 + $0x1b90] sm:$0xff]
        %v1021 = vld [vmem:[%s117 + $0x1b98] sm:$0xff]
        %v1022 = vld [vmem:[%s117 + $0x1ba0] sm:$0xff]
        %v1023 = vld [vmem:[%s117 + $0x1ba8] sm:$0xff]
        %v1024 = vld [vmem:[%s117 + $0x1bb0] sm:$0xff]
        %v1025 = vld [vmem:[%s117 + $0x1bb8] sm:$0xff]
        %v1026 = vld [vmem:[%s117 + $0x1bc0] sm:$0xff]
        %v1027 = vld [vmem:[%s117 + $0x1bc8] sm:$0xff]
        %v1028 = vld [vmem:[%s117 + $0x1bd0] sm:$0xff]
        %v1029 = vld [vmem:[%s117 + $0x1bd8] sm:$0xff]
        %v1030 = vld [vmem:[%s117 + $0x1be0] sm:$0xff]
        %v1031 = vld [vmem:[%s117 + $0x1be8] sm:$0xff]
        %v1032 = vld [vmem:[%s117 + $0x1bf0] sm:$0xff]
        %v1033 = vld [vmem:[%s117 + $0x1bf8] sm:$0xff]
        %v1034 = vld [vmem:[%s117 + $0x1c00] sm:$0xff]
        %v1035 = vld [vmem:[%s117 + $0x1c08] sm:$0xff]
        %v1036 = vld [vmem:[%s117 + $0x1c10] sm:$0xff]
        %v1037 = vld [vmem:[%s117 + $0x1c18] sm:$0xff]
        %v1038 = vld [vmem:[%s117 + $0x1c20] sm:$0xff]
        %v1039 = vld [vmem:[%s117 + $0x1c28] sm:$0xff]
        %v1040 = vld [vmem:[%s117 + $0x1c30] sm:$0xff]
        %v1041 = vld [vmem:[%s117 + $0x1c38] sm:$0xff]
        %v1042 = vld [vmem:[%s117 + $0x1c40] sm:$0xff]
        %v1043 = vld [vmem:[%s117 + $0x1c48] sm:$0xff]
        %v1044 = vld [vmem:[%s117 + $0x1c50] sm:$0xff]
        %v1045 = vld [vmem:[%s117 + $0x1c58] sm:$0xff]
        %v1046 = vld [vmem:[%s117 + $0x1c60] sm:$0xff]
        %v1047 = vld [vmem:[%s117 + $0x1c68] sm:$0xff]
        %v1048 = vld [vmem:[%s117 + $0x1c70] sm:$0xff]
        %v1049 = vld [vmem:[%s117 + $0x1c78] sm:$0xff]
        %v1050 = vld [vmem:[%s117 + $0x1c80] sm:$0xff]
        %v1051 = vld [vmem:[%s117 + $0x1c88] sm:$0xff]
        %v1052 = vld [vmem:[%s117 + $0x1c90] sm:$0xff]
        %v1053 = vld [vmem:[%s117 + $0x1c98] sm:$0xff]
        %v1054 = vld [vmem:[%s117 + $0x1ca0] sm:$0xff]
        %v1055 = vld [vmem:[%s117 + $0x1ca8] sm:$0xff]
        %v1056 = vld [vmem:[%s117 + $0x1cb0] sm:$0xff]
        %v1057 = vld [vmem:[%s117 + $0x1cb8] sm:$0xff]
        %v1058 = vld [vmem:[%s117 + $0x1cc0] sm:$0xff]
        %v1059 = vld [vmem:[%s117 + $0x1cc8] sm:$0xff]
        %v1060 = vld [vmem:[%s117 + $0x1cd0] sm:$0xff]
        %v1061 = vld [vmem:[%s117 + $0x1cd8] sm:$0xff]
        %v1062 = vld [vmem:[%s117 + $0x1ce0] sm:$0xff]
        %v1063 = vld [vmem:[%s117 + $0x1ce8] sm:$0xff]
        %v1064 = vld [vmem:[%s117 + $0x1cf0] sm:$0xff]
        %v1065 = vld [vmem:[%s117 + $0x1cf8] sm:$0xff]
        %v1066 = vld [vmem:[%s117 + $0x1d00] sm:$0xff]
        %v1067 = vld [vmem:[%s117 + $0x1d08] sm:$0xff]
        %v1068 = vld [vmem:[%s117 + $0x1d10] sm:$0xff]
        %v1069 = vld [vmem:[%s117 + $0x1d18] sm:$0xff]
        %v1070 = vld [vmem:[%s117 + $0x1d20] sm:$0xff]
        %v1071 = vld [vmem:[%s117 + $0x1d28] sm:$0xff]
        %v1072 = vld [vmem:[%s117 + $0x1d30] sm:$0xff]
        %v1073 = vld [vmem:[%s117 + $0x1d38] sm:$0xff]
        %v1074 = vld [vmem:[%s117 + $0x1d40] sm:$0xff]
        %v1075 = vld [vmem:[%s117 + $0x1d48] sm:$0xff]
        %v1076 = vld [vmem:[%s117 + $0x1d50] sm:$0xff]
        %v1077 = vld [vmem:[%s117 + $0x1d58] sm:$0xff]
        %v1078 = vld [vmem:[%s117 + $0x1d60] sm:$0xff]
        %v1079 = vld [vmem:[%s117 + $0x1d68] sm:$0xff]
        %v1080 = vld [vmem:[%s117 + $0x1d70] sm:$0xff]
        %v1081 = vld [vmem:[%s117 + $0x1d78] sm:$0xff]
        %v1082 = vld [vmem:[%s117 + $0x1d80] sm:$0xff]
        %v1083 = vld [vmem:[%s117 + $0x1d88] sm:$0xff]
        %v1084 = vld [vmem:[%s117 + $0x1d90] sm:$0xff]
        %v1085 = vld [vmem:[%s117 + $0x1d98] sm:$0xff]
        %v1086 = vld [vmem:[%s117 + $0x1da0] sm:$0xff]
        %v1087 = vld [vmem:[%s117 + $0x1da8] sm:$0xff]
        %v1088 = vld [vmem:[%s117 + $0x1db0] sm:$0xff]
        %v1089 = vld [vmem:[%s117 + $0x1db8] sm:$0xff]
        %v1090 = vld [vmem:[%s117 + $0x1dc0] sm:$0xff]
        %v1091 = vld [vmem:[%s117 + $0x1dc8] sm:$0xff]
        %v1092 = vld [vmem:[%s117 + $0x1dd0] sm:$0xff]
        %v1093 = vld [vmem:[%s117 + $0x1dd8] sm:$0xff]
        %v1094 = vld [vmem:[%s117 + $0x1de0] sm:$0xff]
        %v1095 = vld [vmem:[%s117 + $0x1de8] sm:$0xff]
        %v1096 = vld [vmem:[%s117 + $0x1df0] sm:$0xff]
        %v1097 = vld [vmem:[%s117 + $0x1df8] sm:$0xff]
        %v1098 = vld [vmem:[%s117 + $0x1e00] sm:$0xff]
        %v1099 = vld [vmem:[%s117 + $0x1e08] sm:$0xff]
        %v1100 = vld [vmem:[%s117 + $0x1e10] sm:$0xff]
        %v1101 = vld [vmem:[%s117 + $0x1e18] sm:$0xff]
        %v1102 = vld [vmem:[%s117 + $0x1e20] sm:$0xff]
        %v1103 = vld [vmem:[%s117 + $0x1e28] sm:$0xff]
        %v1104 = vld [vmem:[%s117 + $0x1e30] sm:$0xff]
        %v1105 = vld [vmem:[%s117 + $0x1e38] sm:$0xff]
        %v1106 = vld [vmem:[%s117 + $0x1e40] sm:$0xff]
        %v1107 = vld [vmem:[%s117 + $0x1e48] sm:$0xff]
        %v1108 = vld [vmem:[%s117 + $0x1e50] sm:$0xff]
        %v1109 = vld [vmem:[%s117 + $0x1e58] sm:$0xff]
        %v1110 = vld [vmem:[%s117 + $0x1e60] sm:$0xff]
        %v1111 = vld [vmem:[%s117 + $0x1e68] sm:$0xff]
        %v1112 = vld [vmem:[%s117 + $0x1e70] sm:$0xff]
        %v1113 = vld [vmem:[%s117 + $0x1e78] sm:$0xff]
        %v1114 = vld [vmem:[%s117 + $0x1e80] sm:$0xff]
        %v1115 = vld [vmem:[%s117 + $0x1e88] sm:$0xff]
        %v1116 = vld [vmem:[%s117 + $0x1e90] sm:$0xff]
        %v1117 = vld [vmem:[%s117 + $0x1e98] sm:$0xff]
        %v1118 = vld [vmem:[%s117 + $0x1ea0] sm:$0xff]
        %v1119 = vld [vmem:[%s117 + $0x1ea8] sm:$0xff]
        %v1120 = vld [vmem:[%s117 + $0x1eb0] sm:$0xff]
        %v1121 = vld [vmem:[%s117 + $0x1eb8] sm:$0xff]
        %v1122 = vld [vmem:[%s117 + $0x1ec0] sm:$0xff]
        %v1123 = vld [vmem:[%s117 + $0x1ec8] sm:$0xff]
        %v1124 = vld [vmem:[%s117 + $0x1ed0] sm:$0xff]
        %v1125 = vld [vmem:[%s117 + $0x1ed8] sm:$0xff]
        %v1126 = vld [vmem:[%s117 + $0x1ee0] sm:$0xff]
        %v1127 = vld [vmem:[%s117 + $0x1ee8] sm:$0xff]
        %v1128 = vld [vmem:[%s117 + $0x1ef0] sm:$0xff]
        %v1129 = vld [vmem:[%s117 + $0x1ef8] sm:$0xff]
        %v1130 = vld [vmem:[%s117 + $0x1f00] sm:$0xff]
        %v1131 = vld [vmem:[%s117 + $0x1f08] sm:$0xff]
        %v1132 = vld [vmem:[%s117 + $0x1f10] sm:$0xff]
        %v1133 = vld [vmem:[%s117 + $0x1f18] sm:$0xff]
        %v1134 = vld [vmem:[%s117 + $0x1f20] sm:$0xff]
        %v1135 = vld [vmem:[%s117 + $0x1f28] sm:$0xff]
        %v1136 = vld [vmem:[%s117 + $0x1f30] sm:$0xff]
        %v1137 = vld [vmem:[%s117 + $0x1f38] sm:$0xff]
        %v1138 = vld [vmem:[%s117 + $0x1f40] sm:$0xff]
        %v1139 = vld [vmem:[%s117 + $0x1f48] sm:$0xff]
        %v1140 = vld [vmem:[%s117 + $0x1f50] sm:$0xff]
        %v1141 = vld [vmem:[%s117 + $0x1f58] sm:$0xff]
        %v1142 = vld [vmem:[%s117 + $0x1f60] sm:$0xff]
        %v1143 = vld [vmem:[%s117 + $0x1f68] sm:$0xff]
        %v1144 = vld [vmem:[%s117 + $0x1f70] sm:$0xff]
        %v1145 = vld [vmem:[%s117 + $0x1f78] sm:$0xff]
        %v1146 = vld [vmem:[%s117 + $0x1f80] sm:$0xff]
        %v1147 = vld [vmem:[%s117 + $0x1f88] sm:$0xff]
        %v1148 = vld [vmem:[%s117 + $0x1f90] sm:$0xff]
        %v1149 = vld [vmem:[%s117 + $0x1f98] sm:$0xff]
        %v1150 = vld [vmem:[%s117 + $0x1fa0] sm:$0xff]
        %v1151 = vld [vmem:[%s117 + $0x1fa8] sm:$0xff]
        %v1152 = vld [vmem:[%s117 + $0x1fb0] sm:$0xff]
        %v1153 = vld [vmem:[%s117 + $0x1fb8] sm:$0xff]
        %v1154 = vld [vmem:[%s117 + $0x1fc0] sm:$0xff]
        %v1155 = vld [vmem:[%s117 + $0x1fc8] sm:$0xff]
        %v1156 = vld [vmem:[%s117 + $0x1fd0] sm:$0xff]
        %v1157 = vld [vmem:[%s117 + $0x1fd8] sm:$0xff]
        %v1158 = vld [vmem:[%s117 + $0x1fe0] sm:$0xff]
        %v1159 = vld [vmem:[%s117 + $0x1fe8] sm:$0xff]
        %v1160 = vld [vmem:[%s117 + $0x1ff0] sm:$0xff]
        %v1161 = vld [vmem:[%s117 + $0x1ff8] sm:$0xff]
        %v1162 = vmul.f32 %v138, 0.5
        %v1163 = vmul.f32 %v139, 0.5
        %v1164 = vmul.f32 %v140, 0.5
        %v1165 = vmul.f32 %v141, 0.5
        %v1166 = vmul.f32 %v142, 0.5
        %v1167 = vmul.f32 %v143, 0.5
        %v1168 = vmul.f32 %v144, 0.5
        %v1169 = vmul.f32 %v145, 0.5
        %v1170 = vmul.f32 %v146, 0.5
        %v1171 = vmul.f32 %v147, 0.5
        %v1172 = vmul.f32 %v148, 0.5
        %v1173 = vmul.f32 %v149, 0.5
        %v1174 = vmul.f32 %v150, 0.5
        %v1175 = vmul.f32 %v151, 0.5
        %v1176 = vmul.f32 %v152, 0.5
        %v1177 = vmul.f32 %v153, 0.5
        %v1178 = vmul.f32 %v154, 0.5
        %v1179 = vmul.f32 %v155, 0.5
        %v1180 = vmul.f32 %v156, 0.5
        %v1181 = vmul.f32 %v157, 0.5
        %v1182 = vmul.f32 %v158, 0.5
        %v1183 = vmul.f32 %v159, 0.5
        %v1184 = vmul.f32 %v160, 0.5
        %v1185 = vmul.f32 %v161, 0.5
        %v1186 = vmul.f32 %v162, 0.5
        %v1187 = vmul.f32 %v163, 0.5
        %v1188 = vmul.f32 %v164, 0.5
        %v1189 = vmul.f32 %v165, 0.5
        %v1190 = vmul.f32 %v166, 0.5
        %v1191 = vmul.f32 %v167, 0.5
        %v1192 = vmul.f32 %v168, 0.5
        %v1193 = vmul.f32 %v169, 0.5
        %v1194 = vmul.f32 %v170, 0.5
        %v1195 = vmul.f32 %v171, 0.5
        %v1196 = vmul.f32 %v172, 0.5
        %v1197 = vmul.f32 %v173, 0.5
        %v1198 = vmul.f32 %v174, 0.5
        %v1199 = vmul.f32 %v175, 0.5
        %v1200 = vmul.f32 %v176, 0.5
        %v1201 = vmul.f32 %v177, 0.5
        %v1202 = vmul.f32 %v178, 0.5
        %v1203 = vmul.f32 %v179, 0.5
        %v1204 = vmul.f32 %v180, 0.5
        %v1205 = vmul.f32 %v181, 0.5
        %v1206 = vmul.f32 %v182, 0.5
        %v1207 = vmul.f32 %v183, 0.5
        %v1208 = vmul.f32 %v184, 0.5
        %v1209 = vmul.f32 %v185, 0.5
        %v1210 = vmul.f32 %v186, 0.5
        %v1211 = vmul.f32 %v187, 0.5
        %v1212 = vmul.f32 %v188, 0.5
        %v1213 = vmul.f32 %v189, 0.5
        %v1214 = vmul.f32 %v190, 0.5
        %v1215 = vmul.f32 %v191, 0.5
        %v1216 = vmul.f32 %v192, 0.5
        %v1217 = vmul.f32 %v193, 0.5
        %v1218 = vmul.f32 %v194, 0.5
        %v1219 = vmul.f32 %v195, 0.5
        %v1220 = vmul.f32 %v196, 0.5
        %v1221 = vmul.f32 %v197, 0.5
        %v1222 = vmul.f32 %v198, 0.5
        %v1223 = vmul.f32 %v199, 0.5
        %v1224 = vmul.f32 %v200, 0.5
        %v1225 = vmul.f32 %v201, 0.5
        %v1226 = vmul.f32 %v202, 0.5
        %v1227 = vmul.f32 %v203, 0.5
        %v1228 = vmul.f32 %v204, 0.5
        %v1229 = vmul.f32 %v205, 0.5
        %v1230 = vmul.f32 %v206, 0.5
        %v1231 = vmul.f32 %v207, 0.5
        %v1232 = vmul.f32 %v208, 0.5
        %v1233 = vmul.f32 %v209, 0.5
        %v1234 = vmul.f32 %v210, 0.5
        %v1235 = vmul.f32 %v211, 0.5
        %v1236 = vmul.f32 %v212, 0.5
        %v1237 = vmul.f32 %v213, 0.5
        %v1238 = vmul.f32 %v214, 0.5
        %v1239 = vmul.f32 %v215, 0.5
        %v1240 = vmul.f32 %v216, 0.5
        %v1241 = vmul.f32 %v217, 0.5
        %v1242 = vmul.f32 %v218, 0.5
        %v1243 = vmul.f32 %v219, 0.5
        %v1244 = vmul.f32 %v220, 0.5
        %v1245 = vmul.f32 %v221, 0.5
        %v1246 = vmul.f32 %v222, 0.5
        %v1247 = vmul.f32 %v223, 0.5
        %v1248 = vmul.f32 %v224, 0.5
        %v1249 = vmul.f32 %v225, 0.5
        %v1250 = vmul.f32 %v226, 0.5
        %v1251 = vmul.f32 %v227, 0.5
        %v1252 = vmul.f32 %v228, 0.5
        %v1253 = vmul.f32 %v229, 0.5
        %v1254 = vmul.f32 %v230, 0.5
        %v1255 = vmul.f32 %v231, 0.5
        %v1256 = vmul.f32 %v232, 0.5
        %v1257 = vmul.f32 %v233, 0.5
        %v1258 = vmul.f32 %v234, 0.5
        %v1259 = vmul.f32 %v235, 0.5
        %v1260 = vmul.f32 %v236, 0.5
        %v1261 = vmul.f32 %v237, 0.5
        %v1262 = vmul.f32 %v238, 0.5
        %v1263 = vmul.f32 %v239, 0.5
        %v1264 = vmul.f32 %v240, 0.5
        %v1265 = vmul.f32 %v241, 0.5
        %v1266 = vmul.f32 %v242, 0.5
        %v1267 = vmul.f32 %v243, 0.5
        %v1268 = vmul.f32 %v244, 0.5
        %v1269 = vmul.f32 %v245, 0.5
        %v1270 = vmul.f32 %v246, 0.5
        %v1271 = vmul.f32 %v247, 0.5
        %v1272 = vmul.f32 %v248, 0.5
        %v1273 = vmul.f32 %v249, 0.5
        %v1274 = vmul.f32 %v250, 0.5
        %v1275 = vmul.f32 %v251, 0.5
        %v1276 = vmul.f32 %v252, 0.5
        %v1277 = vmul.f32 %v253, 0.5
        %v1278 = vmul.f32 %v254, 0.5
        %v1279 = vmul.f32 %v255, 0.5
        %v1280 = vmul.f32 %v256, 0.5
        %v1281 = vmul.f32 %v257, 0.5
        %v1282 = vmul.f32 %v258, 0.5
        %v1283 = vmul.f32 %v259, 0.5
        %v1284 = vmul.f32 %v260, 0.5
        %v1285 = vmul.f32 %v261, 0.5
        %v1286 = vmul.f32 %v262, 0.5
        %v1287 = vmul.f32 %v263, 0.5
        %v1288 = vmul.f32 %v264, 0.5
        %v1289 = vmul.f32 %v265, 0.5
        %v1290 = vmul.f32 %v266, 0.5
        %v1291 = vmul.f32 %v267, 0.5
        %v1292 = vmul.f32 %v268, 0.5
        %v1293 = vmul.f32 %v269, 0.5
        %v1294 = vmul.f32 %v270, 0.5
        %v1295 = vmul.f32 %v271, 0.5
        %v1296 = vmul.f32 %v272, 0.5
        %v1297 = vmul.f32 %v273, 0.5
        %v1298 = vmul.f32 %v274, 0.5
        %v1299 = vmul.f32 %v275, 0.5
        %v1300 = vmul.f32 %v276, 0.5
        %v1301 = vmul.f32 %v277, 0.5
        %v1302 = vmul.f32 %v278, 0.5
        %v1303 = vmul.f32 %v279, 0.5
        %v1304 = vmul.f32 %v280, 0.5
        %v1305 = vmul.f32 %v281, 0.5
        %v1306 = vmul.f32 %v282, 0.5
        %v1307 = vmul.f32 %v283, 0.5
        %v1308 = vmul.f32 %v284, 0.5
        %v1309 = vmul.f32 %v285, 0.5
        %v1310 = vmul.f32 %v286, 0.5
        %v1311 = vmul.f32 %v287, 0.5
        %v1312 = vmul.f32 %v288, 0.5
        %v1313 = vmul.f32 %v289, 0.5
        %v1314 = vmul.f32 %v290, 0.5
        %v1315 = vmul.f32 %v291, 0.5
        %v1316 = vmul.f32 %v292, 0.5
        %v1317 = vmul.f32 %v293, 0.5
        %v1318 = vmul.f32 %v294, 0.5
        %v1319 = vmul.f32 %v295, 0.5
        %v1320 = vmul.f32 %v296, 0.5
        %v1321 = vmul.f32 %v297, 0.5
        %v1322 = vmul.f32 %v298, 0.5
        %v1323 = vmul.f32 %v299, 0.5
        %v1324 = vmul.f32 %v300, 0.5
        %v1325 = vmul.f32 %v301, 0.5
        %v1326 = vmul.f32 %v302, 0.5
        %v1327 = vmul.f32 %v303, 0.5
        %v1328 = vmul.f32 %v304, 0.5
        %v1329 = vmul.f32 %v305, 0.5
        %v1330 = vmul.f32 %v306, 0.5
        %v1331 = vmul.f32 %v307, 0.5
        %v1332 = vmul.f32 %v308, 0.5
        %v1333 = vmul.f32 %v309, 0.5
        %v1334 = vmul.f32 %v310, 0.5
        %v1335 = vmul.f32 %v311, 0.5
        %v1336 = vmul.f32 %v312, 0.5
        %v1337 = vmul.f32 %v313, 0.5
        %v1338 = vmul.f32 %v314, 0.5
        %v1339 = vmul.f32 %v315, 0.5
        %v1340 = vmul.f32 %v316, 0.5
        %v1341 = vmul.f32 %v317, 0.5
        %v1342 = vmul.f32 %v318, 0.5
        %v1343 = vmul.f32 %v319, 0.5
        %v1344 = vmul.f32 %v320, 0.5
        %v1345 = vmul.f32 %v321, 0.5
        %v1346 = vmul.f32 %v322, 0.5
        %v1347 = vmul.f32 %v323, 0.5
        %v1348 = vmul.f32 %v324, 0.5
        %v1349 = vmul.f32 %v325, 0.5
        %v1350 = vmul.f32 %v326, 0.5
        %v1351 = vmul.f32 %v327, 0.5
        %v1352 = vmul.f32 %v328, 0.5
        %v1353 = vmul.f32 %v329, 0.5
        %v1354 = vmul.f32 %v330, 0.5
        %v1355 = vmul.f32 %v331, 0.5
        %v1356 = vmul.f32 %v332, 0.5
        %v1357 = vmul.f32 %v333, 0.5
        %v1358 = vmul.f32 %v334, 0.5
        %v1359 = vmul.f32 %v335, 0.5
        %v1360 = vmul.f32 %v336, 0.5
        %v1361 = vmul.f32 %v337, 0.5
        %v1362 = vmul.f32 %v338, 0.5
        %v1363 = vmul.f32 %v339, 0.5
        %v1364 = vmul.f32 %v340, 0.5
        %v1365 = vmul.f32 %v341, 0.5
        %v1366 = vmul.f32 %v342, 0.5
        %v1367 = vmul.f32 %v343, 0.5
        %v1368 = vmul.f32 %v344, 0.5
        %v1369 = vmul.f32 %v345, 0.5
        %v1370 = vmul.f32 %v346, 0.5
        %v1371 = vmul.f32 %v347, 0.5
        %v1372 = vmul.f32 %v348, 0.5
        %v1373 = vmul.f32 %v349, 0.5
        %v1374 = vmul.f32 %v350, 0.5
        %v1375 = vmul.f32 %v351, 0.5
        %v1376 = vmul.f32 %v352, 0.5
        %v1377 = vmul.f32 %v353, 0.5
        %v1378 = vmul.f32 %v354, 0.5
        %v1379 = vmul.f32 %v355, 0.5
        %v1380 = vmul.f32 %v356, 0.5
        %v1381 = vmul.f32 %v357, 0.5
        %v1382 = vmul.f32 %v358, 0.5
        %v1383 = vmul.f32 %v359, 0.5
        %v1384 = vmul.f32 %v360, 0.5
        %v1385 = vmul.f32 %v361, 0.5
        %v1386 = vmul.f32 %v362, 0.5
        %v1387 = vmul.f32 %v363, 0.5
        %v1388 = vmul.f32 %v364, 0.5
        %v1389 = vmul.f32 %v365, 0.5
        %v1390 = vmul.f32 %v366, 0.5
        %v1391 = vmul.f32 %v367, 0.5
        %v1392 = vmul.f32 %v368, 0.5
        %v1393 = vmul.f32 %v369, 0.5
        %v1394 = vmul.f32 %v370, 0.5
        %v1395 = vmul.f32 %v371, 0.5
        %v1396 = vmul.f32 %v372, 0.5
        %v1397 = vmul.f32 %v373, 0.5
        %v1398 = vmul.f32 %v374, 0.5
        %v1399 = vmul.f32 %v375, 0.5
        %v1400 = vmul.f32 %v376, 0.5
        %v1401 = vmul.f32 %v377, 0.5
        %v1402 = vmul.f32 %v378, 0.5
        %v1403 = vmul.f32 %v379, 0.5
        %v1404 = vmul.f32 %v380, 0.5
        %v1405 = vmul.f32 %v381, 0.5
        %v1406 = vmul.f32 %v382, 0.5
        %v1407 = vmul.f32 %v383, 0.5
        %v1408 = vmul.f32 %v384, 0.5
        %v1409 = vmul.f32 %v385, 0.5
        %v1410 = vmul.f32 %v386, 0.5
        %v1411 = vmul.f32 %v387, 0.5
        %v1412 = vmul.f32 %v388, 0.5
        %v1413 = vmul.f32 %v389, 0.5
        %v1414 = vmul.f32 %v390, 0.5
        %v1415 = vmul.f32 %v391, 0.5
        %v1416 = vmul.f32 %v392, 0.5
        %v1417 = vmul.f32 %v393, 0.5
        %v1418 = vmul.f32 %v394, 0.5
        %v1419 = vmul.f32 %v395, 0.5
        %v1420 = vmul.f32 %v396, 0.5
        %v1421 = vmul.f32 %v397, 0.5
        %v1422 = vmul.f32 %v398, 0.5
        %v1423 = vmul.f32 %v399, 0.5
        %v1424 = vmul.f32 %v400, 0.5
        %v1425 = vmul.f32 %v401, 0.5
        %v1426 = vmul.f32 %v402, 0.5
        %v1427 = vmul.f32 %v403, 0.5
        %v1428 = vmul.f32 %v404, 0.5
        %v1429 = vmul.f32 %v405, 0.5
        %v1430 = vmul.f32 %v406, 0.5
        %v1431 = vmul.f32 %v407, 0.5
        %v1432 = vmul.f32 %v408, 0.5
        %v1433 = vmul.f32 %v409, 0.5
        %v1434 = vmul.f32 %v410, 0.5
        %v1435 = vmul.f32 %v411, 0.5
        %v1436 = vmul.f32 %v412, 0.5
        %v1437 = vmul.f32 %v413, 0.5
        %v1438 = vmul.f32 %v414, 0.5
        %v1439 = vmul.f32 %v415, 0.5
        %v1440 = vmul.f32 %v416, 0.5
        %v1441 = vmul.f32 %v417, 0.5
        %v1442 = vmul.f32 %v418, 0.5
        %v1443 = vmul.f32 %v419, 0.5
        %v1444 = vmul.f32 %v420, 0.5
        %v1445 = vmul.f32 %v421, 0.5
        %v1446 = vmul.f32 %v422, 0.5
        %v1447 = vmul.f32 %v423, 0.5
        %v1448 = vmul.f32 %v424, 0.5
        %v1449 = vmul.f32 %v425, 0.5
        %v1450 = vmul.f32 %v426, 0.5
        %v1451 = vmul.f32 %v427, 0.5
        %v1452 = vmul.f32 %v428, 0.5
        %v1453 = vmul.f32 %v429, 0.5
        %v1454 = vmul.f32 %v430, 0.5
        %v1455 = vmul.f32 %v431, 0.5
        %v1456 = vmul.f32 %v432, 0.5
        %v1457 = vmul.f32 %v433, 0.5
        %v1458 = vmul.f32 %v434, 0.5
        %v1459 = vmul.f32 %v435, 0.5
        %v1460 = vmul.f32 %v436, 0.5
        %v1461 = vmul.f32 %v437, 0.5
        %v1462 = vmul.f32 %v438, 0.5
        %v1463 = vmul.f32 %v439, 0.5
        %v1464 = vmul.f32 %v440, 0.5
        %v1465 = vmul.f32 %v441, 0.5
        %v1466 = vmul.f32 %v442, 0.5
        %v1467 = vmul.f32 %v443, 0.5
        %v1468 = vmul.f32 %v444, 0.5
        %v1469 = vmul.f32 %v445, 0.5
        %v1470 = vmul.f32 %v446, 0.5
        %v1471 = vmul.f32 %v447, 0.5
        %v1472 = vmul.f32 %v448, 0.5
        %v1473 = vmul.f32 %v449, 0.5
        %v1474 = vmul.f32 %v450, 0.5
        %v1475 = vmul.f32 %v451, 0.5
        %v1476 = vmul.f32 %v452, 0.5
        %v1477 = vmul.f32 %v453, 0.5
        %v1478 = vmul.f32 %v454, 0.5
        %v1479 = vmul.f32 %v455, 0.5
        %v1480 = vmul.f32 %v456, 0.5
        %v1481 = vmul.f32 %v457, 0.5
        %v1482 = vmul.f32 %v458, 0.5
        %v1483 = vmul.f32 %v459, 0.5
        %v1484 = vmul.f32 %v460, 0.5
        %v1485 = vmul.f32 %v461, 0.5
        %v1486 = vmul.f32 %v462, 0.5
        %v1487 = vmul.f32 %v463, 0.5
        %v1488 = vmul.f32 %v464, 0.5
        %v1489 = vmul.f32 %v465, 0.5
        %v1490 = vmul.f32 %v466, 0.5
        %v1491 = vmul.f32 %v467, 0.5
        %v1492 = vmul.f32 %v468, 0.5
        %v1493 = vmul.f32 %v469, 0.5
        %v1494 = vmul.f32 %v470, 0.5
        %v1495 = vmul.f32 %v471, 0.5
        %v1496 = vmul.f32 %v472, 0.5
        %v1497 = vmul.f32 %v473, 0.5
        %v1498 = vmul.f32 %v474, 0.5
        %v1499 = vmul.f32 %v475, 0.5
        %v1500 = vmul.f32 %v476, 0.5
        %v1501 = vmul.f32 %v477, 0.5
        %v1502 = vmul.f32 %v478, 0.5
        %v1503 = vmul.f32 %v479, 0.5
        %v1504 = vmul.f32 %v480, 0.5
        %v1505 = vmul.f32 %v481, 0.5
        %v1506 = vmul.f32 %v482, 0.5
        %v1507 = vmul.f32 %v483, 0.5
        %v1508 = vmul.f32 %v484, 0.5
        %v1509 = vmul.f32 %v485, 0.5
        %v1510 = vmul.f32 %v486, 0.5
        %v1511 = vmul.f32 %v487, 0.5
        %v1512 = vmul.f32 %v488, 0.5
        %v1513 = vmul.f32 %v489, 0.5
        %v1514 = vmul.f32 %v490, 0.5
        %v1515 = vmul.f32 %v491, 0.5
        %v1516 = vmul.f32 %v492, 0.5
        %v1517 = vmul.f32 %v493, 0.5
        %v1518 = vmul.f32 %v494, 0.5
        %v1519 = vmul.f32 %v495, 0.5
        %v1520 = vmul.f32 %v496, 0.5
        %v1521 = vmul.f32 %v497, 0.5
        %v1522 = vmul.f32 %v498, 0.5
        %v1523 = vmul.f32 %v499, 0.5
        %v1524 = vmul.f32 %v500, 0.5
        %v1525 = vmul.f32 %v501, 0.5
        %v1526 = vmul.f32 %v502, 0.5
        %v1527 = vmul.f32 %v503, 0.5
        %v1528 = vmul.f32 %v504, 0.5
        %v1529 = vmul.f32 %v505, 0.5
        %v1530 = vmul.f32 %v506, 0.5
        %v1531 = vmul.f32 %v507, 0.5
        %v1532 = vmul.f32 %v508, 0.5
        %v1533 = vmul.f32 %v509, 0.5
        %v1534 = vmul.f32 %v510, 0.5
        %v1535 = vmul.f32 %v511, 0.5
        %v1536 = vmul.f32 %v512, 0.5
        %v1537 = vmul.f32 %v513, 0.5
        %v1538 = vmul.f32 %v514, 0.5
        %v1539 = vmul.f32 %v515, 0.5
        %v1540 = vmul.f32 %v516, 0.5
        %v1541 = vmul.f32 %v517, 0.5
        %v1542 = vmul.f32 %v518, 0.5
        %v1543 = vmul.f32 %v519, 0.5
        %v1544 = vmul.f32 %v520, 0.5
        %v1545 = vmul.f32 %v521, 0.5
        %v1546 = vmul.f32 %v522, 0.5
        %v1547 = vmul.f32 %v523, 0.5
        %v1548 = vmul.f32 %v524, 0.5
        %v1549 = vmul.f32 %v525, 0.5
        %v1550 = vmul.f32 %v526, 0.5
        %v1551 = vmul.f32 %v527, 0.5
        %v1552 = vmul.f32 %v528, 0.5
        %v1553 = vmul.f32 %v529, 0.5
        %v1554 = vmul.f32 %v530, 0.5
        %v1555 = vmul.f32 %v531, 0.5
        %v1556 = vmul.f32 %v532, 0.5
        %v1557 = vmul.f32 %v533, 0.5
        %v1558 = vmul.f32 %v534, 0.5
        %v1559 = vmul.f32 %v535, 0.5
        %v1560 = vmul.f32 %v536, 0.5
        %v1561 = vmul.f32 %v537, 0.5
        %v1562 = vmul.f32 %v538, 0.5
        %v1563 = vmul.f32 %v539, 0.5
        %v1564 = vmul.f32 %v540, 0.5
        %v1565 = vmul.f32 %v541, 0.5
        %v1566 = vmul.f32 %v542, 0.5
        %v1567 = vmul.f32 %v543, 0.5
        %v1568 = vmul.f32 %v544, 0.5
        %v1569 = vmul.f32 %v545, 0.5
        %v1570 = vmul.f32 %v546, 0.5
        %v1571 = vmul.f32 %v547, 0.5
        %v1572 = vmul.f32 %v548, 0.5
        %v1573 = vmul.f32 %v549, 0.5
        %v1574 = vmul.f32 %v550, 0.5
        %v1575 = vmul.f32 %v551, 0.5
        %v1576 = vmul.f32 %v552, 0.5
        %v1577 = vmul.f32 %v553, 0.5
        %v1578 = vmul.f32 %v554, 0.5
        %v1579 = vmul.f32 %v555, 0.5
        %v1580 = vmul.f32 %v556, 0.5
        %v1581 = vmul.f32 %v557, 0.5
        %v1582 = vmul.f32 %v558, 0.5
        %v1583 = vmul.f32 %v559, 0.5
        %v1584 = vmul.f32 %v560, 0.5
        %v1585 = vmul.f32 %v561, 0.5
        %v1586 = vmul.f32 %v562, 0.5
        %v1587 = vmul.f32 %v563, 0.5
        %v1588 = vmul.f32 %v564, 0.5
        %v1589 = vmul.f32 %v565, 0.5
        %v1590 = vmul.f32 %v566, 0.5
        %v1591 = vmul.f32 %v567, 0.5
        %v1592 = vmul.f32 %v568, 0.5
        %v1593 = vmul.f32 %v569, 0.5
        %v1594 = vmul.f32 %v570, 0.5
        %v1595 = vmul.f32 %v571, 0.5
        %v1596 = vmul.f32 %v572, 0.5
        %v1597 = vmul.f32 %v573, 0.5
        %v1598 = vmul.f32 %v574, 0.5
        %v1599 = vmul.f32 %v575, 0.5
        %v1600 = vmul.f32 %v576, 0.5
        %v1601 = vmul.f32 %v577, 0.5
        %v1602 = vmul.f32 %v578, 0.5
        %v1603 = vmul.f32 %v579, 0.5
        %v1604 = vmul.f32 %v580, 0.5
        %v1605 = vmul.f32 %v581, 0.5
        %v1606 = vmul.f32 %v582, 0.5
        %v1607 = vmul.f32 %v583, 0.5
        %v1608 = vmul.f32 %v584, 0.5
        %v1609 = vmul.f32 %v585, 0.5
        %v1610 = vmul.f32 %v586, 0.5
        %v1611 = vmul.f32 %v587, 0.5
        %v1612 = vmul.f32 %v588, 0.5
        %v1613 = vmul.f32 %v589, 0.5
        %v1614 = vmul.f32 %v590, 0.5
        %v1615 = vmul.f32 %v591, 0.5
        %v1616 = vmul.f32 %v592, 0.5
        %v1617 = vmul.f32 %v593, 0.5
        %v1618 = vmul.f32 %v594, 0.5
        %v1619 = vmul.f32 %v595, 0.5
        %v1620 = vmul.f32 %v596, 0.5
        %v1621 = vmul.f32 %v597, 0.5
        %v1622 = vmul.f32 %v598, 0.5
        %v1623 = vmul.f32 %v599, 0.5
        %v1624 = vmul.f32 %v600, 0.5
        %v1625 = vmul.f32 %v601, 0.5
        %v1626 = vmul.f32 %v602, 0.5
        %v1627 = vmul.f32 %v603, 0.5
        %v1628 = vmul.f32 %v604, 0.5
        %v1629 = vmul.f32 %v605, 0.5
        %v1630 = vmul.f32 %v606, 0.5
        %v1631 = vmul.f32 %v607, 0.5
        %v1632 = vmul.f32 %v608, 0.5
        %v1633 = vmul.f32 %v609, 0.5
        %v1634 = vmul.f32 %v610, 0.5
        %v1635 = vmul.f32 %v611, 0.5
        %v1636 = vmul.f32 %v612, 0.5
        %v1637 = vmul.f32 %v613, 0.5
        %v1638 = vmul.f32 %v614, 0.5
        %v1639 = vmul.f32 %v615, 0.5
        %v1640 = vmul.f32 %v616, 0.5
        %v1641 = vmul.f32 %v617, 0.5
        %v1642 = vmul.f32 %v618, 0.5
        %v1643 = vmul.f32 %v619, 0.5
        %v1644 = vmul.f32 %v620, 0.5
        %v1645 = vmul.f32 %v621, 0.5
        %v1646 = vmul.f32 %v622, 0.5
        %v1647 = vmul.f32 %v623, 0.5
        %v1648 = vmul.f32 %v624, 0.5
        %v1649 = vmul.f32 %v625, 0.5
        %v1650 = vmul.f32 %v626, 0.5
        %v1651 = vmul.f32 %v627, 0.5
        %v1652 = vmul.f32 %v628, 0.5
        %v1653 = vmul.f32 %v629, 0.5
        %v1654 = vmul.f32 %v630, 0.5
        %v1655 = vmul.f32 %v631, 0.5
        %v1656 = vmul.f32 %v632, 0.5
        %v1657 = vmul.f32 %v633, 0.5
        %v1658 = vmul.f32 %v634, 0.5
        %v1659 = vmul.f32 %v635, 0.5
        %v1660 = vmul.f32 %v636, 0.5
        %v1661 = vmul.f32 %v637, 0.5
        %v1662 = vmul.f32 %v638, 0.5
        %v1663 = vmul.f32 %v639, 0.5
        %v1664 = vmul.f32 %v640, 0.5
        %v1665 = vmul.f32 %v641, 0.5
        %v1666 = vmul.f32 %v642, 0.5
        %v1667 = vmul.f32 %v643, 0.5
        %v1668 = vmul.f32 %v644, 0.5
        %v1669 = vmul.f32 %v645, 0.5
        %v1670 = vmul.f32 %v646, 0.5
        %v1671 = vmul.f32 %v647, 0.5
        %v1672 = vmul.f32 %v648, 0.5
        %v1673 = vmul.f32 %v649, 0.5
        %v1674 = vmul.f32 %v650, 0.5
        %v1675 = vmul.f32 %v651, 0.5
        %v1676 = vmul.f32 %v652, 0.5
        %v1677 = vmul.f32 %v653, 0.5
        %v1678 = vmul.f32 %v654, 0.5
        %v1679 = vmul.f32 %v655, 0.5
        %v1680 = vmul.f32 %v656, 0.5
        %v1681 = vmul.f32 %v657, 0.5
        %v1682 = vmul.f32 %v658, 0.5
        %v1683 = vmul.f32 %v659, 0.5
        %v1684 = vmul.f32 %v660, 0.5
        %v1685 = vmul.f32 %v661, 0.5
        %v1686 = vmul.f32 %v662, 0.5
        %v1687 = vmul.f32 %v663, 0.5
        %v1688 = vmul.f32 %v664, 0.5
        %v1689 = vmul.f32 %v665, 0.5
        %v1690 = vmul.f32 %v666, 0.5
        %v1691 = vmul.f32 %v667, 0.5
        %v1692 = vmul.f32 %v668, 0.5
        %v1693 = vmul.f32 %v669, 0.5
        %v1694 = vmul.f32 %v670, 0.5
        %v1695 = vmul.f32 %v671, 0.5
        %v1696 = vmul.f32 %v672, 0.5
        %v1697 = vmul.f32 %v673, 0.5
        %v1698 = vmul.f32 %v674, 0.5
        %v1699 = vmul.f32 %v675, 0.5
        %v1700 = vmul.f32 %v676, 0.5
        %v1701 = vmul.f32 %v677, 0.5
        %v1702 = vmul.f32 %v678, 0.5
        %v1703 = vmul.f32 %v679, 0.5
        %v1704 = vmul.f32 %v680, 0.5
        %v1705 = vmul.f32 %v681, 0.5
        %v1706 = vmul.f32 %v682, 0.5
        %v1707 = vmul.f32 %v683, 0.5
        %v1708 = vmul.f32 %v684, 0.5
        %v1709 = vmul.f32 %v685, 0.5
        %v1710 = vmul.f32 %v686, 0.5
        %v1711 = vmul.f32 %v687, 0.5
        %v1712 = vmul.f32 %v688, 0.5
        %v1713 = vmul.f32 %v689, 0.5
        %v1714 = vmul.f32 %v690, 0.5
        %v1715 = vmul.f32 %v691, 0.5
        %v1716 = vmul.f32 %v692, 0.5
        %v1717 = vmul.f32 %v693, 0.5
        %v1718 = vmul.f32 %v694, 0.5
        %v1719 = vmul.f32 %v695, 0.5
        %v1720 = vmul.f32 %v696, 0.5
        %v1721 = vmul.f32 %v697, 0.5
        %v1722 = vmul.f32 %v698, 0.5
        %v1723 = vmul.f32 %v699, 0.5
        %v1724 = vmul.f32 %v700, 0.5
        %v1725 = vmul.f32 %v701, 0.5
        %v1726 = vmul.f32 %v702, 0.5
        %v1727 = vmul.f32 %v703, 0.5
        %v1728 = vmul.f32 %v704, 0.5
        %v1729 = vmul.f32 %v705, 0.5
        %v1730 = vmul.f32 %v706, 0.5
        %v1731 = vmul.f32 %v707, 0.5
        %v1732 = vmul.f32 %v708, 0.5
        %v1733 = vmul.f32 %v709, 0.5
        %v1734 = vmul.f32 %v710, 0.5
        %v1735 = vmul.f32 %v711, 0.5
        %v1736 = vmul.f32 %v712, 0.5
        %v1737 = vmul.f32 %v713, 0.5
        %v1738 = vmul.f32 %v714, 0.5
        %v1739 = vmul.f32 %v715, 0.5
        %v1740 = vmul.f32 %v716, 0.5
        %v1741 = vmul.f32 %v717, 0.5
        %v1742 = vmul.f32 %v718, 0.5
        %v1743 = vmul.f32 %v719, 0.5
        %v1744 = vmul.f32 %v720, 0.5
        %v1745 = vmul.f32 %v721, 0.5
        %v1746 = vmul.f32 %v722, 0.5
        %v1747 = vmul.f32 %v723, 0.5
        %v1748 = vmul.f32 %v724, 0.5
        %v1749 = vmul.f32 %v725, 0.5
        %v1750 = vmul.f32 %v726, 0.5
        %v1751 = vmul.f32 %v727, 0.5
        %v1752 = vmul.f32 %v728, 0.5
        %v1753 = vmul.f32 %v729, 0.5
        %v1754 = vmul.f32 %v730, 0.5
        %v1755 = vmul.f32 %v731, 0.5
        %v1756 = vmul.f32 %v732, 0.5
        %v1757 = vmul.f32 %v733, 0.5
        %v1758 = vmul.f32 %v734, 0.5
        %v1759 = vmul.f32 %v735, 0.5
        %v1760 = vmul.f32 %v736, 0.5
        %v1761 = vmul.f32 %v737, 0.5
        %v1762 = vmul.f32 %v738, 0.5
        %v1763 = vmul.f32 %v739, 0.5
        %v1764 = vmul.f32 %v740, 0.5
        %v1765 = vmul.f32 %v741, 0.5
        %v1766 = vmul.f32 %v742, 0.5
        %v1767 = vmul.f32 %v743, 0.5
        %v1768 = vmul.f32 %v744, 0.5
        %v1769 = vmul.f32 %v745, 0.5
        %v1770 = vmul.f32 %v746, 0.5
        %v1771 = vmul.f32 %v747, 0.5
        %v1772 = vmul.f32 %v748, 0.5
        %v1773 = vmul.f32 %v749, 0.5
        %v1774 = vmul.f32 %v750, 0.5
        %v1775 = vmul.f32 %v751, 0.5
        %v1776 = vmul.f32 %v752, 0.5
        %v1777 = vmul.f32 %v753, 0.5
        %v1778 = vmul.f32 %v754, 0.5
        %v1779 = vmul.f32 %v755, 0.5
        %v1780 = vmul.f32 %v756, 0.5
        %v1781 = vmul.f32 %v757, 0.5
        %v1782 = vmul.f32 %v758, 0.5
        %v1783 = vmul.f32 %v759, 0.5
        %v1784 = vmul.f32 %v760, 0.5
        %v1785 = vmul.f32 %v761, 0.5
        %v1786 = vmul.f32 %v762, 0.5
        %v1787 = vmul.f32 %v763, 0.5
        %v1788 = vmul.f32 %v764, 0.5
        %v1789 = vmul.f32 %v765, 0.5
        %v1790 = vmul.f32 %v766, 0.5
        %v1791 = vmul.f32 %v767, 0.5
        %v1792 = vmul.f32 %v768, 0.5
        %v1793 = vmul.f32 %v769, 0.5
        %v1794 = vmul.f32 %v770, 0.5
        %v1795 = vmul.f32 %v771, 0.5
        %v1796 = vmul.f32 %v772, 0.5
        %v1797 = vmul.f32 %v773, 0.5
        %v1798 = vmul.f32 %v774, 0.5
        %v1799 = vmul.f32 %v775, 0.5
        %v1800 = vmul.f32 %v776, 0.5
        %v1801 = vmul.f32 %v777, 0.5
        %v1802 = vmul.f32 %v778, 0.5
        %v1803 = vmul.f32 %v779, 0.5
        %v1804 = vmul.f32 %v780, 0.5
        %v1805 = vmul.f32 %v781, 0.5
        %v1806 = vmul.f32 %v782, 0.5
        %v1807 = vmul.f32 %v783, 0.5
        %v1808 = vmul.f32 %v784, 0.5
        %v1809 = vmul.f32 %v785, 0.5
        %v1810 = vmul.f32 %v786, 0.5
        %v1811 = vmul.f32 %v787, 0.5
        %v1812 = vmul.f32 %v788, 0.5
        %v1813 = vmul.f32 %v789, 0.5
        %v1814 = vmul.f32 %v790, 0.5
        %v1815 = vmul.f32 %v791, 0.5
        %v1816 = vmul.f32 %v792, 0.5
        %v1817 = vmul.f32 %v793, 0.5
        %v1818 = vmul.f32 %v794, 0.5
        %v1819 = vmul.f32 %v795, 0.5
        %v1820 = vmul.f32 %v796, 0.5
        %v1821 = vmul.f32 %v797, 0.5
        %v1822 = vmul.f32 %v798, 0.5
        %v1823 = vmul.f32 %v799, 0.5
        %v1824 = vmul.f32 %v800, 0.5
        %v1825 = vmul.f32 %v801, 0.5
        %v1826 = vmul.f32 %v802, 0.5
        %v1827 = vmul.f32 %v803, 0.5
        %v1828 = vmul.f32 %v804, 0.5
        %v1829 = vmul.f32 %v805, 0.5
        %v1830 = vmul.f32 %v806, 0.5
        %v1831 = vmul.f32 %v807, 0.5
        %v1832 = vmul.f32 %v808, 0.5
        %v1833 = vmul.f32 %v809, 0.5
        %v1834 = vmul.f32 %v810, 0.5
        %v1835 = vmul.f32 %v811, 0.5
        %v1836 = vmul.f32 %v812, 0.5
        %v1837 = vmul.f32 %v813, 0.5
        %v1838 = vmul.f32 %v814, 0.5
        %v1839 = vmul.f32 %v815, 0.5
        %v1840 = vmul.f32 %v816, 0.5
        %v1841 = vmul.f32 %v817, 0.5
        %v1842 = vmul.f32 %v818, 0.5
        %v1843 = vmul.f32 %v819, 0.5
        %v1844 = vmul.f32 %v820, 0.5
        %v1845 = vmul.f32 %v821, 0.5
        %v1846 = vmul.f32 %v822, 0.5
        %v1847 = vmul.f32 %v823, 0.5
        %v1848 = vmul.f32 %v824, 0.5
        %v1849 = vmul.f32 %v825, 0.5
        %v1850 = vmul.f32 %v826, 0.5
        %v1851 = vmul.f32 %v827, 0.5
        %v1852 = vmul.f32 %v828, 0.5
        %v1853 = vmul.f32 %v829, 0.5
        %v1854 = vmul.f32 %v830, 0.5
        %v1855 = vmul.f32 %v831, 0.5
        %v1856 = vmul.f32 %v832, 0.5
        %v1857 = vmul.f32 %v833, 0.5
        %v1858 = vmul.f32 %v834, 0.5
        %v1859 = vmul.f32 %v835, 0.5
        %v1860 = vmul.f32 %v836, 0.5
        %v1861 = vmul.f32 %v837, 0.5
        %v1862 = vmul.f32 %v838, 0.5
        %v1863 = vmul.f32 %v839, 0.5
        %v1864 = vmul.f32 %v840, 0.5
        %v1865 = vmul.f32 %v841, 0.5
        %v1866 = vmul.f32 %v842, 0.5
        %v1867 = vmul.f32 %v843, 0.5
        %v1868 = vmul.f32 %v844, 0.5
        %v1869 = vmul.f32 %v845, 0.5
        %v1870 = vmul.f32 %v846, 0.5
        %v1871 = vmul.f32 %v847, 0.5
        %v1872 = vmul.f32 %v848, 0.5
        %v1873 = vmul.f32 %v849, 0.5
        %v1874 = vmul.f32 %v850, 0.5
        %v1875 = vmul.f32 %v851, 0.5
        %v1876 = vmul.f32 %v852, 0.5
        %v1877 = vmul.f32 %v853, 0.5
        %v1878 = vmul.f32 %v854, 0.5
        %v1879 = vmul.f32 %v855, 0.5
        %v1880 = vmul.f32 %v856, 0.5
        %v1881 = vmul.f32 %v857, 0.5
        %v1882 = vmul.f32 %v858, 0.5
        %v1883 = vmul.f32 %v859, 0.5
        %v1884 = vmul.f32 %v860, 0.5
        %v1885 = vmul.f32 %v861, 0.5
        %v1886 = vmul.f32 %v862, 0.5
        %v1887 = vmul.f32 %v863, 0.5
        %v1888 = vmul.f32 %v864, 0.5
        %v1889 = vmul.f32 %v865, 0.5
        %v1890 = vmul.f32 %v866, 0.5
        %v1891 = vmul.f32 %v867, 0.5
        %v1892 = vmul.f32 %v868, 0.5
        %v1893 = vmul.f32 %v869, 0.5
        %v1894 = vmul.f32 %v870, 0.5
        %v1895 = vmul.f32 %v871, 0.5
        %v1896 = vmul.f32 %v872, 0.5
        %v1897 = vmul.f32 %v873, 0.5
        %v1898 = vmul.f32 %v874, 0.5
        %v1899 = vmul.f32 %v875, 0.5
        %v1900 = vmul.f32 %v876, 0.5
        %v1901 = vmul.f32 %v877, 0.5
        %v1902 = vmul.f32 %v878, 0.5
        %v1903 = vmul.f32 %v879, 0.5
        %v1904 = vmul.f32 %v880, 0.5
        %v1905 = vmul.f32 %v881, 0.5
        %v1906 = vmul.f32 %v882, 0.5
        %v1907 = vmul.f32 %v883, 0.5
        %v1908 = vmul.f32 %v884, 0.5
        %v1909 = vmul.f32 %v885, 0.5
        %v1910 = vmul.f32 %v886, 0.5
        %v1911 = vmul.f32 %v887, 0.5
        %v1912 = vmul.f32 %v888, 0.5
        %v1913 = vmul.f32 %v889, 0.5
        %v1914 = vmul.f32 %v890, 0.5
        %v1915 = vmul.f32 %v891, 0.5
        %v1916 = vmul.f32 %v892, 0.5
        %v1917 = vmul.f32 %v893, 0.5
        %v1918 = vmul.f32 %v894, 0.5
        %v1919 = vmul.f32 %v895, 0.5
        %v1920 = vmul.f32 %v896, 0.5
        %v1921 = vmul.f32 %v897, 0.5
        %v1922 = vmul.f32 %v898, 0.5
        %v1923 = vmul.f32 %v899, 0.5
        %v1924 = vmul.f32 %v900, 0.5
        %v1925 = vmul.f32 %v901, 0.5
        %v1926 = vmul.f32 %v902, 0.5
        %v1927 = vmul.f32 %v903, 0.5
        %v1928 = vmul.f32 %v904, 0.5
        %v1929 = vmul.f32 %v905, 0.5
        %v1930 = vmul.f32 %v906, 0.5
        %v1931 = vmul.f32 %v907, 0.5
        %v1932 = vmul.f32 %v908, 0.5
        %v1933 = vmul.f32 %v909, 0.5
        %v1934 = vmul.f32 %v910, 0.5
        %v1935 = vmul.f32 %v911, 0.5
        %v1936 = vmul.f32 %v912, 0.5
        %v1937 = vmul.f32 %v913, 0.5
        %v1938 = vmul.f32 %v914, 0.5
        %v1939 = vmul.f32 %v915, 0.5
        %v1940 = vmul.f32 %v916, 0.5
        %v1941 = vmul.f32 %v917, 0.5
        %v1942 = vmul.f32 %v918, 0.5
        %v1943 = vmul.f32 %v919, 0.5
        %v1944 = vmul.f32 %v920, 0.5
        %v1945 = vmul.f32 %v921, 0.5
        %v1946 = vmul.f32 %v922, 0.5
        %v1947 = vmul.f32 %v923, 0.5
        %v1948 = vmul.f32 %v924, 0.5
        %v1949 = vmul.f32 %v925, 0.5
        %v1950 = vmul.f32 %v926, 0.5
        %v1951 = vmul.f32 %v927, 0.5
        %v1952 = vmul.f32 %v928, 0.5
        %v1953 = vmul.f32 %v929, 0.5
        %v1954 = vmul.f32 %v930, 0.5
        %v1955 = vmul.f32 %v931, 0.5
        %v1956 = vmul.f32 %v932, 0.5
        %v1957 = vmul.f32 %v933, 0.5
        %v1958 = vmul.f32 %v934, 0.5
        %v1959 = vmul.f32 %v935, 0.5
        %v1960 = vmul.f32 %v936, 0.5
        %v1961 = vmul.f32 %v937, 0.5
        %v1962 = vmul.f32 %v938, 0.5
        %v1963 = vmul.f32 %v939, 0.5
        %v1964 = vmul.f32 %v940, 0.5
        %v1965 = vmul.f32 %v941, 0.5
        %v1966 = vmul.f32 %v942, 0.5
        %v1967 = vmul.f32 %v943, 0.5
        %v1968 = vmul.f32 %v944, 0.5
        %v1969 = vmul.f32 %v945, 0.5
        %v1970 = vmul.f32 %v946, 0.5
        %v1971 = vmul.f32 %v947, 0.5
        %v1972 = vmul.f32 %v948, 0.5
        %v1973 = vmul.f32 %v949, 0.5
        %v1974 = vmul.f32 %v950, 0.5
        %v1975 = vmul.f32 %v951, 0.5
        %v1976 = vmul.f32 %v952, 0.5
        %v1977 = vmul.f32 %v953, 0.5
        %v1978 = vmul.f32 %v954, 0.5
        %v1979 = vmul.f32 %v955, 0.5
        %v1980 = vmul.f32 %v956, 0.5
        %v1981 = vmul.f32 %v957, 0.5
        %v1982 = vmul.f32 %v958, 0.5
        %v1983 = vmul.f32 %v959, 0.5
        %v1984 = vmul.f32 %v960, 0.5
        %v1985 = vmul.f32 %v961, 0.5
        %v1986 = vmul.f32 %v962, 0.5
        %v1987 = vmul.f32 %v963, 0.5
        %v1988 = vmul.f32 %v964, 0.5
        %v1989 = vmul.f32 %v965, 0.5
        %v1990 = vmul.f32 %v966, 0.5
        %v1991 = vmul.f32 %v967, 0.5
        %v1992 = vmul.f32 %v968, 0.5
        %v1993 = vmul.f32 %v969, 0.5
        %v1994 = vmul.f32 %v970, 0.5
        %v1995 = vmul.f32 %v971, 0.5
        %v1996 = vmul.f32 %v972, 0.5
        %v1997 = vmul.f32 %v973, 0.5
        %v1998 = vmul.f32 %v974, 0.5
        %v1999 = vmul.f32 %v975, 0.5
        %v2000 = vmul.f32 %v976, 0.5
        %v2001 = vmul.f32 %v977, 0.5
        %v2002 = vmul.f32 %v978, 0.5
        %v2003 = vmul.f32 %v979, 0.5
        %v2004 = vmul.f32 %v980, 0.5
        %v2005 = vmul.f32 %v981, 0.5
        %v2006 = vmul.f32 %v982, 0.5
        %v2007 = vmul.f32 %v983, 0.5
        %v2008 = vmul.f32 %v984, 0.5
        %v2009 = vmul.f32 %v985, 0.5
        %v2010 = vmul.f32 %v986, 0.5
        %v2011 = vmul.f32 %v987, 0.5
        %v2012 = vmul.f32 %v988, 0.5
        %v2013 = vmul.f32 %v989, 0.5
        %v2014 = vmul.f32 %v990, 0.5
        %v2015 = vmul.f32 %v991, 0.5
        %v2016 = vmul.f32 %v992, 0.5
        %v2017 = vmul.f32 %v993, 0.5
        %v2018 = vmul.f32 %v994, 0.5
        %v2019 = vmul.f32 %v995, 0.5
        %v2020 = vmul.f32 %v996, 0.5
        %v2021 = vmul.f32 %v997, 0.5
        %v2022 = vmul.f32 %v998, 0.5
        %v2023 = vmul.f32 %v999, 0.5
        %v2024 = vmul.f32 %v1000, 0.5
        %v2025 = vmul.f32 %v1001, 0.5
        %v2026 = vmul.f32 %v1002, 0.5
        %v2027 = vmul.f32 %v1003, 0.5
        %v2028 = vmul.f32 %v1004, 0.5
        %v2029 = vmul.f32 %v1005, 0.5
        %v2030 = vmul.f32 %v1006, 0.5
        %v2031 = vmul.f32 %v1007, 0.5
        %v2032 = vmul.f32 %v1008, 0.5
        %v2033 = vmul.f32 %v1009, 0.5
        %v2034 = vmul.f32 %v1010, 0.5
        %v2035 = vmul.f32 %v1011, 0.5
        %v2036 = vmul.f32 %v1012, 0.5
        %v2037 = vmul.f32 %v1013, 0.5
        %v2038 = vmul.f32 %v1014, 0.5
        %v2039 = vmul.f32 %v1015, 0.5
        %v2040 = vmul.f32 %v1016, 0.5
        %v2041 = vmul.f32 %v1017, 0.5
        %v2042 = vmul.f32 %v1018, 0.5
        %v2043 = vmul.f32 %v1019, 0.5
        %v2044 = vmul.f32 %v1020, 0.5
        %v2045 = vmul.f32 %v1021, 0.5
        %v2046 = vmul.f32 %v1022, 0.5
        %v2047 = vmul.f32 %v1023, 0.5
        %v2048 = vmul.f32 %v1024, 0.5
        %v2049 = vmul.f32 %v1025, 0.5
        %v2050 = vmul.f32 %v1026, 0.5
        %v2051 = vmul.f32 %v1027, 0.5
        %v2052 = vmul.f32 %v1028, 0.5
        %v2053 = vmul.f32 %v1029, 0.5
        %v2054 = vmul.f32 %v1030, 0.5
        %v2055 = vmul.f32 %v1031, 0.5
        %v2056 = vmul.f32 %v1032, 0.5
        %v2057 = vmul.f32 %v1033, 0.5
        %v2058 = vmul.f32 %v1034, 0.5
        %v2059 = vmul.f32 %v1035, 0.5
        %v2060 = vmul.f32 %v1036, 0.5
        %v2061 = vmul.f32 %v1037, 0.5
        %v2062 = vmul.f32 %v1038, 0.5
        %v2063 = vmul.f32 %v1039, 0.5
        %v2064 = vmul.f32 %v1040, 0.5
        %v2065 = vmul.f32 %v1041, 0.5
        %v2066 = vmul.f32 %v1042, 0.5
        %v2067 = vmul.f32 %v1043, 0.5
        %v2068 = vmul.f32 %v1044, 0.5
        %v2069 = vmul.f32 %v1045, 0.5
        %v2070 = vmul.f32 %v1046, 0.5
        %v2071 = vmul.f32 %v1047, 0.5
        %v2072 = vmul.f32 %v1048, 0.5
        %v2073 = vmul.f32 %v1049, 0.5
        %v2074 = vmul.f32 %v1050, 0.5
        %v2075 = vmul.f32 %v1051, 0.5
        %v2076 = vmul.f32 %v1052, 0.5
        %v2077 = vmul.f32 %v1053, 0.5
        %v2078 = vmul.f32 %v1054, 0.5
        %v2079 = vmul.f32 %v1055, 0.5
        %v2080 = vmul.f32 %v1056, 0.5
        %v2081 = vmul.f32 %v1057, 0.5
        %v2082 = vmul.f32 %v1058, 0.5
        %v2083 = vmul.f32 %v1059, 0.5
        %v2084 = vmul.f32 %v1060, 0.5
        %v2085 = vmul.f32 %v1061, 0.5
        %v2086 = vmul.f32 %v1062, 0.5
        %v2087 = vmul.f32 %v1063, 0.5
        %v2088 = vmul.f32 %v1064, 0.5
        %v2089 = vmul.f32 %v1065, 0.5
        %v2090 = vmul.f32 %v1066, 0.5
        %v2091 = vmul.f32 %v1067, 0.5
        %v2092 = vmul.f32 %v1068, 0.5
        %v2093 = vmul.f32 %v1069, 0.5
        %v2094 = vmul.f32 %v1070, 0.5
        %v2095 = vmul.f32 %v1071, 0.5
        %v2096 = vmul.f32 %v1072, 0.5
        %v2097 = vmul.f32 %v1073, 0.5
        %v2098 = vmul.f32 %v1074, 0.5
        %v2099 = vmul.f32 %v1075, 0.5
        %v2100 = vmul.f32 %v1076, 0.5
        %v2101 = vmul.f32 %v1077, 0.5
        %v2102 = vmul.f32 %v1078, 0.5
        %v2103 = vmul.f32 %v1079, 0.5
        %v2104 = vmul.f32 %v1080, 0.5
        %v2105 = vmul.f32 %v1081, 0.5
        %v2106 = vmul.f32 %v1082, 0.5
        %v2107 = vmul.f32 %v1083, 0.5
        %v2108 = vmul.f32 %v1084, 0.5
        %v2109 = vmul.f32 %v1085, 0.5
        %v2110 = vmul.f32 %v1086, 0.5
        %v2111 = vmul.f32 %v1087, 0.5
        %v2112 = vmul.f32 %v1088, 0.5
        %v2113 = vmul.f32 %v1089, 0.5
        %v2114 = vmul.f32 %v1090, 0.5
        %v2115 = vmul.f32 %v1091, 0.5
        %v2116 = vmul.f32 %v1092, 0.5
        %v2117 = vmul.f32 %v1093, 0.5
        %v2118 = vmul.f32 %v1094, 0.5
        %v2119 = vmul.f32 %v1095, 0.5
        %v2120 = vmul.f32 %v1096, 0.5
        %v2121 = vmul.f32 %v1097, 0.5
        %v2122 = vmul.f32 %v1098, 0.5
        %v2123 = vmul.f32 %v1099, 0.5
        %v2124 = vmul.f32 %v1100, 0.5
        %v2125 = vmul.f32 %v1101, 0.5
        %v2126 = vmul.f32 %v1102, 0.5
        %v2127 = vmul.f32 %v1103, 0.5
        %v2128 = vmul.f32 %v1104, 0.5
        %v2129 = vmul.f32 %v1105, 0.5
        %v2130 = vmul.f32 %v1106, 0.5
        %v2131 = vmul.f32 %v1107, 0.5
        %v2132 = vmul.f32 %v1108, 0.5
        %v2133 = vmul.f32 %v1109, 0.5
        %v2134 = vmul.f32 %v1110, 0.5
        %v2135 = vmul.f32 %v1111, 0.5
        %v2136 = vmul.f32 %v1112, 0.5
        %v2137 = vmul.f32 %v1113, 0.5
        %v2138 = vmul.f32 %v1114, 0.5
        %v2139 = vmul.f32 %v1115, 0.5
        %v2140 = vmul.f32 %v1116, 0.5
        %v2141 = vmul.f32 %v1117, 0.5
        %v2142 = vmul.f32 %v1118, 0.5
        %v2143 = vmul.f32 %v1119, 0.5
        %v2144 = vmul.f32 %v1120, 0.5
        %v2145 = vmul.f32 %v1121, 0.5
        %v2146 = vmul.f32 %v1122, 0.5
        %v2147 = vmul.f32 %v1123, 0.5
        %v2148 = vmul.f32 %v1124, 0.5
        %v2149 = vmul.f32 %v1125, 0.5
        %v2150 = vmul.f32 %v1126, 0.5
        %v2151 = vmul.f32 %v1127, 0.5
        %v2152 = vmul.f32 %v1128, 0.5
        %v2153 = vmul.f32 %v1129, 0.5
        %v2154 = vmul.f32 %v1130, 0.5
        %v2155 = vmul.f32 %v1131, 0.5
        %v2156 = vmul.f32 %v1132, 0.5
        %v2157 = vmul.f32 %v1133, 0.5
        %v2158 = vmul.f32 %v1134, 0.5
        %v2159 = vmul.f32 %v1135, 0.5
        %v2160 = vmul.f32 %v1136, 0.5
        %v2161 = vmul.f32 %v1137, 0.5
        %v2162 = vmul.f32 %v1138, 0.5
        %v2163 = vmul.f32 %v1139, 0.5
        %v2164 = vmul.f32 %v1140, 0.5
        %v2165 = vmul.f32 %v1141, 0.5
        %v2166 = vmul.f32 %v1142, 0.5
        %v2167 = vmul.f32 %v1143, 0.5
        %v2168 = vmul.f32 %v1144, 0.5
        %v2169 = vmul.f32 %v1145, 0.5
        %v2170 = vmul.f32 %v1146, 0.5
        %v2171 = vmul.f32 %v1147, 0.5
        %v2172 = vmul.f32 %v1148, 0.5
        %v2173 = vmul.f32 %v1149, 0.5
        %v2174 = vmul.f32 %v1150, 0.5
        %v2175 = vmul.f32 %v1151, 0.5
        %v2176 = vmul.f32 %v1152, 0.5
        %v2177 = vmul.f32 %v1153, 0.5
        %v2178 = vmul.f32 %v1154, 0.5
        %v2179 = vmul.f32 %v1155, 0.5
        %v2180 = vmul.f32 %v1156, 0.5
        %v2181 = vmul.f32 %v1157, 0.5
        %v2182 = vmul.f32 %v1158, 0.5
        %v2183 = vmul.f32 %v1159, 0.5
        %v2184 = vmul.f32 %v1160, 0.5
        %v2185 = vmul.f32 %v1161, 0.5
        %v2186 = vmax.f32 %v1162, -128.0
        %v2187 = vmax.f32 %v1163, -128.0
        %v2188 = vmax.f32 %v1164, -128.0
        %v2189 = vmax.f32 %v1165, -128.0
        %v2190 = vmax.f32 %v1166, -128.0
        %v2191 = vmax.f32 %v1167, -128.0
        %v2192 = vmax.f32 %v1168, -128.0
        %v2193 = vmax.f32 %v1169, -128.0
        %v2194 = vmax.f32 %v1170, -128.0
        %v2195 = vmax.f32 %v1171, -128.0
        %v2196 = vmax.f32 %v1172, -128.0
        %v2197 = vmax.f32 %v1173, -128.0
        %v2198 = vmax.f32 %v1174, -128.0
        %v2199 = vmax.f32 %v1175, -128.0
        %v2200 = vmax.f32 %v1176, -128.0
        %v2201 = vmax.f32 %v1177, -128.0
        %v2202 = vmax.f32 %v1178, -128.0
        %v2203 = vmax.f32 %v1179, -128.0
        %v2204 = vmax.f32 %v1180, -128.0
        %v2205 = vmax.f32 %v1181, -128.0
        %v2206 = vmax.f32 %v1182, -128.0
        %v2207 = vmax.f32 %v1183, -128.0
        %v2208 = vmax.f32 %v1184, -128.0
        %v2209 = vmax.f32 %v1185, -128.0
        %v2210 = vmax.f32 %v1186, -128.0
        %v2211 = vmax.f32 %v1187, -128.0
        %v2212 = vmax.f32 %v1188, -128.0
        %v2213 = vmax.f32 %v1189, -128.0
        %v2214 = vmax.f32 %v1190, -128.0
        %v2215 = vmax.f32 %v1191, -128.0
        %v2216 = vmax.f32 %v1192, -128.0
        %v2217 = vmax.f32 %v1193, -128.0
        %v2218 = vmax.f32 %v1194, -128.0
        %v2219 = vmax.f32 %v1195, -128.0
        %v2220 = vmax.f32 %v1196, -128.0
        %v2221 = vmax.f32 %v1197, -128.0
        %v2222 = vmax.f32 %v1198, -128.0
        %v2223 = vmax.f32 %v1199, -128.0
        %v2224 = vmax.f32 %v1200, -128.0
        %v2225 = vmax.f32 %v1201, -128.0
        %v2226 = vmax.f32 %v1202, -128.0
        %v2227 = vmax.f32 %v1203, -128.0
        %v2228 = vmax.f32 %v1204, -128.0
        %v2229 = vmax.f32 %v1205, -128.0
        %v2230 = vmax.f32 %v1206, -128.0
        %v2231 = vmax.f32 %v1207, -128.0
        %v2232 = vmax.f32 %v1208, -128.0
        %v2233 = vmax.f32 %v1209, -128.0
        %v2234 = vmax.f32 %v1210, -128.0
        %v2235 = vmax.f32 %v1211, -128.0
        %v2236 = vmax.f32 %v1212, -128.0
        %v2237 = vmax.f32 %v1213, -128.0
        %v2238 = vmax.f32 %v1214, -128.0
        %v2239 = vmax.f32 %v1215, -128.0
        %v2240 = vmax.f32 %v1216, -128.0
        %v2241 = vmax.f32 %v1217, -128.0
        %v2242 = vmax.f32 %v1218, -128.0
        %v2243 = vmax.f32 %v1219, -128.0
        %v2244 = vmax.f32 %v1220, -128.0
        %v2245 = vmax.f32 %v1221, -128.0
        %v2246 = vmax.f32 %v1222, -128.0
        %v2247 = vmax.f32 %v1223, -128.0
        %v2248 = vmax.f32 %v1224, -128.0
        %v2249 = vmax.f32 %v1225, -128.0
        %v2250 = vmax.f32 %v1226, -128.0
        %v2251 = vmax.f32 %v1227, -128.0
        %v2252 = vmax.f32 %v1228, -128.0
        %v2253 = vmax.f32 %v1229, -128.0
        %v2254 = vmax.f32 %v1230, -128.0
        %v2255 = vmax.f32 %v1231, -128.0
        %v2256 = vmax.f32 %v1232, -128.0
        %v2257 = vmax.f32 %v1233, -128.0
        %v2258 = vmax.f32 %v1234, -128.0
        %v2259 = vmax.f32 %v1235, -128.0
        %v2260 = vmax.f32 %v1236, -128.0
        %v2261 = vmax.f32 %v1237, -128.0
        %v2262 = vmax.f32 %v1238, -128.0
        %v2263 = vmax.f32 %v1239, -128.0
        %v2264 = vmax.f32 %v1240, -128.0
        %v2265 = vmax.f32 %v1241, -128.0
        %v2266 = vmax.f32 %v1242, -128.0
        %v2267 = vmax.f32 %v1243, -128.0
        %v2268 = vmax.f32 %v1244, -128.0
        %v2269 = vmax.f32 %v1245, -128.0
        %v2270 = vmax.f32 %v1246, -128.0
        %v2271 = vmax.f32 %v1247, -128.0
        %v2272 = vmax.f32 %v1248, -128.0
        %v2273 = vmax.f32 %v1249, -128.0
        %v2274 = vmax.f32 %v1250, -128.0
        %v2275 = vmax.f32 %v1251, -128.0
        %v2276 = vmax.f32 %v1252, -128.0
        %v2277 = vmax.f32 %v1253, -128.0
        %v2278 = vmax.f32 %v1254, -128.0
        %v2279 = vmax.f32 %v1255, -128.0
        %v2280 = vmax.f32 %v1256, -128.0
        %v2281 = vmax.f32 %v1257, -128.0
        %v2282 = vmax.f32 %v1258, -128.0
        %v2283 = vmax.f32 %v1259, -128.0
        %v2284 = vmax.f32 %v1260, -128.0
        %v2285 = vmax.f32 %v1261, -128.0
        %v2286 = vmax.f32 %v1262, -128.0
        %v2287 = vmax.f32 %v1263, -128.0
        %v2288 = vmax.f32 %v1264, -128.0
        %v2289 = vmax.f32 %v1265, -128.0
        %v2290 = vmax.f32 %v1266, -128.0
        %v2291 = vmax.f32 %v1267, -128.0
        %v2292 = vmax.f32 %v1268, -128.0
        %v2293 = vmax.f32 %v1269, -128.0
        %v2294 = vmax.f32 %v1270, -128.0
        %v2295 = vmax.f32 %v1271, -128.0
        %v2296 = vmax.f32 %v1272, -128.0
        %v2297 = vmax.f32 %v1273, -128.0
        %v2298 = vmax.f32 %v1274, -128.0
        %v2299 = vmax.f32 %v1275, -128.0
        %v2300 = vmax.f32 %v1276, -128.0
        %v2301 = vmax.f32 %v1277, -128.0
        %v2302 = vmax.f32 %v1278, -128.0
        %v2303 = vmax.f32 %v1279, -128.0
        %v2304 = vmax.f32 %v1280, -128.0
        %v2305 = vmax.f32 %v1281, -128.0
        %v2306 = vmax.f32 %v1282, -128.0
        %v2307 = vmax.f32 %v1283, -128.0
        %v2308 = vmax.f32 %v1284, -128.0
        %v2309 = vmax.f32 %v1285, -128.0
        %v2310 = vmax.f32 %v1286, -128.0
        %v2311 = vmax.f32 %v1287, -128.0
        %v2312 = vmax.f32 %v1288, -128.0
        %v2313 = vmax.f32 %v1289, -128.0
        %v2314 = vmax.f32 %v1290, -128.0
        %v2315 = vmax.f32 %v1291, -128.0
        %v2316 = vmax.f32 %v1292, -128.0
        %v2317 = vmax.f32 %v1293, -128.0
        %v2318 = vmax.f32 %v1294, -128.0
        %v2319 = vmax.f32 %v1295, -128.0
        %v2320 = vmax.f32 %v1296, -128.0
        %v2321 = vmax.f32 %v1297, -128.0
        %v2322 = vmax.f32 %v1298, -128.0
        %v2323 = vmax.f32 %v1299, -128.0
        %v2324 = vmax.f32 %v1300, -128.0
        %v2325 = vmax.f32 %v1301, -128.0
        %v2326 = vmax.f32 %v1302, -128.0
        %v2327 = vmax.f32 %v1303, -128.0
        %v2328 = vmax.f32 %v1304, -128.0
        %v2329 = vmax.f32 %v1305, -128.0
        %v2330 = vmax.f32 %v1306, -128.0
        %v2331 = vmax.f32 %v1307, -128.0
        %v2332 = vmax.f32 %v1308, -128.0
        %v2333 = vmax.f32 %v1309, -128.0
        %v2334 = vmax.f32 %v1310, -128.0
        %v2335 = vmax.f32 %v1311, -128.0
        %v2336 = vmax.f32 %v1312, -128.0
        %v2337 = vmax.f32 %v1313, -128.0
        %v2338 = vmax.f32 %v1314, -128.0
        %v2339 = vmax.f32 %v1315, -128.0
        %v2340 = vmax.f32 %v1316, -128.0
        %v2341 = vmax.f32 %v1317, -128.0
        %v2342 = vmax.f32 %v1318, -128.0
        %v2343 = vmax.f32 %v1319, -128.0
        %v2344 = vmax.f32 %v1320, -128.0
        %v2345 = vmax.f32 %v1321, -128.0
        %v2346 = vmax.f32 %v1322, -128.0
        %v2347 = vmax.f32 %v1323, -128.0
        %v2348 = vmax.f32 %v1324, -128.0
        %v2349 = vmax.f32 %v1325, -128.0
        %v2350 = vmax.f32 %v1326, -128.0
        %v2351 = vmax.f32 %v1327, -128.0
        %v2352 = vmax.f32 %v1328, -128.0
        %v2353 = vmax.f32 %v1329, -128.0
        %v2354 = vmax.f32 %v1330, -128.0
        %v2355 = vmax.f32 %v1331, -128.0
        %v2356 = vmax.f32 %v1332, -128.0
        %v2357 = vmax.f32 %v1333, -128.0
        %v2358 = vmax.f32 %v1334, -128.0
        %v2359 = vmax.f32 %v1335, -128.0
        %v2360 = vmax.f32 %v1336, -128.0
        %v2361 = vmax.f32 %v1337, -128.0
        %v2362 = vmax.f32 %v1338, -128.0
        %v2363 = vmax.f32 %v1339, -128.0
        %v2364 = vmax.f32 %v1340, -128.0
        %v2365 = vmax.f32 %v1341, -128.0
        %v2366 = vmax.f32 %v1342, -128.0
        %v2367 = vmax.f32 %v1343, -128.0
        %v2368 = vmax.f32 %v1344, -128.0
        %v2369 = vmax.f32 %v1345, -128.0
        %v2370 = vmax.f32 %v1346, -128.0
        %v2371 = vmax.f32 %v1347, -128.0
        %v2372 = vmax.f32 %v1348, -128.0
        %v2373 = vmax.f32 %v1349, -128.0
        %v2374 = vmax.f32 %v1350, -128.0
        %v2375 = vmax.f32 %v1351, -128.0
        %v2376 = vmax.f32 %v1352, -128.0
        %v2377 = vmax.f32 %v1353, -128.0
        %v2378 = vmax.f32 %v1354, -128.0
        %v2379 = vmax.f32 %v1355, -128.0
        %v2380 = vmax.f32 %v1356, -128.0
        %v2381 = vmax.f32 %v1357, -128.0
        %v2382 = vmax.f32 %v1358, -128.0
        %v2383 = vmax.f32 %v1359, -128.0
        %v2384 = vmax.f32 %v1360, -128.0
        %v2385 = vmax.f32 %v1361, -128.0
        %v2386 = vmax.f32 %v1362, -128.0
        %v2387 = vmax.f32 %v1363, -128.0
        %v2388 = vmax.f32 %v1364, -128.0
        %v2389 = vmax.f32 %v1365, -128.0
        %v2390 = vmax.f32 %v1366, -128.0
        %v2391 = vmax.f32 %v1367, -128.0
        %v2392 = vmax.f32 %v1368, -128.0
        %v2393 = vmax.f32 %v1369, -128.0
        %v2394 = vmax.f32 %v1370, -128.0
        %v2395 = vmax.f32 %v1371, -128.0
        %v2396 = vmax.f32 %v1372, -128.0
        %v2397 = vmax.f32 %v1373, -128.0
        %v2398 = vmax.f32 %v1374, -128.0
        %v2399 = vmax.f32 %v1375, -128.0
        %v2400 = vmax.f32 %v1376, -128.0
        %v2401 = vmax.f32 %v1377, -128.0
        %v2402 = vmax.f32 %v1378, -128.0
        %v2403 = vmax.f32 %v1379, -128.0
        %v2404 = vmax.f32 %v1380, -128.0
        %v2405 = vmax.f32 %v1381, -128.0
        %v2406 = vmax.f32 %v1382, -128.0
        %v2407 = vmax.f32 %v1383, -128.0
        %v2408 = vmax.f32 %v1384, -128.0
        %v2409 = vmax.f32 %v1385, -128.0
        %v2410 = vmax.f32 %v1386, -128.0
        %v2411 = vmax.f32 %v1387, -128.0
        %v2412 = vmax.f32 %v1388, -128.0
        %v2413 = vmax.f32 %v1389, -128.0
        %v2414 = vmax.f32 %v1390, -128.0
        %v2415 = vmax.f32 %v1391, -128.0
        %v2416 = vmax.f32 %v1392, -128.0
        %v2417 = vmax.f32 %v1393, -128.0
        %v2418 = vmax.f32 %v1394, -128.0
        %v2419 = vmax.f32 %v1395, -128.0
        %v2420 = vmax.f32 %v1396, -128.0
        %v2421 = vmax.f32 %v1397, -128.0
        %v2422 = vmax.f32 %v1398, -128.0
        %v2423 = vmax.f32 %v1399, -128.0
        %v2424 = vmax.f32 %v1400, -128.0
        %v2425 = vmax.f32 %v1401, -128.0
        %v2426 = vmax.f32 %v1402, -128.0
        %v2427 = vmax.f32 %v1403, -128.0
        %v2428 = vmax.f32 %v1404, -128.0
        %v2429 = vmax.f32 %v1405, -128.0
        %v2430 = vmax.f32 %v1406, -128.0
        %v2431 = vmax.f32 %v1407, -128.0
        %v2432 = vmax.f32 %v1408, -128.0
        %v2433 = vmax.f32 %v1409, -128.0
        %v2434 = vmax.f32 %v1410, -128.0
        %v2435 = vmax.f32 %v1411, -128.0
        %v2436 = vmax.f32 %v1412, -128.0
        %v2437 = vmax.f32 %v1413, -128.0
        %v2438 = vmax.f32 %v1414, -128.0
        %v2439 = vmax.f32 %v1415, -128.0
        %v2440 = vmax.f32 %v1416, -128.0
        %v2441 = vmax.f32 %v1417, -128.0
        %v2442 = vmax.f32 %v1418, -128.0
        %v2443 = vmax.f32 %v1419, -128.0
        %v2444 = vmax.f32 %v1420, -128.0
        %v2445 = vmax.f32 %v1421, -128.0
        %v2446 = vmax.f32 %v1422, -128.0
        %v2447 = vmax.f32 %v1423, -128.0
        %v2448 = vmax.f32 %v1424, -128.0
        %v2449 = vmax.f32 %v1425, -128.0
        %v2450 = vmax.f32 %v1426, -128.0
        %v2451 = vmax.f32 %v1427, -128.0
        %v2452 = vmax.f32 %v1428, -128.0
        %v2453 = vmax.f32 %v1429, -128.0
        %v2454 = vmax.f32 %v1430, -128.0
        %v2455 = vmax.f32 %v1431, -128.0
        %v2456 = vmax.f32 %v1432, -128.0
        %v2457 = vmax.f32 %v1433, -128.0
        %v2458 = vmax.f32 %v1434, -128.0
        %v2459 = vmax.f32 %v1435, -128.0
        %v2460 = vmax.f32 %v1436, -128.0
        %v2461 = vmax.f32 %v1437, -128.0
        %v2462 = vmax.f32 %v1438, -128.0
        %v2463 = vmax.f32 %v1439, -128.0
        %v2464 = vmax.f32 %v1440, -128.0
        %v2465 = vmax.f32 %v1441, -128.0
        %v2466 = vmax.f32 %v1442, -128.0
        %v2467 = vmax.f32 %v1443, -128.0
        %v2468 = vmax.f32 %v1444, -128.0
        %v2469 = vmax.f32 %v1445, -128.0
        %v2470 = vmax.f32 %v1446, -128.0
        %v2471 = vmax.f32 %v1447, -128.0
        %v2472 = vmax.f32 %v1448, -128.0
        %v2473 = vmax.f32 %v1449, -128.0
        %v2474 = vmax.f32 %v1450, -128.0
        %v2475 = vmax.f32 %v1451, -128.0
        %v2476 = vmax.f32 %v1452, -128.0
        %v2477 = vmax.f32 %v1453, -128.0
        %v2478 = vmax.f32 %v1454, -128.0
        %v2479 = vmax.f32 %v1455, -128.0
        %v2480 = vmax.f32 %v1456, -128.0
        %v2481 = vmax.f32 %v1457, -128.0
        %v2482 = vmax.f32 %v1458, -128.0
        %v2483 = vmax.f32 %v1459, -128.0
        %v2484 = vmax.f32 %v1460, -128.0
        %v2485 = vmax.f32 %v1461, -128.0
        %v2486 = vmax.f32 %v1462, -128.0
        %v2487 = vmax.f32 %v1463, -128.0
        %v2488 = vmax.f32 %v1464, -128.0
        %v2489 = vmax.f32 %v1465, -128.0
        %v2490 = vmax.f32 %v1466, -128.0
        %v2491 = vmax.f32 %v1467, -128.0
        %v2492 = vmax.f32 %v1468, -128.0
        %v2493 = vmax.f32 %v1469, -128.0
        %v2494 = vmax.f32 %v1470, -128.0
        %v2495 = vmax.f32 %v1471, -128.0
        %v2496 = vmax.f32 %v1472, -128.0
        %v2497 = vmax.f32 %v1473, -128.0
        %v2498 = vmax.f32 %v1474, -128.0
        %v2499 = vmax.f32 %v1475, -128.0
        %v2500 = vmax.f32 %v1476, -128.0
        %v2501 = vmax.f32 %v1477, -128.0
        %v2502 = vmax.f32 %v1478, -128.0
        %v2503 = vmax.f32 %v1479, -128.0
        %v2504 = vmax.f32 %v1480, -128.0
        %v2505 = vmax.f32 %v1481, -128.0
        %v2506 = vmax.f32 %v1482, -128.0
        %v2507 = vmax.f32 %v1483, -128.0
        %v2508 = vmax.f32 %v1484, -128.0
        %v2509 = vmax.f32 %v1485, -128.0
        %v2510 = vmax.f32 %v1486, -128.0
        %v2511 = vmax.f32 %v1487, -128.0
        %v2512 = vmax.f32 %v1488, -128.0
        %v2513 = vmax.f32 %v1489, -128.0
        %v2514 = vmax.f32 %v1490, -128.0
        %v2515 = vmax.f32 %v1491, -128.0
        %v2516 = vmax.f32 %v1492, -128.0
        %v2517 = vmax.f32 %v1493, -128.0
        %v2518 = vmax.f32 %v1494, -128.0
        %v2519 = vmax.f32 %v1495, -128.0
        %v2520 = vmax.f32 %v1496, -128.0
        %v2521 = vmax.f32 %v1497, -128.0
        %v2522 = vmax.f32 %v1498, -128.0
        %v2523 = vmax.f32 %v1499, -128.0
        %v2524 = vmax.f32 %v1500, -128.0
        %v2525 = vmax.f32 %v1501, -128.0
        %v2526 = vmax.f32 %v1502, -128.0
        %v2527 = vmax.f32 %v1503, -128.0
        %v2528 = vmax.f32 %v1504, -128.0
        %v2529 = vmax.f32 %v1505, -128.0
        %v2530 = vmax.f32 %v1506, -128.0
        %v2531 = vmax.f32 %v1507, -128.0
        %v2532 = vmax.f32 %v1508, -128.0
        %v2533 = vmax.f32 %v1509, -128.0
        %v2534 = vmax.f32 %v1510, -128.0
        %v2535 = vmax.f32 %v1511, -128.0
        %v2536 = vmax.f32 %v1512, -128.0
        %v2537 = vmax.f32 %v1513, -128.0
        %v2538 = vmax.f32 %v1514, -128.0
        %v2539 = vmax.f32 %v1515, -128.0
        %v2540 = vmax.f32 %v1516, -128.0
        %v2541 = vmax.f32 %v1517, -128.0
        %v2542 = vmax.f32 %v1518, -128.0
        %v2543 = vmax.f32 %v1519, -128.0
        %v2544 = vmax.f32 %v1520, -128.0
        %v2545 = vmax.f32 %v1521, -128.0
        %v2546 = vmax.f32 %v1522, -128.0
        %v2547 = vmax.f32 %v1523, -128.0
        %v2548 = vmax.f32 %v1524, -128.0
        %v2549 = vmax.f32 %v1525, -128.0
        %v2550 = vmax.f32 %v1526, -128.0
        %v2551 = vmax.f32 %v1527, -128.0
        %v2552 = vmax.f32 %v1528, -128.0
        %v2553 = vmax.f32 %v1529, -128.0
        %v2554 = vmax.f32 %v1530, -128.0
        %v2555 = vmax.f32 %v1531, -128.0
        %v2556 = vmax.f32 %v1532, -128.0
        %v2557 = vmax.f32 %v1533, -128.0
        %v2558 = vmax.f32 %v1534, -128.0
        %v2559 = vmax.f32 %v1535, -128.0
        %v2560 = vmax.f32 %v1536, -128.0
        %v2561 = vmax.f32 %v1537, -128.0
        %v2562 = vmax.f32 %v1538, -128.0
        %v2563 = vmax.f32 %v1539, -128.0
        %v2564 = vmax.f32 %v1540, -128.0
        %v2565 = vmax.f32 %v1541, -128.0
        %v2566 = vmax.f32 %v1542, -128.0
        %v2567 = vmax.f32 %v1543, -128.0
        %v2568 = vmax.f32 %v1544, -128.0
        %v2569 = vmax.f32 %v1545, -128.0
        %v2570 = vmax.f32 %v1546, -128.0
        %v2571 = vmax.f32 %v1547, -128.0
        %v2572 = vmax.f32 %v1548, -128.0
        %v2573 = vmax.f32 %v1549, -128.0
        %v2574 = vmax.f32 %v1550, -128.0
        %v2575 = vmax.f32 %v1551, -128.0
        %v2576 = vmax.f32 %v1552, -128.0
        %v2577 = vmax.f32 %v1553, -128.0
        %v2578 = vmax.f32 %v1554, -128.0
        %v2579 = vmax.f32 %v1555, -128.0
        %v2580 = vmax.f32 %v1556, -128.0
        %v2581 = vmax.f32 %v1557, -128.0
        %v2582 = vmax.f32 %v1558, -128.0
        %v2583 = vmax.f32 %v1559, -128.0
        %v2584 = vmax.f32 %v1560, -128.0
        %v2585 = vmax.f32 %v1561, -128.0
        %v2586 = vmax.f32 %v1562, -128.0
        %v2587 = vmax.f32 %v1563, -128.0
        %v2588 = vmax.f32 %v1564, -128.0
        %v2589 = vmax.f32 %v1565, -128.0
        %v2590 = vmax.f32 %v1566, -128.0
        %v2591 = vmax.f32 %v1567, -128.0
        %v2592 = vmax.f32 %v1568, -128.0
        %v2593 = vmax.f32 %v1569, -128.0
        %v2594 = vmax.f32 %v1570, -128.0
        %v2595 = vmax.f32 %v1571, -128.0
        %v2596 = vmax.f32 %v1572, -128.0
        %v2597 = vmax.f32 %v1573, -128.0
        %v2598 = vmax.f32 %v1574, -128.0
        %v2599 = vmax.f32 %v1575, -128.0
        %v2600 = vmax.f32 %v1576, -128.0
        %v2601 = vmax.f32 %v1577, -128.0
        %v2602 = vmax.f32 %v1578, -128.0
        %v2603 = vmax.f32 %v1579, -128.0
        %v2604 = vmax.f32 %v1580, -128.0
        %v2605 = vmax.f32 %v1581, -128.0
        %v2606 = vmax.f32 %v1582, -128.0
        %v2607 = vmax.f32 %v1583, -128.0
        %v2608 = vmax.f32 %v1584, -128.0
        %v2609 = vmax.f32 %v1585, -128.0
        %v2610 = vmax.f32 %v1586, -128.0
        %v2611 = vmax.f32 %v1587, -128.0
        %v2612 = vmax.f32 %v1588, -128.0
        %v2613 = vmax.f32 %v1589, -128.0
        %v2614 = vmax.f32 %v1590, -128.0
        %v2615 = vmax.f32 %v1591, -128.0
        %v2616 = vmax.f32 %v1592, -128.0
        %v2617 = vmax.f32 %v1593, -128.0
        %v2618 = vmax.f32 %v1594, -128.0
        %v2619 = vmax.f32 %v1595, -128.0
        %v2620 = vmax.f32 %v1596, -128.0
        %v2621 = vmax.f32 %v1597, -128.0
        %v2622 = vmax.f32 %v1598, -128.0
        %v2623 = vmax.f32 %v1599, -128.0
        %v2624 = vmax.f32 %v1600, -128.0
        %v2625 = vmax.f32 %v1601, -128.0
        %v2626 = vmax.f32 %v1602, -128.0
        %v2627 = vmax.f32 %v1603, -128.0
        %v2628 = vmax.f32 %v1604, -128.0
        %v2629 = vmax.f32 %v1605, -128.0
        %v2630 = vmax.f32 %v1606, -128.0
        %v2631 = vmax.f32 %v1607, -128.0
        %v2632 = vmax.f32 %v1608, -128.0
        %v2633 = vmax.f32 %v1609, -128.0
        %v2634 = vmax.f32 %v1610, -128.0
        %v2635 = vmax.f32 %v1611, -128.0
        %v2636 = vmax.f32 %v1612, -128.0
        %v2637 = vmax.f32 %v1613, -128.0
        %v2638 = vmax.f32 %v1614, -128.0
        %v2639 = vmax.f32 %v1615, -128.0
        %v2640 = vmax.f32 %v1616, -128.0
        %v2641 = vmax.f32 %v1617, -128.0
        %v2642 = vmax.f32 %v1618, -128.0
        %v2643 = vmax.f32 %v1619, -128.0
        %v2644 = vmax.f32 %v1620, -128.0
        %v2645 = vmax.f32 %v1621, -128.0
        %v2646 = vmax.f32 %v1622, -128.0
        %v2647 = vmax.f32 %v1623, -128.0
        %v2648 = vmax.f32 %v1624, -128.0
        %v2649 = vmax.f32 %v1625, -128.0
        %v2650 = vmax.f32 %v1626, -128.0
        %v2651 = vmax.f32 %v1627, -128.0
        %v2652 = vmax.f32 %v1628, -128.0
        %v2653 = vmax.f32 %v1629, -128.0
        %v2654 = vmax.f32 %v1630, -128.0
        %v2655 = vmax.f32 %v1631, -128.0
        %v2656 = vmax.f32 %v1632, -128.0
        %v2657 = vmax.f32 %v1633, -128.0
        %v2658 = vmax.f32 %v1634, -128.0
        %v2659 = vmax.f32 %v1635, -128.0
        %v2660 = vmax.f32 %v1636, -128.0
        %v2661 = vmax.f32 %v1637, -128.0
        %v2662 = vmax.f32 %v1638, -128.0
        %v2663 = vmax.f32 %v1639, -128.0
        %v2664 = vmax.f32 %v1640, -128.0
        %v2665 = vmax.f32 %v1641, -128.0
        %v2666 = vmax.f32 %v1642, -128.0
        %v2667 = vmax.f32 %v1643, -128.0
        %v2668 = vmax.f32 %v1644, -128.0
        %v2669 = vmax.f32 %v1645, -128.0
        %v2670 = vmax.f32 %v1646, -128.0
        %v2671 = vmax.f32 %v1647, -128.0
        %v2672 = vmax.f32 %v1648, -128.0
        %v2673 = vmax.f32 %v1649, -128.0
        %v2674 = vmax.f32 %v1650, -128.0
        %v2675 = vmax.f32 %v1651, -128.0
        %v2676 = vmax.f32 %v1652, -128.0
        %v2677 = vmax.f32 %v1653, -128.0
        %v2678 = vmax.f32 %v1654, -128.0
        %v2679 = vmax.f32 %v1655, -128.0
        %v2680 = vmax.f32 %v1656, -128.0
        %v2681 = vmax.f32 %v1657, -128.0
        %v2682 = vmax.f32 %v1658, -128.0
        %v2683 = vmax.f32 %v1659, -128.0
        %v2684 = vmax.f32 %v1660, -128.0
        %v2685 = vmax.f32 %v1661, -128.0
        %v2686 = vmax.f32 %v1662, -128.0
        %v2687 = vmax.f32 %v1663, -128.0
        %v2688 = vmax.f32 %v1664, -128.0
        %v2689 = vmax.f32 %v1665, -128.0
        %v2690 = vmax.f32 %v1666, -128.0
        %v2691 = vmax.f32 %v1667, -128.0
        %v2692 = vmax.f32 %v1668, -128.0
        %v2693 = vmax.f32 %v1669, -128.0
        %v2694 = vmax.f32 %v1670, -128.0
        %v2695 = vmax.f32 %v1671, -128.0
        %v2696 = vmax.f32 %v1672, -128.0
        %v2697 = vmax.f32 %v1673, -128.0
        %v2698 = vmax.f32 %v1674, -128.0
        %v2699 = vmax.f32 %v1675, -128.0
        %v2700 = vmax.f32 %v1676, -128.0
        %v2701 = vmax.f32 %v1677, -128.0
        %v2702 = vmax.f32 %v1678, -128.0
        %v2703 = vmax.f32 %v1679, -128.0
        %v2704 = vmax.f32 %v1680, -128.0
        %v2705 = vmax.f32 %v1681, -128.0
        %v2706 = vmax.f32 %v1682, -128.0
        %v2707 = vmax.f32 %v1683, -128.0
        %v2708 = vmax.f32 %v1684, -128.0
        %v2709 = vmax.f32 %v1685, -128.0
        %v2710 = vmax.f32 %v1686, -128.0
        %v2711 = vmax.f32 %v1687, -128.0
        %v2712 = vmax.f32 %v1688, -128.0
        %v2713 = vmax.f32 %v1689, -128.0
        %v2714 = vmax.f32 %v1690, -128.0
        %v2715 = vmax.f32 %v1691, -128.0
        %v2716 = vmax.f32 %v1692, -128.0
        %v2717 = vmax.f32 %v1693, -128.0
        %v2718 = vmax.f32 %v1694, -128.0
        %v2719 = vmax.f32 %v1695, -128.0
        %v2720 = vmax.f32 %v1696, -128.0
        %v2721 = vmax.f32 %v1697, -128.0
        %v2722 = vmax.f32 %v1698, -128.0
        %v2723 = vmax.f32 %v1699, -128.0
        %v2724 = vmax.f32 %v1700, -128.0
        %v2725 = vmax.f32 %v1701, -128.0
        %v2726 = vmax.f32 %v1702, -128.0
        %v2727 = vmax.f32 %v1703, -128.0
        %v2728 = vmax.f32 %v1704, -128.0
        %v2729 = vmax.f32 %v1705, -128.0
        %v2730 = vmax.f32 %v1706, -128.0
        %v2731 = vmax.f32 %v1707, -128.0
        %v2732 = vmax.f32 %v1708, -128.0
        %v2733 = vmax.f32 %v1709, -128.0
        %v2734 = vmax.f32 %v1710, -128.0
        %v2735 = vmax.f32 %v1711, -128.0
        %v2736 = vmax.f32 %v1712, -128.0
        %v2737 = vmax.f32 %v1713, -128.0
        %v2738 = vmax.f32 %v1714, -128.0
        %v2739 = vmax.f32 %v1715, -128.0
        %v2740 = vmax.f32 %v1716, -128.0
        %v2741 = vmax.f32 %v1717, -128.0
        %v2742 = vmax.f32 %v1718, -128.0
        %v2743 = vmax.f32 %v1719, -128.0
        %v2744 = vmax.f32 %v1720, -128.0
        %v2745 = vmax.f32 %v1721, -128.0
        %v2746 = vmax.f32 %v1722, -128.0
        %v2747 = vmax.f32 %v1723, -128.0
        %v2748 = vmax.f32 %v1724, -128.0
        %v2749 = vmax.f32 %v1725, -128.0
        %v2750 = vmax.f32 %v1726, -128.0
        %v2751 = vmax.f32 %v1727, -128.0
        %v2752 = vmax.f32 %v1728, -128.0
        %v2753 = vmax.f32 %v1729, -128.0
        %v2754 = vmax.f32 %v1730, -128.0
        %v2755 = vmax.f32 %v1731, -128.0
        %v2756 = vmax.f32 %v1732, -128.0
        %v2757 = vmax.f32 %v1733, -128.0
        %v2758 = vmax.f32 %v1734, -128.0
        %v2759 = vmax.f32 %v1735, -128.0
        %v2760 = vmax.f32 %v1736, -128.0
        %v2761 = vmax.f32 %v1737, -128.0
        %v2762 = vmax.f32 %v1738, -128.0
        %v2763 = vmax.f32 %v1739, -128.0
        %v2764 = vmax.f32 %v1740, -128.0
        %v2765 = vmax.f32 %v1741, -128.0
        %v2766 = vmax.f32 %v1742, -128.0
        %v2767 = vmax.f32 %v1743, -128.0
        %v2768 = vmax.f32 %v1744, -128.0
        %v2769 = vmax.f32 %v1745, -128.0
        %v2770 = vmax.f32 %v1746, -128.0
        %v2771 = vmax.f32 %v1747, -128.0
        %v2772 = vmax.f32 %v1748, -128.0
        %v2773 = vmax.f32 %v1749, -128.0
        %v2774 = vmax.f32 %v1750, -128.0
        %v2775 = vmax.f32 %v1751, -128.0
        %v2776 = vmax.f32 %v1752, -128.0
        %v2777 = vmax.f32 %v1753, -128.0
        %v2778 = vmax.f32 %v1754, -128.0
        %v2779 = vmax.f32 %v1755, -128.0
        %v2780 = vmax.f32 %v1756, -128.0
        %v2781 = vmax.f32 %v1757, -128.0
        %v2782 = vmax.f32 %v1758, -128.0
        %v2783 = vmax.f32 %v1759, -128.0
        %v2784 = vmax.f32 %v1760, -128.0
        %v2785 = vmax.f32 %v1761, -128.0
        %v2786 = vmax.f32 %v1762, -128.0
        %v2787 = vmax.f32 %v1763, -128.0
        %v2788 = vmax.f32 %v1764, -128.0
        %v2789 = vmax.f32 %v1765, -128.0
        %v2790 = vmax.f32 %v1766, -128.0
        %v2791 = vmax.f32 %v1767, -128.0
        %v2792 = vmax.f32 %v1768, -128.0
        %v2793 = vmax.f32 %v1769, -128.0
        %v2794 = vmax.f32 %v1770, -128.0
        %v2795 = vmax.f32 %v1771, -128.0
        %v2796 = vmax.f32 %v1772, -128.0
        %v2797 = vmax.f32 %v1773, -128.0
        %v2798 = vmax.f32 %v1774, -128.0
        %v2799 = vmax.f32 %v1775, -128.0
        %v2800 = vmax.f32 %v1776, -128.0
        %v2801 = vmax.f32 %v1777, -128.0
        %v2802 = vmax.f32 %v1778, -128.0
        %v2803 = vmax.f32 %v1779, -128.0
        %v2804 = vmax.f32 %v1780, -128.0
        %v2805 = vmax.f32 %v1781, -128.0
        %v2806 = vmax.f32 %v1782, -128.0
        %v2807 = vmax.f32 %v1783, -128.0
        %v2808 = vmax.f32 %v1784, -128.0
        %v2809 = vmax.f32 %v1785, -128.0
        %v2810 = vmax.f32 %v1786, -128.0
        %v2811 = vmax.f32 %v1787, -128.0
        %v2812 = vmax.f32 %v1788, -128.0
        %v2813 = vmax.f32 %v1789, -128.0
        %v2814 = vmax.f32 %v1790, -128.0
        %v2815 = vmax.f32 %v1791, -128.0
        %v2816 = vmax.f32 %v1792, -128.0
        %v2817 = vmax.f32 %v1793, -128.0
        %v2818 = vmax.f32 %v1794, -128.0
        %v2819 = vmax.f32 %v1795, -128.0
        %v2820 = vmax.f32 %v1796, -128.0
        %v2821 = vmax.f32 %v1797, -128.0
        %v2822 = vmax.f32 %v1798, -128.0
        %v2823 = vmax.f32 %v1799, -128.0
        %v2824 = vmax.f32 %v1800, -128.0
        %v2825 = vmax.f32 %v1801, -128.0
        %v2826 = vmax.f32 %v1802, -128.0
        %v2827 = vmax.f32 %v1803, -128.0
        %v2828 = vmax.f32 %v1804, -128.0
        %v2829 = vmax.f32 %v1805, -128.0
        %v2830 = vmax.f32 %v1806, -128.0
        %v2831 = vmax.f32 %v1807, -128.0
        %v2832 = vmax.f32 %v1808, -128.0
        %v2833 = vmax.f32 %v1809, -128.0
        %v2834 = vmax.f32 %v1810, -128.0
        %v2835 = vmax.f32 %v1811, -128.0
        %v2836 = vmax.f32 %v1812, -128.0
        %v2837 = vmax.f32 %v1813, -128.0
        %v2838 = vmax.f32 %v1814, -128.0
        %v2839 = vmax.f32 %v1815, -128.0
        %v2840 = vmax.f32 %v1816, -128.0
        %v2841 = vmax.f32 %v1817, -128.0
        %v2842 = vmax.f32 %v1818, -128.0
        %v2843 = vmax.f32 %v1819, -128.0
        %v2844 = vmax.f32 %v1820, -128.0
        %v2845 = vmax.f32 %v1821, -128.0
        %v2846 = vmax.f32 %v1822, -128.0
        %v2847 = vmax.f32 %v1823, -128.0
        %v2848 = vmax.f32 %v1824, -128.0
        %v2849 = vmax.f32 %v1825, -128.0
        %v2850 = vmax.f32 %v1826, -128.0
        %v2851 = vmax.f32 %v1827, -128.0
        %v2852 = vmax.f32 %v1828, -128.0
        %v2853 = vmax.f32 %v1829, -128.0
        %v2854 = vmax.f32 %v1830, -128.0
        %v2855 = vmax.f32 %v1831, -128.0
        %v2856 = vmax.f32 %v1832, -128.0
        %v2857 = vmax.f32 %v1833, -128.0
        %v2858 = vmax.f32 %v1834, -128.0
        %v2859 = vmax.f32 %v1835, -128.0
        %v2860 = vmax.f32 %v1836, -128.0
        %v2861 = vmax.f32 %v1837, -128.0
        %v2862 = vmax.f32 %v1838, -128.0
        %v2863 = vmax.f32 %v1839, -128.0
        %v2864 = vmax.f32 %v1840, -128.0
        %v2865 = vmax.f32 %v1841, -128.0
        %v2866 = vmax.f32 %v1842, -128.0
        %v2867 = vmax.f32 %v1843, -128.0
        %v2868 = vmax.f32 %v1844, -128.0
        %v2869 = vmax.f32 %v1845, -128.0
        %v2870 = vmax.f32 %v1846, -128.0
        %v2871 = vmax.f32 %v1847, -128.0
        %v2872 = vmax.f32 %v1848, -128.0
        %v2873 = vmax.f32 %v1849, -128.0
        %v2874 = vmax.f32 %v1850, -128.0
        %v2875 = vmax.f32 %v1851, -128.0
        %v2876 = vmax.f32 %v1852, -128.0
        %v2877 = vmax.f32 %v1853, -128.0
        %v2878 = vmax.f32 %v1854, -128.0
        %v2879 = vmax.f32 %v1855, -128.0
        %v2880 = vmax.f32 %v1856, -128.0
        %v2881 = vmax.f32 %v1857, -128.0
        %v2882 = vmax.f32 %v1858, -128.0
        %v2883 = vmax.f32 %v1859, -128.0
        %v2884 = vmax.f32 %v1860, -128.0
        %v2885 = vmax.f32 %v1861, -128.0
        %v2886 = vmax.f32 %v1862, -128.0
        %v2887 = vmax.f32 %v1863, -128.0
        %v2888 = vmax.f32 %v1864, -128.0
        %v2889 = vmax.f32 %v1865, -128.0
        %v2890 = vmax.f32 %v1866, -128.0
        %v2891 = vmax.f32 %v1867, -128.0
        %v2892 = vmax.f32 %v1868, -128.0
        %v2893 = vmax.f32 %v1869, -128.0
        %v2894 = vmax.f32 %v1870, -128.0
        %v2895 = vmax.f32 %v1871, -128.0
        %v2896 = vmax.f32 %v1872, -128.0
        %v2897 = vmax.f32 %v1873, -128.0
        %v2898 = vmax.f32 %v1874, -128.0
        %v2899 = vmax.f32 %v1875, -128.0
        %v2900 = vmax.f32 %v1876, -128.0
        %v2901 = vmax.f32 %v1877, -128.0
        %v2902 = vmax.f32 %v1878, -128.0
        %v2903 = vmax.f32 %v1879, -128.0
        %v2904 = vmax.f32 %v1880, -128.0
        %v2905 = vmax.f32 %v1881, -128.0
        %v2906 = vmax.f32 %v1882, -128.0
        %v2907 = vmax.f32 %v1883, -128.0
        %v2908 = vmax.f32 %v1884, -128.0
        %v2909 = vmax.f32 %v1885, -128.0
        %v2910 = vmax.f32 %v1886, -128.0
        %v2911 = vmax.f32 %v1887, -128.0
        %v2912 = vmax.f32 %v1888, -128.0
        %v2913 = vmax.f32 %v1889, -128.0
        %v2914 = vmax.f32 %v1890, -128.0
        %v2915 = vmax.f32 %v1891, -128.0
        %v2916 = vmax.f32 %v1892, -128.0
        %v2917 = vmax.f32 %v1893, -128.0
        %v2918 = vmax.f32 %v1894, -128.0
        %v2919 = vmax.f32 %v1895, -128.0
        %v2920 = vmax.f32 %v1896, -128.0
        %v2921 = vmax.f32 %v1897, -128.0
        %v2922 = vmax.f32 %v1898, -128.0
        %v2923 = vmax.f32 %v1899, -128.0
        %v2924 = vmax.f32 %v1900, -128.0
        %v2925 = vmax.f32 %v1901, -128.0
        %v2926 = vmax.f32 %v1902, -128.0
        %v2927 = vmax.f32 %v1903, -128.0
        %v2928 = vmax.f32 %v1904, -128.0
        %v2929 = vmax.f32 %v1905, -128.0
        %v2930 = vmax.f32 %v1906, -128.0
        %v2931 = vmax.f32 %v1907, -128.0
        %v2932 = vmax.f32 %v1908, -128.0
        %v2933 = vmax.f32 %v1909, -128.0
        %v2934 = vmax.f32 %v1910, -128.0
        %v2935 = vmax.f32 %v1911, -128.0
        %v2936 = vmax.f32 %v1912, -128.0
        %v2937 = vmax.f32 %v1913, -128.0
        %v2938 = vmax.f32 %v1914, -128.0
        %v2939 = vmax.f32 %v1915, -128.0
        %v2940 = vmax.f32 %v1916, -128.0
        %v2941 = vmax.f32 %v1917, -128.0
        %v2942 = vmax.f32 %v1918, -128.0
        %v2943 = vmax.f32 %v1919, -128.0
        %v2944 = vmax.f32 %v1920, -128.0
        %v2945 = vmax.f32 %v1921, -128.0
        %v2946 = vmax.f32 %v1922, -128.0
        %v2947 = vmax.f32 %v1923, -128.0
        %v2948 = vmax.f32 %v1924, -128.0
        %v2949 = vmax.f32 %v1925, -128.0
        %v2950 = vmax.f32 %v1926, -128.0
        %v2951 = vmax.f32 %v1927, -128.0
        %v2952 = vmax.f32 %v1928, -128.0
        %v2953 = vmax.f32 %v1929, -128.0
        %v2954 = vmax.f32 %v1930, -128.0
        %v2955 = vmax.f32 %v1931, -128.0
        %v2956 = vmax.f32 %v1932, -128.0
        %v2957 = vmax.f32 %v1933, -128.0
        %v2958 = vmax.f32 %v1934, -128.0
        %v2959 = vmax.f32 %v1935, -128.0
        %v2960 = vmax.f32 %v1936, -128.0
        %v2961 = vmax.f32 %v1937, -128.0
        %v2962 = vmax.f32 %v1938, -128.0
        %v2963 = vmax.f32 %v1939, -128.0
        %v2964 = vmax.f32 %v1940, -128.0
        %v2965 = vmax.f32 %v1941, -128.0
        %v2966 = vmax.f32 %v1942, -128.0
        %v2967 = vmax.f32 %v1943, -128.0
        %v2968 = vmax.f32 %v1944, -128.0
        %v2969 = vmax.f32 %v1945, -128.0
        %v2970 = vmax.f32 %v1946, -128.0
        %v2971 = vmax.f32 %v1947, -128.0
        %v2972 = vmax.f32 %v1948, -128.0
        %v2973 = vmax.f32 %v1949, -128.0
        %v2974 = vmax.f32 %v1950, -128.0
        %v2975 = vmax.f32 %v1951, -128.0
        %v2976 = vmax.f32 %v1952, -128.0
        %v2977 = vmax.f32 %v1953, -128.0
        %v2978 = vmax.f32 %v1954, -128.0
        %v2979 = vmax.f32 %v1955, -128.0
        %v2980 = vmax.f32 %v1956, -128.0
        %v2981 = vmax.f32 %v1957, -128.0
        %v2982 = vmax.f32 %v1958, -128.0
        %v2983 = vmax.f32 %v1959, -128.0
        %v2984 = vmax.f32 %v1960, -128.0
        %v2985 = vmax.f32 %v1961, -128.0
        %v2986 = vmax.f32 %v1962, -128.0
        %v2987 = vmax.f32 %v1963, -128.0
        %v2988 = vmax.f32 %v1964, -128.0
        %v2989 = vmax.f32 %v1965, -128.0
        %v2990 = vmax.f32 %v1966, -128.0
        %v2991 = vmax.f32 %v1967, -128.0
        %v2992 = vmax.f32 %v1968, -128.0
        %v2993 = vmax.f32 %v1969, -128.0
        %v2994 = vmax.f32 %v1970, -128.0
        %v2995 = vmax.f32 %v1971, -128.0
        %v2996 = vmax.f32 %v1972, -128.0
        %v2997 = vmax.f32 %v1973, -128.0
        %v2998 = vmax.f32 %v1974, -128.0
        %v2999 = vmax.f32 %v1975, -128.0
        %v3000 = vmax.f32 %v1976, -128.0
        %v3001 = vmax.f32 %v1977, -128.0
        %v3002 = vmax.f32 %v1978, -128.0
        %v3003 = vmax.f32 %v1979, -128.0
        %v3004 = vmax.f32 %v1980, -128.0
        %v3005 = vmax.f32 %v1981, -128.0
        %v3006 = vmax.f32 %v1982, -128.0
        %v3007 = vmax.f32 %v1983, -128.0
        %v3008 = vmax.f32 %v1984, -128.0
        %v3009 = vmax.f32 %v1985, -128.0
        %v3010 = vmax.f32 %v1986, -128.0
        %v3011 = vmax.f32 %v1987, -128.0
        %v3012 = vmax.f32 %v1988, -128.0
        %v3013 = vmax.f32 %v1989, -128.0
        %v3014 = vmax.f32 %v1990, -128.0
        %v3015 = vmax.f32 %v1991, -128.0
        %v3016 = vmax.f32 %v1992, -128.0
        %v3017 = vmax.f32 %v1993, -128.0
        %v3018 = vmax.f32 %v1994, -128.0
        %v3019 = vmax.f32 %v1995, -128.0
        %v3020 = vmax.f32 %v1996, -128.0
        %v3021 = vmax.f32 %v1997, -128.0
        %v3022 = vmax.f32 %v1998, -128.0
        %v3023 = vmax.f32 %v1999, -128.0
        %v3024 = vmax.f32 %v2000, -128.0
        %v3025 = vmax.f32 %v2001, -128.0
        %v3026 = vmax.f32 %v2002, -128.0
        %v3027 = vmax.f32 %v2003, -128.0
        %v3028 = vmax.f32 %v2004, -128.0
        %v3029 = vmax.f32 %v2005, -128.0
        %v3030 = vmax.f32 %v2006, -128.0
        %v3031 = vmax.f32 %v2007, -128.0
        %v3032 = vmax.f32 %v2008, -128.0
        %v3033 = vmax.f32 %v2009, -128.0
        %v3034 = vmax.f32 %v2010, -128.0
        %v3035 = vmax.f32 %v2011, -128.0
        %v3036 = vmax.f32 %v2012, -128.0
        %v3037 = vmax.f32 %v2013, -128.0
        %v3038 = vmax.f32 %v2014, -128.0
        %v3039 = vmax.f32 %v2015, -128.0
        %v3040 = vmax.f32 %v2016, -128.0
        %v3041 = vmax.f32 %v2017, -128.0
        %v3042 = vmax.f32 %v2018, -128.0
        %v3043 = vmax.f32 %v2019, -128.0
        %v3044 = vmax.f32 %v2020, -128.0
        %v3045 = vmax.f32 %v2021, -128.0
        %v3046 = vmax.f32 %v2022, -128.0
        %v3047 = vmax.f32 %v2023, -128.0
        %v3048 = vmax.f32 %v2024, -128.0
        %v3049 = vmax.f32 %v2025, -128.0
        %v3050 = vmax.f32 %v2026, -128.0
        %v3051 = vmax.f32 %v2027, -128.0
        %v3052 = vmax.f32 %v2028, -128.0
        %v3053 = vmax.f32 %v2029, -128.0
        %v3054 = vmax.f32 %v2030, -128.0
        %v3055 = vmax.f32 %v2031, -128.0
        %v3056 = vmax.f32 %v2032, -128.0
        %v3057 = vmax.f32 %v2033, -128.0
        %v3058 = vmax.f32 %v2034, -128.0
        %v3059 = vmax.f32 %v2035, -128.0
        %v3060 = vmax.f32 %v2036, -128.0
        %v3061 = vmax.f32 %v2037, -128.0
        %v3062 = vmax.f32 %v2038, -128.0
        %v3063 = vmax.f32 %v2039, -128.0
        %v3064 = vmax.f32 %v2040, -128.0
        %v3065 = vmax.f32 %v2041, -128.0
        %v3066 = vmax.f32 %v2042, -128.0
        %v3067 = vmax.f32 %v2043, -128.0
        %v3068 = vmax.f32 %v2044, -128.0
        %v3069 = vmax.f32 %v2045, -128.0
        %v3070 = vmax.f32 %v2046, -128.0
        %v3071 = vmax.f32 %v2047, -128.0
        %v3072 = vmax.f32 %v2048, -128.0
        %v3073 = vmax.f32 %v2049, -128.0
        %v3074 = vmax.f32 %v2050, -128.0
        %v3075 = vmax.f32 %v2051, -128.0
        %v3076 = vmax.f32 %v2052, -128.0
        %v3077 = vmax.f32 %v2053, -128.0
        %v3078 = vmax.f32 %v2054, -128.0
        %v3079 = vmax.f32 %v2055, -128.0
        %v3080 = vmax.f32 %v2056, -128.0
        %v3081 = vmax.f32 %v2057, -128.0
        %v3082 = vmax.f32 %v2058, -128.0
        %v3083 = vmax.f32 %v2059, -128.0
        %v3084 = vmax.f32 %v2060, -128.0
        %v3085 = vmax.f32 %v2061, -128.0
        %v3086 = vmax.f32 %v2062, -128.0
        %v3087 = vmax.f32 %v2063, -128.0
        %v3088 = vmax.f32 %v2064, -128.0
        %v3089 = vmax.f32 %v2065, -128.0
        %v3090 = vmax.f32 %v2066, -128.0
        %v3091 = vmax.f32 %v2067, -128.0
        %v3092 = vmax.f32 %v2068, -128.0
        %v3093 = vmax.f32 %v2069, -128.0
        %v3094 = vmax.f32 %v2070, -128.0
        %v3095 = vmax.f32 %v2071, -128.0
        %v3096 = vmax.f32 %v2072, -128.0
        %v3097 = vmax.f32 %v2073, -128.0
        %v3098 = vmax.f32 %v2074, -128.0
        %v3099 = vmax.f32 %v2075, -128.0
        %v3100 = vmax.f32 %v2076, -128.0
        %v3101 = vmax.f32 %v2077, -128.0
        %v3102 = vmax.f32 %v2078, -128.0
        %v3103 = vmax.f32 %v2079, -128.0
        %v3104 = vmax.f32 %v2080, -128.0
        %v3105 = vmax.f32 %v2081, -128.0
        %v3106 = vmax.f32 %v2082, -128.0
        %v3107 = vmax.f32 %v2083, -128.0
        %v3108 = vmax.f32 %v2084, -128.0
        %v3109 = vmax.f32 %v2085, -128.0
        %v3110 = vmax.f32 %v2086, -128.0
        %v3111 = vmax.f32 %v2087, -128.0
        %v3112 = vmax.f32 %v2088, -128.0
        %v3113 = vmax.f32 %v2089, -128.0
        %v3114 = vmax.f32 %v2090, -128.0
        %v3115 = vmax.f32 %v2091, -128.0
        %v3116 = vmax.f32 %v2092, -128.0
        %v3117 = vmax.f32 %v2093, -128.0
        %v3118 = vmax.f32 %v2094, -128.0
        %v3119 = vmax.f32 %v2095, -128.0
        %v3120 = vmax.f32 %v2096, -128.0
        %v3121 = vmax.f32 %v2097, -128.0
        %v3122 = vmax.f32 %v2098, -128.0
        %v3123 = vmax.f32 %v2099, -128.0
        %v3124 = vmax.f32 %v2100, -128.0
        %v3125 = vmax.f32 %v2101, -128.0
        %v3126 = vmax.f32 %v2102, -128.0
        %v3127 = vmax.f32 %v2103, -128.0
        %v3128 = vmax.f32 %v2104, -128.0
        %v3129 = vmax.f32 %v2105, -128.0
        %v3130 = vmax.f32 %v2106, -128.0
        %v3131 = vmax.f32 %v2107, -128.0
        %v3132 = vmax.f32 %v2108, -128.0
        %v3133 = vmax.f32 %v2109, -128.0
        %v3134 = vmax.f32 %v2110, -128.0
        %v3135 = vmax.f32 %v2111, -128.0
        %v3136 = vmax.f32 %v2112, -128.0
        %v3137 = vmax.f32 %v2113, -128.0
        %v3138 = vmax.f32 %v2114, -128.0
        %v3139 = vmax.f32 %v2115, -128.0
        %v3140 = vmax.f32 %v2116, -128.0
        %v3141 = vmax.f32 %v2117, -128.0
        %v3142 = vmax.f32 %v2118, -128.0
        %v3143 = vmax.f32 %v2119, -128.0
        %v3144 = vmax.f32 %v2120, -128.0
        %v3145 = vmax.f32 %v2121, -128.0
        %v3146 = vmax.f32 %v2122, -128.0
        %v3147 = vmax.f32 %v2123, -128.0
        %v3148 = vmax.f32 %v2124, -128.0
        %v3149 = vmax.f32 %v2125, -128.0
        %v3150 = vmax.f32 %v2126, -128.0
        %v3151 = vmax.f32 %v2127, -128.0
        %v3152 = vmax.f32 %v2128, -128.0
        %v3153 = vmax.f32 %v2129, -128.0
        %v3154 = vmax.f32 %v2130, -128.0
        %v3155 = vmax.f32 %v2131, -128.0
        %v3156 = vmax.f32 %v2132, -128.0
        %v3157 = vmax.f32 %v2133, -128.0
        %v3158 = vmax.f32 %v2134, -128.0
        %v3159 = vmax.f32 %v2135, -128.0
        %v3160 = vmax.f32 %v2136, -128.0
        %v3161 = vmax.f32 %v2137, -128.0
        %v3162 = vmax.f32 %v2138, -128.0
        %v3163 = vmax.f32 %v2139, -128.0
        %v3164 = vmax.f32 %v2140, -128.0
        %v3165 = vmax.f32 %v2141, -128.0
        %v3166 = vmax.f32 %v2142, -128.0
        %v3167 = vmax.f32 %v2143, -128.0
        %v3168 = vmax.f32 %v2144, -128.0
        %v3169 = vmax.f32 %v2145, -128.0
        %v3170 = vmax.f32 %v2146, -128.0
        %v3171 = vmax.f32 %v2147, -128.0
        %v3172 = vmax.f32 %v2148, -128.0
        %v3173 = vmax.f32 %v2149, -128.0
        %v3174 = vmax.f32 %v2150, -128.0
        %v3175 = vmax.f32 %v2151, -128.0
        %v3176 = vmax.f32 %v2152, -128.0
        %v3177 = vmax.f32 %v2153, -128.0
        %v3178 = vmax.f32 %v2154, -128.0
        %v3179 = vmax.f32 %v2155, -128.0
        %v3180 = vmax.f32 %v2156, -128.0
        %v3181 = vmax.f32 %v2157, -128.0
        %v3182 = vmax.f32 %v2158, -128.0
        %v3183 = vmax.f32 %v2159, -128.0
        %v3184 = vmax.f32 %v2160, -128.0
        %v3185 = vmax.f32 %v2161, -128.0
        %v3186 = vmax.f32 %v2162, -128.0
        %v3187 = vmax.f32 %v2163, -128.0
        %v3188 = vmax.f32 %v2164, -128.0
        %v3189 = vmax.f32 %v2165, -128.0
        %v3190 = vmax.f32 %v2166, -128.0
        %v3191 = vmax.f32 %v2167, -128.0
        %v3192 = vmax.f32 %v2168, -128.0
        %v3193 = vmax.f32 %v2169, -128.0
        %v3194 = vmax.f32 %v2170, -128.0
        %v3195 = vmax.f32 %v2171, -128.0
        %v3196 = vmax.f32 %v2172, -128.0
        %v3197 = vmax.f32 %v2173, -128.0
        %v3198 = vmax.f32 %v2174, -128.0
        %v3199 = vmax.f32 %v2175, -128.0
        %v3200 = vmax.f32 %v2176, -128.0
        %v3201 = vmax.f32 %v2177, -128.0
        %v3202 = vmax.f32 %v2178, -128.0
        %v3203 = vmax.f32 %v2179, -128.0
        %v3204 = vmax.f32 %v2180, -128.0
        %v3205 = vmax.f32 %v2181, -128.0
        %v3206 = vmax.f32 %v2182, -128.0
        %v3207 = vmax.f32 %v2183, -128.0
        %v3208 = vmax.f32 %v2184, -128.0
        %v3209 = vmax.f32 %v2185, -128.0
        %v3210 = vmin.f32 %v2186, 127.0
        %v3211 = vmin.f32 %v2187, 127.0
        %v3212 = vmin.f32 %v2188, 127.0
        %v3213 = vmin.f32 %v2189, 127.0
        %v3214 = vmin.f32 %v2190, 127.0
        %v3215 = vmin.f32 %v2191, 127.0
        %v3216 = vmin.f32 %v2192, 127.0
        %v3217 = vmin.f32 %v2193, 127.0
        %v3218 = vmin.f32 %v2194, 127.0
        %v3219 = vmin.f32 %v2195, 127.0
        %v3220 = vmin.f32 %v2196, 127.0
        %v3221 = vmin.f32 %v2197, 127.0
        %v3222 = vmin.f32 %v2198, 127.0
        %v3223 = vmin.f32 %v2199, 127.0
        %v3224 = vmin.f32 %v2200, 127.0
        %v3225 = vmin.f32 %v2201, 127.0
        %v3226 = vmin.f32 %v2202, 127.0
        %v3227 = vmin.f32 %v2203, 127.0
        %v3228 = vmin.f32 %v2204, 127.0
        %v3229 = vmin.f32 %v2205, 127.0
        %v3230 = vmin.f32 %v2206, 127.0
        %v3231 = vmin.f32 %v2207, 127.0
        %v3232 = vmin.f32 %v2208, 127.0
        %v3233 = vmin.f32 %v2209, 127.0
        %v3234 = vmin.f32 %v2210, 127.0
        %v3235 = vmin.f32 %v2211, 127.0
        %v3236 = vmin.f32 %v2212, 127.0
        %v3237 = vmin.f32 %v2213, 127.0
        %v3238 = vmin.f32 %v2214, 127.0
        %v3239 = vmin.f32 %v2215, 127.0
        %v3240 = vmin.f32 %v2216, 127.0
        %v3241 = vmin.f32 %v2217, 127.0
        %v3242 = vmin.f32 %v2218, 127.0
        %v3243 = vmin.f32 %v2219, 127.0
        %v3244 = vmin.f32 %v2220, 127.0
        %v3245 = vmin.f32 %v2221, 127.0
        %v3246 = vmin.f32 %v2222, 127.0
        %v3247 = vmin.f32 %v2223, 127.0
        %v3248 = vmin.f32 %v2224, 127.0
        %v3249 = vmin.f32 %v2225, 127.0
        %v3250 = vmin.f32 %v2226, 127.0
        %v3251 = vmin.f32 %v2227, 127.0
        %v3252 = vmin.f32 %v2228, 127.0
        %v3253 = vmin.f32 %v2229, 127.0
        %v3254 = vmin.f32 %v2230, 127.0
        %v3255 = vmin.f32 %v2231, 127.0
        %v3256 = vmin.f32 %v2232, 127.0
        %v3257 = vmin.f32 %v2233, 127.0
        %v3258 = vmin.f32 %v2234, 127.0
        %v3259 = vmin.f32 %v2235, 127.0
        %v3260 = vmin.f32 %v2236, 127.0
        %v3261 = vmin.f32 %v2237, 127.0
        %v3262 = vmin.f32 %v2238, 127.0
        %v3263 = vmin.f32 %v2239, 127.0
        %v3264 = vmin.f32 %v2240, 127.0
        %v3265 = vmin.f32 %v2241, 127.0
        %v3266 = vmin.f32 %v2242, 127.0
        %v3267 = vmin.f32 %v2243, 127.0
        %v3268 = vmin.f32 %v2244, 127.0
        %v3269 = vmin.f32 %v2245, 127.0
        %v3270 = vmin.f32 %v2246, 127.0
        %v3271 = vmin.f32 %v2247, 127.0
        %v3272 = vmin.f32 %v2248, 127.0
        %v3273 = vmin.f32 %v2249, 127.0
        %v3274 = vmin.f32 %v2250, 127.0
        %v3275 = vmin.f32 %v2251, 127.0
        %v3276 = vmin.f32 %v2252, 127.0
        %v3277 = vmin.f32 %v2253, 127.0
        %v3278 = vmin.f32 %v2254, 127.0
        %v3279 = vmin.f32 %v2255, 127.0
        %v3280 = vmin.f32 %v2256, 127.0
        %v3281 = vmin.f32 %v2257, 127.0
        %v3282 = vmin.f32 %v2258, 127.0
        %v3283 = vmin.f32 %v2259, 127.0
        %v3284 = vmin.f32 %v2260, 127.0
        %v3285 = vmin.f32 %v2261, 127.0
        %v3286 = vmin.f32 %v2262, 127.0
        %v3287 = vmin.f32 %v2263, 127.0
        %v3288 = vmin.f32 %v2264, 127.0
        %v3289 = vmin.f32 %v2265, 127.0
        %v3290 = vmin.f32 %v2266, 127.0
        %v3291 = vmin.f32 %v2267, 127.0
        %v3292 = vmin.f32 %v2268, 127.0
        %v3293 = vmin.f32 %v2269, 127.0
        %v3294 = vmin.f32 %v2270, 127.0
        %v3295 = vmin.f32 %v2271, 127.0
        %v3296 = vmin.f32 %v2272, 127.0
        %v3297 = vmin.f32 %v2273, 127.0
        %v3298 = vmin.f32 %v2274, 127.0
        %v3299 = vmin.f32 %v2275, 127.0
        %v3300 = vmin.f32 %v2276, 127.0
        %v3301 = vmin.f32 %v2277, 127.0
        %v3302 = vmin.f32 %v2278, 127.0
        %v3303 = vmin.f32 %v2279, 127.0
        %v3304 = vmin.f32 %v2280, 127.0
        %v3305 = vmin.f32 %v2281, 127.0
        %v3306 = vmin.f32 %v2282, 127.0
        %v3307 = vmin.f32 %v2283, 127.0
        %v3308 = vmin.f32 %v2284, 127.0
        %v3309 = vmin.f32 %v2285, 127.0
        %v3310 = vmin.f32 %v2286, 127.0
        %v3311 = vmin.f32 %v2287, 127.0
        %v3312 = vmin.f32 %v2288, 127.0
        %v3313 = vmin.f32 %v2289, 127.0
        %v3314 = vmin.f32 %v2290, 127.0
        %v3315 = vmin.f32 %v2291, 127.0
        %v3316 = vmin.f32 %v2292, 127.0
        %v3317 = vmin.f32 %v2293, 127.0
        %v3318 = vmin.f32 %v2294, 127.0
        %v3319 = vmin.f32 %v2295, 127.0
        %v3320 = vmin.f32 %v2296, 127.0
        %v3321 = vmin.f32 %v2297, 127.0
        %v3322 = vmin.f32 %v2298, 127.0
        %v3323 = vmin.f32 %v2299, 127.0
        %v3324 = vmin.f32 %v2300, 127.0
        %v3325 = vmin.f32 %v2301, 127.0
        %v3326 = vmin.f32 %v2302, 127.0
        %v3327 = vmin.f32 %v2303, 127.0
        %v3328 = vmin.f32 %v2304, 127.0
        %v3329 = vmin.f32 %v2305, 127.0
        %v3330 = vmin.f32 %v2306, 127.0
        %v3331 = vmin.f32 %v2307, 127.0
        %v3332 = vmin.f32 %v2308, 127.0
        %v3333 = vmin.f32 %v2309, 127.0
        %v3334 = vmin.f32 %v2310, 127.0
        %v3335 = vmin.f32 %v2311, 127.0
        %v3336 = vmin.f32 %v2312, 127.0
        %v3337 = vmin.f32 %v2313, 127.0
        %v3338 = vmin.f32 %v2314, 127.0
        %v3339 = vmin.f32 %v2315, 127.0
        %v3340 = vmin.f32 %v2316, 127.0
        %v3341 = vmin.f32 %v2317, 127.0
        %v3342 = vmin.f32 %v2318, 127.0
        %v3343 = vmin.f32 %v2319, 127.0
        %v3344 = vmin.f32 %v2320, 127.0
        %v3345 = vmin.f32 %v2321, 127.0
        %v3346 = vmin.f32 %v2322, 127.0
        %v3347 = vmin.f32 %v2323, 127.0
        %v3348 = vmin.f32 %v2324, 127.0
        %v3349 = vmin.f32 %v2325, 127.0
        %v3350 = vmin.f32 %v2326, 127.0
        %v3351 = vmin.f32 %v2327, 127.0
        %v3352 = vmin.f32 %v2328, 127.0
        %v3353 = vmin.f32 %v2329, 127.0
        %v3354 = vmin.f32 %v2330, 127.0
        %v3355 = vmin.f32 %v2331, 127.0
        %v3356 = vmin.f32 %v2332, 127.0
        %v3357 = vmin.f32 %v2333, 127.0
        %v3358 = vmin.f32 %v2334, 127.0
        %v3359 = vmin.f32 %v2335, 127.0
        %v3360 = vmin.f32 %v2336, 127.0
        %v3361 = vmin.f32 %v2337, 127.0
        %v3362 = vmin.f32 %v2338, 127.0
        %v3363 = vmin.f32 %v2339, 127.0
        %v3364 = vmin.f32 %v2340, 127.0
        %v3365 = vmin.f32 %v2341, 127.0
        %v3366 = vmin.f32 %v2342, 127.0
        %v3367 = vmin.f32 %v2343, 127.0
        %v3368 = vmin.f32 %v2344, 127.0
        %v3369 = vmin.f32 %v2345, 127.0
        %v3370 = vmin.f32 %v2346, 127.0
        %v3371 = vmin.f32 %v2347, 127.0
        %v3372 = vmin.f32 %v2348, 127.0
        %v3373 = vmin.f32 %v2349, 127.0
        %v3374 = vmin.f32 %v2350, 127.0
        %v3375 = vmin.f32 %v2351, 127.0
        %v3376 = vmin.f32 %v2352, 127.0
        %v3377 = vmin.f32 %v2353, 127.0
        %v3378 = vmin.f32 %v2354, 127.0
        %v3379 = vmin.f32 %v2355, 127.0
        %v3380 = vmin.f32 %v2356, 127.0
        %v3381 = vmin.f32 %v2357, 127.0
        %v3382 = vmin.f32 %v2358, 127.0
        %v3383 = vmin.f32 %v2359, 127.0
        %v3384 = vmin.f32 %v2360, 127.0
        %v3385 = vmin.f32 %v2361, 127.0
        %v3386 = vmin.f32 %v2362, 127.0
        %v3387 = vmin.f32 %v2363, 127.0
        %v3388 = vmin.f32 %v2364, 127.0
        %v3389 = vmin.f32 %v2365, 127.0
        %v3390 = vmin.f32 %v2366, 127.0
        %v3391 = vmin.f32 %v2367, 127.0
        %v3392 = vmin.f32 %v2368, 127.0
        %v3393 = vmin.f32 %v2369, 127.0
        %v3394 = vmin.f32 %v2370, 127.0
        %v3395 = vmin.f32 %v2371, 127.0
        %v3396 = vmin.f32 %v2372, 127.0
        %v3397 = vmin.f32 %v2373, 127.0
        %v3398 = vmin.f32 %v2374, 127.0
        %v3399 = vmin.f32 %v2375, 127.0
        %v3400 = vmin.f32 %v2376, 127.0
        %v3401 = vmin.f32 %v2377, 127.0
        %v3402 = vmin.f32 %v2378, 127.0
        %v3403 = vmin.f32 %v2379, 127.0
        %v3404 = vmin.f32 %v2380, 127.0
        %v3405 = vmin.f32 %v2381, 127.0
        %v3406 = vmin.f32 %v2382, 127.0
        %v3407 = vmin.f32 %v2383, 127.0
        %v3408 = vmin.f32 %v2384, 127.0
        %v3409 = vmin.f32 %v2385, 127.0
        %v3410 = vmin.f32 %v2386, 127.0
        %v3411 = vmin.f32 %v2387, 127.0
        %v3412 = vmin.f32 %v2388, 127.0
        %v3413 = vmin.f32 %v2389, 127.0
        %v3414 = vmin.f32 %v2390, 127.0
        %v3415 = vmin.f32 %v2391, 127.0
        %v3416 = vmin.f32 %v2392, 127.0
        %v3417 = vmin.f32 %v2393, 127.0
        %v3418 = vmin.f32 %v2394, 127.0
        %v3419 = vmin.f32 %v2395, 127.0
        %v3420 = vmin.f32 %v2396, 127.0
        %v3421 = vmin.f32 %v2397, 127.0
        %v3422 = vmin.f32 %v2398, 127.0
        %v3423 = vmin.f32 %v2399, 127.0
        %v3424 = vmin.f32 %v2400, 127.0
        %v3425 = vmin.f32 %v2401, 127.0
        %v3426 = vmin.f32 %v2402, 127.0
        %v3427 = vmin.f32 %v2403, 127.0
        %v3428 = vmin.f32 %v2404, 127.0
        %v3429 = vmin.f32 %v2405, 127.0
        %v3430 = vmin.f32 %v2406, 127.0
        %v3431 = vmin.f32 %v2407, 127.0
        %v3432 = vmin.f32 %v2408, 127.0
        %v3433 = vmin.f32 %v2409, 127.0
        %v3434 = vmin.f32 %v2410, 127.0
        %v3435 = vmin.f32 %v2411, 127.0
        %v3436 = vmin.f32 %v2412, 127.0
        %v3437 = vmin.f32 %v2413, 127.0
        %v3438 = vmin.f32 %v2414, 127.0
        %v3439 = vmin.f32 %v2415, 127.0
        %v3440 = vmin.f32 %v2416, 127.0
        %v3441 = vmin.f32 %v2417, 127.0
        %v3442 = vmin.f32 %v2418, 127.0
        %v3443 = vmin.f32 %v2419, 127.0
        %v3444 = vmin.f32 %v2420, 127.0
        %v3445 = vmin.f32 %v2421, 127.0
        %v3446 = vmin.f32 %v2422, 127.0
        %v3447 = vmin.f32 %v2423, 127.0
        %v3448 = vmin.f32 %v2424, 127.0
        %v3449 = vmin.f32 %v2425, 127.0
        %v3450 = vmin.f32 %v2426, 127.0
        %v3451 = vmin.f32 %v2427, 127.0
        %v3452 = vmin.f32 %v2428, 127.0
        %v3453 = vmin.f32 %v2429, 127.0
        %v3454 = vmin.f32 %v2430, 127.0
        %v3455 = vmin.f32 %v2431, 127.0
        %v3456 = vmin.f32 %v2432, 127.0
        %v3457 = vmin.f32 %v2433, 127.0
        %v3458 = vmin.f32 %v2434, 127.0
        %v3459 = vmin.f32 %v2435, 127.0
        %v3460 = vmin.f32 %v2436, 127.0
        %v3461 = vmin.f32 %v2437, 127.0
        %v3462 = vmin.f32 %v2438, 127.0
        %v3463 = vmin.f32 %v2439, 127.0
        %v3464 = vmin.f32 %v2440, 127.0
        %v3465 = vmin.f32 %v2441, 127.0
        %v3466 = vmin.f32 %v2442, 127.0
        %v3467 = vmin.f32 %v2443, 127.0
        %v3468 = vmin.f32 %v2444, 127.0
        %v3469 = vmin.f32 %v2445, 127.0
        %v3470 = vmin.f32 %v2446, 127.0
        %v3471 = vmin.f32 %v2447, 127.0
        %v3472 = vmin.f32 %v2448, 127.0
        %v3473 = vmin.f32 %v2449, 127.0
        %v3474 = vmin.f32 %v2450, 127.0
        %v3475 = vmin.f32 %v2451, 127.0
        %v3476 = vmin.f32 %v2452, 127.0
        %v3477 = vmin.f32 %v2453, 127.0
        %v3478 = vmin.f32 %v2454, 127.0
        %v3479 = vmin.f32 %v2455, 127.0
        %v3480 = vmin.f32 %v2456, 127.0
        %v3481 = vmin.f32 %v2457, 127.0
        %v3482 = vmin.f32 %v2458, 127.0
        %v3483 = vmin.f32 %v2459, 127.0
        %v3484 = vmin.f32 %v2460, 127.0
        %v3485 = vmin.f32 %v2461, 127.0
        %v3486 = vmin.f32 %v2462, 127.0
        %v3487 = vmin.f32 %v2463, 127.0
        %v3488 = vmin.f32 %v2464, 127.0
        %v3489 = vmin.f32 %v2465, 127.0
        %v3490 = vmin.f32 %v2466, 127.0
        %v3491 = vmin.f32 %v2467, 127.0
        %v3492 = vmin.f32 %v2468, 127.0
        %v3493 = vmin.f32 %v2469, 127.0
        %v3494 = vmin.f32 %v2470, 127.0
        %v3495 = vmin.f32 %v2471, 127.0
        %v3496 = vmin.f32 %v2472, 127.0
        %v3497 = vmin.f32 %v2473, 127.0
        %v3498 = vmin.f32 %v2474, 127.0
        %v3499 = vmin.f32 %v2475, 127.0
        %v3500 = vmin.f32 %v2476, 127.0
        %v3501 = vmin.f32 %v2477, 127.0
        %v3502 = vmin.f32 %v2478, 127.0
        %v3503 = vmin.f32 %v2479, 127.0
        %v3504 = vmin.f32 %v2480, 127.0
        %v3505 = vmin.f32 %v2481, 127.0
        %v3506 = vmin.f32 %v2482, 127.0
        %v3507 = vmin.f32 %v2483, 127.0
        %v3508 = vmin.f32 %v2484, 127.0
        %v3509 = vmin.f32 %v2485, 127.0
        %v3510 = vmin.f32 %v2486, 127.0
        %v3511 = vmin.f32 %v2487, 127.0
        %v3512 = vmin.f32 %v2488, 127.0
        %v3513 = vmin.f32 %v2489, 127.0
        %v3514 = vmin.f32 %v2490, 127.0
        %v3515 = vmin.f32 %v2491, 127.0
        %v3516 = vmin.f32 %v2492, 127.0
        %v3517 = vmin.f32 %v2493, 127.0
        %v3518 = vmin.f32 %v2494, 127.0
        %v3519 = vmin.f32 %v2495, 127.0
        %v3520 = vmin.f32 %v2496, 127.0
        %v3521 = vmin.f32 %v2497, 127.0
        %v3522 = vmin.f32 %v2498, 127.0
        %v3523 = vmin.f32 %v2499, 127.0
        %v3524 = vmin.f32 %v2500, 127.0
        %v3525 = vmin.f32 %v2501, 127.0
        %v3526 = vmin.f32 %v2502, 127.0
        %v3527 = vmin.f32 %v2503, 127.0
        %v3528 = vmin.f32 %v2504, 127.0
        %v3529 = vmin.f32 %v2505, 127.0
        %v3530 = vmin.f32 %v2506, 127.0
        %v3531 = vmin.f32 %v2507, 127.0
        %v3532 = vmin.f32 %v2508, 127.0
        %v3533 = vmin.f32 %v2509, 127.0
        %v3534 = vmin.f32 %v2510, 127.0
        %v3535 = vmin.f32 %v2511, 127.0
        %v3536 = vmin.f32 %v2512, 127.0
        %v3537 = vmin.f32 %v2513, 127.0
        %v3538 = vmin.f32 %v2514, 127.0
        %v3539 = vmin.f32 %v2515, 127.0
        %v3540 = vmin.f32 %v2516, 127.0
        %v3541 = vmin.f32 %v2517, 127.0
        %v3542 = vmin.f32 %v2518, 127.0
        %v3543 = vmin.f32 %v2519, 127.0
        %v3544 = vmin.f32 %v2520, 127.0
        %v3545 = vmin.f32 %v2521, 127.0
        %v3546 = vmin.f32 %v2522, 127.0
        %v3547 = vmin.f32 %v2523, 127.0
        %v3548 = vmin.f32 %v2524, 127.0
        %v3549 = vmin.f32 %v2525, 127.0
        %v3550 = vmin.f32 %v2526, 127.0
        %v3551 = vmin.f32 %v2527, 127.0
        %v3552 = vmin.f32 %v2528, 127.0
        %v3553 = vmin.f32 %v2529, 127.0
        %v3554 = vmin.f32 %v2530, 127.0
        %v3555 = vmin.f32 %v2531, 127.0
        %v3556 = vmin.f32 %v2532, 127.0
        %v3557 = vmin.f32 %v2533, 127.0
        %v3558 = vmin.f32 %v2534, 127.0
        %v3559 = vmin.f32 %v2535, 127.0
        %v3560 = vmin.f32 %v2536, 127.0
        %v3561 = vmin.f32 %v2537, 127.0
        %v3562 = vmin.f32 %v2538, 127.0
        %v3563 = vmin.f32 %v2539, 127.0
        %v3564 = vmin.f32 %v2540, 127.0
        %v3565 = vmin.f32 %v2541, 127.0
        %v3566 = vmin.f32 %v2542, 127.0
        %v3567 = vmin.f32 %v2543, 127.0
        %v3568 = vmin.f32 %v2544, 127.0
        %v3569 = vmin.f32 %v2545, 127.0
        %v3570 = vmin.f32 %v2546, 127.0
        %v3571 = vmin.f32 %v2547, 127.0
        %v3572 = vmin.f32 %v2548, 127.0
        %v3573 = vmin.f32 %v2549, 127.0
        %v3574 = vmin.f32 %v2550, 127.0
        %v3575 = vmin.f32 %v2551, 127.0
        %v3576 = vmin.f32 %v2552, 127.0
        %v3577 = vmin.f32 %v2553, 127.0
        %v3578 = vmin.f32 %v2554, 127.0
        %v3579 = vmin.f32 %v2555, 127.0
        %v3580 = vmin.f32 %v2556, 127.0
        %v3581 = vmin.f32 %v2557, 127.0
        %v3582 = vmin.f32 %v2558, 127.0
        %v3583 = vmin.f32 %v2559, 127.0
        %v3584 = vmin.f32 %v2560, 127.0
        %v3585 = vmin.f32 %v2561, 127.0
        %v3586 = vmin.f32 %v2562, 127.0
        %v3587 = vmin.f32 %v2563, 127.0
        %v3588 = vmin.f32 %v2564, 127.0
        %v3589 = vmin.f32 %v2565, 127.0
        %v3590 = vmin.f32 %v2566, 127.0
        %v3591 = vmin.f32 %v2567, 127.0
        %v3592 = vmin.f32 %v2568, 127.0
        %v3593 = vmin.f32 %v2569, 127.0
        %v3594 = vmin.f32 %v2570, 127.0
        %v3595 = vmin.f32 %v2571, 127.0
        %v3596 = vmin.f32 %v2572, 127.0
        %v3597 = vmin.f32 %v2573, 127.0
        %v3598 = vmin.f32 %v2574, 127.0
        %v3599 = vmin.f32 %v2575, 127.0
        %v3600 = vmin.f32 %v2576, 127.0
        %v3601 = vmin.f32 %v2577, 127.0
        %v3602 = vmin.f32 %v2578, 127.0
        %v3603 = vmin.f32 %v2579, 127.0
        %v3604 = vmin.f32 %v2580, 127.0
        %v3605 = vmin.f32 %v2581, 127.0
        %v3606 = vmin.f32 %v2582, 127.0
        %v3607 = vmin.f32 %v2583, 127.0
        %v3608 = vmin.f32 %v2584, 127.0
        %v3609 = vmin.f32 %v2585, 127.0
        %v3610 = vmin.f32 %v2586, 127.0
        %v3611 = vmin.f32 %v2587, 127.0
        %v3612 = vmin.f32 %v2588, 127.0
        %v3613 = vmin.f32 %v2589, 127.0
        %v3614 = vmin.f32 %v2590, 127.0
        %v3615 = vmin.f32 %v2591, 127.0
        %v3616 = vmin.f32 %v2592, 127.0
        %v3617 = vmin.f32 %v2593, 127.0
        %v3618 = vmin.f32 %v2594, 127.0
        %v3619 = vmin.f32 %v2595, 127.0
        %v3620 = vmin.f32 %v2596, 127.0
        %v3621 = vmin.f32 %v2597, 127.0
        %v3622 = vmin.f32 %v2598, 127.0
        %v3623 = vmin.f32 %v2599, 127.0
        %v3624 = vmin.f32 %v2600, 127.0
        %v3625 = vmin.f32 %v2601, 127.0
        %v3626 = vmin.f32 %v2602, 127.0
        %v3627 = vmin.f32 %v2603, 127.0
        %v3628 = vmin.f32 %v2604, 127.0
        %v3629 = vmin.f32 %v2605, 127.0
        %v3630 = vmin.f32 %v2606, 127.0
        %v3631 = vmin.f32 %v2607, 127.0
        %v3632 = vmin.f32 %v2608, 127.0
        %v3633 = vmin.f32 %v2609, 127.0
        %v3634 = vmin.f32 %v2610, 127.0
        %v3635 = vmin.f32 %v2611, 127.0
        %v3636 = vmin.f32 %v2612, 127.0
        %v3637 = vmin.f32 %v2613, 127.0
        %v3638 = vmin.f32 %v2614, 127.0
        %v3639 = vmin.f32 %v2615, 127.0
        %v3640 = vmin.f32 %v2616, 127.0
        %v3641 = vmin.f32 %v2617, 127.0
        %v3642 = vmin.f32 %v2618, 127.0
        %v3643 = vmin.f32 %v2619, 127.0
        %v3644 = vmin.f32 %v2620, 127.0
        %v3645 = vmin.f32 %v2621, 127.0
        %v3646 = vmin.f32 %v2622, 127.0
        %v3647 = vmin.f32 %v2623, 127.0
        %v3648 = vmin.f32 %v2624, 127.0
        %v3649 = vmin.f32 %v2625, 127.0
        %v3650 = vmin.f32 %v2626, 127.0
        %v3651 = vmin.f32 %v2627, 127.0
        %v3652 = vmin.f32 %v2628, 127.0
        %v3653 = vmin.f32 %v2629, 127.0
        %v3654 = vmin.f32 %v2630, 127.0
        %v3655 = vmin.f32 %v2631, 127.0
        %v3656 = vmin.f32 %v2632, 127.0
        %v3657 = vmin.f32 %v2633, 127.0
        %v3658 = vmin.f32 %v2634, 127.0
        %v3659 = vmin.f32 %v2635, 127.0
        %v3660 = vmin.f32 %v2636, 127.0
        %v3661 = vmin.f32 %v2637, 127.0
        %v3662 = vmin.f32 %v2638, 127.0
        %v3663 = vmin.f32 %v2639, 127.0
        %v3664 = vmin.f32 %v2640, 127.0
        %v3665 = vmin.f32 %v2641, 127.0
        %v3666 = vmin.f32 %v2642, 127.0
        %v3667 = vmin.f32 %v2643, 127.0
        %v3668 = vmin.f32 %v2644, 127.0
        %v3669 = vmin.f32 %v2645, 127.0
        %v3670 = vmin.f32 %v2646, 127.0
        %v3671 = vmin.f32 %v2647, 127.0
        %v3672 = vmin.f32 %v2648, 127.0
        %v3673 = vmin.f32 %v2649, 127.0
        %v3674 = vmin.f32 %v2650, 127.0
        %v3675 = vmin.f32 %v2651, 127.0
        %v3676 = vmin.f32 %v2652, 127.0
        %v3677 = vmin.f32 %v2653, 127.0
        %v3678 = vmin.f32 %v2654, 127.0
        %v3679 = vmin.f32 %v2655, 127.0
        %v3680 = vmin.f32 %v2656, 127.0
        %v3681 = vmin.f32 %v2657, 127.0
        %v3682 = vmin.f32 %v2658, 127.0
        %v3683 = vmin.f32 %v2659, 127.0
        %v3684 = vmin.f32 %v2660, 127.0
        %v3685 = vmin.f32 %v2661, 127.0
        %v3686 = vmin.f32 %v2662, 127.0
        %v3687 = vmin.f32 %v2663, 127.0
        %v3688 = vmin.f32 %v2664, 127.0
        %v3689 = vmin.f32 %v2665, 127.0
        %v3690 = vmin.f32 %v2666, 127.0
        %v3691 = vmin.f32 %v2667, 127.0
        %v3692 = vmin.f32 %v2668, 127.0
        %v3693 = vmin.f32 %v2669, 127.0
        %v3694 = vmin.f32 %v2670, 127.0
        %v3695 = vmin.f32 %v2671, 127.0
        %v3696 = vmin.f32 %v2672, 127.0
        %v3697 = vmin.f32 %v2673, 127.0
        %v3698 = vmin.f32 %v2674, 127.0
        %v3699 = vmin.f32 %v2675, 127.0
        %v3700 = vmin.f32 %v2676, 127.0
        %v3701 = vmin.f32 %v2677, 127.0
        %v3702 = vmin.f32 %v2678, 127.0
        %v3703 = vmin.f32 %v2679, 127.0
        %v3704 = vmin.f32 %v2680, 127.0
        %v3705 = vmin.f32 %v2681, 127.0
        %v3706 = vmin.f32 %v2682, 127.0
        %v3707 = vmin.f32 %v2683, 127.0
        %v3708 = vmin.f32 %v2684, 127.0
        %v3709 = vmin.f32 %v2685, 127.0
        %v3710 = vmin.f32 %v2686, 127.0
        %v3711 = vmin.f32 %v2687, 127.0
        %v3712 = vmin.f32 %v2688, 127.0
        %v3713 = vmin.f32 %v2689, 127.0
        %v3714 = vmin.f32 %v2690, 127.0
        %v3715 = vmin.f32 %v2691, 127.0
        %v3716 = vmin.f32 %v2692, 127.0
        %v3717 = vmin.f32 %v2693, 127.0
        %v3718 = vmin.f32 %v2694, 127.0
        %v3719 = vmin.f32 %v2695, 127.0
        %v3720 = vmin.f32 %v2696, 127.0
        %v3721 = vmin.f32 %v2697, 127.0
        %v3722 = vmin.f32 %v2698, 127.0
        %v3723 = vmin.f32 %v2699, 127.0
        %v3724 = vmin.f32 %v2700, 127.0
        %v3725 = vmin.f32 %v2701, 127.0
        %v3726 = vmin.f32 %v2702, 127.0
        %v3727 = vmin.f32 %v2703, 127.0
        %v3728 = vmin.f32 %v2704, 127.0
        %v3729 = vmin.f32 %v2705, 127.0
        %v3730 = vmin.f32 %v2706, 127.0
        %v3731 = vmin.f32 %v2707, 127.0
        %v3732 = vmin.f32 %v2708, 127.0
        %v3733 = vmin.f32 %v2709, 127.0
        %v3734 = vmin.f32 %v2710, 127.0
        %v3735 = vmin.f32 %v2711, 127.0
        %v3736 = vmin.f32 %v2712, 127.0
        %v3737 = vmin.f32 %v2713, 127.0
        %v3738 = vmin.f32 %v2714, 127.0
        %v3739 = vmin.f32 %v2715, 127.0
        %v3740 = vmin.f32 %v2716, 127.0
        %v3741 = vmin.f32 %v2717, 127.0
        %v3742 = vmin.f32 %v2718, 127.0
        %v3743 = vmin.f32 %v2719, 127.0
        %v3744 = vmin.f32 %v2720, 127.0
        %v3745 = vmin.f32 %v2721, 127.0
        %v3746 = vmin.f32 %v2722, 127.0
        %v3747 = vmin.f32 %v2723, 127.0
        %v3748 = vmin.f32 %v2724, 127.0
        %v3749 = vmin.f32 %v2725, 127.0
        %v3750 = vmin.f32 %v2726, 127.0
        %v3751 = vmin.f32 %v2727, 127.0
        %v3752 = vmin.f32 %v2728, 127.0
        %v3753 = vmin.f32 %v2729, 127.0
        %v3754 = vmin.f32 %v2730, 127.0
        %v3755 = vmin.f32 %v2731, 127.0
        %v3756 = vmin.f32 %v2732, 127.0
        %v3757 = vmin.f32 %v2733, 127.0
        %v3758 = vmin.f32 %v2734, 127.0
        %v3759 = vmin.f32 %v2735, 127.0
        %v3760 = vmin.f32 %v2736, 127.0
        %v3761 = vmin.f32 %v2737, 127.0
        %v3762 = vmin.f32 %v2738, 127.0
        %v3763 = vmin.f32 %v2739, 127.0
        %v3764 = vmin.f32 %v2740, 127.0
        %v3765 = vmin.f32 %v2741, 127.0
        %v3766 = vmin.f32 %v2742, 127.0
        %v3767 = vmin.f32 %v2743, 127.0
        %v3768 = vmin.f32 %v2744, 127.0
        %v3769 = vmin.f32 %v2745, 127.0
        %v3770 = vmin.f32 %v2746, 127.0
        %v3771 = vmin.f32 %v2747, 127.0
        %v3772 = vmin.f32 %v2748, 127.0
        %v3773 = vmin.f32 %v2749, 127.0
        %v3774 = vmin.f32 %v2750, 127.0
        %v3775 = vmin.f32 %v2751, 127.0
        %v3776 = vmin.f32 %v2752, 127.0
        %v3777 = vmin.f32 %v2753, 127.0
        %v3778 = vmin.f32 %v2754, 127.0
        %v3779 = vmin.f32 %v2755, 127.0
        %v3780 = vmin.f32 %v2756, 127.0
        %v3781 = vmin.f32 %v2757, 127.0
        %v3782 = vmin.f32 %v2758, 127.0
        %v3783 = vmin.f32 %v2759, 127.0
        %v3784 = vmin.f32 %v2760, 127.0
        %v3785 = vmin.f32 %v2761, 127.0
        %v3786 = vmin.f32 %v2762, 127.0
        %v3787 = vmin.f32 %v2763, 127.0
        %v3788 = vmin.f32 %v2764, 127.0
        %v3789 = vmin.f32 %v2765, 127.0
        %v3790 = vmin.f32 %v2766, 127.0
        %v3791 = vmin.f32 %v2767, 127.0
        %v3792 = vmin.f32 %v2768, 127.0
        %v3793 = vmin.f32 %v2769, 127.0
        %v3794 = vmin.f32 %v2770, 127.0
        %v3795 = vmin.f32 %v2771, 127.0
        %v3796 = vmin.f32 %v2772, 127.0
        %v3797 = vmin.f32 %v2773, 127.0
        %v3798 = vmin.f32 %v2774, 127.0
        %v3799 = vmin.f32 %v2775, 127.0
        %v3800 = vmin.f32 %v2776, 127.0
        %v3801 = vmin.f32 %v2777, 127.0
        %v3802 = vmin.f32 %v2778, 127.0
        %v3803 = vmin.f32 %v2779, 127.0
        %v3804 = vmin.f32 %v2780, 127.0
        %v3805 = vmin.f32 %v2781, 127.0
        %v3806 = vmin.f32 %v2782, 127.0
        %v3807 = vmin.f32 %v2783, 127.0
        %v3808 = vmin.f32 %v2784, 127.0
        %v3809 = vmin.f32 %v2785, 127.0
        %v3810 = vmin.f32 %v2786, 127.0
        %v3811 = vmin.f32 %v2787, 127.0
        %v3812 = vmin.f32 %v2788, 127.0
        %v3813 = vmin.f32 %v2789, 127.0
        %v3814 = vmin.f32 %v2790, 127.0
        %v3815 = vmin.f32 %v2791, 127.0
        %v3816 = vmin.f32 %v2792, 127.0
        %v3817 = vmin.f32 %v2793, 127.0
        %v3818 = vmin.f32 %v2794, 127.0
        %v3819 = vmin.f32 %v2795, 127.0
        %v3820 = vmin.f32 %v2796, 127.0
        %v3821 = vmin.f32 %v2797, 127.0
        %v3822 = vmin.f32 %v2798, 127.0
        %v3823 = vmin.f32 %v2799, 127.0
        %v3824 = vmin.f32 %v2800, 127.0
        %v3825 = vmin.f32 %v2801, 127.0
        %v3826 = vmin.f32 %v2802, 127.0
        %v3827 = vmin.f32 %v2803, 127.0
        %v3828 = vmin.f32 %v2804, 127.0
        %v3829 = vmin.f32 %v2805, 127.0
        %v3830 = vmin.f32 %v2806, 127.0
        %v3831 = vmin.f32 %v2807, 127.0
        %v3832 = vmin.f32 %v2808, 127.0
        %v3833 = vmin.f32 %v2809, 127.0
        %v3834 = vmin.f32 %v2810, 127.0
        %v3835 = vmin.f32 %v2811, 127.0
        %v3836 = vmin.f32 %v2812, 127.0
        %v3837 = vmin.f32 %v2813, 127.0
        %v3838 = vmin.f32 %v2814, 127.0
        %v3839 = vmin.f32 %v2815, 127.0
        %v3840 = vmin.f32 %v2816, 127.0
        %v3841 = vmin.f32 %v2817, 127.0
        %v3842 = vmin.f32 %v2818, 127.0
        %v3843 = vmin.f32 %v2819, 127.0
        %v3844 = vmin.f32 %v2820, 127.0
        %v3845 = vmin.f32 %v2821, 127.0
        %v3846 = vmin.f32 %v2822, 127.0
        %v3847 = vmin.f32 %v2823, 127.0
        %v3848 = vmin.f32 %v2824, 127.0
        %v3849 = vmin.f32 %v2825, 127.0
        %v3850 = vmin.f32 %v2826, 127.0
        %v3851 = vmin.f32 %v2827, 127.0
        %v3852 = vmin.f32 %v2828, 127.0
        %v3853 = vmin.f32 %v2829, 127.0
        %v3854 = vmin.f32 %v2830, 127.0
        %v3855 = vmin.f32 %v2831, 127.0
        %v3856 = vmin.f32 %v2832, 127.0
        %v3857 = vmin.f32 %v2833, 127.0
        %v3858 = vmin.f32 %v2834, 127.0
        %v3859 = vmin.f32 %v2835, 127.0
        %v3860 = vmin.f32 %v2836, 127.0
        %v3861 = vmin.f32 %v2837, 127.0
        %v3862 = vmin.f32 %v2838, 127.0
        %v3863 = vmin.f32 %v2839, 127.0
        %v3864 = vmin.f32 %v2840, 127.0
        %v3865 = vmin.f32 %v2841, 127.0
        %v3866 = vmin.f32 %v2842, 127.0
        %v3867 = vmin.f32 %v2843, 127.0
        %v3868 = vmin.f32 %v2844, 127.0
        %v3869 = vmin.f32 %v2845, 127.0
        %v3870 = vmin.f32 %v2846, 127.0
        %v3871 = vmin.f32 %v2847, 127.0
        %v3872 = vmin.f32 %v2848, 127.0
        %v3873 = vmin.f32 %v2849, 127.0
        %v3874 = vmin.f32 %v2850, 127.0
        %v3875 = vmin.f32 %v2851, 127.0
        %v3876 = vmin.f32 %v2852, 127.0
        %v3877 = vmin.f32 %v2853, 127.0
        %v3878 = vmin.f32 %v2854, 127.0
        %v3879 = vmin.f32 %v2855, 127.0
        %v3880 = vmin.f32 %v2856, 127.0
        %v3881 = vmin.f32 %v2857, 127.0
        %v3882 = vmin.f32 %v2858, 127.0
        %v3883 = vmin.f32 %v2859, 127.0
        %v3884 = vmin.f32 %v2860, 127.0
        %v3885 = vmin.f32 %v2861, 127.0
        %v3886 = vmin.f32 %v2862, 127.0
        %v3887 = vmin.f32 %v2863, 127.0
        %v3888 = vmin.f32 %v2864, 127.0
        %v3889 = vmin.f32 %v2865, 127.0
        %v3890 = vmin.f32 %v2866, 127.0
        %v3891 = vmin.f32 %v2867, 127.0
        %v3892 = vmin.f32 %v2868, 127.0
        %v3893 = vmin.f32 %v2869, 127.0
        %v3894 = vmin.f32 %v2870, 127.0
        %v3895 = vmin.f32 %v2871, 127.0
        %v3896 = vmin.f32 %v2872, 127.0
        %v3897 = vmin.f32 %v2873, 127.0
        %v3898 = vmin.f32 %v2874, 127.0
        %v3899 = vmin.f32 %v2875, 127.0
        %v3900 = vmin.f32 %v2876, 127.0
        %v3901 = vmin.f32 %v2877, 127.0
        %v3902 = vmin.f32 %v2878, 127.0
        %v3903 = vmin.f32 %v2879, 127.0
        %v3904 = vmin.f32 %v2880, 127.0
        %v3905 = vmin.f32 %v2881, 127.0
        %v3906 = vmin.f32 %v2882, 127.0
        %v3907 = vmin.f32 %v2883, 127.0
        %v3908 = vmin.f32 %v2884, 127.0
        %v3909 = vmin.f32 %v2885, 127.0
        %v3910 = vmin.f32 %v2886, 127.0
        %v3911 = vmin.f32 %v2887, 127.0
        %v3912 = vmin.f32 %v2888, 127.0
        %v3913 = vmin.f32 %v2889, 127.0
        %v3914 = vmin.f32 %v2890, 127.0
        %v3915 = vmin.f32 %v2891, 127.0
        %v3916 = vmin.f32 %v2892, 127.0
        %v3917 = vmin.f32 %v2893, 127.0
        %v3918 = vmin.f32 %v2894, 127.0
        %v3919 = vmin.f32 %v2895, 127.0
        %v3920 = vmin.f32 %v2896, 127.0
        %v3921 = vmin.f32 %v2897, 127.0
        %v3922 = vmin.f32 %v2898, 127.0
        %v3923 = vmin.f32 %v2899, 127.0
        %v3924 = vmin.f32 %v2900, 127.0
        %v3925 = vmin.f32 %v2901, 127.0
        %v3926 = vmin.f32 %v2902, 127.0
        %v3927 = vmin.f32 %v2903, 127.0
        %v3928 = vmin.f32 %v2904, 127.0
        %v3929 = vmin.f32 %v2905, 127.0
        %v3930 = vmin.f32 %v2906, 127.0
        %v3931 = vmin.f32 %v2907, 127.0
        %v3932 = vmin.f32 %v2908, 127.0
        %v3933 = vmin.f32 %v2909, 127.0
        %v3934 = vmin.f32 %v2910, 127.0
        %v3935 = vmin.f32 %v2911, 127.0
        %v3936 = vmin.f32 %v2912, 127.0
        %v3937 = vmin.f32 %v2913, 127.0
        %v3938 = vmin.f32 %v2914, 127.0
        %v3939 = vmin.f32 %v2915, 127.0
        %v3940 = vmin.f32 %v2916, 127.0
        %v3941 = vmin.f32 %v2917, 127.0
        %v3942 = vmin.f32 %v2918, 127.0
        %v3943 = vmin.f32 %v2919, 127.0
        %v3944 = vmin.f32 %v2920, 127.0
        %v3945 = vmin.f32 %v2921, 127.0
        %v3946 = vmin.f32 %v2922, 127.0
        %v3947 = vmin.f32 %v2923, 127.0
        %v3948 = vmin.f32 %v2924, 127.0
        %v3949 = vmin.f32 %v2925, 127.0
        %v3950 = vmin.f32 %v2926, 127.0
        %v3951 = vmin.f32 %v2927, 127.0
        %v3952 = vmin.f32 %v2928, 127.0
        %v3953 = vmin.f32 %v2929, 127.0
        %v3954 = vmin.f32 %v2930, 127.0
        %v3955 = vmin.f32 %v2931, 127.0
        %v3956 = vmin.f32 %v2932, 127.0
        %v3957 = vmin.f32 %v2933, 127.0
        %v3958 = vmin.f32 %v2934, 127.0
        %v3959 = vmin.f32 %v2935, 127.0
        %v3960 = vmin.f32 %v2936, 127.0
        %v3961 = vmin.f32 %v2937, 127.0
        %v3962 = vmin.f32 %v2938, 127.0
        %v3963 = vmin.f32 %v2939, 127.0
        %v3964 = vmin.f32 %v2940, 127.0
        %v3965 = vmin.f32 %v2941, 127.0
        %v3966 = vmin.f32 %v2942, 127.0
        %v3967 = vmin.f32 %v2943, 127.0
        %v3968 = vmin.f32 %v2944, 127.0
        %v3969 = vmin.f32 %v2945, 127.0
        %v3970 = vmin.f32 %v2946, 127.0
        %v3971 = vmin.f32 %v2947, 127.0
        %v3972 = vmin.f32 %v2948, 127.0
        %v3973 = vmin.f32 %v2949, 127.0
        %v3974 = vmin.f32 %v2950, 127.0
        %v3975 = vmin.f32 %v2951, 127.0
        %v3976 = vmin.f32 %v2952, 127.0
        %v3977 = vmin.f32 %v2953, 127.0
        %v3978 = vmin.f32 %v2954, 127.0
        %v3979 = vmin.f32 %v2955, 127.0
        %v3980 = vmin.f32 %v2956, 127.0
        %v3981 = vmin.f32 %v2957, 127.0
        %v3982 = vmin.f32 %v2958, 127.0
        %v3983 = vmin.f32 %v2959, 127.0
        %v3984 = vmin.f32 %v2960, 127.0
        %v3985 = vmin.f32 %v2961, 127.0
        %v3986 = vmin.f32 %v2962, 127.0
        %v3987 = vmin.f32 %v2963, 127.0
        %v3988 = vmin.f32 %v2964, 127.0
        %v3989 = vmin.f32 %v2965, 127.0
        %v3990 = vmin.f32 %v2966, 127.0
        %v3991 = vmin.f32 %v2967, 127.0
        %v3992 = vmin.f32 %v2968, 127.0
        %v3993 = vmin.f32 %v2969, 127.0
        %v3994 = vmin.f32 %v2970, 127.0
        %v3995 = vmin.f32 %v2971, 127.0
        %v3996 = vmin.f32 %v2972, 127.0
        %v3997 = vmin.f32 %v2973, 127.0
        %v3998 = vmin.f32 %v2974, 127.0
        %v3999 = vmin.f32 %v2975, 127.0
        %v4000 = vmin.f32 %v2976, 127.0
        %v4001 = vmin.f32 %v2977, 127.0
        %v4002 = vmin.f32 %v2978, 127.0
        %v4003 = vmin.f32 %v2979, 127.0
        %v4004 = vmin.f32 %v2980, 127.0
        %v4005 = vmin.f32 %v2981, 127.0
        %v4006 = vmin.f32 %v2982, 127.0
        %v4007 = vmin.f32 %v2983, 127.0
        %v4008 = vmin.f32 %v2984, 127.0
        %v4009 = vmin.f32 %v2985, 127.0
        %v4010 = vmin.f32 %v2986, 127.0
        %v4011 = vmin.f32 %v2987, 127.0
        %v4012 = vmin.f32 %v2988, 127.0
        %v4013 = vmin.f32 %v2989, 127.0
        %v4014 = vmin.f32 %v2990, 127.0
        %v4015 = vmin.f32 %v2991, 127.0
        %v4016 = vmin.f32 %v2992, 127.0
        %v4017 = vmin.f32 %v2993, 127.0
        %v4018 = vmin.f32 %v2994, 127.0
        %v4019 = vmin.f32 %v2995, 127.0
        %v4020 = vmin.f32 %v2996, 127.0
        %v4021 = vmin.f32 %v2997, 127.0
        %v4022 = vmin.f32 %v2998, 127.0
        %v4023 = vmin.f32 %v2999, 127.0
        %v4024 = vmin.f32 %v3000, 127.0
        %v4025 = vmin.f32 %v3001, 127.0
        %v4026 = vmin.f32 %v3002, 127.0
        %v4027 = vmin.f32 %v3003, 127.0
        %v4028 = vmin.f32 %v3004, 127.0
        %v4029 = vmin.f32 %v3005, 127.0
        %v4030 = vmin.f32 %v3006, 127.0
        %v4031 = vmin.f32 %v3007, 127.0
        %v4032 = vmin.f32 %v3008, 127.0
        %v4033 = vmin.f32 %v3009, 127.0
        %v4034 = vmin.f32 %v3010, 127.0
        %v4035 = vmin.f32 %v3011, 127.0
        %v4036 = vmin.f32 %v3012, 127.0
        %v4037 = vmin.f32 %v3013, 127.0
        %v4038 = vmin.f32 %v3014, 127.0
        %v4039 = vmin.f32 %v3015, 127.0
        %v4040 = vmin.f32 %v3016, 127.0
        %v4041 = vmin.f32 %v3017, 127.0
        %v4042 = vmin.f32 %v3018, 127.0
        %v4043 = vmin.f32 %v3019, 127.0
        %v4044 = vmin.f32 %v3020, 127.0
        %v4045 = vmin.f32 %v3021, 127.0
        %v4046 = vmin.f32 %v3022, 127.0
        %v4047 = vmin.f32 %v3023, 127.0
        %v4048 = vmin.f32 %v3024, 127.0
        %v4049 = vmin.f32 %v3025, 127.0
        %v4050 = vmin.f32 %v3026, 127.0
        %v4051 = vmin.f32 %v3027, 127.0
        %v4052 = vmin.f32 %v3028, 127.0
        %v4053 = vmin.f32 %v3029, 127.0
        %v4054 = vmin.f32 %v3030, 127.0
        %v4055 = vmin.f32 %v3031, 127.0
        %v4056 = vmin.f32 %v3032, 127.0
        %v4057 = vmin.f32 %v3033, 127.0
        %v4058 = vmin.f32 %v3034, 127.0
        %v4059 = vmin.f32 %v3035, 127.0
        %v4060 = vmin.f32 %v3036, 127.0
        %v4061 = vmin.f32 %v3037, 127.0
        %v4062 = vmin.f32 %v3038, 127.0
        %v4063 = vmin.f32 %v3039, 127.0
        %v4064 = vmin.f32 %v3040, 127.0
        %v4065 = vmin.f32 %v3041, 127.0
        %v4066 = vmin.f32 %v3042, 127.0
        %v4067 = vmin.f32 %v3043, 127.0
        %v4068 = vmin.f32 %v3044, 127.0
        %v4069 = vmin.f32 %v3045, 127.0
        %v4070 = vmin.f32 %v3046, 127.0
        %v4071 = vmin.f32 %v3047, 127.0
        %v4072 = vmin.f32 %v3048, 127.0
        %v4073 = vmin.f32 %v3049, 127.0
        %v4074 = vmin.f32 %v3050, 127.0
        %v4075 = vmin.f32 %v3051, 127.0
        %v4076 = vmin.f32 %v3052, 127.0
        %v4077 = vmin.f32 %v3053, 127.0
        %v4078 = vmin.f32 %v3054, 127.0
        %v4079 = vmin.f32 %v3055, 127.0
        %v4080 = vmin.f32 %v3056, 127.0
        %v4081 = vmin.f32 %v3057, 127.0
        %v4082 = vmin.f32 %v3058, 127.0
        %v4083 = vmin.f32 %v3059, 127.0
        %v4084 = vmin.f32 %v3060, 127.0
        %v4085 = vmin.f32 %v3061, 127.0
        %v4086 = vmin.f32 %v3062, 127.0
        %v4087 = vmin.f32 %v3063, 127.0
        %v4088 = vmin.f32 %v3064, 127.0
        %v4089 = vmin.f32 %v3065, 127.0
        %v4090 = vmin.f32 %v3066, 127.0
        %v4091 = vmin.f32 %v3067, 127.0
        %v4092 = vmin.f32 %v3068, 127.0
        %v4093 = vmin.f32 %v3069, 127.0
        %v4094 = vmin.f32 %v3070, 127.0
        %v4095 = vmin.f32 %v3071, 127.0
        %v4096 = vmin.f32 %v3072, 127.0
        %v4097 = vmin.f32 %v3073, 127.0
        %v4098 = vmin.f32 %v3074, 127.0
        %v4099 = vmin.f32 %v3075, 127.0
        %v4100 = vmin.f32 %v3076, 127.0
        %v4101 = vmin.f32 %v3077, 127.0
        %v4102 = vmin.f32 %v3078, 127.0
        %v4103 = vmin.f32 %v3079, 127.0
        %v4104 = vmin.f32 %v3080, 127.0
        %v4105 = vmin.f32 %v3081, 127.0
        %v4106 = vmin.f32 %v3082, 127.0
        %v4107 = vmin.f32 %v3083, 127.0
        %v4108 = vmin.f32 %v3084, 127.0
        %v4109 = vmin.f32 %v3085, 127.0
        %v4110 = vmin.f32 %v3086, 127.0
        %v4111 = vmin.f32 %v3087, 127.0
        %v4112 = vmin.f32 %v3088, 127.0
        %v4113 = vmin.f32 %v3089, 127.0
        %v4114 = vmin.f32 %v3090, 127.0
        %v4115 = vmin.f32 %v3091, 127.0
        %v4116 = vmin.f32 %v3092, 127.0
        %v4117 = vmin.f32 %v3093, 127.0
        %v4118 = vmin.f32 %v3094, 127.0
        %v4119 = vmin.f32 %v3095, 127.0
        %v4120 = vmin.f32 %v3096, 127.0
        %v4121 = vmin.f32 %v3097, 127.0
        %v4122 = vmin.f32 %v3098, 127.0
        %v4123 = vmin.f32 %v3099, 127.0
        %v4124 = vmin.f32 %v3100, 127.0
        %v4125 = vmin.f32 %v3101, 127.0
        %v4126 = vmin.f32 %v3102, 127.0
        %v4127 = vmin.f32 %v3103, 127.0
        %v4128 = vmin.f32 %v3104, 127.0
        %v4129 = vmin.f32 %v3105, 127.0
        %v4130 = vmin.f32 %v3106, 127.0
        %v4131 = vmin.f32 %v3107, 127.0
        %v4132 = vmin.f32 %v3108, 127.0
        %v4133 = vmin.f32 %v3109, 127.0
        %v4134 = vmin.f32 %v3110, 127.0
        %v4135 = vmin.f32 %v3111, 127.0
        %v4136 = vmin.f32 %v3112, 127.0
        %v4137 = vmin.f32 %v3113, 127.0
        %v4138 = vmin.f32 %v3114, 127.0
        %v4139 = vmin.f32 %v3115, 127.0
        %v4140 = vmin.f32 %v3116, 127.0
        %v4141 = vmin.f32 %v3117, 127.0
        %v4142 = vmin.f32 %v3118, 127.0
        %v4143 = vmin.f32 %v3119, 127.0
        %v4144 = vmin.f32 %v3120, 127.0
        %v4145 = vmin.f32 %v3121, 127.0
        %v4146 = vmin.f32 %v3122, 127.0
        %v4147 = vmin.f32 %v3123, 127.0
        %v4148 = vmin.f32 %v3124, 127.0
        %v4149 = vmin.f32 %v3125, 127.0
        %v4150 = vmin.f32 %v3126, 127.0
        %v4151 = vmin.f32 %v3127, 127.0
        %v4152 = vmin.f32 %v3128, 127.0
        %v4153 = vmin.f32 %v3129, 127.0
        %v4154 = vmin.f32 %v3130, 127.0
        %v4155 = vmin.f32 %v3131, 127.0
        %v4156 = vmin.f32 %v3132, 127.0
        %v4157 = vmin.f32 %v3133, 127.0
        %v4158 = vmin.f32 %v3134, 127.0
        %v4159 = vmin.f32 %v3135, 127.0
        %v4160 = vmin.f32 %v3136, 127.0
        %v4161 = vmin.f32 %v3137, 127.0
        %v4162 = vmin.f32 %v3138, 127.0
        %v4163 = vmin.f32 %v3139, 127.0
        %v4164 = vmin.f32 %v3140, 127.0
        %v4165 = vmin.f32 %v3141, 127.0
        %v4166 = vmin.f32 %v3142, 127.0
        %v4167 = vmin.f32 %v3143, 127.0
        %v4168 = vmin.f32 %v3144, 127.0
        %v4169 = vmin.f32 %v3145, 127.0
        %v4170 = vmin.f32 %v3146, 127.0
        %v4171 = vmin.f32 %v3147, 127.0
        %v4172 = vmin.f32 %v3148, 127.0
        %v4173 = vmin.f32 %v3149, 127.0
        %v4174 = vmin.f32 %v3150, 127.0
        %v4175 = vmin.f32 %v3151, 127.0
        %v4176 = vmin.f32 %v3152, 127.0
        %v4177 = vmin.f32 %v3153, 127.0
        %v4178 = vmin.f32 %v3154, 127.0
        %v4179 = vmin.f32 %v3155, 127.0
        %v4180 = vmin.f32 %v3156, 127.0
        %v4181 = vmin.f32 %v3157, 127.0
        %v4182 = vmin.f32 %v3158, 127.0
        %v4183 = vmin.f32 %v3159, 127.0
        %v4184 = vmin.f32 %v3160, 127.0
        %v4185 = vmin.f32 %v3161, 127.0
        %v4186 = vmin.f32 %v3162, 127.0
        %v4187 = vmin.f32 %v3163, 127.0
        %v4188 = vmin.f32 %v3164, 127.0
        %v4189 = vmin.f32 %v3165, 127.0
        %v4190 = vmin.f32 %v3166, 127.0
        %v4191 = vmin.f32 %v3167, 127.0
        %v4192 = vmin.f32 %v3168, 127.0
        %v4193 = vmin.f32 %v3169, 127.0
        %v4194 = vmin.f32 %v3170, 127.0
        %v4195 = vmin.f32 %v3171, 127.0
        %v4196 = vmin.f32 %v3172, 127.0
        %v4197 = vmin.f32 %v3173, 127.0
        %v4198 = vmin.f32 %v3174, 127.0
        %v4199 = vmin.f32 %v3175, 127.0
        %v4200 = vmin.f32 %v3176, 127.0
        %v4201 = vmin.f32 %v3177, 127.0
        %v4202 = vmin.f32 %v3178, 127.0
        %v4203 = vmin.f32 %v3179, 127.0
        %v4204 = vmin.f32 %v3180, 127.0
        %v4205 = vmin.f32 %v3181, 127.0
        %v4206 = vmin.f32 %v3182, 127.0
        %v4207 = vmin.f32 %v3183, 127.0
        %v4208 = vmin.f32 %v3184, 127.0
        %v4209 = vmin.f32 %v3185, 127.0
        %v4210 = vmin.f32 %v3186, 127.0
        %v4211 = vmin.f32 %v3187, 127.0
        %v4212 = vmin.f32 %v3188, 127.0
        %v4213 = vmin.f32 %v3189, 127.0
        %v4214 = vmin.f32 %v3190, 127.0
        %v4215 = vmin.f32 %v3191, 127.0
        %v4216 = vmin.f32 %v3192, 127.0
        %v4217 = vmin.f32 %v3193, 127.0
        %v4218 = vmin.f32 %v3194, 127.0
        %v4219 = vmin.f32 %v3195, 127.0
        %v4220 = vmin.f32 %v3196, 127.0
        %v4221 = vmin.f32 %v3197, 127.0
        %v4222 = vmin.f32 %v3198, 127.0
        %v4223 = vmin.f32 %v3199, 127.0
        %v4224 = vmin.f32 %v3200, 127.0
        %v4225 = vmin.f32 %v3201, 127.0
        %v4226 = vmin.f32 %v3202, 127.0
        %v4227 = vmin.f32 %v3203, 127.0
        %v4228 = vmin.f32 %v3204, 127.0
        %v4229 = vmin.f32 %v3205, 127.0
        %v4230 = vmin.f32 %v3206, 127.0
        %v4231 = vmin.f32 %v3207, 127.0
        %v4232 = vmin.f32 %v3208, 127.0
        %v4233 = vmin.f32 %v3209, 127.0
        %v4234 = vcvt.f32.s32.to.zero.pseudo %v3210
        %v4235 = vcvt.f32.s32.to.zero.pseudo %v3211
        %v4236 = vcvt.f32.s32.to.zero.pseudo %v3212
        %v4237 = vcvt.f32.s32.to.zero.pseudo %v3213
        %v4238 = vcvt.f32.s32.to.zero.pseudo %v3214
        %v4239 = vcvt.f32.s32.to.zero.pseudo %v3215
        %v4240 = vcvt.f32.s32.to.zero.pseudo %v3216
        %v4241 = vcvt.f32.s32.to.zero.pseudo %v3217
        %v4242 = vcvt.f32.s32.to.zero.pseudo %v3218
        %v4243 = vcvt.f32.s32.to.zero.pseudo %v3219
        %v4244 = vcvt.f32.s32.to.zero.pseudo %v3220
        %v4245 = vcvt.f32.s32.to.zero.pseudo %v3221
        %v4246 = vcvt.f32.s32.to.zero.pseudo %v3222
        %v4247 = vcvt.f32.s32.to.zero.pseudo %v3223
        %v4248 = vcvt.f32.s32.to.zero.pseudo %v3224
        %v4249 = vcvt.f32.s32.to.zero.pseudo %v3225
        %v4250 = vcvt.f32.s32.to.zero.pseudo %v3226
        %v4251 = vcvt.f32.s32.to.zero.pseudo %v3227
        %v4252 = vcvt.f32.s32.to.zero.pseudo %v3228
        %v4253 = vcvt.f32.s32.to.zero.pseudo %v3229
        %v4254 = vcvt.f32.s32.to.zero.pseudo %v3230
        %v4255 = vcvt.f32.s32.to.zero.pseudo %v3231
        %v4256 = vcvt.f32.s32.to.zero.pseudo %v3232
        %v4257 = vcvt.f32.s32.to.zero.pseudo %v3233
        %v4258 = vcvt.f32.s32.to.zero.pseudo %v3234
        %v4259 = vcvt.f32.s32.to.zero.pseudo %v3235
        %v4260 = vcvt.f32.s32.to.zero.pseudo %v3236
        %v4261 = vcvt.f32.s32.to.zero.pseudo %v3237
        %v4262 = vcvt.f32.s32.to.zero.pseudo %v3238
        %v4263 = vcvt.f32.s32.to.zero.pseudo %v3239
        %v4264 = vcvt.f32.s32.to.zero.pseudo %v3240
        %v4265 = vcvt.f32.s32.to.zero.pseudo %v3241
        %v4266 = vcvt.f32.s32.to.zero.pseudo %v3242
        %v4267 = vcvt.f32.s32.to.zero.pseudo %v3243
        %v4268 = vcvt.f32.s32.to.zero.pseudo %v3244
        %v4269 = vcvt.f32.s32.to.zero.pseudo %v3245
        %v4270 = vcvt.f32.s32.to.zero.pseudo %v3246
        %v4271 = vcvt.f32.s32.to.zero.pseudo %v3247
        %v4272 = vcvt.f32.s32.to.zero.pseudo %v3248
        %v4273 = vcvt.f32.s32.to.zero.pseudo %v3249
        %v4274 = vcvt.f32.s32.to.zero.pseudo %v3250
        %v4275 = vcvt.f32.s32.to.zero.pseudo %v3251
        %v4276 = vcvt.f32.s32.to.zero.pseudo %v3252
        %v4277 = vcvt.f32.s32.to.zero.pseudo %v3253
        %v4278 = vcvt.f32.s32.to.zero.pseudo %v3254
        %v4279 = vcvt.f32.s32.to.zero.pseudo %v3255
        %v4280 = vcvt.f32.s32.to.zero.pseudo %v3256
        %v4281 = vcvt.f32.s32.to.zero.pseudo %v3257
        %v4282 = vcvt.f32.s32.to.zero.pseudo %v3258
        %v4283 = vcvt.f32.s32.to.zero.pseudo %v3259
        %v4284 = vcvt.f32.s32.to.zero.pseudo %v3260
        %v4285 = vcvt.f32.s32.to.zero.pseudo %v3261
        %v4286 = vcvt.f32.s32.to.zero.pseudo %v3262
        %v4287 = vcvt.f32.s32.to.zero.pseudo %v3263
        %v4288 = vcvt.f32.s32.to.zero.pseudo %v3264
        %v4289 = vcvt.f32.s32.to.zero.pseudo %v3265
        %v4290 = vcvt.f32.s32.to.zero.pseudo %v3266
        %v4291 = vcvt.f32.s32.to.zero.pseudo %v3267
        %v4292 = vcvt.f32.s32.to.zero.pseudo %v3268
        %v4293 = vcvt.f32.s32.to.zero.pseudo %v3269
        %v4294 = vcvt.f32.s32.to.zero.pseudo %v3270
        %v4295 = vcvt.f32.s32.to.zero.pseudo %v3271
        %v4296 = vcvt.f32.s32.to.zero.pseudo %v3272
        %v4297 = vcvt.f32.s32.to.zero.pseudo %v3273
        %v4298 = vcvt.f32.s32.to.zero.pseudo %v3274
        %v4299 = vcvt.f32.s32.to.zero.pseudo %v3275
        %v4300 = vcvt.f32.s32.to.zero.pseudo %v3276
        %v4301 = vcvt.f32.s32.to.zero.pseudo %v3277
        %v4302 = vcvt.f32.s32.to.zero.pseudo %v3278
        %v4303 = vcvt.f32.s32.to.zero.pseudo %v3279
        %v4304 = vcvt.f32.s32.to.zero.pseudo %v3280
        %v4305 = vcvt.f32.s32.to.zero.pseudo %v3281
        %v4306 = vcvt.f32.s32.to.zero.pseudo %v3282
        %v4307 = vcvt.f32.s32.to.zero.pseudo %v3283
        %v4308 = vcvt.f32.s32.to.zero.pseudo %v3284
        %v4309 = vcvt.f32.s32.to.zero.pseudo %v3285
        %v4310 = vcvt.f32.s32.to.zero.pseudo %v3286
        %v4311 = vcvt.f32.s32.to.zero.pseudo %v3287
        %v4312 = vcvt.f32.s32.to.zero.pseudo %v3288
        %v4313 = vcvt.f32.s32.to.zero.pseudo %v3289
        %v4314 = vcvt.f32.s32.to.zero.pseudo %v3290
        %v4315 = vcvt.f32.s32.to.zero.pseudo %v3291
        %v4316 = vcvt.f32.s32.to.zero.pseudo %v3292
        %v4317 = vcvt.f32.s32.to.zero.pseudo %v3293
        %v4318 = vcvt.f32.s32.to.zero.pseudo %v3294
        %v4319 = vcvt.f32.s32.to.zero.pseudo %v3295
        %v4320 = vcvt.f32.s32.to.zero.pseudo %v3296
        %v4321 = vcvt.f32.s32.to.zero.pseudo %v3297
        %v4322 = vcvt.f32.s32.to.zero.pseudo %v3298
        %v4323 = vcvt.f32.s32.to.zero.pseudo %v3299
        %v4324 = vcvt.f32.s32.to.zero.pseudo %v3300
        %v4325 = vcvt.f32.s32.to.zero.pseudo %v3301
        %v4326 = vcvt.f32.s32.to.zero.pseudo %v3302
        %v4327 = vcvt.f32.s32.to.zero.pseudo %v3303
        %v4328 = vcvt.f32.s32.to.zero.pseudo %v3304
        %v4329 = vcvt.f32.s32.to.zero.pseudo %v3305
        %v4330 = vcvt.f32.s32.to.zero.pseudo %v3306
        %v4331 = vcvt.f32.s32.to.zero.pseudo %v3307
        %v4332 = vcvt.f32.s32.to.zero.pseudo %v3308
        %v4333 = vcvt.f32.s32.to.zero.pseudo %v3309
        %v4334 = vcvt.f32.s32.to.zero.pseudo %v3310
        %v4335 = vcvt.f32.s32.to.zero.pseudo %v3311
        %v4336 = vcvt.f32.s32.to.zero.pseudo %v3312
        %v4337 = vcvt.f32.s32.to.zero.pseudo %v3313
        %v4338 = vcvt.f32.s32.to.zero.pseudo %v3314
        %v4339 = vcvt.f32.s32.to.zero.pseudo %v3315
        %v4340 = vcvt.f32.s32.to.zero.pseudo %v3316
        %v4341 = vcvt.f32.s32.to.zero.pseudo %v3317
        %v4342 = vcvt.f32.s32.to.zero.pseudo %v3318
        %v4343 = vcvt.f32.s32.to.zero.pseudo %v3319
        %v4344 = vcvt.f32.s32.to.zero.pseudo %v3320
        %v4345 = vcvt.f32.s32.to.zero.pseudo %v3321
        %v4346 = vcvt.f32.s32.to.zero.pseudo %v3322
        %v4347 = vcvt.f32.s32.to.zero.pseudo %v3323
        %v4348 = vcvt.f32.s32.to.zero.pseudo %v3324
        %v4349 = vcvt.f32.s32.to.zero.pseudo %v3325
        %v4350 = vcvt.f32.s32.to.zero.pseudo %v3326
        %v4351 = vcvt.f32.s32.to.zero.pseudo %v3327
        %v4352 = vcvt.f32.s32.to.zero.pseudo %v3328
        %v4353 = vcvt.f32.s32.to.zero.pseudo %v3329
        %v4354 = vcvt.f32.s32.to.zero.pseudo %v3330
        %v4355 = vcvt.f32.s32.to.zero.pseudo %v3331
        %v4356 = vcvt.f32.s32.to.zero.pseudo %v3332
        %v4357 = vcvt.f32.s32.to.zero.pseudo %v3333
        %v4358 = vcvt.f32.s32.to.zero.pseudo %v3334
        %v4359 = vcvt.f32.s32.to.zero.pseudo %v3335
        %v4360 = vcvt.f32.s32.to.zero.pseudo %v3336
        %v4361 = vcvt.f32.s32.to.zero.pseudo %v3337
        %v4362 = vcvt.f32.s32.to.zero.pseudo %v3338
        %v4363 = vcvt.f32.s32.to.zero.pseudo %v3339
        %v4364 = vcvt.f32.s32.to.zero.pseudo %v3340
        %v4365 = vcvt.f32.s32.to.zero.pseudo %v3341
        %v4366 = vcvt.f32.s32.to.zero.pseudo %v3342
        %v4367 = vcvt.f32.s32.to.zero.pseudo %v3343
        %v4368 = vcvt.f32.s32.to.zero.pseudo %v3344
        %v4369 = vcvt.f32.s32.to.zero.pseudo %v3345
        %v4370 = vcvt.f32.s32.to.zero.pseudo %v3346
        %v4371 = vcvt.f32.s32.to.zero.pseudo %v3347
        %v4372 = vcvt.f32.s32.to.zero.pseudo %v3348
        %v4373 = vcvt.f32.s32.to.zero.pseudo %v3349
        %v4374 = vcvt.f32.s32.to.zero.pseudo %v3350
        %v4375 = vcvt.f32.s32.to.zero.pseudo %v3351
        %v4376 = vcvt.f32.s32.to.zero.pseudo %v3352
        %v4377 = vcvt.f32.s32.to.zero.pseudo %v3353
        %v4378 = vcvt.f32.s32.to.zero.pseudo %v3354
        %v4379 = vcvt.f32.s32.to.zero.pseudo %v3355
        %v4380 = vcvt.f32.s32.to.zero.pseudo %v3356
        %v4381 = vcvt.f32.s32.to.zero.pseudo %v3357
        %v4382 = vcvt.f32.s32.to.zero.pseudo %v3358
        %v4383 = vcvt.f32.s32.to.zero.pseudo %v3359
        %v4384 = vcvt.f32.s32.to.zero.pseudo %v3360
        %v4385 = vcvt.f32.s32.to.zero.pseudo %v3361
        %v4386 = vcvt.f32.s32.to.zero.pseudo %v3362
        %v4387 = vcvt.f32.s32.to.zero.pseudo %v3363
        %v4388 = vcvt.f32.s32.to.zero.pseudo %v3364
        %v4389 = vcvt.f32.s32.to.zero.pseudo %v3365
        %v4390 = vcvt.f32.s32.to.zero.pseudo %v3366
        %v4391 = vcvt.f32.s32.to.zero.pseudo %v3367
        %v4392 = vcvt.f32.s32.to.zero.pseudo %v3368
        %v4393 = vcvt.f32.s32.to.zero.pseudo %v3369
        %v4394 = vcvt.f32.s32.to.zero.pseudo %v3370
        %v4395 = vcvt.f32.s32.to.zero.pseudo %v3371
        %v4396 = vcvt.f32.s32.to.zero.pseudo %v3372
        %v4397 = vcvt.f32.s32.to.zero.pseudo %v3373
        %v4398 = vcvt.f32.s32.to.zero.pseudo %v3374
        %v4399 = vcvt.f32.s32.to.zero.pseudo %v3375
        %v4400 = vcvt.f32.s32.to.zero.pseudo %v3376
        %v4401 = vcvt.f32.s32.to.zero.pseudo %v3377
        %v4402 = vcvt.f32.s32.to.zero.pseudo %v3378
        %v4403 = vcvt.f32.s32.to.zero.pseudo %v3379
        %v4404 = vcvt.f32.s32.to.zero.pseudo %v3380
        %v4405 = vcvt.f32.s32.to.zero.pseudo %v3381
        %v4406 = vcvt.f32.s32.to.zero.pseudo %v3382
        %v4407 = vcvt.f32.s32.to.zero.pseudo %v3383
        %v4408 = vcvt.f32.s32.to.zero.pseudo %v3384
        %v4409 = vcvt.f32.s32.to.zero.pseudo %v3385
        %v4410 = vcvt.f32.s32.to.zero.pseudo %v3386
        %v4411 = vcvt.f32.s32.to.zero.pseudo %v3387
        %v4412 = vcvt.f32.s32.to.zero.pseudo %v3388
        %v4413 = vcvt.f32.s32.to.zero.pseudo %v3389
        %v4414 = vcvt.f32.s32.to.zero.pseudo %v3390
        %v4415 = vcvt.f32.s32.to.zero.pseudo %v3391
        %v4416 = vcvt.f32.s32.to.zero.pseudo %v3392
        %v4417 = vcvt.f32.s32.to.zero.pseudo %v3393
        %v4418 = vcvt.f32.s32.to.zero.pseudo %v3394
        %v4419 = vcvt.f32.s32.to.zero.pseudo %v3395
        %v4420 = vcvt.f32.s32.to.zero.pseudo %v3396
        %v4421 = vcvt.f32.s32.to.zero.pseudo %v3397
        %v4422 = vcvt.f32.s32.to.zero.pseudo %v3398
        %v4423 = vcvt.f32.s32.to.zero.pseudo %v3399
        %v4424 = vcvt.f32.s32.to.zero.pseudo %v3400
        %v4425 = vcvt.f32.s32.to.zero.pseudo %v3401
        %v4426 = vcvt.f32.s32.to.zero.pseudo %v3402
        %v4427 = vcvt.f32.s32.to.zero.pseudo %v3403
        %v4428 = vcvt.f32.s32.to.zero.pseudo %v3404
        %v4429 = vcvt.f32.s32.to.zero.pseudo %v3405
        %v4430 = vcvt.f32.s32.to.zero.pseudo %v3406
        %v4431 = vcvt.f32.s32.to.zero.pseudo %v3407
        %v4432 = vcvt.f32.s32.to.zero.pseudo %v3408
        %v4433 = vcvt.f32.s32.to.zero.pseudo %v3409
        %v4434 = vcvt.f32.s32.to.zero.pseudo %v3410
        %v4435 = vcvt.f32.s32.to.zero.pseudo %v3411
        %v4436 = vcvt.f32.s32.to.zero.pseudo %v3412
        %v4437 = vcvt.f32.s32.to.zero.pseudo %v3413
        %v4438 = vcvt.f32.s32.to.zero.pseudo %v3414
        %v4439 = vcvt.f32.s32.to.zero.pseudo %v3415
        %v4440 = vcvt.f32.s32.to.zero.pseudo %v3416
        %v4441 = vcvt.f32.s32.to.zero.pseudo %v3417
        %v4442 = vcvt.f32.s32.to.zero.pseudo %v3418
        %v4443 = vcvt.f32.s32.to.zero.pseudo %v3419
        %v4444 = vcvt.f32.s32.to.zero.pseudo %v3420
        %v4445 = vcvt.f32.s32.to.zero.pseudo %v3421
        %v4446 = vcvt.f32.s32.to.zero.pseudo %v3422
        %v4447 = vcvt.f32.s32.to.zero.pseudo %v3423
        %v4448 = vcvt.f32.s32.to.zero.pseudo %v3424
        %v4449 = vcvt.f32.s32.to.zero.pseudo %v3425
        %v4450 = vcvt.f32.s32.to.zero.pseudo %v3426
        %v4451 = vcvt.f32.s32.to.zero.pseudo %v3427
        %v4452 = vcvt.f32.s32.to.zero.pseudo %v3428
        %v4453 = vcvt.f32.s32.to.zero.pseudo %v3429
        %v4454 = vcvt.f32.s32.to.zero.pseudo %v3430
        %v4455 = vcvt.f32.s32.to.zero.pseudo %v3431
        %v4456 = vcvt.f32.s32.to.zero.pseudo %v3432
        %v4457 = vcvt.f32.s32.to.zero.pseudo %v3433
        %v4458 = vcvt.f32.s32.to.zero.pseudo %v3434
        %v4459 = vcvt.f32.s32.to.zero.pseudo %v3435
        %v4460 = vcvt.f32.s32.to.zero.pseudo %v3436
        %v4461 = vcvt.f32.s32.to.zero.pseudo %v3437
        %v4462 = vcvt.f32.s32.to.zero.pseudo %v3438
        %v4463 = vcvt.f32.s32.to.zero.pseudo %v3439
        %v4464 = vcvt.f32.s32.to.zero.pseudo %v3440
        %v4465 = vcvt.f32.s32.to.zero.pseudo %v3441
        %v4466 = vcvt.f32.s32.to.zero.pseudo %v3442
        %v4467 = vcvt.f32.s32.to.zero.pseudo %v3443
        %v4468 = vcvt.f32.s32.to.zero.pseudo %v3444
        %v4469 = vcvt.f32.s32.to.zero.pseudo %v3445
        %v4470 = vcvt.f32.s32.to.zero.pseudo %v3446
        %v4471 = vcvt.f32.s32.to.zero.pseudo %v3447
        %v4472 = vcvt.f32.s32.to.zero.pseudo %v3448
        %v4473 = vcvt.f32.s32.to.zero.pseudo %v3449
        %v4474 = vcvt.f32.s32.to.zero.pseudo %v3450
        %v4475 = vcvt.f32.s32.to.zero.pseudo %v3451
        %v4476 = vcvt.f32.s32.to.zero.pseudo %v3452
        %v4477 = vcvt.f32.s32.to.zero.pseudo %v3453
        %v4478 = vcvt.f32.s32.to.zero.pseudo %v3454
        %v4479 = vcvt.f32.s32.to.zero.pseudo %v3455
        %v4480 = vcvt.f32.s32.to.zero.pseudo %v3456
        %v4481 = vcvt.f32.s32.to.zero.pseudo %v3457
        %v4482 = vcvt.f32.s32.to.zero.pseudo %v3458
        %v4483 = vcvt.f32.s32.to.zero.pseudo %v3459
        %v4484 = vcvt.f32.s32.to.zero.pseudo %v3460
        %v4485 = vcvt.f32.s32.to.zero.pseudo %v3461
        %v4486 = vcvt.f32.s32.to.zero.pseudo %v3462
        %v4487 = vcvt.f32.s32.to.zero.pseudo %v3463
        %v4488 = vcvt.f32.s32.to.zero.pseudo %v3464
        %v4489 = vcvt.f32.s32.to.zero.pseudo %v3465
        %v4490 = vcvt.f32.s32.to.zero.pseudo %v3466
        %v4491 = vcvt.f32.s32.to.zero.pseudo %v3467
        %v4492 = vcvt.f32.s32.to.zero.pseudo %v3468
        %v4493 = vcvt.f32.s32.to.zero.pseudo %v3469
        %v4494 = vcvt.f32.s32.to.zero.pseudo %v3470
        %v4495 = vcvt.f32.s32.to.zero.pseudo %v3471
        %v4496 = vcvt.f32.s32.to.zero.pseudo %v3472
        %v4497 = vcvt.f32.s32.to.zero.pseudo %v3473
        %v4498 = vcvt.f32.s32.to.zero.pseudo %v3474
        %v4499 = vcvt.f32.s32.to.zero.pseudo %v3475
        %v4500 = vcvt.f32.s32.to.zero.pseudo %v3476
        %v4501 = vcvt.f32.s32.to.zero.pseudo %v3477
        %v4502 = vcvt.f32.s32.to.zero.pseudo %v3478
        %v4503 = vcvt.f32.s32.to.zero.pseudo %v3479
        %v4504 = vcvt.f32.s32.to.zero.pseudo %v3480
        %v4505 = vcvt.f32.s32.to.zero.pseudo %v3481
        %v4506 = vcvt.f32.s32.to.zero.pseudo %v3482
        %v4507 = vcvt.f32.s32.to.zero.pseudo %v3483
        %v4508 = vcvt.f32.s32.to.zero.pseudo %v3484
        %v4509 = vcvt.f32.s32.to.zero.pseudo %v3485
        %v4510 = vcvt.f32.s32.to.zero.pseudo %v3486
        %v4511 = vcvt.f32.s32.to.zero.pseudo %v3487
        %v4512 = vcvt.f32.s32.to.zero.pseudo %v3488
        %v4513 = vcvt.f32.s32.to.zero.pseudo %v3489
        %v4514 = vcvt.f32.s32.to.zero.pseudo %v3490
        %v4515 = vcvt.f32.s32.to.zero.pseudo %v3491
        %v4516 = vcvt.f32.s32.to.zero.pseudo %v3492
        %v4517 = vcvt.f32.s32.to.zero.pseudo %v3493
        %v4518 = vcvt.f32.s32.to.zero.pseudo %v3494
        %v4519 = vcvt.f32.s32.to.zero.pseudo %v3495
        %v4520 = vcvt.f32.s32.to.zero.pseudo %v3496
        %v4521 = vcvt.f32.s32.to.zero.pseudo %v3497
        %v4522 = vcvt.f32.s32.to.zero.pseudo %v3498
        %v4523 = vcvt.f32.s32.to.zero.pseudo %v3499
        %v4524 = vcvt.f32.s32.to.zero.pseudo %v3500
        %v4525 = vcvt.f32.s32.to.zero.pseudo %v3501
        %v4526 = vcvt.f32.s32.to.zero.pseudo %v3502
        %v4527 = vcvt.f32.s32.to.zero.pseudo %v3503
        %v4528 = vcvt.f32.s32.to.zero.pseudo %v3504
        %v4529 = vcvt.f32.s32.to.zero.pseudo %v3505
        %v4530 = vcvt.f32.s32.to.zero.pseudo %v3506
        %v4531 = vcvt.f32.s32.to.zero.pseudo %v3507
        %v4532 = vcvt.f32.s32.to.zero.pseudo %v3508
        %v4533 = vcvt.f32.s32.to.zero.pseudo %v3509
        %v4534 = vcvt.f32.s32.to.zero.pseudo %v3510
        %v4535 = vcvt.f32.s32.to.zero.pseudo %v3511
        %v4536 = vcvt.f32.s32.to.zero.pseudo %v3512
        %v4537 = vcvt.f32.s32.to.zero.pseudo %v3513
        %v4538 = vcvt.f32.s32.to.zero.pseudo %v3514
        %v4539 = vcvt.f32.s32.to.zero.pseudo %v3515
        %v4540 = vcvt.f32.s32.to.zero.pseudo %v3516
        %v4541 = vcvt.f32.s32.to.zero.pseudo %v3517
        %v4542 = vcvt.f32.s32.to.zero.pseudo %v3518
        %v4543 = vcvt.f32.s32.to.zero.pseudo %v3519
        %v4544 = vcvt.f32.s32.to.zero.pseudo %v3520
        %v4545 = vcvt.f32.s32.to.zero.pseudo %v3521
        %v4546 = vcvt.f32.s32.to.zero.pseudo %v3522
        %v4547 = vcvt.f32.s32.to.zero.pseudo %v3523
        %v4548 = vcvt.f32.s32.to.zero.pseudo %v3524
        %v4549 = vcvt.f32.s32.to.zero.pseudo %v3525
        %v4550 = vcvt.f32.s32.to.zero.pseudo %v3526
        %v4551 = vcvt.f32.s32.to.zero.pseudo %v3527
        %v4552 = vcvt.f32.s32.to.zero.pseudo %v3528
        %v4553 = vcvt.f32.s32.to.zero.pseudo %v3529
        %v4554 = vcvt.f32.s32.to.zero.pseudo %v3530
        %v4555 = vcvt.f32.s32.to.zero.pseudo %v3531
        %v4556 = vcvt.f32.s32.to.zero.pseudo %v3532
        %v4557 = vcvt.f32.s32.to.zero.pseudo %v3533
        %v4558 = vcvt.f32.s32.to.zero.pseudo %v3534
        %v4559 = vcvt.f32.s32.to.zero.pseudo %v3535
        %v4560 = vcvt.f32.s32.to.zero.pseudo %v3536
        %v4561 = vcvt.f32.s32.to.zero.pseudo %v3537
        %v4562 = vcvt.f32.s32.to.zero.pseudo %v3538
        %v4563 = vcvt.f32.s32.to.zero.pseudo %v3539
        %v4564 = vcvt.f32.s32.to.zero.pseudo %v3540
        %v4565 = vcvt.f32.s32.to.zero.pseudo %v3541
        %v4566 = vcvt.f32.s32.to.zero.pseudo %v3542
        %v4567 = vcvt.f32.s32.to.zero.pseudo %v3543
        %v4568 = vcvt.f32.s32.to.zero.pseudo %v3544
        %v4569 = vcvt.f32.s32.to.zero.pseudo %v3545
        %v4570 = vcvt.f32.s32.to.zero.pseudo %v3546
        %v4571 = vcvt.f32.s32.to.zero.pseudo %v3547
        %v4572 = vcvt.f32.s32.to.zero.pseudo %v3548
        %v4573 = vcvt.f32.s32.to.zero.pseudo %v3549
        %v4574 = vcvt.f32.s32.to.zero.pseudo %v3550
        %v4575 = vcvt.f32.s32.to.zero.pseudo %v3551
        %v4576 = vcvt.f32.s32.to.zero.pseudo %v3552
        %v4577 = vcvt.f32.s32.to.zero.pseudo %v3553
        %v4578 = vcvt.f32.s32.to.zero.pseudo %v3554
        %v4579 = vcvt.f32.s32.to.zero.pseudo %v3555
        %v4580 = vcvt.f32.s32.to.zero.pseudo %v3556
        %v4581 = vcvt.f32.s32.to.zero.pseudo %v3557
        %v4582 = vcvt.f32.s32.to.zero.pseudo %v3558
        %v4583 = vcvt.f32.s32.to.zero.pseudo %v3559
        %v4584 = vcvt.f32.s32.to.zero.pseudo %v3560
        %v4585 = vcvt.f32.s32.to.zero.pseudo %v3561
        %v4586 = vcvt.f32.s32.to.zero.pseudo %v3562
        %v4587 = vcvt.f32.s32.to.zero.pseudo %v3563
        %v4588 = vcvt.f32.s32.to.zero.pseudo %v3564
        %v4589 = vcvt.f32.s32.to.zero.pseudo %v3565
        %v4590 = vcvt.f32.s32.to.zero.pseudo %v3566
        %v4591 = vcvt.f32.s32.to.zero.pseudo %v3567
        %v4592 = vcvt.f32.s32.to.zero.pseudo %v3568
        %v4593 = vcvt.f32.s32.to.zero.pseudo %v3569
        %v4594 = vcvt.f32.s32.to.zero.pseudo %v3570
        %v4595 = vcvt.f32.s32.to.zero.pseudo %v3571
        %v4596 = vcvt.f32.s32.to.zero.pseudo %v3572
        %v4597 = vcvt.f32.s32.to.zero.pseudo %v3573
        %v4598 = vcvt.f32.s32.to.zero.pseudo %v3574
        %v4599 = vcvt.f32.s32.to.zero.pseudo %v3575
        %v4600 = vcvt.f32.s32.to.zero.pseudo %v3576
        %v4601 = vcvt.f32.s32.to.zero.pseudo %v3577
        %v4602 = vcvt.f32.s32.to.zero.pseudo %v3578
        %v4603 = vcvt.f32.s32.to.zero.pseudo %v3579
        %v4604 = vcvt.f32.s32.to.zero.pseudo %v3580
        %v4605 = vcvt.f32.s32.to.zero.pseudo %v3581
        %v4606 = vcvt.f32.s32.to.zero.pseudo %v3582
        %v4607 = vcvt.f32.s32.to.zero.pseudo %v3583
        %v4608 = vcvt.f32.s32.to.zero.pseudo %v3584
        %v4609 = vcvt.f32.s32.to.zero.pseudo %v3585
        %v4610 = vcvt.f32.s32.to.zero.pseudo %v3586
        %v4611 = vcvt.f32.s32.to.zero.pseudo %v3587
        %v4612 = vcvt.f32.s32.to.zero.pseudo %v3588
        %v4613 = vcvt.f32.s32.to.zero.pseudo %v3589
        %v4614 = vcvt.f32.s32.to.zero.pseudo %v3590
        %v4615 = vcvt.f32.s32.to.zero.pseudo %v3591
        %v4616 = vcvt.f32.s32.to.zero.pseudo %v3592
        %v4617 = vcvt.f32.s32.to.zero.pseudo %v3593
        %v4618 = vcvt.f32.s32.to.zero.pseudo %v3594
        %v4619 = vcvt.f32.s32.to.zero.pseudo %v3595
        %v4620 = vcvt.f32.s32.to.zero.pseudo %v3596
        %v4621 = vcvt.f32.s32.to.zero.pseudo %v3597
        %v4622 = vcvt.f32.s32.to.zero.pseudo %v3598
        %v4623 = vcvt.f32.s32.to.zero.pseudo %v3599
        %v4624 = vcvt.f32.s32.to.zero.pseudo %v3600
        %v4625 = vcvt.f32.s32.to.zero.pseudo %v3601
        %v4626 = vcvt.f32.s32.to.zero.pseudo %v3602
        %v4627 = vcvt.f32.s32.to.zero.pseudo %v3603
        %v4628 = vcvt.f32.s32.to.zero.pseudo %v3604
        %v4629 = vcvt.f32.s32.to.zero.pseudo %v3605
        %v4630 = vcvt.f32.s32.to.zero.pseudo %v3606
        %v4631 = vcvt.f32.s32.to.zero.pseudo %v3607
        %v4632 = vcvt.f32.s32.to.zero.pseudo %v3608
        %v4633 = vcvt.f32.s32.to.zero.pseudo %v3609
        %v4634 = vcvt.f32.s32.to.zero.pseudo %v3610
        %v4635 = vcvt.f32.s32.to.zero.pseudo %v3611
        %v4636 = vcvt.f32.s32.to.zero.pseudo %v3612
        %v4637 = vcvt.f32.s32.to.zero.pseudo %v3613
        %v4638 = vcvt.f32.s32.to.zero.pseudo %v3614
        %v4639 = vcvt.f32.s32.to.zero.pseudo %v3615
        %v4640 = vcvt.f32.s32.to.zero.pseudo %v3616
        %v4641 = vcvt.f32.s32.to.zero.pseudo %v3617
        %v4642 = vcvt.f32.s32.to.zero.pseudo %v3618
        %v4643 = vcvt.f32.s32.to.zero.pseudo %v3619
        %v4644 = vcvt.f32.s32.to.zero.pseudo %v3620
        %v4645 = vcvt.f32.s32.to.zero.pseudo %v3621
        %v4646 = vcvt.f32.s32.to.zero.pseudo %v3622
        %v4647 = vcvt.f32.s32.to.zero.pseudo %v3623
        %v4648 = vcvt.f32.s32.to.zero.pseudo %v3624
        %v4649 = vcvt.f32.s32.to.zero.pseudo %v3625
        %v4650 = vcvt.f32.s32.to.zero.pseudo %v3626
        %v4651 = vcvt.f32.s32.to.zero.pseudo %v3627
        %v4652 = vcvt.f32.s32.to.zero.pseudo %v3628
        %v4653 = vcvt.f32.s32.to.zero.pseudo %v3629
        %v4654 = vcvt.f32.s32.to.zero.pseudo %v3630
        %v4655 = vcvt.f32.s32.to.zero.pseudo %v3631
        %v4656 = vcvt.f32.s32.to.zero.pseudo %v3632
        %v4657 = vcvt.f32.s32.to.zero.pseudo %v3633
        %v4658 = vcvt.f32.s32.to.zero.pseudo %v3634
        %v4659 = vcvt.f32.s32.to.zero.pseudo %v3635
        %v4660 = vcvt.f32.s32.to.zero.pseudo %v3636
        %v4661 = vcvt.f32.s32.to.zero.pseudo %v3637
        %v4662 = vcvt.f32.s32.to.zero.pseudo %v3638
        %v4663 = vcvt.f32.s32.to.zero.pseudo %v3639
        %v4664 = vcvt.f32.s32.to.zero.pseudo %v3640
        %v4665 = vcvt.f32.s32.to.zero.pseudo %v3641
        %v4666 = vcvt.f32.s32.to.zero.pseudo %v3642
        %v4667 = vcvt.f32.s32.to.zero.pseudo %v3643
        %v4668 = vcvt.f32.s32.to.zero.pseudo %v3644
        %v4669 = vcvt.f32.s32.to.zero.pseudo %v3645
        %v4670 = vcvt.f32.s32.to.zero.pseudo %v3646
        %v4671 = vcvt.f32.s32.to.zero.pseudo %v3647
        %v4672 = vcvt.f32.s32.to.zero.pseudo %v3648
        %v4673 = vcvt.f32.s32.to.zero.pseudo %v3649
        %v4674 = vcvt.f32.s32.to.zero.pseudo %v3650
        %v4675 = vcvt.f32.s32.to.zero.pseudo %v3651
        %v4676 = vcvt.f32.s32.to.zero.pseudo %v3652
        %v4677 = vcvt.f32.s32.to.zero.pseudo %v3653
        %v4678 = vcvt.f32.s32.to.zero.pseudo %v3654
        %v4679 = vcvt.f32.s32.to.zero.pseudo %v3655
        %v4680 = vcvt.f32.s32.to.zero.pseudo %v3656
        %v4681 = vcvt.f32.s32.to.zero.pseudo %v3657
        %v4682 = vcvt.f32.s32.to.zero.pseudo %v3658
        %v4683 = vcvt.f32.s32.to.zero.pseudo %v3659
        %v4684 = vcvt.f32.s32.to.zero.pseudo %v3660
        %v4685 = vcvt.f32.s32.to.zero.pseudo %v3661
        %v4686 = vcvt.f32.s32.to.zero.pseudo %v3662
        %v4687 = vcvt.f32.s32.to.zero.pseudo %v3663
        %v4688 = vcvt.f32.s32.to.zero.pseudo %v3664
        %v4689 = vcvt.f32.s32.to.zero.pseudo %v3665
        %v4690 = vcvt.f32.s32.to.zero.pseudo %v3666
        %v4691 = vcvt.f32.s32.to.zero.pseudo %v3667
        %v4692 = vcvt.f32.s32.to.zero.pseudo %v3668
        %v4693 = vcvt.f32.s32.to.zero.pseudo %v3669
        %v4694 = vcvt.f32.s32.to.zero.pseudo %v3670
        %v4695 = vcvt.f32.s32.to.zero.pseudo %v3671
        %v4696 = vcvt.f32.s32.to.zero.pseudo %v3672
        %v4697 = vcvt.f32.s32.to.zero.pseudo %v3673
        %v4698 = vcvt.f32.s32.to.zero.pseudo %v3674
        %v4699 = vcvt.f32.s32.to.zero.pseudo %v3675
        %v4700 = vcvt.f32.s32.to.zero.pseudo %v3676
        %v4701 = vcvt.f32.s32.to.zero.pseudo %v3677
        %v4702 = vcvt.f32.s32.to.zero.pseudo %v3678
        %v4703 = vcvt.f32.s32.to.zero.pseudo %v3679
        %v4704 = vcvt.f32.s32.to.zero.pseudo %v3680
        %v4705 = vcvt.f32.s32.to.zero.pseudo %v3681
        %v4706 = vcvt.f32.s32.to.zero.pseudo %v3682
        %v4707 = vcvt.f32.s32.to.zero.pseudo %v3683
        %v4708 = vcvt.f32.s32.to.zero.pseudo %v3684
        %v4709 = vcvt.f32.s32.to.zero.pseudo %v3685
        %v4710 = vcvt.f32.s32.to.zero.pseudo %v3686
        %v4711 = vcvt.f32.s32.to.zero.pseudo %v3687
        %v4712 = vcvt.f32.s32.to.zero.pseudo %v3688
        %v4713 = vcvt.f32.s32.to.zero.pseudo %v3689
        %v4714 = vcvt.f32.s32.to.zero.pseudo %v3690
        %v4715 = vcvt.f32.s32.to.zero.pseudo %v3691
        %v4716 = vcvt.f32.s32.to.zero.pseudo %v3692
        %v4717 = vcvt.f32.s32.to.zero.pseudo %v3693
        %v4718 = vcvt.f32.s32.to.zero.pseudo %v3694
        %v4719 = vcvt.f32.s32.to.zero.pseudo %v3695
        %v4720 = vcvt.f32.s32.to.zero.pseudo %v3696
        %v4721 = vcvt.f32.s32.to.zero.pseudo %v3697
        %v4722 = vcvt.f32.s32.to.zero.pseudo %v3698
        %v4723 = vcvt.f32.s32.to.zero.pseudo %v3699
        %v4724 = vcvt.f32.s32.to.zero.pseudo %v3700
        %v4725 = vcvt.f32.s32.to.zero.pseudo %v3701
        %v4726 = vcvt.f32.s32.to.zero.pseudo %v3702
        %v4727 = vcvt.f32.s32.to.zero.pseudo %v3703
        %v4728 = vcvt.f32.s32.to.zero.pseudo %v3704
        %v4729 = vcvt.f32.s32.to.zero.pseudo %v3705
        %v4730 = vcvt.f32.s32.to.zero.pseudo %v3706
        %v4731 = vcvt.f32.s32.to.zero.pseudo %v3707
        %v4732 = vcvt.f32.s32.to.zero.pseudo %v3708
        %v4733 = vcvt.f32.s32.to.zero.pseudo %v3709
        %v4734 = vcvt.f32.s32.to.zero.pseudo %v3710
        %v4735 = vcvt.f32.s32.to.zero.pseudo %v3711
        %v4736 = vcvt.f32.s32.to.zero.pseudo %v3712
        %v4737 = vcvt.f32.s32.to.zero.pseudo %v3713
        %v4738 = vcvt.f32.s32.to.zero.pseudo %v3714
        %v4739 = vcvt.f32.s32.to.zero.pseudo %v3715
        %v4740 = vcvt.f32.s32.to.zero.pseudo %v3716
        %v4741 = vcvt.f32.s32.to.zero.pseudo %v3717
        %v4742 = vcvt.f32.s32.to.zero.pseudo %v3718
        %v4743 = vcvt.f32.s32.to.zero.pseudo %v3719
        %v4744 = vcvt.f32.s32.to.zero.pseudo %v3720
        %v4745 = vcvt.f32.s32.to.zero.pseudo %v3721
        %v4746 = vcvt.f32.s32.to.zero.pseudo %v3722
        %v4747 = vcvt.f32.s32.to.zero.pseudo %v3723
        %v4748 = vcvt.f32.s32.to.zero.pseudo %v3724
        %v4749 = vcvt.f32.s32.to.zero.pseudo %v3725
        %v4750 = vcvt.f32.s32.to.zero.pseudo %v3726
        %v4751 = vcvt.f32.s32.to.zero.pseudo %v3727
        %v4752 = vcvt.f32.s32.to.zero.pseudo %v3728
        %v4753 = vcvt.f32.s32.to.zero.pseudo %v3729
        %v4754 = vcvt.f32.s32.to.zero.pseudo %v3730
        %v4755 = vcvt.f32.s32.to.zero.pseudo %v3731
        %v4756 = vcvt.f32.s32.to.zero.pseudo %v3732
        %v4757 = vcvt.f32.s32.to.zero.pseudo %v3733
        %v4758 = vcvt.f32.s32.to.zero.pseudo %v3734
        %v4759 = vcvt.f32.s32.to.zero.pseudo %v3735
        %v4760 = vcvt.f32.s32.to.zero.pseudo %v3736
        %v4761 = vcvt.f32.s32.to.zero.pseudo %v3737
        %v4762 = vcvt.f32.s32.to.zero.pseudo %v3738
        %v4763 = vcvt.f32.s32.to.zero.pseudo %v3739
        %v4764 = vcvt.f32.s32.to.zero.pseudo %v3740
        %v4765 = vcvt.f32.s32.to.zero.pseudo %v3741
        %v4766 = vcvt.f32.s32.to.zero.pseudo %v3742
        %v4767 = vcvt.f32.s32.to.zero.pseudo %v3743
        %v4768 = vcvt.f32.s32.to.zero.pseudo %v3744
        %v4769 = vcvt.f32.s32.to.zero.pseudo %v3745
        %v4770 = vcvt.f32.s32.to.zero.pseudo %v3746
        %v4771 = vcvt.f32.s32.to.zero.pseudo %v3747
        %v4772 = vcvt.f32.s32.to.zero.pseudo %v3748
        %v4773 = vcvt.f32.s32.to.zero.pseudo %v3749
        %v4774 = vcvt.f32.s32.to.zero.pseudo %v3750
        %v4775 = vcvt.f32.s32.to.zero.pseudo %v3751
        %v4776 = vcvt.f32.s32.to.zero.pseudo %v3752
        %v4777 = vcvt.f32.s32.to.zero.pseudo %v3753
        %v4778 = vcvt.f32.s32.to.zero.pseudo %v3754
        %v4779 = vcvt.f32.s32.to.zero.pseudo %v3755
        %v4780 = vcvt.f32.s32.to.zero.pseudo %v3756
        %v4781 = vcvt.f32.s32.to.zero.pseudo %v3757
        %v4782 = vcvt.f32.s32.to.zero.pseudo %v3758
        %v4783 = vcvt.f32.s32.to.zero.pseudo %v3759
        %v4784 = vcvt.f32.s32.to.zero.pseudo %v3760
        %v4785 = vcvt.f32.s32.to.zero.pseudo %v3761
        %v4786 = vcvt.f32.s32.to.zero.pseudo %v3762
        %v4787 = vcvt.f32.s32.to.zero.pseudo %v3763
        %v4788 = vcvt.f32.s32.to.zero.pseudo %v3764
        %v4789 = vcvt.f32.s32.to.zero.pseudo %v3765
        %v4790 = vcvt.f32.s32.to.zero.pseudo %v3766
        %v4791 = vcvt.f32.s32.to.zero.pseudo %v3767
        %v4792 = vcvt.f32.s32.to.zero.pseudo %v3768
        %v4793 = vcvt.f32.s32.to.zero.pseudo %v3769
        %v4794 = vcvt.f32.s32.to.zero.pseudo %v3770
        %v4795 = vcvt.f32.s32.to.zero.pseudo %v3771
        %v4796 = vcvt.f32.s32.to.zero.pseudo %v3772
        %v4797 = vcvt.f32.s32.to.zero.pseudo %v3773
        %v4798 = vcvt.f32.s32.to.zero.pseudo %v3774
        %v4799 = vcvt.f32.s32.to.zero.pseudo %v3775
        %v4800 = vcvt.f32.s32.to.zero.pseudo %v3776
        %v4801 = vcvt.f32.s32.to.zero.pseudo %v3777
        %v4802 = vcvt.f32.s32.to.zero.pseudo %v3778
        %v4803 = vcvt.f32.s32.to.zero.pseudo %v3779
        %v4804 = vcvt.f32.s32.to.zero.pseudo %v3780
        %v4805 = vcvt.f32.s32.to.zero.pseudo %v3781
        %v4806 = vcvt.f32.s32.to.zero.pseudo %v3782
        %v4807 = vcvt.f32.s32.to.zero.pseudo %v3783
        %v4808 = vcvt.f32.s32.to.zero.pseudo %v3784
        %v4809 = vcvt.f32.s32.to.zero.pseudo %v3785
        %v4810 = vcvt.f32.s32.to.zero.pseudo %v3786
        %v4811 = vcvt.f32.s32.to.zero.pseudo %v3787
        %v4812 = vcvt.f32.s32.to.zero.pseudo %v3788
        %v4813 = vcvt.f32.s32.to.zero.pseudo %v3789
        %v4814 = vcvt.f32.s32.to.zero.pseudo %v3790
        %v4815 = vcvt.f32.s32.to.zero.pseudo %v3791
        %v4816 = vcvt.f32.s32.to.zero.pseudo %v3792
        %v4817 = vcvt.f32.s32.to.zero.pseudo %v3793
        %v4818 = vcvt.f32.s32.to.zero.pseudo %v3794
        %v4819 = vcvt.f32.s32.to.zero.pseudo %v3795
        %v4820 = vcvt.f32.s32.to.zero.pseudo %v3796
        %v4821 = vcvt.f32.s32.to.zero.pseudo %v3797
        %v4822 = vcvt.f32.s32.to.zero.pseudo %v3798
        %v4823 = vcvt.f32.s32.to.zero.pseudo %v3799
        %v4824 = vcvt.f32.s32.to.zero.pseudo %v3800
        %v4825 = vcvt.f32.s32.to.zero.pseudo %v3801
        %v4826 = vcvt.f32.s32.to.zero.pseudo %v3802
        %v4827 = vcvt.f32.s32.to.zero.pseudo %v3803
        %v4828 = vcvt.f32.s32.to.zero.pseudo %v3804
        %v4829 = vcvt.f32.s32.to.zero.pseudo %v3805
        %v4830 = vcvt.f32.s32.to.zero.pseudo %v3806
        %v4831 = vcvt.f32.s32.to.zero.pseudo %v3807
        %v4832 = vcvt.f32.s32.to.zero.pseudo %v3808
        %v4833 = vcvt.f32.s32.to.zero.pseudo %v3809
        %v4834 = vcvt.f32.s32.to.zero.pseudo %v3810
        %v4835 = vcvt.f32.s32.to.zero.pseudo %v3811
        %v4836 = vcvt.f32.s32.to.zero.pseudo %v3812
        %v4837 = vcvt.f32.s32.to.zero.pseudo %v3813
        %v4838 = vcvt.f32.s32.to.zero.pseudo %v3814
        %v4839 = vcvt.f32.s32.to.zero.pseudo %v3815
        %v4840 = vcvt.f32.s32.to.zero.pseudo %v3816
        %v4841 = vcvt.f32.s32.to.zero.pseudo %v3817
        %v4842 = vcvt.f32.s32.to.zero.pseudo %v3818
        %v4843 = vcvt.f32.s32.to.zero.pseudo %v3819
        %v4844 = vcvt.f32.s32.to.zero.pseudo %v3820
        %v4845 = vcvt.f32.s32.to.zero.pseudo %v3821
        %v4846 = vcvt.f32.s32.to.zero.pseudo %v3822
        %v4847 = vcvt.f32.s32.to.zero.pseudo %v3823
        %v4848 = vcvt.f32.s32.to.zero.pseudo %v3824
        %v4849 = vcvt.f32.s32.to.zero.pseudo %v3825
        %v4850 = vcvt.f32.s32.to.zero.pseudo %v3826
        %v4851 = vcvt.f32.s32.to.zero.pseudo %v3827
        %v4852 = vcvt.f32.s32.to.zero.pseudo %v3828
        %v4853 = vcvt.f32.s32.to.zero.pseudo %v3829
        %v4854 = vcvt.f32.s32.to.zero.pseudo %v3830
        %v4855 = vcvt.f32.s32.to.zero.pseudo %v3831
        %v4856 = vcvt.f32.s32.to.zero.pseudo %v3832
        %v4857 = vcvt.f32.s32.to.zero.pseudo %v3833
        %v4858 = vcvt.f32.s32.to.zero.pseudo %v3834
        %v4859 = vcvt.f32.s32.to.zero.pseudo %v3835
        %v4860 = vcvt.f32.s32.to.zero.pseudo %v3836
        %v4861 = vcvt.f32.s32.to.zero.pseudo %v3837
        %v4862 = vcvt.f32.s32.to.zero.pseudo %v3838
        %v4863 = vcvt.f32.s32.to.zero.pseudo %v3839
        %v4864 = vcvt.f32.s32.to.zero.pseudo %v3840
        %v4865 = vcvt.f32.s32.to.zero.pseudo %v3841
        %v4866 = vcvt.f32.s32.to.zero.pseudo %v3842
        %v4867 = vcvt.f32.s32.to.zero.pseudo %v3843
        %v4868 = vcvt.f32.s32.to.zero.pseudo %v3844
        %v4869 = vcvt.f32.s32.to.zero.pseudo %v3845
        %v4870 = vcvt.f32.s32.to.zero.pseudo %v3846
        %v4871 = vcvt.f32.s32.to.zero.pseudo %v3847
        %v4872 = vcvt.f32.s32.to.zero.pseudo %v3848
        %v4873 = vcvt.f32.s32.to.zero.pseudo %v3849
        %v4874 = vcvt.f32.s32.to.zero.pseudo %v3850
        %v4875 = vcvt.f32.s32.to.zero.pseudo %v3851
        %v4876 = vcvt.f32.s32.to.zero.pseudo %v3852
        %v4877 = vcvt.f32.s32.to.zero.pseudo %v3853
        %v4878 = vcvt.f32.s32.to.zero.pseudo %v3854
        %v4879 = vcvt.f32.s32.to.zero.pseudo %v3855
        %v4880 = vcvt.f32.s32.to.zero.pseudo %v3856
        %v4881 = vcvt.f32.s32.to.zero.pseudo %v3857
        %v4882 = vcvt.f32.s32.to.zero.pseudo %v3858
        %v4883 = vcvt.f32.s32.to.zero.pseudo %v3859
        %v4884 = vcvt.f32.s32.to.zero.pseudo %v3860
        %v4885 = vcvt.f32.s32.to.zero.pseudo %v3861
        %v4886 = vcvt.f32.s32.to.zero.pseudo %v3862
        %v4887 = vcvt.f32.s32.to.zero.pseudo %v3863
        %v4888 = vcvt.f32.s32.to.zero.pseudo %v3864
        %v4889 = vcvt.f32.s32.to.zero.pseudo %v3865
        %v4890 = vcvt.f32.s32.to.zero.pseudo %v3866
        %v4891 = vcvt.f32.s32.to.zero.pseudo %v3867
        %v4892 = vcvt.f32.s32.to.zero.pseudo %v3868
        %v4893 = vcvt.f32.s32.to.zero.pseudo %v3869
        %v4894 = vcvt.f32.s32.to.zero.pseudo %v3870
        %v4895 = vcvt.f32.s32.to.zero.pseudo %v3871
        %v4896 = vcvt.f32.s32.to.zero.pseudo %v3872
        %v4897 = vcvt.f32.s32.to.zero.pseudo %v3873
        %v4898 = vcvt.f32.s32.to.zero.pseudo %v3874
        %v4899 = vcvt.f32.s32.to.zero.pseudo %v3875
        %v4900 = vcvt.f32.s32.to.zero.pseudo %v3876
        %v4901 = vcvt.f32.s32.to.zero.pseudo %v3877
        %v4902 = vcvt.f32.s32.to.zero.pseudo %v3878
        %v4903 = vcvt.f32.s32.to.zero.pseudo %v3879
        %v4904 = vcvt.f32.s32.to.zero.pseudo %v3880
        %v4905 = vcvt.f32.s32.to.zero.pseudo %v3881
        %v4906 = vcvt.f32.s32.to.zero.pseudo %v3882
        %v4907 = vcvt.f32.s32.to.zero.pseudo %v3883
        %v4908 = vcvt.f32.s32.to.zero.pseudo %v3884
        %v4909 = vcvt.f32.s32.to.zero.pseudo %v3885
        %v4910 = vcvt.f32.s32.to.zero.pseudo %v3886
        %v4911 = vcvt.f32.s32.to.zero.pseudo %v3887
        %v4912 = vcvt.f32.s32.to.zero.pseudo %v3888
        %v4913 = vcvt.f32.s32.to.zero.pseudo %v3889
        %v4914 = vcvt.f32.s32.to.zero.pseudo %v3890
        %v4915 = vcvt.f32.s32.to.zero.pseudo %v3891
        %v4916 = vcvt.f32.s32.to.zero.pseudo %v3892
        %v4917 = vcvt.f32.s32.to.zero.pseudo %v3893
        %v4918 = vcvt.f32.s32.to.zero.pseudo %v3894
        %v4919 = vcvt.f32.s32.to.zero.pseudo %v3895
        %v4920 = vcvt.f32.s32.to.zero.pseudo %v3896
        %v4921 = vcvt.f32.s32.to.zero.pseudo %v3897
        %v4922 = vcvt.f32.s32.to.zero.pseudo %v3898
        %v4923 = vcvt.f32.s32.to.zero.pseudo %v3899
        %v4924 = vcvt.f32.s32.to.zero.pseudo %v3900
        %v4925 = vcvt.f32.s32.to.zero.pseudo %v3901
        %v4926 = vcvt.f32.s32.to.zero.pseudo %v3902
        %v4927 = vcvt.f32.s32.to.zero.pseudo %v3903
        %v4928 = vcvt.f32.s32.to.zero.pseudo %v3904
        %v4929 = vcvt.f32.s32.to.zero.pseudo %v3905
        %v4930 = vcvt.f32.s32.to.zero.pseudo %v3906
        %v4931 = vcvt.f32.s32.to.zero.pseudo %v3907
        %v4932 = vcvt.f32.s32.to.zero.pseudo %v3908
        %v4933 = vcvt.f32.s32.to.zero.pseudo %v3909
        %v4934 = vcvt.f32.s32.to.zero.pseudo %v3910
        %v4935 = vcvt.f32.s32.to.zero.pseudo %v3911
        %v4936 = vcvt.f32.s32.to.zero.pseudo %v3912
        %v4937 = vcvt.f32.s32.to.zero.pseudo %v3913
        %v4938 = vcvt.f32.s32.to.zero.pseudo %v3914
        %v4939 = vcvt.f32.s32.to.zero.pseudo %v3915
        %v4940 = vcvt.f32.s32.to.zero.pseudo %v3916
        %v4941 = vcvt.f32.s32.to.zero.pseudo %v3917
        %v4942 = vcvt.f32.s32.to.zero.pseudo %v3918
        %v4943 = vcvt.f32.s32.to.zero.pseudo %v3919
        %v4944 = vcvt.f32.s32.to.zero.pseudo %v3920
        %v4945 = vcvt.f32.s32.to.zero.pseudo %v3921
        %v4946 = vcvt.f32.s32.to.zero.pseudo %v3922
        %v4947 = vcvt.f32.s32.to.zero.pseudo %v3923
        %v4948 = vcvt.f32.s32.to.zero.pseudo %v3924
        %v4949 = vcvt.f32.s32.to.zero.pseudo %v3925
        %v4950 = vcvt.f32.s32.to.zero.pseudo %v3926
        %v4951 = vcvt.f32.s32.to.zero.pseudo %v3927
        %v4952 = vcvt.f32.s32.to.zero.pseudo %v3928
        %v4953 = vcvt.f32.s32.to.zero.pseudo %v3929
        %v4954 = vcvt.f32.s32.to.zero.pseudo %v3930
        %v4955 = vcvt.f32.s32.to.zero.pseudo %v3931
        %v4956 = vcvt.f32.s32.to.zero.pseudo %v3932
        %v4957 = vcvt.f32.s32.to.zero.pseudo %v3933
        %v4958 = vcvt.f32.s32.to.zero.pseudo %v3934
        %v4959 = vcvt.f32.s32.to.zero.pseudo %v3935
        %v4960 = vcvt.f32.s32.to.zero.pseudo %v3936
        %v4961 = vcvt.f32.s32.to.zero.pseudo %v3937
        %v4962 = vcvt.f32.s32.to.zero.pseudo %v3938
        %v4963 = vcvt.f32.s32.to.zero.pseudo %v3939
        %v4964 = vcvt.f32.s32.to.zero.pseudo %v3940
        %v4965 = vcvt.f32.s32.to.zero.pseudo %v3941
        %v4966 = vcvt.f32.s32.to.zero.pseudo %v3942
        %v4967 = vcvt.f32.s32.to.zero.pseudo %v3943
        %v4968 = vcvt.f32.s32.to.zero.pseudo %v3944
        %v4969 = vcvt.f32.s32.to.zero.pseudo %v3945
        %v4970 = vcvt.f32.s32.to.zero.pseudo %v3946
        %v4971 = vcvt.f32.s32.to.zero.pseudo %v3947
        %v4972 = vcvt.f32.s32.to.zero.pseudo %v3948
        %v4973 = vcvt.f32.s32.to.zero.pseudo %v3949
        %v4974 = vcvt.f32.s32.to.zero.pseudo %v3950
        %v4975 = vcvt.f32.s32.to.zero.pseudo %v3951
        %v4976 = vcvt.f32.s32.to.zero.pseudo %v3952
        %v4977 = vcvt.f32.s32.to.zero.pseudo %v3953
        %v4978 = vcvt.f32.s32.to.zero.pseudo %v3954
        %v4979 = vcvt.f32.s32.to.zero.pseudo %v3955
        %v4980 = vcvt.f32.s32.to.zero.pseudo %v3956
        %v4981 = vcvt.f32.s32.to.zero.pseudo %v3957
        %v4982 = vcvt.f32.s32.to.zero.pseudo %v3958
        %v4983 = vcvt.f32.s32.to.zero.pseudo %v3959
        %v4984 = vcvt.f32.s32.to.zero.pseudo %v3960
        %v4985 = vcvt.f32.s32.to.zero.pseudo %v3961
        %v4986 = vcvt.f32.s32.to.zero.pseudo %v3962
        %v4987 = vcvt.f32.s32.to.zero.pseudo %v3963
        %v4988 = vcvt.f32.s32.to.zero.pseudo %v3964
        %v4989 = vcvt.f32.s32.to.zero.pseudo %v3965
        %v4990 = vcvt.f32.s32.to.zero.pseudo %v3966
        %v4991 = vcvt.f32.s32.to.zero.pseudo %v3967
        %v4992 = vcvt.f32.s32.to.zero.pseudo %v3968
        %v4993 = vcvt.f32.s32.to.zero.pseudo %v3969
        %v4994 = vcvt.f32.s32.to.zero.pseudo %v3970
        %v4995 = vcvt.f32.s32.to.zero.pseudo %v3971
        %v4996 = vcvt.f32.s32.to.zero.pseudo %v3972
        %v4997 = vcvt.f32.s32.to.zero.pseudo %v3973
        %v4998 = vcvt.f32.s32.to.zero.pseudo %v3974
        %v4999 = vcvt.f32.s32.to.zero.pseudo %v3975
        %v5000 = vcvt.f32.s32.to.zero.pseudo %v3976
        %v5001 = vcvt.f32.s32.to.zero.pseudo %v3977
        %v5002 = vcvt.f32.s32.to.zero.pseudo %v3978
        %v5003 = vcvt.f32.s32.to.zero.pseudo %v3979
        %v5004 = vcvt.f32.s32.to.zero.pseudo %v3980
        %v5005 = vcvt.f32.s32.to.zero.pseudo %v3981
        %v5006 = vcvt.f32.s32.to.zero.pseudo %v3982
        %v5007 = vcvt.f32.s32.to.zero.pseudo %v3983
        %v5008 = vcvt.f32.s32.to.zero.pseudo %v3984
        %v5009 = vcvt.f32.s32.to.zero.pseudo %v3985
        %v5010 = vcvt.f32.s32.to.zero.pseudo %v3986
        %v5011 = vcvt.f32.s32.to.zero.pseudo %v3987
        %v5012 = vcvt.f32.s32.to.zero.pseudo %v3988
        %v5013 = vcvt.f32.s32.to.zero.pseudo %v3989
        %v5014 = vcvt.f32.s32.to.zero.pseudo %v3990
        %v5015 = vcvt.f32.s32.to.zero.pseudo %v3991
        %v5016 = vcvt.f32.s32.to.zero.pseudo %v3992
        %v5017 = vcvt.f32.s32.to.zero.pseudo %v3993
        %v5018 = vcvt.f32.s32.to.zero.pseudo %v3994
        %v5019 = vcvt.f32.s32.to.zero.pseudo %v3995
        %v5020 = vcvt.f32.s32.to.zero.pseudo %v3996
        %v5021 = vcvt.f32.s32.to.zero.pseudo %v3997
        %v5022 = vcvt.f32.s32.to.zero.pseudo %v3998
        %v5023 = vcvt.f32.s32.to.zero.pseudo %v3999
        %v5024 = vcvt.f32.s32.to.zero.pseudo %v4000
        %v5025 = vcvt.f32.s32.to.zero.pseudo %v4001
        %v5026 = vcvt.f32.s32.to.zero.pseudo %v4002
        %v5027 = vcvt.f32.s32.to.zero.pseudo %v4003
        %v5028 = vcvt.f32.s32.to.zero.pseudo %v4004
        %v5029 = vcvt.f32.s32.to.zero.pseudo %v4005
        %v5030 = vcvt.f32.s32.to.zero.pseudo %v4006
        %v5031 = vcvt.f32.s32.to.zero.pseudo %v4007
        %v5032 = vcvt.f32.s32.to.zero.pseudo %v4008
        %v5033 = vcvt.f32.s32.to.zero.pseudo %v4009
        %v5034 = vcvt.f32.s32.to.zero.pseudo %v4010
        %v5035 = vcvt.f32.s32.to.zero.pseudo %v4011
        %v5036 = vcvt.f32.s32.to.zero.pseudo %v4012
        %v5037 = vcvt.f32.s32.to.zero.pseudo %v4013
        %v5038 = vcvt.f32.s32.to.zero.pseudo %v4014
        %v5039 = vcvt.f32.s32.to.zero.pseudo %v4015
        %v5040 = vcvt.f32.s32.to.zero.pseudo %v4016
        %v5041 = vcvt.f32.s32.to.zero.pseudo %v4017
        %v5042 = vcvt.f32.s32.to.zero.pseudo %v4018
        %v5043 = vcvt.f32.s32.to.zero.pseudo %v4019
        %v5044 = vcvt.f32.s32.to.zero.pseudo %v4020
        %v5045 = vcvt.f32.s32.to.zero.pseudo %v4021
        %v5046 = vcvt.f32.s32.to.zero.pseudo %v4022
        %v5047 = vcvt.f32.s32.to.zero.pseudo %v4023
        %v5048 = vcvt.f32.s32.to.zero.pseudo %v4024
        %v5049 = vcvt.f32.s32.to.zero.pseudo %v4025
        %v5050 = vcvt.f32.s32.to.zero.pseudo %v4026
        %v5051 = vcvt.f32.s32.to.zero.pseudo %v4027
        %v5052 = vcvt.f32.s32.to.zero.pseudo %v4028
        %v5053 = vcvt.f32.s32.to.zero.pseudo %v4029
        %v5054 = vcvt.f32.s32.to.zero.pseudo %v4030
        %v5055 = vcvt.f32.s32.to.zero.pseudo %v4031
        %v5056 = vcvt.f32.s32.to.zero.pseudo %v4032
        %v5057 = vcvt.f32.s32.to.zero.pseudo %v4033
        %v5058 = vcvt.f32.s32.to.zero.pseudo %v4034
        %v5059 = vcvt.f32.s32.to.zero.pseudo %v4035
        %v5060 = vcvt.f32.s32.to.zero.pseudo %v4036
        %v5061 = vcvt.f32.s32.to.zero.pseudo %v4037
        %v5062 = vcvt.f32.s32.to.zero.pseudo %v4038
        %v5063 = vcvt.f32.s32.to.zero.pseudo %v4039
        %v5064 = vcvt.f32.s32.to.zero.pseudo %v4040
        %v5065 = vcvt.f32.s32.to.zero.pseudo %v4041
        %v5066 = vcvt.f32.s32.to.zero.pseudo %v4042
        %v5067 = vcvt.f32.s32.to.zero.pseudo %v4043
        %v5068 = vcvt.f32.s32.to.zero.pseudo %v4044
        %v5069 = vcvt.f32.s32.to.zero.pseudo %v4045
        %v5070 = vcvt.f32.s32.to.zero.pseudo %v4046
        %v5071 = vcvt.f32.s32.to.zero.pseudo %v4047
        %v5072 = vcvt.f32.s32.to.zero.pseudo %v4048
        %v5073 = vcvt.f32.s32.to.zero.pseudo %v4049
        %v5074 = vcvt.f32.s32.to.zero.pseudo %v4050
        %v5075 = vcvt.f32.s32.to.zero.pseudo %v4051
        %v5076 = vcvt.f32.s32.to.zero.pseudo %v4052
        %v5077 = vcvt.f32.s32.to.zero.pseudo %v4053
        %v5078 = vcvt.f32.s32.to.zero.pseudo %v4054
        %v5079 = vcvt.f32.s32.to.zero.pseudo %v4055
        %v5080 = vcvt.f32.s32.to.zero.pseudo %v4056
        %v5081 = vcvt.f32.s32.to.zero.pseudo %v4057
        %v5082 = vcvt.f32.s32.to.zero.pseudo %v4058
        %v5083 = vcvt.f32.s32.to.zero.pseudo %v4059
        %v5084 = vcvt.f32.s32.to.zero.pseudo %v4060
        %v5085 = vcvt.f32.s32.to.zero.pseudo %v4061
        %v5086 = vcvt.f32.s32.to.zero.pseudo %v4062
        %v5087 = vcvt.f32.s32.to.zero.pseudo %v4063
        %v5088 = vcvt.f32.s32.to.zero.pseudo %v4064
        %v5089 = vcvt.f32.s32.to.zero.pseudo %v4065
        %v5090 = vcvt.f32.s32.to.zero.pseudo %v4066
        %v5091 = vcvt.f32.s32.to.zero.pseudo %v4067
        %v5092 = vcvt.f32.s32.to.zero.pseudo %v4068
        %v5093 = vcvt.f32.s32.to.zero.pseudo %v4069
        %v5094 = vcvt.f32.s32.to.zero.pseudo %v4070
        %v5095 = vcvt.f32.s32.to.zero.pseudo %v4071
        %v5096 = vcvt.f32.s32.to.zero.pseudo %v4072
        %v5097 = vcvt.f32.s32.to.zero.pseudo %v4073
        %v5098 = vcvt.f32.s32.to.zero.pseudo %v4074
        %v5099 = vcvt.f32.s32.to.zero.pseudo %v4075
        %v5100 = vcvt.f32.s32.to.zero.pseudo %v4076
        %v5101 = vcvt.f32.s32.to.zero.pseudo %v4077
        %v5102 = vcvt.f32.s32.to.zero.pseudo %v4078
        %v5103 = vcvt.f32.s32.to.zero.pseudo %v4079
        %v5104 = vcvt.f32.s32.to.zero.pseudo %v4080
        %v5105 = vcvt.f32.s32.to.zero.pseudo %v4081
        %v5106 = vcvt.f32.s32.to.zero.pseudo %v4082
        %v5107 = vcvt.f32.s32.to.zero.pseudo %v4083
        %v5108 = vcvt.f32.s32.to.zero.pseudo %v4084
        %v5109 = vcvt.f32.s32.to.zero.pseudo %v4085
        %v5110 = vcvt.f32.s32.to.zero.pseudo %v4086
        %v5111 = vcvt.f32.s32.to.zero.pseudo %v4087
        %v5112 = vcvt.f32.s32.to.zero.pseudo %v4088
        %v5113 = vcvt.f32.s32.to.zero.pseudo %v4089
        %v5114 = vcvt.f32.s32.to.zero.pseudo %v4090
        %v5115 = vcvt.f32.s32.to.zero.pseudo %v4091
        %v5116 = vcvt.f32.s32.to.zero.pseudo %v4092
        %v5117 = vcvt.f32.s32.to.zero.pseudo %v4093
        %v5118 = vcvt.f32.s32.to.zero.pseudo %v4094
        %v5119 = vcvt.f32.s32.to.zero.pseudo %v4095
        %v5120 = vcvt.f32.s32.to.zero.pseudo %v4096
        %v5121 = vcvt.f32.s32.to.zero.pseudo %v4097
        %v5122 = vcvt.f32.s32.to.zero.pseudo %v4098
        %v5123 = vcvt.f32.s32.to.zero.pseudo %v4099
        %v5124 = vcvt.f32.s32.to.zero.pseudo %v4100
        %v5125 = vcvt.f32.s32.to.zero.pseudo %v4101
        %v5126 = vcvt.f32.s32.to.zero.pseudo %v4102
        %v5127 = vcvt.f32.s32.to.zero.pseudo %v4103
        %v5128 = vcvt.f32.s32.to.zero.pseudo %v4104
        %v5129 = vcvt.f32.s32.to.zero.pseudo %v4105
        %v5130 = vcvt.f32.s32.to.zero.pseudo %v4106
        %v5131 = vcvt.f32.s32.to.zero.pseudo %v4107
        %v5132 = vcvt.f32.s32.to.zero.pseudo %v4108
        %v5133 = vcvt.f32.s32.to.zero.pseudo %v4109
        %v5134 = vcvt.f32.s32.to.zero.pseudo %v4110
        %v5135 = vcvt.f32.s32.to.zero.pseudo %v4111
        %v5136 = vcvt.f32.s32.to.zero.pseudo %v4112
        %v5137 = vcvt.f32.s32.to.zero.pseudo %v4113
        %v5138 = vcvt.f32.s32.to.zero.pseudo %v4114
        %v5139 = vcvt.f32.s32.to.zero.pseudo %v4115
        %v5140 = vcvt.f32.s32.to.zero.pseudo %v4116
        %v5141 = vcvt.f32.s32.to.zero.pseudo %v4117
        %v5142 = vcvt.f32.s32.to.zero.pseudo %v4118
        %v5143 = vcvt.f32.s32.to.zero.pseudo %v4119
        %v5144 = vcvt.f32.s32.to.zero.pseudo %v4120
        %v5145 = vcvt.f32.s32.to.zero.pseudo %v4121
        %v5146 = vcvt.f32.s32.to.zero.pseudo %v4122
        %v5147 = vcvt.f32.s32.to.zero.pseudo %v4123
        %v5148 = vcvt.f32.s32.to.zero.pseudo %v4124
        %v5149 = vcvt.f32.s32.to.zero.pseudo %v4125
        %v5150 = vcvt.f32.s32.to.zero.pseudo %v4126
        %v5151 = vcvt.f32.s32.to.zero.pseudo %v4127
        %v5152 = vcvt.f32.s32.to.zero.pseudo %v4128
        %v5153 = vcvt.f32.s32.to.zero.pseudo %v4129
        %v5154 = vcvt.f32.s32.to.zero.pseudo %v4130
        %v5155 = vcvt.f32.s32.to.zero.pseudo %v4131
        %v5156 = vcvt.f32.s32.to.zero.pseudo %v4132
        %v5157 = vcvt.f32.s32.to.zero.pseudo %v4133
        %v5158 = vcvt.f32.s32.to.zero.pseudo %v4134
        %v5159 = vcvt.f32.s32.to.zero.pseudo %v4135
        %v5160 = vcvt.f32.s32.to.zero.pseudo %v4136
        %v5161 = vcvt.f32.s32.to.zero.pseudo %v4137
        %v5162 = vcvt.f32.s32.to.zero.pseudo %v4138
        %v5163 = vcvt.f32.s32.to.zero.pseudo %v4139
        %v5164 = vcvt.f32.s32.to.zero.pseudo %v4140
        %v5165 = vcvt.f32.s32.to.zero.pseudo %v4141
        %v5166 = vcvt.f32.s32.to.zero.pseudo %v4142
        %v5167 = vcvt.f32.s32.to.zero.pseudo %v4143
        %v5168 = vcvt.f32.s32.to.zero.pseudo %v4144
        %v5169 = vcvt.f32.s32.to.zero.pseudo %v4145
        %v5170 = vcvt.f32.s32.to.zero.pseudo %v4146
        %v5171 = vcvt.f32.s32.to.zero.pseudo %v4147
        %v5172 = vcvt.f32.s32.to.zero.pseudo %v4148
        %v5173 = vcvt.f32.s32.to.zero.pseudo %v4149
        %v5174 = vcvt.f32.s32.to.zero.pseudo %v4150
        %v5175 = vcvt.f32.s32.to.zero.pseudo %v4151
        %v5176 = vcvt.f32.s32.to.zero.pseudo %v4152
        %v5177 = vcvt.f32.s32.to.zero.pseudo %v4153
        %v5178 = vcvt.f32.s32.to.zero.pseudo %v4154
        %v5179 = vcvt.f32.s32.to.zero.pseudo %v4155
        %v5180 = vcvt.f32.s32.to.zero.pseudo %v4156
        %v5181 = vcvt.f32.s32.to.zero.pseudo %v4157
        %v5182 = vcvt.f32.s32.to.zero.pseudo %v4158
        %v5183 = vcvt.f32.s32.to.zero.pseudo %v4159
        %v5184 = vcvt.f32.s32.to.zero.pseudo %v4160
        %v5185 = vcvt.f32.s32.to.zero.pseudo %v4161
        %v5186 = vcvt.f32.s32.to.zero.pseudo %v4162
        %v5187 = vcvt.f32.s32.to.zero.pseudo %v4163
        %v5188 = vcvt.f32.s32.to.zero.pseudo %v4164
        %v5189 = vcvt.f32.s32.to.zero.pseudo %v4165
        %v5190 = vcvt.f32.s32.to.zero.pseudo %v4166
        %v5191 = vcvt.f32.s32.to.zero.pseudo %v4167
        %v5192 = vcvt.f32.s32.to.zero.pseudo %v4168
        %v5193 = vcvt.f32.s32.to.zero.pseudo %v4169
        %v5194 = vcvt.f32.s32.to.zero.pseudo %v4170
        %v5195 = vcvt.f32.s32.to.zero.pseudo %v4171
        %v5196 = vcvt.f32.s32.to.zero.pseudo %v4172
        %v5197 = vcvt.f32.s32.to.zero.pseudo %v4173
        %v5198 = vcvt.f32.s32.to.zero.pseudo %v4174
        %v5199 = vcvt.f32.s32.to.zero.pseudo %v4175
        %v5200 = vcvt.f32.s32.to.zero.pseudo %v4176
        %v5201 = vcvt.f32.s32.to.zero.pseudo %v4177
        %v5202 = vcvt.f32.s32.to.zero.pseudo %v4178
        %v5203 = vcvt.f32.s32.to.zero.pseudo %v4179
        %v5204 = vcvt.f32.s32.to.zero.pseudo %v4180
        %v5205 = vcvt.f32.s32.to.zero.pseudo %v4181
        %v5206 = vcvt.f32.s32.to.zero.pseudo %v4182
        %v5207 = vcvt.f32.s32.to.zero.pseudo %v4183
        %v5208 = vcvt.f32.s32.to.zero.pseudo %v4184
        %v5209 = vcvt.f32.s32.to.zero.pseudo %v4185
        %v5210 = vcvt.f32.s32.to.zero.pseudo %v4186
        %v5211 = vcvt.f32.s32.to.zero.pseudo %v4187
        %v5212 = vcvt.f32.s32.to.zero.pseudo %v4188
        %v5213 = vcvt.f32.s32.to.zero.pseudo %v4189
        %v5214 = vcvt.f32.s32.to.zero.pseudo %v4190
        %v5215 = vcvt.f32.s32.to.zero.pseudo %v4191
        %v5216 = vcvt.f32.s32.to.zero.pseudo %v4192
        %v5217 = vcvt.f32.s32.to.zero.pseudo %v4193
        %v5218 = vcvt.f32.s32.to.zero.pseudo %v4194
        %v5219 = vcvt.f32.s32.to.zero.pseudo %v4195
        %v5220 = vcvt.f32.s32.to.zero.pseudo %v4196
        %v5221 = vcvt.f32.s32.to.zero.pseudo %v4197
        %v5222 = vcvt.f32.s32.to.zero.pseudo %v4198
        %v5223 = vcvt.f32.s32.to.zero.pseudo %v4199
        %v5224 = vcvt.f32.s32.to.zero.pseudo %v4200
        %v5225 = vcvt.f32.s32.to.zero.pseudo %v4201
        %v5226 = vcvt.f32.s32.to.zero.pseudo %v4202
        %v5227 = vcvt.f32.s32.to.zero.pseudo %v4203
        %v5228 = vcvt.f32.s32.to.zero.pseudo %v4204
        %v5229 = vcvt.f32.s32.to.zero.pseudo %v4205
        %v5230 = vcvt.f32.s32.to.zero.pseudo %v4206
        %v5231 = vcvt.f32.s32.to.zero.pseudo %v4207
        %v5232 = vcvt.f32.s32.to.zero.pseudo %v4208
        %v5233 = vcvt.f32.s32.to.zero.pseudo %v4209
        %v5234 = vcvt.f32.s32.to.zero.pseudo %v4210
        %v5235 = vcvt.f32.s32.to.zero.pseudo %v4211
        %v5236 = vcvt.f32.s32.to.zero.pseudo %v4212
        %v5237 = vcvt.f32.s32.to.zero.pseudo %v4213
        %v5238 = vcvt.f32.s32.to.zero.pseudo %v4214
        %v5239 = vcvt.f32.s32.to.zero.pseudo %v4215
        %v5240 = vcvt.f32.s32.to.zero.pseudo %v4216
        %v5241 = vcvt.f32.s32.to.zero.pseudo %v4217
        %v5242 = vcvt.f32.s32.to.zero.pseudo %v4218
        %v5243 = vcvt.f32.s32.to.zero.pseudo %v4219
        %v5244 = vcvt.f32.s32.to.zero.pseudo %v4220
        %v5245 = vcvt.f32.s32.to.zero.pseudo %v4221
        %v5246 = vcvt.f32.s32.to.zero.pseudo %v4222
        %v5247 = vcvt.f32.s32.to.zero.pseudo %v4223
        %v5248 = vcvt.f32.s32.to.zero.pseudo %v4224
        %v5249 = vcvt.f32.s32.to.zero.pseudo %v4225
        %v5250 = vcvt.f32.s32.to.zero.pseudo %v4226
        %v5251 = vcvt.f32.s32.to.zero.pseudo %v4227
        %v5252 = vcvt.f32.s32.to.zero.pseudo %v4228
        %v5253 = vcvt.f32.s32.to.zero.pseudo %v4229
        %v5254 = vcvt.f32.s32.to.zero.pseudo %v4230
        %v5255 = vcvt.f32.s32.to.zero.pseudo %v4231
        %v5256 = vcvt.f32.s32.to.zero.pseudo %v4232
        %v5257 = vcvt.f32.s32.to.zero.pseudo %v4233
        %v5258 = vpack.c.b16 %v4266, %v4234
        %v5259 = vpack.c.b16 %v4330, %v4298
        %v5260 = vpack.c.b8 %v5259, %v5258
        %v5261 = vpack.c.b16 %v4267, %v4235
        %v5262 = vpack.c.b16 %v4331, %v4299
        %v5263 = vpack.c.b8 %v5262, %v5261
        %v5264 = vpack.c.b16 %v4268, %v4236
        %v5265 = vpack.c.b16 %v4332, %v4300
        %v5266 = vpack.c.b8 %v5265, %v5264
        %v5267 = vpack.c.b16 %v4269, %v4237
        %v5268 = vpack.c.b16 %v4333, %v4301
        %v5269 = vpack.c.b8 %v5268, %v5267
        %v5270 = vpack.c.b16 %v4270, %v4238
        %v5271 = vpack.c.b16 %v4334, %v4302
        %v5272 = vpack.c.b8 %v5271, %v5270
        %v5273 = vpack.c.b16 %v4271, %v4239
        %v5274 = vpack.c.b16 %v4335, %v4303
        %v5275 = vpack.c.b8 %v5274, %v5273
        %v5276 = vpack.c.b16 %v4272, %v4240
        %v5277 = vpack.c.b16 %v4336, %v4304
        %v5278 = vpack.c.b8 %v5277, %v5276
        %v5279 = vpack.c.b16 %v4273, %v4241
        %v5280 = vpack.c.b16 %v4337, %v4305
        %v5281 = vpack.c.b8 %v5280, %v5279
        %v5282 = vpack.c.b16 %v4274, %v4242
        %v5283 = vpack.c.b16 %v4338, %v4306
        %v5284 = vpack.c.b8 %v5283, %v5282
        %v5285 = vpack.c.b16 %v4275, %v4243
        %v5286 = vpack.c.b16 %v4339, %v4307
        %v5287 = vpack.c.b8 %v5286, %v5285
        %v5288 = vpack.c.b16 %v4276, %v4244
        %v5289 = vpack.c.b16 %v4340, %v4308
        %v5290 = vpack.c.b8 %v5289, %v5288
        %v5291 = vpack.c.b16 %v4277, %v4245
        %v5292 = vpack.c.b16 %v4341, %v4309
        %v5293 = vpack.c.b8 %v5292, %v5291
        %v5294 = vpack.c.b16 %v4278, %v4246
        %v5295 = vpack.c.b16 %v4342, %v4310
        %v5296 = vpack.c.b8 %v5295, %v5294
        %v5297 = vpack.c.b16 %v4279, %v4247
        %v5298 = vpack.c.b16 %v4343, %v4311
        %v5299 = vpack.c.b8 %v5298, %v5297
        %v5300 = vpack.c.b16 %v4280, %v4248
        %v5301 = vpack.c.b16 %v4344, %v4312
        %v5302 = vpack.c.b8 %v5301, %v5300
        %v5303 = vpack.c.b16 %v4281, %v4249
        %v5304 = vpack.c.b16 %v4345, %v4313
        %v5305 = vpack.c.b8 %v5304, %v5303
        %v5306 = vpack.c.b16 %v4282, %v4250
        %v5307 = vpack.c.b16 %v4346, %v4314
        %v5308 = vpack.c.b8 %v5307, %v5306
        %v5309 = vpack.c.b16 %v4283, %v4251
        %v5310 = vpack.c.b16 %v4347, %v4315
        %v5311 = vpack.c.b8 %v5310, %v5309
        %v5312 = vpack.c.b16 %v4284, %v4252
        %v5313 = vpack.c.b16 %v4348, %v4316
        %v5314 = vpack.c.b8 %v5313, %v5312
        %v5315 = vpack.c.b16 %v4285, %v4253
        %v5316 = vpack.c.b16 %v4349, %v4317
        %v5317 = vpack.c.b8 %v5316, %v5315
        %v5318 = vpack.c.b16 %v4286, %v4254
        %v5319 = vpack.c.b16 %v4350, %v4318
        %v5320 = vpack.c.b8 %v5319, %v5318
        %v5321 = vpack.c.b16 %v4287, %v4255
        %v5322 = vpack.c.b16 %v4351, %v4319
        %v5323 = vpack.c.b8 %v5322, %v5321
        %v5324 = vpack.c.b16 %v4288, %v4256
        %v5325 = vpack.c.b16 %v4352, %v4320
        %v5326 = vpack.c.b8 %v5325, %v5324
        %v5327 = vpack.c.b16 %v4289, %v4257
        %v5328 = vpack.c.b16 %v4353, %v4321
        %v5329 = vpack.c.b8 %v5328, %v5327
        %v5330 = vpack.c.b16 %v4290, %v4258
        %v5331 = vpack.c.b16 %v4354, %v4322
        %v5332 = vpack.c.b8 %v5331, %v5330
        %v5333 = vpack.c.b16 %v4291, %v4259
        %v5334 = vpack.c.b16 %v4355, %v4323
        %v5335 = vpack.c.b8 %v5334, %v5333
        %v5336 = vpack.c.b16 %v4292, %v4260
        %v5337 = vpack.c.b16 %v4356, %v4324
        %v5338 = vpack.c.b8 %v5337, %v5336
        %v5339 = vpack.c.b16 %v4293, %v4261
        %v5340 = vpack.c.b16 %v4357, %v4325
        %v5341 = vpack.c.b8 %v5340, %v5339
        %v5342 = vpack.c.b16 %v4294, %v4262
        %v5343 = vpack.c.b16 %v4358, %v4326
        %v5344 = vpack.c.b8 %v5343, %v5342
        %v5345 = vpack.c.b16 %v4295, %v4263
        %v5346 = vpack.c.b16 %v4359, %v4327
        %v5347 = vpack.c.b8 %v5346, %v5345
        %v5348 = vpack.c.b16 %v4296, %v4264
        %v5349 = vpack.c.b16 %v4360, %v4328
        %v5350 = vpack.c.b8 %v5349, %v5348
        %v5351 = vpack.c.b16 %v4297, %v4265
        %v5352 = vpack.c.b16 %v4361, %v4329
        %v5353 = vpack.c.b8 %v5352, %v5351
        %v5354 = vpack.c.b16 %v4394, %v4362
        %v5355 = vpack.c.b16 %v4458, %v4426
        %v5356 = vpack.c.b8 %v5355, %v5354
        %v5357 = vpack.c.b16 %v4395, %v4363
        %v5358 = vpack.c.b16 %v4459, %v4427
        %v5359 = vpack.c.b8 %v5358, %v5357
        %v5360 = vpack.c.b16 %v4396, %v4364
        %v5361 = vpack.c.b16 %v4460, %v4428
        %v5362 = vpack.c.b8 %v5361, %v5360
        %v5363 = vpack.c.b16 %v4397, %v4365
        %v5364 = vpack.c.b16 %v4461, %v4429
        %v5365 = vpack.c.b8 %v5364, %v5363
        %v5366 = vpack.c.b16 %v4398, %v4366
        %v5367 = vpack.c.b16 %v4462, %v4430
        %v5368 = vpack.c.b8 %v5367, %v5366
        %v5369 = vpack.c.b16 %v4399, %v4367
        %v5370 = vpack.c.b16 %v4463, %v4431
        %v5371 = vpack.c.b8 %v5370, %v5369
        %v5372 = vpack.c.b16 %v4400, %v4368
        %v5373 = vpack.c.b16 %v4464, %v4432
        %v5374 = vpack.c.b8 %v5373, %v5372
        %v5375 = vpack.c.b16 %v4401, %v4369
        %v5376 = vpack.c.b16 %v4465, %v4433
        %v5377 = vpack.c.b8 %v5376, %v5375
        %v5378 = vpack.c.b16 %v4402, %v4370
        %v5379 = vpack.c.b16 %v4466, %v4434
        %v5380 = vpack.c.b8 %v5379, %v5378
        %v5381 = vpack.c.b16 %v4403, %v4371
        %v5382 = vpack.c.b16 %v4467, %v4435
        %v5383 = vpack.c.b8 %v5382, %v5381
        %v5384 = vpack.c.b16 %v4404, %v4372
        %v5385 = vpack.c.b16 %v4468, %v4436
        %v5386 = vpack.c.b8 %v5385, %v5384
        %v5387 = vpack.c.b16 %v4405, %v4373
        %v5388 = vpack.c.b16 %v4469, %v4437
        %v5389 = vpack.c.b8 %v5388, %v5387
        %v5390 = vpack.c.b16 %v4406, %v4374
        %v5391 = vpack.c.b16 %v4470, %v4438
        %v5392 = vpack.c.b8 %v5391, %v5390
        %v5393 = vpack.c.b16 %v4407, %v4375
        %v5394 = vpack.c.b16 %v4471, %v4439
        %v5395 = vpack.c.b8 %v5394, %v5393
        %v5396 = vpack.c.b16 %v4408, %v4376
        %v5397 = vpack.c.b16 %v4472, %v4440
        %v5398 = vpack.c.b8 %v5397, %v5396
        %v5399 = vpack.c.b16 %v4409, %v4377
        %v5400 = vpack.c.b16 %v4473, %v4441
        %v5401 = vpack.c.b8 %v5400, %v5399
        %v5402 = vpack.c.b16 %v4410, %v4378
        %v5403 = vpack.c.b16 %v4474, %v4442
        %v5404 = vpack.c.b8 %v5403, %v5402
        %v5405 = vpack.c.b16 %v4411, %v4379
        %v5406 = vpack.c.b16 %v4475, %v4443
        %v5407 = vpack.c.b8 %v5406, %v5405
        %v5408 = vpack.c.b16 %v4412, %v4380
        %v5409 = vpack.c.b16 %v4476, %v4444
        %v5410 = vpack.c.b8 %v5409, %v5408
        %v5411 = vpack.c.b16 %v4413, %v4381
        %v5412 = vpack.c.b16 %v4477, %v4445
        %v5413 = vpack.c.b8 %v5412, %v5411
        %v5414 = vpack.c.b16 %v4414, %v4382
        %v5415 = vpack.c.b16 %v4478, %v4446
        %v5416 = vpack.c.b8 %v5415, %v5414
        %v5417 = vpack.c.b16 %v4415, %v4383
        %v5418 = vpack.c.b16 %v4479, %v4447
        %v5419 = vpack.c.b8 %v5418, %v5417
        %v5420 = vpack.c.b16 %v4416, %v4384
        %v5421 = vpack.c.b16 %v4480, %v4448
        %v5422 = vpack.c.b8 %v5421, %v5420
        %v5423 = vpack.c.b16 %v4417, %v4385
        %v5424 = vpack.c.b16 %v4481, %v4449
        %v5425 = vpack.c.b8 %v5424, %v5423
        %v5426 = vpack.c.b16 %v4418, %v4386
        %v5427 = vpack.c.b16 %v4482, %v4450
        %v5428 = vpack.c.b8 %v5427, %v5426
        %v5429 = vpack.c.b16 %v4419, %v4387
        %v5430 = vpack.c.b16 %v4483, %v4451
        %v5431 = vpack.c.b8 %v5430, %v5429
        %v5432 = vpack.c.b16 %v4420, %v4388
        %v5433 = vpack.c.b16 %v4484, %v4452
        %v5434 = vpack.c.b8 %v5433, %v5432
        %v5435 = vpack.c.b16 %v4421, %v4389
        %v5436 = vpack.c.b16 %v4485, %v4453
        %v5437 = vpack.c.b8 %v5436, %v5435
        %v5438 = vpack.c.b16 %v4422, %v4390
        %v5439 = vpack.c.b16 %v4486, %v4454
        %v5440 = vpack.c.b8 %v5439, %v5438
        %v5441 = vpack.c.b16 %v4423, %v4391
        %v5442 = vpack.c.b16 %v4487, %v4455
        %v5443 = vpack.c.b8 %v5442, %v5441
        %v5444 = vpack.c.b16 %v4424, %v4392
        %v5445 = vpack.c.b16 %v4488, %v4456
        %v5446 = vpack.c.b8 %v5445, %v5444
        %v5447 = vpack.c.b16 %v4425, %v4393
        %v5448 = vpack.c.b16 %v4489, %v4457
        %v5449 = vpack.c.b8 %v5448, %v5447
        %v5450 = vpack.c.b16 %v4522, %v4490
        %v5451 = vpack.c.b16 %v4586, %v4554
        %v5452 = vpack.c.b8 %v5451, %v5450
        %v5453 = vpack.c.b16 %v4523, %v4491
        %v5454 = vpack.c.b16 %v4587, %v4555
        %v5455 = vpack.c.b8 %v5454, %v5453
        %v5456 = vpack.c.b16 %v4524, %v4492
        %v5457 = vpack.c.b16 %v4588, %v4556
        %v5458 = vpack.c.b8 %v5457, %v5456
        %v5459 = vpack.c.b16 %v4525, %v4493
        %v5460 = vpack.c.b16 %v4589, %v4557
        %v5461 = vpack.c.b8 %v5460, %v5459
        %v5462 = vpack.c.b16 %v4526, %v4494
        %v5463 = vpack.c.b16 %v4590, %v4558
        %v5464 = vpack.c.b8 %v5463, %v5462
        %v5465 = vpack.c.b16 %v4527, %v4495
        %v5466 = vpack.c.b16 %v4591, %v4559
        %v5467 = vpack.c.b8 %v5466, %v5465
        %v5468 = vpack.c.b16 %v4528, %v4496
        %v5469 = vpack.c.b16 %v4592, %v4560
        %v5470 = vpack.c.b8 %v5469, %v5468
        %v5471 = vpack.c.b16 %v4529, %v4497
        %v5472 = vpack.c.b16 %v4593, %v4561
        %v5473 = vpack.c.b8 %v5472, %v5471
        %v5474 = vpack.c.b16 %v4530, %v4498
        %v5475 = vpack.c.b16 %v4594, %v4562
        %v5476 = vpack.c.b8 %v5475, %v5474
        %v5477 = vpack.c.b16 %v4531, %v4499
        %v5478 = vpack.c.b16 %v4595, %v4563
        %v5479 = vpack.c.b8 %v5478, %v5477
        %v5480 = vpack.c.b16 %v4532, %v4500
        %v5481 = vpack.c.b16 %v4596, %v4564
        %v5482 = vpack.c.b8 %v5481, %v5480
        %v5483 = vpack.c.b16 %v4533, %v4501
        %v5484 = vpack.c.b16 %v4597, %v4565
        %v5485 = vpack.c.b8 %v5484, %v5483
        %v5486 = vpack.c.b16 %v4534, %v4502
        %v5487 = vpack.c.b16 %v4598, %v4566
        %v5488 = vpack.c.b8 %v5487, %v5486
        %v5489 = vpack.c.b16 %v4535, %v4503
        %v5490 = vpack.c.b16 %v4599, %v4567
        %v5491 = vpack.c.b8 %v5490, %v5489
        %v5492 = vpack.c.b16 %v4536, %v4504
        %v5493 = vpack.c.b16 %v4600, %v4568
        %v5494 = vpack.c.b8 %v5493, %v5492
        %v5495 = vpack.c.b16 %v4537, %v4505
        %v5496 = vpack.c.b16 %v4601, %v4569
        %v5497 = vpack.c.b8 %v5496, %v5495
        %v5498 = vpack.c.b16 %v4538, %v4506
        %v5499 = vpack.c.b16 %v4602, %v4570
        %v5500 = vpack.c.b8 %v5499, %v5498
        %v5501 = vpack.c.b16 %v4539, %v4507
        %v5502 = vpack.c.b16 %v4603, %v4571
        %v5503 = vpack.c.b8 %v5502, %v5501
        %v5504 = vpack.c.b16 %v4540, %v4508
        %v5505 = vpack.c.b16 %v4604, %v4572
        %v5506 = vpack.c.b8 %v5505, %v5504
        %v5507 = vpack.c.b16 %v4541, %v4509
        %v5508 = vpack.c.b16 %v4605, %v4573
        %v5509 = vpack.c.b8 %v5508, %v5507
        %v5510 = vpack.c.b16 %v4542, %v4510
        %v5511 = vpack.c.b16 %v4606, %v4574
        %v5512 = vpack.c.b8 %v5511, %v5510
        %v5513 = vpack.c.b16 %v4543, %v4511
        %v5514 = vpack.c.b16 %v4607, %v4575
        %v5515 = vpack.c.b8 %v5514, %v5513
        %v5516 = vpack.c.b16 %v4544, %v4512
        %v5517 = vpack.c.b16 %v4608, %v4576
        %v5518 = vpack.c.b8 %v5517, %v5516
        %v5519 = vpack.c.b16 %v4545, %v4513
        %v5520 = vpack.c.b16 %v4609, %v4577
        %v5521 = vpack.c.b8 %v5520, %v5519
        %v5522 = vpack.c.b16 %v4546, %v4514
        %v5523 = vpack.c.b16 %v4610, %v4578
        %v5524 = vpack.c.b8 %v5523, %v5522
        %v5525 = vpack.c.b16 %v4547, %v4515
        %v5526 = vpack.c.b16 %v4611, %v4579
        %v5527 = vpack.c.b8 %v5526, %v5525
        %v5528 = vpack.c.b16 %v4548, %v4516
        %v5529 = vpack.c.b16 %v4612, %v4580
        %v5530 = vpack.c.b8 %v5529, %v5528
        %v5531 = vpack.c.b16 %v4549, %v4517
        %v5532 = vpack.c.b16 %v4613, %v4581
        %v5533 = vpack.c.b8 %v5532, %v5531
        %v5534 = vpack.c.b16 %v4550, %v4518
        %v5535 = vpack.c.b16 %v4614, %v4582
        %v5536 = vpack.c.b8 %v5535, %v5534
        %v5537 = vpack.c.b16 %v4551, %v4519
        %v5538 = vpack.c.b16 %v4615, %v4583
        %v5539 = vpack.c.b8 %v5538, %v5537
        %v5540 = vpack.c.b16 %v4552, %v4520
        %v5541 = vpack.c.b16 %v4616, %v4584
        %v5542 = vpack.c.b8 %v5541, %v5540
        %v5543 = vpack.c.b16 %v4553, %v4521
        %v5544 = vpack.c.b16 %v4617, %v4585
        %v5545 = vpack.c.b8 %v5544, %v5543
        %v5546 = vpack.c.b16 %v4650, %v4618
        %v5547 = vpack.c.b16 %v4714, %v4682
        %v5548 = vpack.c.b8 %v5547, %v5546
        %v5549 = vpack.c.b16 %v4651, %v4619
        %v5550 = vpack.c.b16 %v4715, %v4683
        %v5551 = vpack.c.b8 %v5550, %v5549
        %v5552 = vpack.c.b16 %v4652, %v4620
        %v5553 = vpack.c.b16 %v4716, %v4684
        %v5554 = vpack.c.b8 %v5553, %v5552
        %v5555 = vpack.c.b16 %v4653, %v4621
        %v5556 = vpack.c.b16 %v4717, %v4685
        %v5557 = vpack.c.b8 %v5556, %v5555
        %v5558 = vpack.c.b16 %v4654, %v4622
        %v5559 = vpack.c.b16 %v4718, %v4686
        %v5560 = vpack.c.b8 %v5559, %v5558
        %v5561 = vpack.c.b16 %v4655, %v4623
        %v5562 = vpack.c.b16 %v4719, %v4687
        %v5563 = vpack.c.b8 %v5562, %v5561
        %v5564 = vpack.c.b16 %v4656, %v4624
        %v5565 = vpack.c.b16 %v4720, %v4688
        %v5566 = vpack.c.b8 %v5565, %v5564
        %v5567 = vpack.c.b16 %v4657, %v4625
        %v5568 = vpack.c.b16 %v4721, %v4689
        %v5569 = vpack.c.b8 %v5568, %v5567
        %v5570 = vpack.c.b16 %v4658, %v4626
        %v5571 = vpack.c.b16 %v4722, %v4690
        %v5572 = vpack.c.b8 %v5571, %v5570
        %v5573 = vpack.c.b16 %v4659, %v4627
        %v5574 = vpack.c.b16 %v4723, %v4691
        %v5575 = vpack.c.b8 %v5574, %v5573
        %v5576 = vpack.c.b16 %v4660, %v4628
        %v5577 = vpack.c.b16 %v4724, %v4692
        %v5578 = vpack.c.b8 %v5577, %v5576
        %v5579 = vpack.c.b16 %v4661, %v4629
        %v5580 = vpack.c.b16 %v4725, %v4693
        %v5581 = vpack.c.b8 %v5580, %v5579
        %v5582 = vpack.c.b16 %v4662, %v4630
        %v5583 = vpack.c.b16 %v4726, %v4694
        %v5584 = vpack.c.b8 %v5583, %v5582
        %v5585 = vpack.c.b16 %v4663, %v4631
        %v5586 = vpack.c.b16 %v4727, %v4695
        %v5587 = vpack.c.b8 %v5586, %v5585
        %v5588 = vpack.c.b16 %v4664, %v4632
        %v5589 = vpack.c.b16 %v4728, %v4696
        %v5590 = vpack.c.b8 %v5589, %v5588
        %v5591 = vpack.c.b16 %v4665, %v4633
        %v5592 = vpack.c.b16 %v4729, %v4697
        %v5593 = vpack.c.b8 %v5592, %v5591
        %v5594 = vpack.c.b16 %v4666, %v4634
        %v5595 = vpack.c.b16 %v4730, %v4698
        %v5596 = vpack.c.b8 %v5595, %v5594
        %v5597 = vpack.c.b16 %v4667, %v4635
        %v5598 = vpack.c.b16 %v4731, %v4699
        %v5599 = vpack.c.b8 %v5598, %v5597
        %v5600 = vpack.c.b16 %v4668, %v4636
        %v5601 = vpack.c.b16 %v4732, %v4700
        %v5602 = vpack.c.b8 %v5601, %v5600
        %v5603 = vpack.c.b16 %v4669, %v4637
        %v5604 = vpack.c.b16 %v4733, %v4701
        %v5605 = vpack.c.b8 %v5604, %v5603
        %v5606 = vpack.c.b16 %v4670, %v4638
        %v5607 = vpack.c.b16 %v4734, %v4702
        %v5608 = vpack.c.b8 %v5607, %v5606
        %v5609 = vpack.c.b16 %v4671, %v4639
        %v5610 = vpack.c.b16 %v4735, %v4703
        %v5611 = vpack.c.b8 %v5610, %v5609
        %v5612 = vpack.c.b16 %v4672, %v4640
        %v5613 = vpack.c.b16 %v4736, %v4704
        %v5614 = vpack.c.b8 %v5613, %v5612
        %v5615 = vpack.c.b16 %v4673, %v4641
        %v5616 = vpack.c.b16 %v4737, %v4705
        %v5617 = vpack.c.b8 %v5616, %v5615
        %v5618 = vpack.c.b16 %v4674, %v4642
        %v5619 = vpack.c.b16 %v4738, %v4706
        %v5620 = vpack.c.b8 %v5619, %v5618
        %v5621 = vpack.c.b16 %v4675, %v4643
        %v5622 = vpack.c.b16 %v4739, %v4707
        %v5623 = vpack.c.b8 %v5622, %v5621
        %v5624 = vpack.c.b16 %v4676, %v4644
        %v5625 = vpack.c.b16 %v4740, %v4708
        %v5626 = vpack.c.b8 %v5625, %v5624
        %v5627 = vpack.c.b16 %v4677, %v4645
        %v5628 = vpack.c.b16 %v4741, %v4709
        %v5629 = vpack.c.b8 %v5628, %v5627
        %v5630 = vpack.c.b16 %v4678, %v4646
        %v5631 = vpack.c.b16 %v4742, %v4710
        %v5632 = vpack.c.b8 %v5631, %v5630
        %v5633 = vpack.c.b16 %v4679, %v4647
        %v5634 = vpack.c.b16 %v4743, %v4711
        %v5635 = vpack.c.b8 %v5634, %v5633
        %v5636 = vpack.c.b16 %v4680, %v4648
        %v5637 = vpack.c.b16 %v4744, %v4712
        %v5638 = vpack.c.b8 %v5637, %v5636
        %v5639 = vpack.c.b16 %v4681, %v4649
        %v5640 = vpack.c.b16 %v4745, %v4713
        %v5641 = vpack.c.b8 %v5640, %v5639
        %v5642 = vpack.c.b16 %v4778, %v4746
        %v5643 = vpack.c.b16 %v4842, %v4810
        %v5644 = vpack.c.b8 %v5643, %v5642
        %v5645 = vpack.c.b16 %v4779, %v4747
        %v5646 = vpack.c.b16 %v4843, %v4811
        %v5647 = vpack.c.b8 %v5646, %v5645
        %v5648 = vpack.c.b16 %v4780, %v4748
        %v5649 = vpack.c.b16 %v4844, %v4812
        %v5650 = vpack.c.b8 %v5649, %v5648
        %v5651 = vpack.c.b16 %v4781, %v4749
        %v5652 = vpack.c.b16 %v4845, %v4813
        %v5653 = vpack.c.b8 %v5652, %v5651
        %v5654 = vpack.c.b16 %v4782, %v4750
        %v5655 = vpack.c.b16 %v4846, %v4814
        %v5656 = vpack.c.b8 %v5655, %v5654
        %v5657 = vpack.c.b16 %v4783, %v4751
        %v5658 = vpack.c.b16 %v4847, %v4815
        %v5659 = vpack.c.b8 %v5658, %v5657
        %v5660 = vpack.c.b16 %v4784, %v4752
        %v5661 = vpack.c.b16 %v4848, %v4816
        %v5662 = vpack.c.b8 %v5661, %v5660
        %v5663 = vpack.c.b16 %v4785, %v4753
        %v5664 = vpack.c.b16 %v4849, %v4817
        %v5665 = vpack.c.b8 %v5664, %v5663
        %v5666 = vpack.c.b16 %v4786, %v4754
        %v5667 = vpack.c.b16 %v4850, %v4818
        %v5668 = vpack.c.b8 %v5667, %v5666
        %v5669 = vpack.c.b16 %v4787, %v4755
        %v5670 = vpack.c.b16 %v4851, %v4819
        %v5671 = vpack.c.b8 %v5670, %v5669
        %v5672 = vpack.c.b16 %v4788, %v4756
        %v5673 = vpack.c.b16 %v4852, %v4820
        %v5674 = vpack.c.b8 %v5673, %v5672
        %v5675 = vpack.c.b16 %v4789, %v4757
        %v5676 = vpack.c.b16 %v4853, %v4821
        %v5677 = vpack.c.b8 %v5676, %v5675
        %v5678 = vpack.c.b16 %v4790, %v4758
        %v5679 = vpack.c.b16 %v4854, %v4822
        %v5680 = vpack.c.b8 %v5679, %v5678
        %v5681 = vpack.c.b16 %v4791, %v4759
        %v5682 = vpack.c.b16 %v4855, %v4823
        %v5683 = vpack.c.b8 %v5682, %v5681
        %v5684 = vpack.c.b16 %v4792, %v4760
        %v5685 = vpack.c.b16 %v4856, %v4824
        %v5686 = vpack.c.b8 %v5685, %v5684
        %v5687 = vpack.c.b16 %v4793, %v4761
        %v5688 = vpack.c.b16 %v4857, %v4825
        %v5689 = vpack.c.b8 %v5688, %v5687
        %v5690 = vpack.c.b16 %v4794, %v4762
        %v5691 = vpack.c.b16 %v4858, %v4826
        %v5692 = vpack.c.b8 %v5691, %v5690
        %v5693 = vpack.c.b16 %v4795, %v4763
        %v5694 = vpack.c.b16 %v4859, %v4827
        %v5695 = vpack.c.b8 %v5694, %v5693
        %v5696 = vpack.c.b16 %v4796, %v4764
        %v5697 = vpack.c.b16 %v4860, %v4828
        %v5698 = vpack.c.b8 %v5697, %v5696
        %v5699 = vpack.c.b16 %v4797, %v4765
        %v5700 = vpack.c.b16 %v4861, %v4829
        %v5701 = vpack.c.b8 %v5700, %v5699
        %v5702 = vpack.c.b16 %v4798, %v4766
        %v5703 = vpack.c.b16 %v4862, %v4830
        %v5704 = vpack.c.b8 %v5703, %v5702
        %v5705 = vpack.c.b16 %v4799, %v4767
        %v5706 = vpack.c.b16 %v4863, %v4831
        %v5707 = vpack.c.b8 %v5706, %v5705
        %v5708 = vpack.c.b16 %v4800, %v4768
        %v5709 = vpack.c.b16 %v4864, %v4832
        %v5710 = vpack.c.b8 %v5709, %v5708
        %v5711 = vpack.c.b16 %v4801, %v4769
        %v5712 = vpack.c.b16 %v4865, %v4833
        %v5713 = vpack.c.b8 %v5712, %v5711
        %v5714 = vpack.c.b16 %v4802, %v4770
        %v5715 = vpack.c.b16 %v4866, %v4834
        %v5716 = vpack.c.b8 %v5715, %v5714
        %v5717 = vpack.c.b16 %v4803, %v4771
        %v5718 = vpack.c.b16 %v4867, %v4835
        %v5719 = vpack.c.b8 %v5718, %v5717
        %v5720 = vpack.c.b16 %v4804, %v4772
        %v5721 = vpack.c.b16 %v4868, %v4836
        %v5722 = vpack.c.b8 %v5721, %v5720
        %v5723 = vpack.c.b16 %v4805, %v4773
        %v5724 = vpack.c.b16 %v4869, %v4837
        %v5725 = vpack.c.b8 %v5724, %v5723
        %v5726 = vpack.c.b16 %v4806, %v4774
        %v5727 = vpack.c.b16 %v4870, %v4838
        %v5728 = vpack.c.b8 %v5727, %v5726
        %v5729 = vpack.c.b16 %v4807, %v4775
        %v5730 = vpack.c.b16 %v4871, %v4839
        %v5731 = vpack.c.b8 %v5730, %v5729
        %v5732 = vpack.c.b16 %v4808, %v4776
        %v5733 = vpack.c.b16 %v4872, %v4840
        %v5734 = vpack.c.b8 %v5733, %v5732
        %v5735 = vpack.c.b16 %v4809, %v4777
        %v5736 = vpack.c.b16 %v4873, %v4841
        %v5737 = vpack.c.b8 %v5736, %v5735
        %v5738 = vpack.c.b16 %v4906, %v4874
        %v5739 = vpack.c.b16 %v4970, %v4938
        %v5740 = vpack.c.b8 %v5739, %v5738
        %v5741 = vpack.c.b16 %v4907, %v4875
        %v5742 = vpack.c.b16 %v4971, %v4939
        %v5743 = vpack.c.b8 %v5742, %v5741
        %v5744 = vpack.c.b16 %v4908, %v4876
        %v5745 = vpack.c.b16 %v4972, %v4940
        %v5746 = vpack.c.b8 %v5745, %v5744
        %v5747 = vpack.c.b16 %v4909, %v4877
        %v5748 = vpack.c.b16 %v4973, %v4941
        %v5749 = vpack.c.b8 %v5748, %v5747
        %v5750 = vpack.c.b16 %v4910, %v4878
        %v5751 = vpack.c.b16 %v4974, %v4942
        %v5752 = vpack.c.b8 %v5751, %v5750
        %v5753 = vpack.c.b16 %v4911, %v4879
        %v5754 = vpack.c.b16 %v4975, %v4943
        %v5755 = vpack.c.b8 %v5754, %v5753
        %v5756 = vpack.c.b16 %v4912, %v4880
        %v5757 = vpack.c.b16 %v4976, %v4944
        %v5758 = vpack.c.b8 %v5757, %v5756
        %v5759 = vpack.c.b16 %v4913, %v4881
        %v5760 = vpack.c.b16 %v4977, %v4945
        %v5761 = vpack.c.b8 %v5760, %v5759
        %v5762 = vpack.c.b16 %v4914, %v4882
        %v5763 = vpack.c.b16 %v4978, %v4946
        %v5764 = vpack.c.b8 %v5763, %v5762
        %v5765 = vpack.c.b16 %v4915, %v4883
        %v5766 = vpack.c.b16 %v4979, %v4947
        %v5767 = vpack.c.b8 %v5766, %v5765
        %v5768 = vpack.c.b16 %v4916, %v4884
        %v5769 = vpack.c.b16 %v4980, %v4948
        %v5770 = vpack.c.b8 %v5769, %v5768
        %v5771 = vpack.c.b16 %v4917, %v4885
        %v5772 = vpack.c.b16 %v4981, %v4949
        %v5773 = vpack.c.b8 %v5772, %v5771
        %v5774 = vpack.c.b16 %v4918, %v4886
        %v5775 = vpack.c.b16 %v4982, %v4950
        %v5776 = vpack.c.b8 %v5775, %v5774
        %v5777 = vpack.c.b16 %v4919, %v4887
        %v5778 = vpack.c.b16 %v4983, %v4951
        %v5779 = vpack.c.b8 %v5778, %v5777
        %v5780 = vpack.c.b16 %v4920, %v4888
        %v5781 = vpack.c.b16 %v4984, %v4952
        %v5782 = vpack.c.b8 %v5781, %v5780
        %v5783 = vpack.c.b16 %v4921, %v4889
        %v5784 = vpack.c.b16 %v4985, %v4953
        %v5785 = vpack.c.b8 %v5784, %v5783
        %v5786 = vpack.c.b16 %v4922, %v4890
        %v5787 = vpack.c.b16 %v4986, %v4954
        %v5788 = vpack.c.b8 %v5787, %v5786
        %v5789 = vpack.c.b16 %v4923, %v4891
        %v5790 = vpack.c.b16 %v4987, %v4955
        %v5791 = vpack.c.b8 %v5790, %v5789
        %v5792 = vpack.c.b16 %v4924, %v4892
        %v5793 = vpack.c.b16 %v4988, %v4956
        %v5794 = vpack.c.b8 %v5793, %v5792
        %v5795 = vpack.c.b16 %v4925, %v4893
        %v5796 = vpack.c.b16 %v4989, %v4957
        %v5797 = vpack.c.b8 %v5796, %v5795
        %v5798 = vpack.c.b16 %v4926, %v4894
        %v5799 = vpack.c.b16 %v4990, %v4958
        %v5800 = vpack.c.b8 %v5799, %v5798
        %v5801 = vpack.c.b16 %v4927, %v4895
        %v5802 = vpack.c.b16 %v4991, %v4959
        %v5803 = vpack.c.b8 %v5802, %v5801
        %v5804 = vpack.c.b16 %v4928, %v4896
        %v5805 = vpack.c.b16 %v4992, %v4960
        %v5806 = vpack.c.b8 %v5805, %v5804
        %v5807 = vpack.c.b16 %v4929, %v4897
        %v5808 = vpack.c.b16 %v4993, %v4961
        %v5809 = vpack.c.b8 %v5808, %v5807
        %v5810 = vpack.c.b16 %v4930, %v4898
        %v5811 = vpack.c.b16 %v4994, %v4962
        %v5812 = vpack.c.b8 %v5811, %v5810
        %v5813 = vpack.c.b16 %v4931, %v4899
        %v5814 = vpack.c.b16 %v4995, %v4963
        %v5815 = vpack.c.b8 %v5814, %v5813
        %v5816 = vpack.c.b16 %v4932, %v4900
        %v5817 = vpack.c.b16 %v4996, %v4964
        %v5818 = vpack.c.b8 %v5817, %v5816
        %v5819 = vpack.c.b16 %v4933, %v4901
        %v5820 = vpack.c.b16 %v4997, %v4965
        %v5821 = vpack.c.b8 %v5820, %v5819
        %v5822 = vpack.c.b16 %v4934, %v4902
        %v5823 = vpack.c.b16 %v4998, %v4966
        %v5824 = vpack.c.b8 %v5823, %v5822
        %v5825 = vpack.c.b16 %v4935, %v4903
        %v5826 = vpack.c.b16 %v4999, %v4967
        %v5827 = vpack.c.b8 %v5826, %v5825
        %v5828 = vpack.c.b16 %v4936, %v4904
        %v5829 = vpack.c.b16 %v5000, %v4968
        %v5830 = vpack.c.b8 %v5829, %v5828
        %v5831 = vpack.c.b16 %v4937, %v4905
        %v5832 = vpack.c.b16 %v5001, %v4969
        %v5833 = vpack.c.b8 %v5832, %v5831
        %v5834 = vpack.c.b16 %v5034, %v5002
        %v5835 = vpack.c.b16 %v5098, %v5066
        %v5836 = vpack.c.b8 %v5835, %v5834
        %v5837 = vpack.c.b16 %v5035, %v5003
        %v5838 = vpack.c.b16 %v5099, %v5067
        %v5839 = vpack.c.b8 %v5838, %v5837
        %v5840 = vpack.c.b16 %v5036, %v5004
        %v5841 = vpack.c.b16 %v5100, %v5068
        %v5842 = vpack.c.b8 %v5841, %v5840
        %v5843 = vpack.c.b16 %v5037, %v5005
        %v5844 = vpack.c.b16 %v5101, %v5069
        %v5845 = vpack.c.b8 %v5844, %v5843
        %v5846 = vpack.c.b16 %v5038, %v5006
        %v5847 = vpack.c.b16 %v5102, %v5070
        %v5848 = vpack.c.b8 %v5847, %v5846
        %v5849 = vpack.c.b16 %v5039, %v5007
        %v5850 = vpack.c.b16 %v5103, %v5071
        %v5851 = vpack.c.b8 %v5850, %v5849
        %v5852 = vpack.c.b16 %v5040, %v5008
        %v5853 = vpack.c.b16 %v5104, %v5072
        %v5854 = vpack.c.b8 %v5853, %v5852
        %v5855 = vpack.c.b16 %v5041, %v5009
        %v5856 = vpack.c.b16 %v5105, %v5073
        %v5857 = vpack.c.b8 %v5856, %v5855
        %v5858 = vpack.c.b16 %v5042, %v5010
        %v5859 = vpack.c.b16 %v5106, %v5074
        %v5860 = vpack.c.b8 %v5859, %v5858
        %v5861 = vpack.c.b16 %v5043, %v5011
        %v5862 = vpack.c.b16 %v5107, %v5075
        %v5863 = vpack.c.b8 %v5862, %v5861
        %v5864 = vpack.c.b16 %v5044, %v5012
        %v5865 = vpack.c.b16 %v5108, %v5076
        %v5866 = vpack.c.b8 %v5865, %v5864
        %v5867 = vpack.c.b16 %v5045, %v5013
        %v5868 = vpack.c.b16 %v5109, %v5077
        %v5869 = vpack.c.b8 %v5868, %v5867
        %v5870 = vpack.c.b16 %v5046, %v5014
        %v5871 = vpack.c.b16 %v5110, %v5078
        %v5872 = vpack.c.b8 %v5871, %v5870
        %v5873 = vpack.c.b16 %v5047, %v5015
        %v5874 = vpack.c.b16 %v5111, %v5079
        %v5875 = vpack.c.b8 %v5874, %v5873
        %v5876 = vpack.c.b16 %v5048, %v5016
        %v5877 = vpack.c.b16 %v5112, %v5080
        %v5878 = vpack.c.b8 %v5877, %v5876
        %v5879 = vpack.c.b16 %v5049, %v5017
        %v5880 = vpack.c.b16 %v5113, %v5081
        %v5881 = vpack.c.b8 %v5880, %v5879
        %v5882 = vpack.c.b16 %v5050, %v5018
        %v5883 = vpack.c.b16 %v5114, %v5082
        %v5884 = vpack.c.b8 %v5883, %v5882
        %v5885 = vpack.c.b16 %v5051, %v5019
        %v5886 = vpack.c.b16 %v5115, %v5083
        %v5887 = vpack.c.b8 %v5886, %v5885
        %v5888 = vpack.c.b16 %v5052, %v5020
        %v5889 = vpack.c.b16 %v5116, %v5084
        %v5890 = vpack.c.b8 %v5889, %v5888
        %v5891 = vpack.c.b16 %v5053, %v5021
        %v5892 = vpack.c.b16 %v5117, %v5085
        %v5893 = vpack.c.b8 %v5892, %v5891
        %v5894 = vpack.c.b16 %v5054, %v5022
        %v5895 = vpack.c.b16 %v5118, %v5086
        %v5896 = vpack.c.b8 %v5895, %v5894
        %v5897 = vpack.c.b16 %v5055, %v5023
        %v5898 = vpack.c.b16 %v5119, %v5087
        %v5899 = vpack.c.b8 %v5898, %v5897
        %v5900 = vpack.c.b16 %v5056, %v5024
        %v5901 = vpack.c.b16 %v5120, %v5088
        %v5902 = vpack.c.b8 %v5901, %v5900
        %v5903 = vpack.c.b16 %v5057, %v5025
        %v5904 = vpack.c.b16 %v5121, %v5089
        %v5905 = vpack.c.b8 %v5904, %v5903
        %v5906 = vpack.c.b16 %v5058, %v5026
        %v5907 = vpack.c.b16 %v5122, %v5090
        %v5908 = vpack.c.b8 %v5907, %v5906
        %v5909 = vpack.c.b16 %v5059, %v5027
        %v5910 = vpack.c.b16 %v5123, %v5091
        %v5911 = vpack.c.b8 %v5910, %v5909
        %v5912 = vpack.c.b16 %v5060, %v5028
        %v5913 = vpack.c.b16 %v5124, %v5092
        %v5914 = vpack.c.b8 %v5913, %v5912
        %v5915 = vpack.c.b16 %v5061, %v5029
        %v5916 = vpack.c.b16 %v5125, %v5093
        %v5917 = vpack.c.b8 %v5916, %v5915
        %v5918 = vpack.c.b16 %v5062, %v5030
        %v5919 = vpack.c.b16 %v5126, %v5094
        %v5920 = vpack.c.b8 %v5919, %v5918
        %v5921 = vpack.c.b16 %v5063, %v5031
        %v5922 = vpack.c.b16 %v5127, %v5095
        %v5923 = vpack.c.b8 %v5922, %v5921
        %v5924 = vpack.c.b16 %v5064, %v5032
        %v5925 = vpack.c.b16 %v5128, %v5096
        %v5926 = vpack.c.b8 %v5925, %v5924
        %v5927 = vpack.c.b16 %v5065, %v5033
        %v5928 = vpack.c.b16 %v5129, %v5097
        %v5929 = vpack.c.b8 %v5928, %v5927
        %v5930 = vpack.c.b16 %v5162, %v5130
        %v5931 = vpack.c.b16 %v5226, %v5194
        %v5932 = vpack.c.b8 %v5931, %v5930
        %v5933 = vpack.c.b16 %v5163, %v5131
        %v5934 = vpack.c.b16 %v5227, %v5195
        %v5935 = vpack.c.b8 %v5934, %v5933
        %v5936 = vpack.c.b16 %v5164, %v5132
        %v5937 = vpack.c.b16 %v5228, %v5196
        %v5938 = vpack.c.b8 %v5937, %v5936
        %v5939 = vpack.c.b16 %v5165, %v5133
        %v5940 = vpack.c.b16 %v5229, %v5197
        %v5941 = vpack.c.b8 %v5940, %v5939
        %v5942 = vpack.c.b16 %v5166, %v5134
        %v5943 = vpack.c.b16 %v5230, %v5198
        %v5944 = vpack.c.b8 %v5943, %v5942
        %v5945 = vpack.c.b16 %v5167, %v5135
        %v5946 = vpack.c.b16 %v5231, %v5199
        %v5947 = vpack.c.b8 %v5946, %v5945
        %v5948 = vpack.c.b16 %v5168, %v5136
        %v5949 = vpack.c.b16 %v5232, %v5200
        %v5950 = vpack.c.b8 %v5949, %v5948
        %v5951 = vpack.c.b16 %v5169, %v5137
        %v5952 = vpack.c.b16 %v5233, %v5201
        %v5953 = vpack.c.b8 %v5952, %v5951
        %v5954 = vpack.c.b16 %v5170, %v5138
        %v5955 = vpack.c.b16 %v5234, %v5202
        %v5956 = vpack.c.b8 %v5955, %v5954
        %v5957 = vpack.c.b16 %v5171, %v5139
        %v5958 = vpack.c.b16 %v5235, %v5203
        %v5959 = vpack.c.b8 %v5958, %v5957
        %v5960 = vpack.c.b16 %v5172, %v5140
        %v5961 = vpack.c.b16 %v5236, %v5204
        %v5962 = vpack.c.b8 %v5961, %v5960
        %v5963 = vpack.c.b16 %v5173, %v5141
        %v5964 = vpack.c.b16 %v5237, %v5205
        %v5965 = vpack.c.b8 %v5964, %v5963
        %v5966 = vpack.c.b16 %v5174, %v5142
        %v5967 = vpack.c.b16 %v5238, %v5206
        %v5968 = vpack.c.b8 %v5967, %v5966
        %v5969 = vpack.c.b16 %v5175, %v5143
        %v5970 = vpack.c.b16 %v5239, %v5207
        %v5971 = vpack.c.b8 %v5970, %v5969
        %v5972 = vpack.c.b16 %v5176, %v5144
        %v5973 = vpack.c.b16 %v5240, %v5208
        %v5974 = vpack.c.b8 %v5973, %v5972
        %v5975 = vpack.c.b16 %v5177, %v5145
        %v5976 = vpack.c.b16 %v5241, %v5209
        %v5977 = vpack.c.b8 %v5976, %v5975
        %v5978 = vpack.c.b16 %v5178, %v5146
        %v5979 = vpack.c.b16 %v5242, %v5210
        %v5980 = vpack.c.b8 %v5979, %v5978
        %v5981 = vpack.c.b16 %v5179, %v5147
        %v5982 = vpack.c.b16 %v5243, %v5211
        %v5983 = vpack.c.b8 %v5982, %v5981
        %v5984 = vpack.c.b16 %v5180, %v5148
        %v5985 = vpack.c.b16 %v5244, %v5212
        %v5986 = vpack.c.b8 %v5985, %v5984
        %v5987 = vpack.c.b16 %v5181, %v5149
        %v5988 = vpack.c.b16 %v5245, %v5213
        %v5989 = vpack.c.b8 %v5988, %v5987
        %v5990 = vpack.c.b16 %v5182, %v5150
        %v5991 = vpack.c.b16 %v5246, %v5214
        %v5992 = vpack.c.b8 %v5991, %v5990
        %v5993 = vpack.c.b16 %v5183, %v5151
        %v5994 = vpack.c.b16 %v5247, %v5215
        %v5995 = vpack.c.b8 %v5994, %v5993
        %v5996 = vpack.c.b16 %v5184, %v5152
        %v5997 = vpack.c.b16 %v5248, %v5216
        %v5998 = vpack.c.b8 %v5997, %v5996
        %v5999 = vpack.c.b16 %v5185, %v5153
        %v6000 = vpack.c.b16 %v5249, %v5217
        %v6001 = vpack.c.b8 %v6000, %v5999
        %v6002 = vpack.c.b16 %v5186, %v5154
        %v6003 = vpack.c.b16 %v5250, %v5218
        %v6004 = vpack.c.b8 %v6003, %v6002
        %v6005 = vpack.c.b16 %v5187, %v5155
        %v6006 = vpack.c.b16 %v5251, %v5219
        %v6007 = vpack.c.b8 %v6006, %v6005
        %v6008 = vpack.c.b16 %v5188, %v5156
        %v6009 = vpack.c.b16 %v5252, %v5220
        %v6010 = vpack.c.b8 %v6009, %v6008
        %v6011 = vpack.c.b16 %v5189, %v5157
        %v6012 = vpack.c.b16 %v5253, %v5221
        %v6013 = vpack.c.b8 %v6012, %v6011
        %v6014 = vpack.c.b16 %v5190, %v5158
        %v6015 = vpack.c.b16 %v5254, %v5222
        %v6016 = vpack.c.b8 %v6015, %v6014
        %v6017 = vpack.c.b16 %v5191, %v5159
        %v6018 = vpack.c.b16 %v5255, %v5223
        %v6019 = vpack.c.b8 %v6018, %v6017
        %v6020 = vpack.c.b16 %v5192, %v5160
        %v6021 = vpack.c.b16 %v5256, %v5224
        %v6022 = vpack.c.b8 %v6021, %v6020
        %v6023 = vpack.c.b16 %v5193, %v5161
        %v6024 = vpack.c.b16 %v5257, %v5225
        %v6025 = vpack.c.b8 %v6024, %v6023
        %6026 = vst [vmem:[%s135] sm:$0xff] %v5260
        %6027 = vst [vmem:[%s135 + $0x8] sm:$0xff] %v5263
        %6028 = vst [vmem:[%s135 + $0x10] sm:$0xff] %v5266
        %6029 = vst [vmem:[%s135 + $0x18] sm:$0xff] %v5269
        %6030 = vst [vmem:[%s135 + $0x20] sm:$0xff] %v5272
        %6031 = vst [vmem:[%s135 + $0x28] sm:$0xff] %v5275
        %6032 = vst [vmem:[%s135 + $0x30] sm:$0xff] %v5278
        %6033 = vst [vmem:[%s135 + $0x38] sm:$0xff] %v5281
        %6034 = vst [vmem:[%s135 + $0x40] sm:$0xff] %v5284
        %6035 = vst [vmem:[%s135 + $0x48] sm:$0xff] %v5287
        %6036 = vst [vmem:[%s135 + $0x50] sm:$0xff] %v5290
        %6037 = vst [vmem:[%s135 + $0x58] sm:$0xff] %v5293
        %6038 = vst [vmem:[%s135 + $0x60] sm:$0xff] %v5296
        %6039 = vst [vmem:[%s135 + $0x68] sm:$0xff] %v5299
        %6040 = vst [vmem:[%s135 + $0x70] sm:$0xff] %v5302
        %6041 = vst [vmem:[%s135 + $0x78] sm:$0xff] %v5305
        %6042 = vst [vmem:[%s135 + $0x80] sm:$0xff] %v5308
        %6043 = vst [vmem:[%s135 + $0x88] sm:$0xff] %v5311
        %6044 = vst [vmem:[%s135 + $0x90] sm:$0xff] %v5314
        %6045 = vst [vmem:[%s135 + $0x98] sm:$0xff] %v5317
        %6046 = vst [vmem:[%s135 + $0xa0] sm:$0xff] %v5320
        %6047 = vst [vmem:[%s135 + $0xa8] sm:$0xff] %v5323
        %6048 = vst [vmem:[%s135 + $0xb0] sm:$0xff] %v5326
        %6049 = vst [vmem:[%s135 + $0xb8] sm:$0xff] %v5329
        %6050 = vst [vmem:[%s135 + $0xc0] sm:$0xff] %v5332
        %6051 = vst [vmem:[%s135 + $0xc8] sm:$0xff] %v5335
        %6052 = vst [vmem:[%s135 + $0xd0] sm:$0xff] %v5338
        %6053 = vst [vmem:[%s135 + $0xd8] sm:$0xff] %v5341
        %6054 = vst [vmem:[%s135 + $0xe0] sm:$0xff] %v5344
        %6055 = vst [vmem:[%s135 + $0xe8] sm:$0xff] %v5347
        %6056 = vst [vmem:[%s135 + $0xf0] sm:$0xff] %v5350
        %6057 = vst [vmem:[%s135 + $0xf8] sm:$0xff] %v5353
        %6058 = vst [vmem:[%s135 + $0x100] sm:$0xff] %v5356
        %6059 = vst [vmem:[%s135 + $0x108] sm:$0xff] %v5359
        %6060 = vst [vmem:[%s135 + $0x110] sm:$0xff] %v5362
        %6061 = vst [vmem:[%s135 + $0x118] sm:$0xff] %v5365
        %6062 = vst [vmem:[%s135 + $0x120] sm:$0xff] %v5368
        %6063 = vst [vmem:[%s135 + $0x128] sm:$0xff] %v5371
        %6064 = vst [vmem:[%s135 + $0x130] sm:$0xff] %v5374
        %6065 = vst [vmem:[%s135 + $0x138] sm:$0xff] %v5377
        %6066 = vst [vmem:[%s135 + $0x140] sm:$0xff] %v5380
        %6067 = vst [vmem:[%s135 + $0x148] sm:$0xff] %v5383
        %6068 = vst [vmem:[%s135 + $0x150] sm:$0xff] %v5386
        %6069 = vst [vmem:[%s135 + $0x158] sm:$0xff] %v5389
        %6070 = vst [vmem:[%s135 + $0x160] sm:$0xff] %v5392
        %6071 = vst [vmem:[%s135 + $0x168] sm:$0xff] %v5395
        %6072 = vst [vmem:[%s135 + $0x170] sm:$0xff] %v5398
        %6073 = vst [vmem:[%s135 + $0x178] sm:$0xff] %v5401
        %6074 = vst [vmem:[%s135 + $0x180] sm:$0xff] %v5404
        %6075 = vst [vmem:[%s135 + $0x188] sm:$0xff] %v5407
        %6076 = vst [vmem:[%s135 + $0x190] sm:$0xff] %v5410
        %6077 = vst [vmem:[%s135 + $0x198] sm:$0xff] %v5413
        %6078 = vst [vmem:[%s135 + $0x1a0] sm:$0xff] %v5416
        %6079 = vst [vmem:[%s135 + $0x1a8] sm:$0xff] %v5419
        %6080 = vst [vmem:[%s135 + $0x1b0] sm:$0xff] %v5422
        %6081 = vst [vmem:[%s135 + $0x1b8] sm:$0xff] %v5425
        %6082 = vst [vmem:[%s135 + $0x1c0] sm:$0xff] %v5428
        %6083 = vst [vmem:[%s135 + $0x1c8] sm:$0xff] %v5431
        %6084 = vst [vmem:[%s135 + $0x1d0] sm:$0xff] %v5434
        %6085 = vst [vmem:[%s135 + $0x1d8] sm:$0xff] %v5437
        %6086 = vst [vmem:[%s135 + $0x1e0] sm:$0xff] %v5440
        %6087 = vst [vmem:[%s135 + $0x1e8] sm:$0xff] %v5443
        %6088 = vst [vmem:[%s135 + $0x1f0] sm:$0xff] %v5446
        %6089 = vst [vmem:[%s135 + $0x1f8] sm:$0xff] %v5449
        %6090 = vst [vmem:[%s135 + $0x200] sm:$0xff] %v5452
        %6091 = vst [vmem:[%s135 + $0x208] sm:$0xff] %v5455
        %6092 = vst [vmem:[%s135 + $0x210] sm:$0xff] %v5458
        %6093 = vst [vmem:[%s135 + $0x218] sm:$0xff] %v5461
        %6094 = vst [vmem:[%s135 + $0x220] sm:$0xff] %v5464
        %6095 = vst [vmem:[%s135 + $0x228] sm:$0xff] %v5467
        %6096 = vst [vmem:[%s135 + $0x230] sm:$0xff] %v5470
        %6097 = vst [vmem:[%s135 + $0x238] sm:$0xff] %v5473
        %6098 = vst [vmem:[%s135 + $0x240] sm:$0xff] %v5476
        %6099 = vst [vmem:[%s135 + $0x248] sm:$0xff] %v5479
        %6100 = vst [vmem:[%s135 + $0x250] sm:$0xff] %v5482
        %6101 = vst [vmem:[%s135 + $0x258] sm:$0xff] %v5485
        %6102 = vst [vmem:[%s135 + $0x260] sm:$0xff] %v5488
        %6103 = vst [vmem:[%s135 + $0x268] sm:$0xff] %v5491
        %6104 = vst [vmem:[%s135 + $0x270] sm:$0xff] %v5494
        %6105 = vst [vmem:[%s135 + $0x278] sm:$0xff] %v5497
        %6106 = vst [vmem:[%s135 + $0x280] sm:$0xff] %v5500
        %6107 = vst [vmem:[%s135 + $0x288] sm:$0xff] %v5503
        %6108 = vst [vmem:[%s135 + $0x290] sm:$0xff] %v5506
        %6109 = vst [vmem:[%s135 + $0x298] sm:$0xff] %v5509
        %6110 = vst [vmem:[%s135 + $0x2a0] sm:$0xff] %v5512
        %6111 = vst [vmem:[%s135 + $0x2a8] sm:$0xff] %v5515
        %6112 = vst [vmem:[%s135 + $0x2b0] sm:$0xff] %v5518
        %6113 = vst [vmem:[%s135 + $0x2b8] sm:$0xff] %v5521
        %6114 = vst [vmem:[%s135 + $0x2c0] sm:$0xff] %v5524
        %6115 = vst [vmem:[%s135 + $0x2c8] sm:$0xff] %v5527
        %6116 = vst [vmem:[%s135 + $0x2d0] sm:$0xff] %v5530
        %6117 = vst [vmem:[%s135 + $0x2d8] sm:$0xff] %v5533
        %6118 = vst [vmem:[%s135 + $0x2e0] sm:$0xff] %v5536
        %6119 = vst [vmem:[%s135 + $0x2e8] sm:$0xff] %v5539
        %6120 = vst [vmem:[%s135 + $0x2f0] sm:$0xff] %v5542
        %6121 = vst [vmem:[%s135 + $0x2f8] sm:$0xff] %v5545
        %6122 = vst [vmem:[%s135 + $0x300] sm:$0xff] %v5548
        %6123 = vst [vmem:[%s135 + $0x308] sm:$0xff] %v5551
        %6124 = vst [vmem:[%s135 + $0x310] sm:$0xff] %v5554
        %6125 = vst [vmem:[%s135 + $0x318] sm:$0xff] %v5557
        %6126 = vst [vmem:[%s135 + $0x320] sm:$0xff] %v5560
        %6127 = vst [vmem:[%s135 + $0x328] sm:$0xff] %v5563
        %6128 = vst [vmem:[%s135 + $0x330] sm:$0xff] %v5566
        %6129 = vst [vmem:[%s135 + $0x338] sm:$0xff] %v5569
        %6130 = vst [vmem:[%s135 + $0x340] sm:$0xff] %v5572
        %6131 = vst [vmem:[%s135 + $0x348] sm:$0xff] %v5575
        %6132 = vst [vmem:[%s135 + $0x350] sm:$0xff] %v5578
        %6133 = vst [vmem:[%s135 + $0x358] sm:$0xff] %v5581
        %6134 = vst [vmem:[%s135 + $0x360] sm:$0xff] %v5584
        %6135 = vst [vmem:[%s135 + $0x368] sm:$0xff] %v5587
        %6136 = vst [vmem:[%s135 + $0x370] sm:$0xff] %v5590
        %6137 = vst [vmem:[%s135 + $0x378] sm:$0xff] %v5593
        %6138 = vst [vmem:[%s135 + $0x380] sm:$0xff] %v5596
        %6139 = vst [vmem:[%s135 + $0x388] sm:$0xff] %v5599
        %6140 = vst [vmem:[%s135 + $0x390] sm:$0xff] %v5602
        %6141 = vst [vmem:[%s135 + $0x398] sm:$0xff] %v5605
        %6142 = vst [vmem:[%s135 + $0x3a0] sm:$0xff] %v5608
        %6143 = vst [vmem:[%s135 + $0x3a8] sm:$0xff] %v5611
        %6144 = vst [vmem:[%s135 + $0x3b0] sm:$0xff] %v5614
        %6145 = vst [vmem:[%s135 + $0x3b8] sm:$0xff] %v5617
        %6146 = vst [vmem:[%s135 + $0x3c0] sm:$0xff] %v5620
        %6147 = vst [vmem:[%s135 + $0x3c8] sm:$0xff] %v5623
        %6148 = vst [vmem:[%s135 + $0x3d0] sm:$0xff] %v5626
        %6149 = vst [vmem:[%s135 + $0x3d8] sm:$0xff] %v5629
        %6150 = vst [vmem:[%s135 + $0x3e0] sm:$0xff] %v5632
        %6151 = vst [vmem:[%s135 + $0x3e8] sm:$0xff] %v5635
        %6152 = vst [vmem:[%s135 + $0x3f0] sm:$0xff] %v5638
        %6153 = vst [vmem:[%s135 + $0x3f8] sm:$0xff] %v5641
        %6154 = vst [vmem:[%s135 + $0x400] sm:$0xff] %v5644
        %6155 = vst [vmem:[%s135 + $0x408] sm:$0xff] %v5647
        %6156 = vst [vmem:[%s135 + $0x410] sm:$0xff] %v5650
        %6157 = vst [vmem:[%s135 + $0x418] sm:$0xff] %v5653
        %6158 = vst [vmem:[%s135 + $0x420] sm:$0xff] %v5656
        %6159 = vst [vmem:[%s135 + $0x428] sm:$0xff] %v5659
        %6160 = vst [vmem:[%s135 + $0x430] sm:$0xff] %v5662
        %6161 = vst [vmem:[%s135 + $0x438] sm:$0xff] %v5665
        %6162 = vst [vmem:[%s135 + $0x440] sm:$0xff] %v5668
        %6163 = vst [vmem:[%s135 + $0x448] sm:$0xff] %v5671
        %6164 = vst [vmem:[%s135 + $0x450] sm:$0xff] %v5674
        %6165 = vst [vmem:[%s135 + $0x458] sm:$0xff] %v5677
        %6166 = vst [vmem:[%s135 + $0x460] sm:$0xff] %v5680
        %6167 = vst [vmem:[%s135 + $0x468] sm:$0xff] %v5683
        %6168 = vst [vmem:[%s135 + $0x470] sm:$0xff] %v5686
        %6169 = vst [vmem:[%s135 + $0x478] sm:$0xff] %v5689
        %6170 = vst [vmem:[%s135 + $0x480] sm:$0xff] %v5692
        %6171 = vst [vmem:[%s135 + $0x488] sm:$0xff] %v5695
        %6172 = vst [vmem:[%s135 + $0x490] sm:$0xff] %v5698
        %6173 = vst [vmem:[%s135 + $0x498] sm:$0xff] %v5701
        %6174 = vst [vmem:[%s135 + $0x4a0] sm:$0xff] %v5704
        %6175 = vst [vmem:[%s135 + $0x4a8] sm:$0xff] %v5707
        %6176 = vst [vmem:[%s135 + $0x4b0] sm:$0xff] %v5710
        %6177 = vst [vmem:[%s135 + $0x4b8] sm:$0xff] %v5713
        %6178 = vst [vmem:[%s135 + $0x4c0] sm:$0xff] %v5716
        %6179 = vst [vmem:[%s135 + $0x4c8] sm:$0xff] %v5719
        %6180 = vst [vmem:[%s135 + $0x4d0] sm:$0xff] %v5722
        %6181 = vst [vmem:[%s135 + $0x4d8] sm:$0xff] %v5725
        %6182 = vst [vmem:[%s135 + $0x4e0] sm:$0xff] %v5728
        %6183 = vst [vmem:[%s135 + $0x4e8] sm:$0xff] %v5731
        %6184 = vst [vmem:[%s135 + $0x4f0] sm:$0xff] %v5734
        %6185 = vst [vmem:[%s135 + $0x4f8] sm:$0xff] %v5737
        %6186 = vst [vmem:[%s135 + $0x500] sm:$0xff] %v5740
        %6187 = vst [vmem:[%s135 + $0x508] sm:$0xff] %v5743
        %6188 = vst [vmem:[%s135 + $0x510] sm:$0xff] %v5746
        %6189 = vst [vmem:[%s135 + $0x518] sm:$0xff] %v5749
        %6190 = vst [vmem:[%s135 + $0x520] sm:$0xff] %v5752
        %6191 = vst [vmem:[%s135 + $0x528] sm:$0xff] %v5755
        %6192 = vst [vmem:[%s135 + $0x530] sm:$0xff] %v5758
        %6193 = vst [vmem:[%s135 + $0x538] sm:$0xff] %v5761
        %6194 = vst [vmem:[%s135 + $0x540] sm:$0xff] %v5764
        %6195 = vst [vmem:[%s135 + $0x548] sm:$0xff] %v5767
        %6196 = vst [vmem:[%s135 + $0x550] sm:$0xff] %v5770
        %6197 = vst [vmem:[%s135 + $0x558] sm:$0xff] %v5773
        %6198 = vst [vmem:[%s135 + $0x560] sm:$0xff] %v5776
        %6199 = vst [vmem:[%s135 + $0x568] sm:$0xff] %v5779
        %6200 = vst [vmem:[%s135 + $0x570] sm:$0xff] %v5782
        %6201 = vst [vmem:[%s135 + $0x578] sm:$0xff] %v5785
        %6202 = vst [vmem:[%s135 + $0x580] sm:$0xff] %v5788
        %6203 = vst [vmem:[%s135 + $0x588] sm:$0xff] %v5791
        %6204 = vst [vmem:[%s135 + $0x590] sm:$0xff] %v5794
        %6205 = vst [vmem:[%s135 + $0x598] sm:$0xff] %v5797
        %6206 = vst [vmem:[%s135 + $0x5a0] sm:$0xff] %v5800
        %6207 = vst [vmem:[%s135 + $0x5a8] sm:$0xff] %v5803
        %6208 = vst [vmem:[%s135 + $0x5b0] sm:$0xff] %v5806
        %6209 = vst [vmem:[%s135 + $0x5b8] sm:$0xff] %v5809
        %6210 = vst [vmem:[%s135 + $0x5c0] sm:$0xff] %v5812
        %6211 = vst [vmem:[%s135 + $0x5c8] sm:$0xff] %v5815
        %6212 = vst [vmem:[%s135 + $0x5d0] sm:$0xff] %v5818
        %6213 = vst [vmem:[%s135 + $0x5d8] sm:$0xff] %v5821
        %6214 = vst [vmem:[%s135 + $0x5e0] sm:$0xff] %v5824
        %6215 = vst [vmem:[%s135 + $0x5e8] sm:$0xff] %v5827
        %6216 = vst [vmem:[%s135 + $0x5f0] sm:$0xff] %v5830
        %6217 = vst [vmem:[%s135 + $0x5f8] sm:$0xff] %v5833
        %6218 = vst [vmem:[%s135 + $0x600] sm:$0xff] %v5836
        %6219 = vst [vmem:[%s135 + $0x608] sm:$0xff] %v5839
        %6220 = vst [vmem:[%s135 + $0x610] sm:$0xff] %v5842
        %6221 = vst [vmem:[%s135 + $0x618] sm:$0xff] %v5845
        %6222 = vst [vmem:[%s135 + $0x620] sm:$0xff] %v5848
        %6223 = vst [vmem:[%s135 + $0x628] sm:$0xff] %v5851
        %6224 = vst [vmem:[%s135 + $0x630] sm:$0xff] %v5854
        %6225 = vst [vmem:[%s135 + $0x638] sm:$0xff] %v5857
        %6226 = vst [vmem:[%s135 + $0x640] sm:$0xff] %v5860
        %6227 = vst [vmem:[%s135 + $0x648] sm:$0xff] %v5863
        %6228 = vst [vmem:[%s135 + $0x650] sm:$0xff] %v5866
        %6229 = vst [vmem:[%s135 + $0x658] sm:$0xff] %v5869
        %6230 = vst [vmem:[%s135 + $0x660] sm:$0xff] %v5872
        %6231 = vst [vmem:[%s135 + $0x668] sm:$0xff] %v5875
        %6232 = vst [vmem:[%s135 + $0x670] sm:$0xff] %v5878
        %6233 = vst [vmem:[%s135 + $0x678] sm:$0xff] %v5881
        %6234 = vst [vmem:[%s135 + $0x680] sm:$0xff] %v5884
        %6235 = vst [vmem:[%s135 + $0x688] sm:$0xff] %v5887
        %6236 = vst [vmem:[%s135 + $0x690] sm:$0xff] %v5890
        %6237 = vst [vmem:[%s135 + $0x698] sm:$0xff] %v5893
        %6238 = vst [vmem:[%s135 + $0x6a0] sm:$0xff] %v5896
        %6239 = vst [vmem:[%s135 + $0x6a8] sm:$0xff] %v5899
        %6240 = vst [vmem:[%s135 + $0x6b0] sm:$0xff] %v5902
        %6241 = vst [vmem:[%s135 + $0x6b8] sm:$0xff] %v5905
        %6242 = vst [vmem:[%s135 + $0x6c0] sm:$0xff] %v5908
        %6243 = vst [vmem:[%s135 + $0x6c8] sm:$0xff] %v5911
        %6244 = vst [vmem:[%s135 + $0x6d0] sm:$0xff] %v5914
        %6245 = vst [vmem:[%s135 + $0x6d8] sm:$0xff] %v5917
        %6246 = vst [vmem:[%s135 + $0x6e0] sm:$0xff] %v5920
        %6247 = vst [vmem:[%s135 + $0x6e8] sm:$0xff] %v5923
        %6248 = vst [vmem:[%s135 + $0x6f0] sm:$0xff] %v5926
        %6249 = vst [vmem:[%s135 + $0x6f8] sm:$0xff] %v5929
        %6250 = vst [vmem:[%s135 + $0x700] sm:$0xff] %v5932
        %6251 = vst [vmem:[%s135 + $0x708] sm:$0xff] %v5935
        %6252 = vst [vmem:[%s135 + $0x710] sm:$0xff] %v5938
        %6253 = vst [vmem:[%s135 + $0x718] sm:$0xff] %v5941
        %6254 = vst [vmem:[%s135 + $0x720] sm:$0xff] %v5944
        %6255 = vst [vmem:[%s135 + $0x728] sm:$0xff] %v5947
        %6256 = vst [vmem:[%s135 + $0x730] sm:$0xff] %v5950
        %6257 = vst [vmem:[%s135 + $0x738] sm:$0xff] %v5953
        %6258 = vst [vmem:[%s135 + $0x740] sm:$0xff] %v5956
        %6259 = vst [vmem:[%s135 + $0x748] sm:$0xff] %v5959
        %6260 = vst [vmem:[%s135 + $0x750] sm:$0xff] %v5962
        %6261 = vst [vmem:[%s135 + $0x758] sm:$0xff] %v5965
        %6262 = vst [vmem:[%s135 + $0x760] sm:$0xff] %v5968
        %6263 = vst [vmem:[%s135 + $0x768] sm:$0xff] %v5971
        %6264 = vst [vmem:[%s135 + $0x770] sm:$0xff] %v5974
        %6265 = vst [vmem:[%s135 + $0x778] sm:$0xff] %v5977
        %6266 = vst [vmem:[%s135 + $0x780] sm:$0xff] %v5980
        %6267 = vst [vmem:[%s135 + $0x788] sm:$0xff] %v5983
        %6268 = vst [vmem:[%s135 + $0x790] sm:$0xff] %v5986
        %6269 = vst [vmem:[%s135 + $0x798] sm:$0xff] %v5989
        %6270 = vst [vmem:[%s135 + $0x7a0] sm:$0xff] %v5992
        %6271 = vst [vmem:[%s135 + $0x7a8] sm:$0xff] %v5995
        %6272 = vst [vmem:[%s135 + $0x7b0] sm:$0xff] %v5998
        %6273 = vst [vmem:[%s135 + $0x7b8] sm:$0xff] %v6001
        %6274 = vst [vmem:[%s135 + $0x7c0] sm:$0xff] %v6004
        %6275 = vst [vmem:[%s135 + $0x7c8] sm:$0xff] %v6007
        %6276 = vst [vmem:[%s135 + $0x7d0] sm:$0xff] %v6010
        %6277 = vst [vmem:[%s135 + $0x7d8] sm:$0xff] %v6013
        %6278 = vst [vmem:[%s135 + $0x7e0] sm:$0xff] %v6016
        %6279 = vst [vmem:[%s135 + $0x7e8] sm:$0xff] %v6019
        %6280 = vst [vmem:[%s135 + $0x7f0] sm:$0xff] %v6022
        %6281 = vst [vmem:[%s135 + $0x7f8] sm:$0xff] %v6025
        %s6282 = sand.u32 %s52, 1
        %s6283 = scalar_lea.sflag [#allocation4], %s6282
        %s6284 = sand.u32 %s52, 1
        %s6285 = smul.addr %s6284, 2048
        %s6286 = scalar_lea.vmem [#allocation5], %s6285
        // Predicated region
        $region29: #{tpu_custom_call.1} parent=23 // pred_check
          %p6287 = pneg %p62
        $region30: #{tpu_custom_call.1} parent=23 // pred_check_branch
          %6289 = sbr.rel (%p6287) target = $region32
        $region31: #{tpu_custom_call.1} parent=23 // pred_region
          %s6290 = smul.u32 8, %s18
          %s6292 = ssub.s32 32768, 32768
          %6293 = vsyncadd %s6283, %s6292
          %s6294 = smul.addr %s6290, 32
          %s6295 = smul.addr %s6294, 128
          %s6296 = scalar_lea.hbm %s1, %s6295
          %s6297 = sshll.u32 %s6286, 4
          %s6298 = int_to_ptr.vmem [resolvable:$true] %s6297
          %6303 = dma.vmem_to_hbm [thread:$0]  %s6298, 32768, %s6296, %s6283, 4096, 4096, 256
        $region32: #{tpu_custom_call.1} parent=23 // pred_fallthru
          _
      $region24: #{tpu_custom_call.1} parent=5 // pred_fallthru
        _
      %p6304 = scmp.le.s32.totalorder 2, %s13
      // Predicated region
      $region33: #{tpu_custom_call.1} parent=5 // pred_check
        %p6305 = pneg %p6304
      $region34: #{tpu_custom_call.1} parent=5 // pred_check_branch
        %6307 = sbr.rel (%p6305) target = $region36
      $region35: #{tpu_custom_call.1} parent=5 // pred_region
        %s6308 = ssub.s32 %s13, 2
        // Predicated region
        $region37: #{tpu_custom_call.1} parent=35 // pred_check
          %p6309 = pneg %p68
        $region38: #{tpu_custom_call.1} parent=35 // pred_check_branch
          %6311 = sbr.rel (%p6309) target = $region40
        $region39: #{tpu_custom_call.1} parent=35 // pred_region
          %s6312 = sand.u32 %s53, 1
          %s6313 = scalar_lea.sflag [#allocation4], %s6312
          %s6314 = sand.u32 %s53, 1
          %s6315 = smul.addr %s6314, 2048
          %s6316 = scalar_lea.vmem [#allocation5], %s6315
          %6317 = dma.done %s6313, 32768
        $region40: #{tpu_custom_call.1} parent=35 // pred_fallthru
          _
      $region36: #{tpu_custom_call.1} parent=5 // pred_fallthru
        _
    $region6: #{tpu_custom_call.1} parent=1 // loop_footer
      %s17 = sadd.s32 1, %s13
    $region7: #{tpu_custom_call.1} parent=1 // loop_footer_branch
      %12 = sbr.rel target = $region3
    $region8: #{tpu_custom_call.1} parent=1 // loop_exit
      _
    %6318 = vsyncpa [#allocation3], 1
    %s6319 = scalar_lea.sflag [#allocation3], 1
    %6320 = vsyncpa %s6319, 1
    %6321 = vsyncpa [#allocation4], 1
    %s6322 = scalar_lea.sflag [#allocation4], 1
    %6323 = vsyncpa %s6322, 1

</llo_original>
